<compile_context>
chip_gen: v7x
topology: tpu7x:2x2x1
jax: 0.10.0
libtpu: 0.0.40
codegen_flags: <defaults>
</compile_context>

<pallas_src>
import functools

import jax
import jax.numpy as jnp
from jax import lax
from jax.experimental import pallas as pl
from jax.experimental.pallas import tpu as pltpu


def _round_up(x, m):
    return (x + m - 1) // m * m


def _vmem_capacity():
    """Physical per-core VMEM in bytes (64 MiB fallback = safe on every chip)."""
    try:
        return int(pltpu.get_tpu_info().vmem_capacity_bytes)
    except Exception:
        return 64 * 1024 * 1024


def _default_batch_shards():
    """2 on multi-TensorCore chips (v4/v5p/v7x), else 1 (don't serialize the
    latency-bound recurrence twice on single-core chips)."""
    try:
        kind = jax.devices()[0].device_kind.lower()
    except Exception:
        return 1
    if ("v4" in kind) or ("v5p" in kind) or ("v7" in kind) or ("7x" in kind):
        return 2
    return 1


# ---------------------------------------------------------------------------
# Generic tiled Linear kernel:  y = cast(x) @ w_t + b    (w_t pre-transposed)
# Used for (a) the hoisted layer-0 input projection and (b) the output layer.
# ---------------------------------------------------------------------------
def _linear_kernel(x_ref, w_ref, b_ref, o_ref):
    acc = jnp.dot(x_ref[...].astype(w_ref.dtype), w_ref[...],
                  preferred_element_type=jnp.float32) + b_ref[...]
    o_ref[...] = acc.astype(o_ref.dtype)


def linear_pallas(x2d, w_t, b, *, out_dtype=jnp.float32, block_n=None, block_v=None):
    """x2d: (N, K), w_t: (K, V) (compute dtype, e.g. bf16), b: (V,) f32."""
    N, K = x2d.shape
    V = w_t.shape[1]
    cap = _vmem_capacity()
    # Big lane-dense tiles on 128 MiB chips (v5e/v6e); smaller on v7x (64 MiB).
    if block_n is None:
        block_n = 512 if cap >= 100 * (1 << 20) else 256
    if block_v is None:
        block_v = 2048 if cap >= 100 * (1 << 20) else 1024

    TN = min(block_n, _round_up(N, 16))        # sublane-full rows (bf16-safe)
    TV = min(block_v, _round_up(V, 128))       # lane-dense columns
    Np = _round_up(N, TN)
    Vp = _round_up(V, TV)

    x_p = jnp.pad(x2d, ((0, Np - N), (0, 0)))  # cast to compute dtype in-kernel
    w_p = jnp.pad(w_t, ((0, 0), (0, Vp - V)))
    b_p = jnp.pad(b, (0, Vp - V)).reshape(1, Vp).astype(jnp.float32)

    # Grid order: stream the LARGER operand exactly once (inner axis revisits
    # the smaller one); the Pallas pipeline skips re-fetch on unchanged blocks.
    x_bytes = Np * K * x_p.dtype.itemsize
    w_bytes = K * Vp * w_p.dtype.itemsize
    if w_bytes >= x_bytes:
        grid = (Vp // TV, Np // TN)            # rows innermost: weights once
        x_map = lambda v, n: (n, 0)
        w_map = lambda v, n: (0, v)
        b_map = lambda v, n: (0, v)
        o_map = lambda v, n: (n, v)
    else:
        grid = (Np // TN, Vp // TV)            # vocab innermost: x once
        x_map = lambda n, v: (n, 0)
        w_map = lambda n, v: (0, v)
        b_map = lambda n, v: (0, v)
        o_map = lambda n, v: (n, v)

    buf_bytes = 2 * (TN * K * x_p.dtype.itemsize
                     + K * TV * w_p.dtype.itemsize
                     + TV * 4
                     + TN * TV * jnp.dtype(out_dtype).itemsize)
    vmem_limit = int(min(max(buf_bytes + (8 << 20), 32 * 1024 * 1024), cap))

    out = pl.pallas_call(
        _linear_kernel,
        out_shape=jax.ShapeDtypeStruct((Np, Vp), out_dtype),
        grid_spec=pltpu.PrefetchScalarGridSpec(
            num_scalar_prefetch=0,
            grid=grid,
            in_specs=[
                pl.BlockSpec((TN, K), x_map),
                pl.BlockSpec((K, TV), w_map),
                pl.BlockSpec((1, TV), b_map),
            ],
            out_specs=pl.BlockSpec((TN, TV), o_map),
        ),
        compiler_params=pltpu.CompilerParams(
            dimension_semantics=("parallel", "parallel"),
            vmem_limit_bytes=vmem_limit,
        ),
    )(x_p, w_p, b_p)
    return out[:N, :V]


# ---------------------------------------------------------------------------
# Fused multi-layer LSTM recurrence.
#   grid = (batch_shards, Tp // time_chunk)   ("parallel", "arbitrary")
#   Streamed in : layer-0 pre-projected gates  xproj (Tp, Bp, 4Hp) bf16
#   Resident    : recurrent weights (bf16), copied HBM -> VMEM once per core
#   Scratch     : per-layer h/c state (f32), persists across time grid steps
#   Streamed out: top-layer hidden states y (Tp, Bp, Hp) bf16
# ---------------------------------------------------------------------------
def _make_stack_kernel(num_layers, hidden_p, time_chunk, compute_dtype, unroll):
    Hp = hidden_p
    GH = 4 * Hp

    def cell(gates, c_prev):
        i_g = jax.nn.sigmoid(gates[:, 0 * Hp:1 * Hp])
        f_g = jax.nn.sigmoid(gates[:, 1 * Hp:2 * Hp])
        g_g = jnp.tanh(gates[:, 2 * Hp:3 * Hp])
        o_g = jax.nn.sigmoid(gates[:, 3 * Hp:4 * Hp])
        c_new = f_g * c_prev + i_g * g_g
        h_new = o_g * jnp.tanh(c_new)
        return h_new, c_new

    def kernel(xproj_ref, whh_hbm, wih_hbm, bias_ref, y_ref,
               whh_vmem, wih_vmem, h_sc, c_sc, dma_sem):
        @pl.when(pl.program_id(1) == 0)
        def _init():
            # Start the (constant) weight DMAs first so they overlap with the
            # state zero-fill; wait only after the zeroing is issued.
            cp0 = pltpu.make_async_copy(whh_hbm, whh_vmem, dma_sem.at[0])
            cp0.start()
            if num_layers > 1:
                cp1 = pltpu.make_async_copy(wih_hbm, wih_vmem, dma_sem.at[1])
                cp1.start()
            h_sc[...] = jnp.zeros(h_sc.shape, h_sc.dtype)
            c_sc[...] = jnp.zeros(c_sc.shape, c_sc.dtype)
            cp0.wait()
            if num_layers > 1:
                cp1.wait()

        Bc = h_sc.shape[1]
        # Hoist per-layer bias broadcasts out of the time loop (JAX won't CSE).
        biases = [jnp.broadcast_to(bias_ref[l - 1].reshape(1, GH), (Bc, GH))
                  for l in range(1, num_layers)]

        def step(t, carry):
            # ---- layer 0: input projection hoisted; only the (Bc,Hp)x(Hp,4Hp)
            #      recurrent matmul is on the per-step critical path.
            gates = xproj_ref[t].astype(jnp.float32) + jnp.dot(
                h_sc[0].astype(compute_dtype), whh_vmem[0],
                preferred_element_type=jnp.float32)
            h_new, c_new = cell(gates, c_sc[0])
            h_sc[0] = h_new
            c_sc[0] = c_new
            h_below = h_new

            # ---- layers 1..L-1: two accumulating MXU dots, no concat copy.
            for l in range(1, num_layers):
                gates = (
                    jnp.dot(h_below.astype(compute_dtype), wih_vmem[l - 1],
                            preferred_element_type=jnp.float32)
                    + jnp.dot(h_sc[l].astype(compute_dtype), whh_vmem[l],
                              preferred_element_type=jnp.float32)
                    + biases[l - 1]
                )
                h_new, c_new = cell(gates, c_sc[l])
                h_sc[l] = h_new
                c_sc[l] = c_new
                h_below = h_new

            y_ref[t] = h_below.astype(y_ref.dtype)
            return carry

        lax.fori_loop(0, time_chunk, step, 0, unroll=unroll)

    return kernel


def lstm_stack_pallas(xproj, prepared, num_layers, time_chunk, batch_shards):
    """xproj: (Tp, Bp, 4Hp) bf16 (layer-0 gates, bias folded in) -> (Tp, Bp, Hp) bf16."""
    Tp, Bp, GH = xproj.shape
    Hp = GH // 4
    Bc = Bp // batch_shards
    Lm1 = max(num_layers - 1, 1)
    cd = prepared["whh_t"].dtype
    unroll = min(time_chunk, 8)                # bounded unroll: vreg pressure

    kernel = _make_stack_kernel(num_layers, Hp, time_chunk, cd, unroll)

    # Honest VMEM budget, clamped to physical capacity (64 MiB on v7x).
    itemsize = jnp.dtype(cd).itemsize
    stream_bytes = 2 * time_chunk * Bc * (GH + Hp) * 2        # bf16 xproj+y dbl buf
    weight_bytes = (num_layers + Lm1) * Hp * GH * itemsize    # resident weights
    state_bytes = 2 * num_layers * Bc * Hp * 4                # h / c (f32)
    bias_bytes = 2 * Lm1 * GH * 4
    vmem_bytes = stream_bytes + weight_bytes + state_bytes + bias_bytes + (6 << 20)
    vmem_limit = int(min(max(vmem_bytes, 32 * 1024 * 1024), _vmem_capacity()))

    return pl.pallas_call(
        kernel,
        out_shape=jax.ShapeDtypeStruct((Tp, Bp, Hp), jnp.bfloat16),
        grid_spec=pltpu.PrefetchScalarGridSpec(
            num_scalar_prefetch=0,
            grid=(batch_shards, Tp // time_chunk),
            in_specs=[
                pl.BlockSpec((time_chunk, Bc, GH), lambda b, c: (c, b, 0)),
                pl.BlockSpec(memory_space=pl.ANY),        # W_hh^T all layers (HBM)
                pl.BlockSpec(memory_space=pl.ANY),        # W_ih^T layers >= 1 (HBM)
                pl.BlockSpec((Lm1, 1, GH), lambda b, c: (0, 0, 0)),
            ],
            out_specs=pl.BlockSpec((time_chunk, Bc, Hp), lambda b, c: (c, b, 0)),
            scratch_shapes=[
                pltpu.VMEM((num_layers, Hp, GH), cd),       # resident W_hh^T
                pltpu.VMEM((Lm1, Hp, GH), cd),              # resident W_ih^T (l>=1)
                pltpu.VMEM((num_layers, Bc, Hp), jnp.float32),   # h state
                pltpu.VMEM((num_layers, Bc, Hp), jnp.float32),   # c state
                pltpu.SemaphoreType.DMA((2,)),
            ],
        ),
        compiler_params=pltpu.CompilerParams(
            dimension_semantics=("parallel", "arbitrary"),  # batch shards || cores
            vmem_limit_bytes=vmem_limit,
        ),
    )(xproj, prepared["whh_t"], prepared["wih_rest_t"], prepared["bias1"])


# ---------------------------------------------------------------------------
# One-time parameter preparation: pad hidden to a multiple of 128 (lane-dense,
# exact: padded gate pre-activations are 0 -> padded h/c lanes stay 0),
# pre-transpose, fuse biases, cast weights to bf16.
# ---------------------------------------------------------------------------
def prepare_decoder_params(params, decoder_layers, compute_dtype=jnp.bfloat16):
    p0 = params["lstm"][0]
    H = p0["w_hh"].shape[1]
    Hp = _round_up(H, 128)

    def pad_gate_rows(w):        # (4H, K) -> (4Hp, K), pad each gate block
        parts = [w[g * H:(g + 1) * H] for g in range(4)]
        return jnp.concatenate(
            [jnp.pad(p, ((0, Hp - H), (0, 0))) for p in parts], axis=0)

    def pad_gate_vec(v):         # (4H,) -> (4Hp,)
        parts = [v[g * H:(g + 1) * H] for g in range(4)]
        return jnp.concatenate([jnp.pad(p, (0, Hp - H)) for p in parts])

    def pad_cols(w):             # (R, H) -> (R, Hp)
        return jnp.pad(w, ((0, 0), (0, Hp - H)))

    whh_list, wih_rest, bias_rest = [], [], []
    wih0_t, b0 = None, None
    for l in range(decoder_layers):
        p = params["lstm"][l]
        whh_list.append(pad_cols(pad_gate_rows(p["w_hh"])).T)        # (Hp, 4Hp)
        if l == 0:
            wih0_t = pad_gate_rows(p["w_ih"]).T                      # (D, 4Hp)
            b0 = pad_gate_vec(p["b_ih"] + p["b_hh"])                 # (4Hp,)
        else:
            wih_rest.append(pad_cols(pad_gate_rows(p["w_ih"])).T)    # (Hp, 4Hp)
            bias_rest.append(
                pad_gate_vec(p["b_ih"] + p["b_hh"]).reshape(1, 4 * Hp))

    prepared = {
        "wih0_t": wih0_t.astype(compute_dtype),                      # (D, 4Hp)
        "b0": b0.astype(jnp.float32),                                # (4Hp,)
        "whh_t": jnp.stack(whh_list, 0).astype(compute_dtype),       # (L, Hp, 4Hp)
        "out_w_t": jnp.pad(params["out_w"],
                           ((0, 0), (0, Hp - H))).T.astype(compute_dtype),  # (Hp, V)
        "out_b": params["out_b"].astype(jnp.float32),                # (V,)
    }
    if decoder_layers > 1:
        prepared["wih_rest_t"] = jnp.stack(wih_rest, 0).astype(compute_dtype)
        prepared["bias1"] = jnp.stack(bias_rest, 0).astype(jnp.float32)
    else:  # dummies (never read by the kernel)
        prepared["wih_rest_t"] = jnp.zeros((1, Hp, 4 * Hp), compute_dtype)
        prepared["bias1"] = jnp.zeros((1, 1, 4 * Hp), jnp.float32)
    return prepared


# ---------------------------------------------------------------------------
# Full Decoder forward (LSTM stack + Linear), matching nn.Module semantics.
# ---------------------------------------------------------------------------
@functools.partial(jax.jit,
                   static_argnames=("decoder_layers", "time_chunk", "batch_shards"))
def decoder_forward(x_btd, prepared, decoder_layers, time_chunk=16, batch_shards=1):
    B, T, D = x_btd.shape
    Hp = prepared["whh_t"].shape[1]                   # padded hidden (mult of 128)
    Bc = _round_up(-(-B // batch_shards), 16)         # per-core batch, bf16-full
    Bp = Bc * batch_shards
    Tp = _round_up(T, time_chunk)

    x_tm = jnp.transpose(x_btd, (1, 0, 2))            # (T, B, D) time-major
    x_tm = jnp.pad(x_tm, ((0, Tp - T), (0, Bp - B), (0, 0)))

    # 1) Hoisted layer-0 input projection: one big (T*B, D) x (D, 4Hp) matmul,
    #    streamed out in bf16 for the recurrence.
    xproj = linear_pallas(x_tm.reshape(Tp * Bp, D), prepared["wih0_t"],
                          prepared["b0"], out_dtype=jnp.bfloat16)
    xproj = xproj.reshape(Tp, Bp, 4 * Hp)

    # 2) Fused multi-layer recurrence (single pallas_call, resident weights).
    y = lstm_stack_pallas(xproj, prepared, decoder_layers, time_chunk, batch_shards)
    y = y[:T, :B]                                     # drop time/batch padding

    # 3) Output projection over all (B*T) rows; vocab tiled, weights streamed once.
    h2d = jnp.transpose(y, (1, 0, 2)).reshape(B * T, Hp)
    logits = linear_pallas(h2d, prepared["out_w_t"], prepared["out_b"],
                           out_dtype=jnp.float32)
    return logits.reshape(B, T, -1)                   # (B, T, vocab)


# ---------------------------------------------------------------------------
# Pure-JAX reference (lax.scan) for numerical validation.
# ---------------------------------------------------------------------------
def decoder_reference(x_btd, params, decoder_layers, compute_dtype=jnp.float32):
    cd = compute_dtype
    h = jnp.transpose(x_btd, (1, 0, 2))               # (T, B, D)
    B = h.shape[1]
    for l in range(decoder_layers):
        p = params["lstm"][l]
        H = p["w_hh"].shape[1]
        wih_t = p["w_ih"].T.astype(cd)
        whh_t = p["w_hh"].T.astype(cd)
        bias = (p["b_ih"] + p["b_hh"]).astype(jnp.float32)

        def step(carry, x_t, wih_t=wih_t, whh_t=whh_t, bias=bias, H=H):
            h_prev, c_prev = carry
            gates = (jnp.dot(x_t.astype(cd), wih_t, preferred_element_type=jnp.float32)
                     + jnp.dot(h_prev.astype(cd), whh_t, preferred_element_type=jnp.float32)
                     + bias)
            i = jax.nn.sigmoid(gates[:, 0 * H:1 * H])
            f = jax.nn.sigmoid(gates[:, 1 * H:2 * H])
            g = jnp.tanh(gates[:, 2 * H:3 * H])
            o = jax.nn.sigmoid(gates[:, 3 * H:4 * H])
            c = f * c_prev + i * g
            hh = o * jnp.tanh(c)
            return (hh, c), hh

        init = (jnp.zeros((B, H), jnp.float32), jnp.zeros((B, H), jnp.float32))
        _, h = lax.scan(step, init, h)
    h = jnp.transpose(h, (1, 0, 2))                   # (B, T, H)
    B_, T_, H_ = h.shape
    logits = (jnp.dot(h.reshape(B_ * T_, H_).astype(cd),
                      params["out_w"].T.astype(cd),
                      preferred_element_type=jnp.float32)
              + params["out_b"])
    return logits.reshape(B_, T_, -1)


# ---------------------------------------------------------------------------
def init_params(key, model_d, decoder_layers, decoder_d, vocab_size):
    params = {"lstm": []}
    scale = 1.0 / jnp.sqrt(decoder_d)
    for l in range(decoder_layers):
        d_in = model_d if l == 0 else decoder_d
        key, k1, k2, k3, k4 = jax.random.split(key, 5)
        params["lstm"].append({
            "w_ih": jax.random.uniform(k1, (4 * decoder_d, d_in), jnp.float32, -scale, scale),
            "w_hh": jax.random.uniform(k2, (4 * decoder_d, decoder_d), jnp.float32, -scale, scale),
            "b_ih": jax.random.uniform(k3, (4 * decoder_d,), jnp.float32, -scale, scale),
            "b_hh": jax.random.uniform(k4, (4 * decoder_d,), jnp.float32, -scale, scale),
        })
    key, k5, k6 = jax.random.split(key, 3)
    params["out_w"] = jax.random.uniform(k5, (vocab_size, decoder_d), jnp.float32, -scale, scale)
    params["out_b"] = jax.random.uniform(k6, (vocab_size,), jnp.float32, -scale, scale)
    return params


if __name__ == "__main__":
    B, T = 2, 8
    model_d, decoder_layers, decoder_d, vocab_size = 32, 2, 32, 48

    key = jax.random.PRNGKey(0)
    key, kx = jax.random.split(key)
    x = jax.random.normal(kx, (B, T, model_d), jnp.float32)

    params = init_params(key, model_d, decoder_layers, decoder_d, vocab_size)
    prepared = prepare_decoder_params(params, decoder_layers, jnp.bfloat16)

    shards = _default_batch_shards()
    out = decoder_forward(x, prepared, decoder_layers,
                          time_chunk=8, batch_shards=shards)
    out = jax.block_until_ready(out)
    assert out.shape == (B, T, vocab_size)

    # bf16-matched reference (tight) and true f32 reference (loose) checks.
    ref_bf16 = decoder_reference(x, params, decoder_layers, jnp.bfloat16)
    ref_f32 = decoder_reference(x, params, decoder_layers, jnp.float32)
    assert jnp.allclose(out, ref_bf16, atol=3e-2, rtol=3e-2), "mismatch vs bf16 reference"
    assert jnp.allclose(out, ref_f32, atol=1e-1, rtol=1e-1), "mismatch vs f32 reference"

    print("KERNEL_OK")
</pallas_src>

<mosaic_0001>
module attributes {stable_mosaic.version = 11 : i64} {
  func.func @_linear_kernel(%arg0: i32, %arg1: i32, %arg2: memref<128x32xf32, #tpu.memory_space<vmem>>, %arg3: memref<32x512xbf16, #tpu.memory_space<vmem>>, %arg4: memref<1x512xf32, #tpu.memory_space<vmem>>, %arg5: memref<128x512xbf16, #tpu.memory_space<vmem>>) attributes {dimension_semantics = [#tpu.dimension_semantics<parallel>, #tpu.dimension_semantics<parallel>], iteration_bounds = array<i64: 1, 1>, scalar_prefetch = 0 : i64, scratch_operands = 0 : i64, tpu.core_type = #tpu.core_type<tc>, window_params = [{transform_indices = @transform_0, window_bounds = array<i64: 128, 32>}, {transform_indices = @transform_1, window_bounds = array<i64: 32, 512>}, {transform_indices = @transform_2, window_bounds = array<i64: 1, 512>}, {transform_indices = @transform_3, window_bounds = array<i64: 128, 512>}]} {
    %c0 = arith.constant 0 : index
    %c0_0 = arith.constant 0 : index
    %0 = vector.load %arg2[%c0, %c0_0] : memref<128x32xf32, #tpu.memory_space<vmem>>, vector<128x32xf32>
    %1 = arith.truncf %0 : vector<128x32xf32> to vector<128x32xbf16>
    %c0_1 = arith.constant 0 : index
    %c0_2 = arith.constant 0 : index
    %2 = vector.load %arg3[%c0_1, %c0_2] : memref<32x512xbf16, #tpu.memory_space<vmem>>, vector<32x512xbf16>
    %cst = arith.constant dense<0.000000e+00> : vector<128x512xf32>
    %3 = tpu.matmul %1, %2, %cst {dimension_numbers = #tpu.dot_dimension_numbers<[1], [0], [0], [1], [0, 0, 1, 1], [], []>} : vector<128x32xbf16>, vector<32x512xbf16>, vector<128x512xf32> -> vector<128x512xf32>
    %c0_3 = arith.constant 0 : index
    %c0_4 = arith.constant 0 : index
    %4 = vector.load %arg4[%c0_3, %c0_4] : memref<1x512xf32, #tpu.memory_space<vmem>>, vector<1x512xf32>
    %5 = vector.broadcast %4 : vector<1x512xf32> to vector<128x512xf32>
    %6 = arith.addf %3, %5 : vector<128x512xf32>
    %7 = arith.truncf %6 : vector<128x512xf32> to vector<128x512xbf16>
    %c0_5 = arith.constant 0 : index
    %c0_6 = arith.constant 0 : index
    %8 = vector.load %arg5[%c0_5, %c0_6] : memref<128x512xbf16, #tpu.memory_space<vmem>>, vector<128x512xbf16>
    tpu.vector_store %arg5[%c0_5, %c0_6], %7 {strides = array<i32>} : memref<128x512xbf16, #tpu.memory_space<vmem>>, vector<128x512xbf16>,
    return
  }
  func.func @transform_0(%arg0: i32, %arg1: i32) -> (i32, i32) {
    %c0_i32 = arith.constant 0 : i32
    %c0_i32_0 = arith.constant 0 : i32
    return %arg1, %c0_i32 : i32, i32
  }
  func.func @transform_1(%arg0: i32, %arg1: i32) -> (i32, i32) {
    %c0_i32 = arith.constant 0 : i32
    %c0_i32_0 = arith.constant 0 : i32
    return %c0_i32, %arg0 : i32, i32
  }
  func.func @transform_2(%arg0: i32, %arg1: i32) -> (i32, i32) {
    %c0_i32 = arith.constant 0 : i32
    %c0_i32_0 = arith.constant 0 : i32
    return %c0_i32, %arg0 : i32, i32
  }
  func.func @transform_3(%arg0: i32, %arg1: i32) -> (i32, i32) {
    %c0_i32 = arith.constant 0 : i32
    return %arg1, %arg0 : i32, i32
  }
}

module attributes {stable_mosaic.version = 11 : i64} {
  func.func @kernel(%arg0: i32, %arg1: i32, %arg2: memref<8x16x512xbf16, #tpu.memory_space<vmem>>, %arg3: memref<2x128x512xbf16, #tpu.memory_space<any>>, %arg4: memref<1x128x512xbf16, #tpu.memory_space<any>>, %arg5: memref<1x1x512xf32, #tpu.memory_space<vmem>>, %arg6: memref<8x16x128xbf16, #tpu.memory_space<vmem>>, %arg7: memref<2x128x512xbf16, #tpu.memory_space<vmem>>, %arg8: memref<1x128x512xbf16, #tpu.memory_space<vmem>>, %arg9: memref<2x16x128xf32, #tpu.memory_space<vmem>>, %arg10: memref<2x16x128xf32, #tpu.memory_space<vmem>>, %arg11: memref<2x!tpu.dma_semaphore, #tpu.memory_space<semaphore_mem>>) attributes {dimension_semantics = [#tpu.dimension_semantics<parallel>, #tpu.dimension_semantics<arbitrary>], iteration_bounds = array<i64: 1, 1>, scalar_prefetch = 0 : i64, scratch_operands = 5 : i64, tpu.core_type = #tpu.core_type<tc>, window_params = [{transform_indices = @transform_0, window_bounds = array<i64: 8, 16, 512>}, {}, {}, {pipeline_mode = #tpu.pipeline_mode<synchronous>, transform_indices = @transform_3, window_bounds = array<i64: 1, 1, 512>}, {transform_indices = @transform_4, window_bounds = array<i64: 8, 16, 128>}]} {
    %c0_i32 = arith.constant 0 : i32
    %0 = arith.cmpi eq, %arg1, %c0_i32 : i32
    %1 = arith.extui %0 : i1 to i32
    %c0_i32_0 = arith.constant 0 : i32
    %2 = arith.cmpi ne, %1, %c0_i32_0 : i32
    scf.if %2 {
      %c0_i32_370 = arith.constant 0 : i32
      %759 = tpu.memref_slice %arg11[%c0_i32_370] : memref<2x!tpu.dma_semaphore, #tpu.memory_space<semaphore_mem>> -> memref<1x!tpu.dma_semaphore, #tpu.memory_space<semaphore_mem>>
      %760 = tpu.memref_squeeze %759 : memref<1x!tpu.dma_semaphore, #tpu.memory_space<semaphore_mem>> -> memref<!tpu.dma_semaphore, #tpu.memory_space<semaphore_mem>>
      tpu.enqueue_dma source(%arg3 : memref<2x128x512xbf16, #tpu.memory_space<any>>) target(%arg7 : memref<2x128x512xbf16, #tpu.memory_space<vmem>>) target_semaphore(%760 : memref<!tpu.dma_semaphore, #tpu.memory_space<semaphore_mem>>)
      %c1_i32_371 = arith.constant 1 : i32
      %761 = tpu.memref_slice %arg11[%c1_i32_371] : memref<2x!tpu.dma_semaphore, #tpu.memory_space<semaphore_mem>> -> memref<1x!tpu.dma_semaphore, #tpu.memory_space<semaphore_mem>>
      %762 = tpu.memref_squeeze %761 : memref<1x!tpu.dma_semaphore, #tpu.memory_space<semaphore_mem>> -> memref<!tpu.dma_semaphore, #tpu.memory_space<semaphore_mem>>
      tpu.enqueue_dma source(%arg4 : memref<1x128x512xbf16, #tpu.memory_space<any>>) target(%arg8 : memref<1x128x512xbf16, #tpu.memory_space<vmem>>) target_semaphore(%762 : memref<!tpu.dma_semaphore, #tpu.memory_space<semaphore_mem>>)
      %cst_372 = arith.constant 0.000000e+00 : f32
      %763 = vector.broadcast %cst_372 : f32 to vector<2x16x128xf32>
      %c0_373 = arith.constant 0 : index
      %c0_374 = arith.constant 0 : index
      %c0_375 = arith.constant 0 : index
      %764 = vector.load %arg9[%c0_373, %c0_374, %c0_375] : memref<2x16x128xf32, #tpu.memory_space<vmem>>, vector<2x16x128xf32>
      tpu.vector_store %arg9[%c0_373, %c0_374, %c0_375], %763 {strides = array<i32>} : memref<2x16x128xf32, #tpu.memory_space<vmem>>, vector<2x16x128xf32>,
      %cst_376 = arith.constant 0.000000e+00 : f32
      %765 = vector.broadcast %cst_376 : f32 to vector<2x16x128xf32>
      %c0_377 = arith.constant 0 : index
      %c0_378 = arith.constant 0 : index
      %c0_379 = arith.constant 0 : index
      %766 = vector.load %arg10[%c0_377, %c0_378, %c0_379] : memref<2x16x128xf32, #tpu.memory_space<vmem>>, vector<2x16x128xf32>
      tpu.vector_store %arg10[%c0_377, %c0_378, %c0_379], %765 {strides = array<i32>} : memref<2x16x128xf32, #tpu.memory_space<vmem>>, vector<2x16x128xf32>,
      %c0_i32_380 = arith.constant 0 : i32
      %767 = tpu.memref_slice %arg11[%c0_i32_380] : memref<2x!tpu.dma_semaphore, #tpu.memory_space<semaphore_mem>> -> memref<1x!tpu.dma_semaphore, #tpu.memory_space<semaphore_mem>>
      %768 = tpu.memref_squeeze %767 : memref<1x!tpu.dma_semaphore, #tpu.memory_space<semaphore_mem>> -> memref<!tpu.dma_semaphore, #tpu.memory_space<semaphore_mem>>
      tpu.wait_dma2 semaphore(%768 : memref<!tpu.dma_semaphore, #tpu.memory_space<semaphore_mem>>) src(%arg3 : memref<2x128x512xbf16, #tpu.memory_space<any>>) dst(%arg7 : memref<2x128x512xbf16, #tpu.memory_space<vmem>>)
      %c1_i32_381 = arith.constant 1 : i32
      %769 = tpu.memref_slice %arg11[%c1_i32_381] : memref<2x!tpu.dma_semaphore, #tpu.memory_space<semaphore_mem>> -> memref<1x!tpu.dma_semaphore, #tpu.memory_space<semaphore_mem>>
      %770 = tpu.memref_squeeze %769 : memref<1x!tpu.dma_semaphore, #tpu.memory_space<semaphore_mem>> -> memref<!tpu.dma_semaphore, #tpu.memory_space<semaphore_mem>>
      tpu.wait_dma2 semaphore(%770 : memref<!tpu.dma_semaphore, #tpu.memory_space<semaphore_mem>>) src(%arg4 : memref<1x128x512xbf16, #tpu.memory_space<any>>) dst(%arg8 : memref<1x128x512xbf16, #tpu.memory_space<vmem>>)
    } else {
    }
    %c0 = arith.constant 0 : index
    %c0_1 = arith.constant 0 : index
    %c0_2 = arith.constant 0 : index
    %3 = vector.load %arg5[%c0, %c0_1, %c0_2] : memref<1x1x512xf32, #tpu.memory_space<vmem>>, vector<1x1x512xf32>
    %4 = vector.shape_cast %3 : vector<1x1x512xf32> to vector<1x512xf32>
    %5 = vector.shape_cast %4 : vector<1x512xf32> to vector<1x512xf32>
    %6 = vector.broadcast %5 : vector<1x512xf32> to vector<16x512xf32>
    %c0_i32_3 = arith.constant 0 : i32
    %7 = arith.index_cast %c0_i32_3 : i32 to index
    %c0_4 = arith.constant 0 : index
    %c0_5 = arith.constant 0 : index
    %8 = vector.load %arg2[%7, %c0_4, %c0_5] : memref<8x16x512xbf16, #tpu.memory_space<vmem>>, vector<1x16x512xbf16>
    %9 = vector.shape_cast %8 : vector<1x16x512xbf16> to vector<16x512xbf16>
    %10 = arith.extf %9 : vector<16x512xbf16> to vector<16x512xf32>
    %c0_6 = arith.constant 0 : index
    %c0_7 = arith.constant 0 : index
    %c0_8 = arith.constant 0 : index
    %11 = vector.load %arg9[%c0_6, %c0_7, %c0_8] : memref<2x16x128xf32, #tpu.memory_space<vmem>>, vector<1x16x128xf32>
    %12 = vector.shape_cast %11 : vector<1x16x128xf32> to vector<16x128xf32>
    %13 = arith.truncf %12 : vector<16x128xf32> to vector<16x128xbf16>
    %c0_9 = arith.constant 0 : index
    %c0_10 = arith.constant 0 : index
    %c0_11 = arith.constant 0 : index
    %14 = vector.load %arg7[%c0_9, %c0_10, %c0_11] : memref<2x128x512xbf16, #tpu.memory_space<vmem>>, vector<1x128x512xbf16>
    %15 = vector.shape_cast %14 : vector<1x128x512xbf16> to vector<128x512xbf16>
    %cst = arith.constant dense<0.000000e+00> : vector<16x512xf32>
    %16 = tpu.matmul %13, %15, %cst {dimension_numbers = #tpu.dot_dimension_numbers<[1], [0], [0], [1], [0, 0, 1, 1], [], []>} : vector<16x128xbf16>, vector<128x512xbf16>, vector<16x512xf32> -> vector<16x512xf32>
    %17 = arith.addf %10, %16 : vector<16x512xf32>
    %c0_12 = arith.constant 0 : index
    %c0_13 = arith.constant 0 : index
    %c0_14 = arith.constant 0 : index
    %18 = vector.load %arg10[%c0_12, %c0_13, %c0_14] : memref<2x16x128xf32, #tpu.memory_space<vmem>>, vector<1x16x128xf32>
    %19 = vector.shape_cast %18 : vector<1x16x128xf32> to vector<16x128xf32>
    %20 = vector.extract_strided_slice %17 {offsets = [0, 0], sizes = [16, 128], strides = [1, 1]} : vector<16x512xf32> to vector<16x128xf32>
    %21 = arith.negf %20 : vector<16x128xf32>
    %22 = math.exp %21 : vector<16x128xf32>
    %cst_15 = arith.constant 1.000000e+00 : f32
    %23 = vector.broadcast %cst_15 : f32 to vector<16x128xf32>
    %24 = arith.addf %23, %22 : vector<16x128xf32>
    %25 = arith.divf %23, %24 : vector<16x128xf32>
    %26 = vector.extract_strided_slice %17 {offsets = [0, 128], sizes = [16, 128], strides = [1, 1]} : vector<16x512xf32> to vector<16x128xf32>
    %27 = arith.negf %26 : vector<16x128xf32>
    %28 = math.exp %27 : vector<16x128xf32>
    %cst_16 = arith.constant 1.000000e+00 : f32
    %29 = vector.broadcast %cst_16 : f32 to vector<16x128xf32>
    %30 = arith.addf %29, %28 : vector<16x128xf32>
    %31 = arith.divf %29, %30 : vector<16x128xf32>
    %32 = vector.extract_strided_slice %17 {offsets = [0, 256], sizes = [16, 128], strides = [1, 1]} : vector<16x512xf32> to vector<16x128xf32>
    %33 = math.tanh %32 : vector<16x128xf32>
    %34 = vector.extract_strided_slice %17 {offsets = [0, 384], sizes = [16, 128], strides = [1, 1]} : vector<16x512xf32> to vector<16x128xf32>
    %35 = arith.negf %34 : vector<16x128xf32>
    %36 = math.exp %35 : vector<16x128xf32>
    %cst_17 = arith.constant 1.000000e+00 : f32
    %37 = vector.broadcast %cst_17 : f32 to vector<16x128xf32>
    %38 = arith.addf %37, %36 : vector<16x128xf32>
    %39 = arith.divf %37, %38 : vector<16x128xf32>
    %40 = arith.mulf %31, %19 : vector<16x128xf32>
    %41 = arith.mulf %25, %33 : vector<16x128xf32>
    %42 = arith.addf %40, %41 : vector<16x128xf32>
    %43 = math.tanh %42 : vector<16x128xf32>
    %44 = arith.mulf %39, %43 : vector<16x128xf32>
    %c0_18 = arith.constant 0 : index
    %c0_19 = arith.constant 0 : index
    %c0_20 = arith.constant 0 : index
    %45 = vector.load %arg9[%c0_18, %c0_19, %c0_20] : memref<2x16x128xf32, #tpu.memory_space<vmem>>, vector<1x16x128xf32>
    %46 = vector.shape_cast %45 : vector<1x16x128xf32> to vector<16x128xf32>
    %47 = vector.shape_cast %44 : vector<16x128xf32> to vector<1x16x128xf32>
    tpu.vector_store %arg9[%c0_18, %c0_19, %c0_20], %47 {strides = array<i32>} : memref<2x16x128xf32, #tpu.memory_space<vmem>>, vector<1x16x128xf32>,
    %c0_21 = arith.constant 0 : index
    %c0_22 = arith.constant 0 : index
    %c0_23 = arith.constant 0 : index
    %48 = vector.load %arg10[%c0_21, %c0_22, %c0_23] : memref<2x16x128xf32, #tpu.memory_space<vmem>>, vector<1x16x128xf32>
    %49 = vector.shape_cast %48 : vector<1x16x128xf32> to vector<16x128xf32>
    %50 = vector.shape_cast %42 : vector<16x128xf32> to vector<1x16x128xf32>
    tpu.vector_store %arg10[%c0_21, %c0_22, %c0_23], %50 {strides = array<i32>} : memref<2x16x128xf32, #tpu.memory_space<vmem>>, vector<1x16x128xf32>,
    %51 = arith.truncf %44 : vector<16x128xf32> to vector<16x128xbf16>
    %c0_24 = arith.constant 0 : index
    %c0_25 = arith.constant 0 : index
    %c0_26 = arith.constant 0 : index
    %52 = vector.load %arg8[%c0_24, %c0_25, %c0_26] : memref<1x128x512xbf16, #tpu.memory_space<vmem>>, vector<1x128x512xbf16>
    %53 = vector.shape_cast %52 : vector<1x128x512xbf16> to vector<128x512xbf16>
    %cst_27 = arith.constant dense<0.000000e+00> : vector<16x512xf32>
    %54 = tpu.matmul %51, %53, %cst_27 {dimension_numbers = #tpu.dot_dimension_numbers<[1], [0], [0], [1], [0, 0, 1, 1], [], []>} : vector<16x128xbf16>, vector<128x512xbf16>, vector<16x512xf32> -> vector<16x512xf32>
    %c1 = arith.constant 1 : index
    %c0_28 = arith.constant 0 : index
    %c0_29 = arith.constant 0 : index
    %55 = vector.load %arg9[%c1, %c0_28, %c0_29] : memref<2x16x128xf32, #tpu.memory_space<vmem>>, vector<1x16x128xf32>
    %56 = vector.shape_cast %55 : vector<1x16x128xf32> to vector<16x128xf32>
    %57 = arith.truncf %56 : vector<16x128xf32> to vector<16x128xbf16>
    %c1_30 = arith.constant 1 : index
    %c0_31 = arith.constant 0 : index
    %c0_32 = arith.constant 0 : index
    %58 = vector.load %arg7[%c1_30, %c0_31, %c0_32] : memref<2x128x512xbf16, #tpu.memory_space<vmem>>, vector<1x128x512xbf16>
    %59 = vector.shape_cast %58 : vector<1x128x512xbf16> to vector<128x512xbf16>
    %cst_33 = arith.constant dense<0.000000e+00> : vector<16x512xf32>
    %60 = tpu.matmul %57, %59, %cst_33 {dimension_numbers = #tpu.dot_dimension_numbers<[1], [0], [0], [1], [0, 0, 1, 1], [], []>} : vector<16x128xbf16>, vector<128x512xbf16>, vector<16x512xf32> -> vector<16x512xf32>
    %61 = arith.addf %54, %60 : vector<16x512xf32>
    %62 = arith.addf %61, %6 : vector<16x512xf32>
    %c1_34 = arith.constant 1 : index
    %c0_35 = arith.constant 0 : index
    %c0_36 = arith.constant 0 : index
    %63 = vector.load %arg10[%c1_34, %c0_35, %c0_36] : memref<2x16x128xf32, #tpu.memory_space<vmem>>, vector<1x16x128xf32>
    %64 = vector.shape_cast %63 : vector<1x16x128xf32> to vector<16x128xf32>
    %65 = vector.extract_strided_slice %62 {offsets = [0, 0], sizes = [16, 128], strides = [1, 1]} : vector<16x512xf32> to vector<16x128xf32>
    %66 = arith.negf %65 : vector<16x128xf32>
    %67 = math.exp %66 : vector<16x128xf32>
    %cst_37 = arith.constant 1.000000e+00 : f32
    %68 = vector.broadcast %cst_37 : f32 to vector<16x128xf32>
    %69 = arith.addf %68, %67 : vector<16x128xf32>
    %70 = arith.divf %68, %69 : vector<16x128xf32>
    %71 = vector.extract_strided_slice %62 {offsets = [0, 128], sizes = [16, 128], strides = [1, 1]} : vector<16x512xf32> to vector<16x128xf32>
    %72 = arith.negf %71 : vector<16x128xf32>
    %73 = math.exp %72 : vector<16x128xf32>
    %cst_38 = arith.constant 1.000000e+00 : f32
    %74 = vector.broadcast %cst_38 : f32 to vector<16x128xf32>
    %75 = arith.addf %74, %73 : vector<16x128xf32>
    %76 = arith.divf %74, %75 : vector<16x128xf32>
    %77 = vector.extract_strided_slice %62 {offsets = [0, 256], sizes = [16, 128], strides = [1, 1]} : vector<16x512xf32> to vector<16x128xf32>
    %78 = math.tanh %77 : vector<16x128xf32>
    %79 = vector.extract_strided_slice %62 {offsets = [0, 384], sizes = [16, 128], strides = [1, 1]} : vector<16x512xf32> to vector<16x128xf32>
    %80 = arith.negf %79 : vector<16x128xf32>
    %81 = math.exp %80 : vector<16x128xf32>
    %cst_39 = arith.constant 1.000000e+00 : f32
    %82 = vector.broadcast %cst_39 : f32 to vector<16x128xf32>
    %83 = arith.addf %82, %81 : vector<16x128xf32>
    %84 = arith.divf %82, %83 : vector<16x128xf32>
    %85 = arith.mulf %76, %64 : vector<16x128xf32>
    %86 = arith.mulf %70, %78 : vector<16x128xf32>
    %87 = arith.addf %85, %86 : vector<16x128xf32>
    %88 = math.tanh %87 : vector<16x128xf32>
    %89 = arith.mulf %84, %88 : vector<16x128xf32>
    %c1_40 = arith.constant 1 : index
    %c0_41 = arith.constant 0 : index
    %c0_42 = arith.constant 0 : index
    %90 = vector.load %arg9[%c1_40, %c0_41, %c0_42] : memref<2x16x128xf32, #tpu.memory_space<vmem>>, vector<1x16x128xf32>
    %91 = vector.shape_cast %90 : vector<1x16x128xf32> to vector<16x128xf32>
    %92 = vector.shape_cast %89 : vector<16x128xf32> to vector<1x16x128xf32>
    tpu.vector_store %arg9[%c1_40, %c0_41, %c0_42], %92 {strides = array<i32>} : memref<2x16x128xf32, #tpu.memory_space<vmem>>, vector<1x16x128xf32>,
    %c1_43 = arith.constant 1 : index
    %c0_44 = arith.constant 0 : index
    %c0_45 = arith.constant 0 : index
    %93 = vector.load %arg10[%c1_43, %c0_44, %c0_45] : memref<2x16x128xf32, #tpu.memory_space<vmem>>, vector<1x16x128xf32>
    %94 = vector.shape_cast %93 : vector<1x16x128xf32> to vector<16x128xf32>
    %95 = vector.shape_cast %87 : vector<16x128xf32> to vector<1x16x128xf32>
    tpu.vector_store %arg10[%c1_43, %c0_44, %c0_45], %95 {strides = array<i32>} : memref<2x16x128xf32, #tpu.memory_space<vmem>>, vector<1x16x128xf32>,
    %96 = arith.truncf %89 : vector<16x128xf32> to vector<16x128xbf16>
    %97 = arith.index_cast %c0_i32_3 : i32 to index
    %c0_46 = arith.constant 0 : index
    %c0_47 = arith.constant 0 : index
    %98 = vector.load %arg6[%97, %c0_46, %c0_47] : memref<8x16x128xbf16, #tpu.memory_space<vmem>>, vector<1x16x128xbf16>
    %99 = vector.shape_cast %98 : vector<1x16x128xbf16> to vector<16x128xbf16>
    %100 = vector.shape_cast %96 : vector<16x128xbf16> to vector<1x16x128xbf16>
    tpu.vector_store %arg6[%97, %c0_46, %c0_47], %100 {strides = array<i32>} : memref<8x16x128xbf16, #tpu.memory_space<vmem>>, vector<1x16x128xbf16>,
    %c1_i32 = arith.constant 1 : i32
    %101 = arith.index_cast %c1_i32 : i32 to index
    %c0_48 = arith.constant 0 : index
    %c0_49 = arith.constant 0 : index
    %102 = vector.load %arg2[%101, %c0_48, %c0_49] : memref<8x16x512xbf16, #tpu.memory_space<vmem>>, vector<1x16x512xbf16>
    %103 = vector.shape_cast %102 : vector<1x16x512xbf16> to vector<16x512xbf16>
    %104 = arith.extf %103 : vector<16x512xbf16> to vector<16x512xf32>
    %c0_50 = arith.constant 0 : index
    %c0_51 = arith.constant 0 : index
    %c0_52 = arith.constant 0 : index
    %105 = vector.load %arg9[%c0_50, %c0_51, %c0_52] : memref<2x16x128xf32, #tpu.memory_space<vmem>>, vector<1x16x128xf32>
    %106 = vector.shape_cast %105 : vector<1x16x128xf32> to vector<16x128xf32>
    %107 = arith.truncf %106 : vector<16x128xf32> to vector<16x128xbf16>
    %c0_53 = arith.constant 0 : index
    %c0_54 = arith.constant 0 : index
    %c0_55 = arith.constant 0 : index
    %108 = vector.load %arg7[%c0_53, %c0_54, %c0_55] : memref<2x128x512xbf16, #tpu.memory_space<vmem>>, vector<1x128x512xbf16>
    %109 = vector.shape_cast %108 : vector<1x128x512xbf16> to vector<128x512xbf16>
    %cst_56 = arith.constant dense<0.000000e+00> : vector<16x512xf32>
    %110 = tpu.matmul %107, %109, %cst_56 {dimension_numbers = #tpu.dot_dimension_numbers<[1], [0], [0], [1], [0, 0, 1, 1], [], []>} : vector<16x128xbf16>, vector<128x512xbf16>, vector<16x512xf32> -> vector<16x512xf32>
    %111 = arith.addf %104, %110 : vector<16x512xf32>
    %c0_57 = arith.constant 0 : index
    %c0_58 = arith.constant 0 : index
    %c0_59 = arith.constant 0 : index
    %112 = vector.load %arg10[%c0_57, %c0_58, %c0_59] : memref<2x16x128xf32, #tpu.memory_space<vmem>>, vector<1x16x128xf32>
    %113 = vector.shape_cast %112 : vector<1x16x128xf32> to vector<16x128xf32>
    %114 = vector.extract_strided_slice %111 {offsets = [0, 0], sizes = [16, 128], strides = [1, 1]} : vector<16x512xf32> to vector<16x128xf32>
    %115 = arith.negf %114 : vector<16x128xf32>
    %116 = math.exp %115 : vector<16x128xf32>
    %cst_60 = arith.constant 1.000000e+00 : f32
    %117 = vector.broadcast %cst_60 : f32 to vector<16x128xf32>
    %118 = arith.addf %117, %116 : vector<16x128xf32>
    %119 = arith.divf %117, %118 : vector<16x128xf32>
    %120 = vector.extract_strided_slice %111 {offsets = [0, 128], sizes = [16, 128], strides = [1, 1]} : vector<16x512xf32> to vector<16x128xf32>
    %121 = arith.negf %120 : vector<16x128xf32>
    %122 = math.exp %121 : vector<16x128xf32>
    %cst_61 = arith.constant 1.000000e+00 : f32
    %123 = vector.broadcast %cst_61 : f32 to vector<16x128xf32>
    %124 = arith.addf %123, %122 : vector<16x128xf32>
    %125 = arith.divf %123, %124 : vector<16x128xf32>
    %126 = vector.extract_strided_slice %111 {offsets = [0, 256], sizes = [16, 128], strides = [1, 1]} : vector<16x512xf32> to vector<16x128xf32>
    %127 = math.tanh %126 : vector<16x128xf32>
    %128 = vector.extract_strided_slice %111 {offsets = [0, 384], sizes = [16, 128], strides = [1, 1]} : vector<16x512xf32> to vector<16x128xf32>
    %129 = arith.negf %128 : vector<16x128xf32>
    %130 = math.exp %129 : vector<16x128xf32>
    %cst_62 = arith.constant 1.000000e+00 : f32
    %131 = vector.broadcast %cst_62 : f32 to vector<16x128xf32>
    %132 = arith.addf %131, %130 : vector<16x128xf32>
    %133 = arith.divf %131, %132 : vector<16x128xf32>
    %134 = arith.mulf %125, %113 : vector<16x128xf32>
    %135 = arith.mulf %119, %127 : vector<16x128xf32>
    %136 = arith.addf %134, %135 : vector<16x128xf32>
    %137 = math.tanh %136 : vector<16x128xf32>
    %138 = arith.mulf %133, %137 : vector<16x128xf32>
    %c0_63 = arith.constant 0 : index
    %c0_64 = arith.constant 0 : index
    %c0_65 = arith.constant 0 : index
    %139 = vector.load %arg9[%c0_63, %c0_64, %c0_65] : memref<2x16x128xf32, #tpu.memory_space<vmem>>, vector<1x16x128xf32>
    %140 = vector.shape_cast %139 : vector<1x16x128xf32> to vector<16x128xf32>
    %141 = vector.shape_cast %138 : vector<16x128xf32> to vector<1x16x128xf32>
    tpu.vector_store %arg9[%c0_63, %c0_64, %c0_65], %141 {strides = array<i32>} : memref<2x16x128xf32, #tpu.memory_space<vmem>>, vector<1x16x128xf32>,
    %c0_66 = arith.constant 0 : index
    %c0_67 = arith.constant 0 : index
    %c0_68 = arith.constant 0 : index
    %142 = vector.load %arg10[%c0_66, %c0_67, %c0_68] : memref<2x16x128xf32, #tpu.memory_space<vmem>>, vector<1x16x128xf32>
    %143 = vector.shape_cast %142 : vector<1x16x128xf32> to vector<16x128xf32>
    %144 = vector.shape_cast %136 : vector<16x128xf32> to vector<1x16x128xf32>
    tpu.vector_store %arg10[%c0_66, %c0_67, %c0_68], %144 {strides = array<i32>} : memref<2x16x128xf32, #tpu.memory_space<vmem>>, vector<1x16x128xf32>,
    %145 = arith.truncf %138 : vector<16x128xf32> to vector<16x128xbf16>
    %c0_69 = arith.constant 0 : index
    %c0_70 = arith.constant 0 : index
    %c0_71 = arith.constant 0 : index
    %146 = vector.load %arg8[%c0_69, %c0_70, %c0_71] : memref<1x128x512xbf16, #tpu.memory_space<vmem>>, vector<1x128x512xbf16>
    %147 = vector.shape_cast %146 : vector<1x128x512xbf16> to vector<128x512xbf16>
    %cst_72 = arith.constant dense<0.000000e+00> : vector<16x512xf32>
    %148 = tpu.matmul %145, %147, %cst_72 {dimension_numbers = #tpu.dot_dimension_numbers<[1], [0], [0], [1], [0, 0, 1, 1], [], []>} : vector<16x128xbf16>, vector<128x512xbf16>, vector<16x512xf32> -> vector<16x512xf32>
    %c1_73 = arith.constant 1 : index
    %c0_74 = arith.constant 0 : index
    %c0_75 = arith.constant 0 : index
    %149 = vector.load %arg9[%c1_73, %c0_74, %c0_75] : memref<2x16x128xf32, #tpu.memory_space<vmem>>, vector<1x16x128xf32>
    %150 = vector.shape_cast %149 : vector<1x16x128xf32> to vector<16x128xf32>
    %151 = arith.truncf %150 : vector<16x128xf32> to vector<16x128xbf16>
    %c1_76 = arith.constant 1 : index
    %c0_77 = arith.constant 0 : index
    %c0_78 = arith.constant 0 : index
    %152 = vector.load %arg7[%c1_76, %c0_77, %c0_78] : memref<2x128x512xbf16, #tpu.memory_space<vmem>>, vector<1x128x512xbf16>
    %153 = vector.shape_cast %152 : vector<1x128x512xbf16> to vector<128x512xbf16>
    %cst_79 = arith.constant dense<0.000000e+00> : vector<16x512xf32>
    %154 = tpu.matmul %151, %153, %cst_79 {dimension_numbers = #tpu.dot_dimension_numbers<[1], [0], [0], [1], [0, 0, 1, 1], [], []>} : vector<16x128xbf16>, vector<128x512xbf16>, vector<16x512xf32> -> vector<16x512xf32>
    %155 = arith.addf %148, %154 : vector<16x512xf32>
    %156 = arith.addf %155, %6 : vector<16x512xf32>
    %c1_80 = arith.constant 1 : index
    %c0_81 = arith.constant 0 : index
    %c0_82 = arith.constant 0 : index
    %157 = vector.load %arg10[%c1_80, %c0_81, %c0_82] : memref<2x16x128xf32, #tpu.memory_space<vmem>>, vector<1x16x128xf32>
    %158 = vector.shape_cast %157 : vector<1x16x128xf32> to vector<16x128xf32>
    %159 = vector.extract_strided_slice %156 {offsets = [0, 0], sizes = [16, 128], strides = [1, 1]} : vector<16x512xf32> to vector<16x128xf32>
    %160 = arith.negf %159 : vector<16x128xf32>
    %161 = math.exp %160 : vector<16x128xf32>
    %cst_83 = arith.constant 1.000000e+00 : f32
    %162 = vector.broadcast %cst_83 : f32 to vector<16x128xf32>
    %163 = arith.addf %162, %161 : vector<16x128xf32>
    %164 = arith.divf %162, %163 : vector<16x128xf32>
    %165 = vector.extract_strided_slice %156 {offsets = [0, 128], sizes = [16, 128], strides = [1, 1]} : vector<16x512xf32> to vector<16x128xf32>
    %166 = arith.negf %165 : vector<16x128xf32>
    %167 = math.exp %166 : vector<16x128xf32>
    %cst_84 = arith.constant 1.000000e+00 : f32
    %168 = vector.broadcast %cst_84 : f32 to vector<16x128xf32>
    %169 = arith.addf %168, %167 : vector<16x128xf32>
    %170 = arith.divf %168, %169 : vector<16x128xf32>
    %171 = vector.extract_strided_slice %156 {offsets = [0, 256], sizes = [16, 128], strides = [1, 1]} : vector<16x512xf32> to vector<16x128xf32>
    %172 = math.tanh %171 : vector<16x128xf32>
    %173 = vector.extract_strided_slice %156 {offsets = [0, 384], sizes = [16, 128], strides = [1, 1]} : vector<16x512xf32> to vector<16x128xf32>
    %174 = arith.negf %173 : vector<16x128xf32>
    %175 = math.exp %174 : vector<16x128xf32>
    %cst_85 = arith.constant 1.000000e+00 : f32
    %176 = vector.broadcast %cst_85 : f32 to vector<16x128xf32>
    %177 = arith.addf %176, %175 : vector<16x128xf32>
    %178 = arith.divf %176, %177 : vector<16x128xf32>
    %179 = arith.mulf %170, %158 : vector<16x128xf32>
    %180 = arith.mulf %164, %172 : vector<16x128xf32>
    %181 = arith.addf %179, %180 : vector<16x128xf32>
    %182 = math.tanh %181 : vector<16x128xf32>
    %183 = arith.mulf %178, %182 : vector<16x128xf32>
    %c1_86 = arith.constant 1 : index
    %c0_87 = arith.constant 0 : index
    %c0_88 = arith.constant 0 : index
    %184 = vector.load %arg9[%c1_86, %c0_87, %c0_88] : memref<2x16x128xf32, #tpu.memory_space<vmem>>, vector<1x16x128xf32>
    %185 = vector.shape_cast %184 : vector<1x16x128xf32> to vector<16x128xf32>
    %186 = vector.shape_cast %183 : vector<16x128xf32> to vector<1x16x128xf32>
    tpu.vector_store %arg9[%c1_86, %c0_87, %c0_88], %186 {strides = array<i32>} : memref<2x16x128xf32, #tpu.memory_space<vmem>>, vector<1x16x128xf32>,
    %c1_89 = arith.constant 1 : index
    %c0_90 = arith.constant 0 : index
    %c0_91 = arith.constant 0 : index
    %187 = vector.load %arg10[%c1_89, %c0_90, %c0_91] : memref<2x16x128xf32, #tpu.memory_space<vmem>>, vector<1x16x128xf32>
    %188 = vector.shape_cast %187 : vector<1x16x128xf32> to vector<16x128xf32>
    %189 = vector.shape_cast %181 : vector<16x128xf32> to vector<1x16x128xf32>
    tpu.vector_store %arg10[%c1_89, %c0_90, %c0_91], %189 {strides = array<i32>} : memref<2x16x128xf32, #tpu.memory_space<vmem>>, vector<1x16x128xf32>,
    %190 = arith.truncf %183 : vector<16x128xf32> to vector<16x128xbf16>
    %191 = arith.index_cast %c1_i32 : i32 to index
    %c0_92 = arith.constant 0 : index
    %c0_93 = arith.constant 0 : index
    %192 = vector.load %arg6[%191, %c0_92, %c0_93] : memref<8x16x128xbf16, #tpu.memory_space<vmem>>, vector<1x16x128xbf16>
    %193 = vector.shape_cast %192 : vector<1x16x128xbf16> to vector<16x128xbf16>
    %194 = vector.shape_cast %190 : vector<16x128xbf16> to vector<1x16x128xbf16>
    tpu.vector_store %arg6[%191, %c0_92, %c0_93], %194 {strides = array<i32>} : memref<8x16x128xbf16, #tpu.memory_space<vmem>>, vector<1x16x128xbf16>,
    %c2_i32 = arith.constant 2 : i32
    %195 = arith.index_cast %c2_i32 : i32 to index
    %c0_94 = arith.constant 0 : index
    %c0_95 = arith.constant 0 : index
    %196 = vector.load %arg2[%195, %c0_94, %c0_95] : memref<8x16x512xbf16, #tpu.memory_space<vmem>>, vector<1x16x512xbf16>
    %197 = vector.shape_cast %196 : vector<1x16x512xbf16> to vector<16x512xbf16>
    %198 = arith.extf %197 : vector<16x512xbf16> to vector<16x512xf32>
    %c0_96 = arith.constant 0 : index
    %c0_97 = arith.constant 0 : index
    %c0_98 = arith.constant 0 : index
    %199 = vector.load %arg9[%c0_96, %c0_97, %c0_98] : memref<2x16x128xf32, #tpu.memory_space<vmem>>, vector<1x16x128xf32>
    %200 = vector.shape_cast %199 : vector<1x16x128xf32> to vector<16x128xf32>
    %201 = arith.truncf %200 : vector<16x128xf32> to vector<16x128xbf16>
    %c0_99 = arith.constant 0 : index
    %c0_100 = arith.constant 0 : index
    %c0_101 = arith.constant 0 : index
    %202 = vector.load %arg7[%c0_99, %c0_100, %c0_101] : memref<2x128x512xbf16, #tpu.memory_space<vmem>>, vector<1x128x512xbf16>
    %203 = vector.shape_cast %202 : vector<1x128x512xbf16> to vector<128x512xbf16>
    %cst_102 = arith.constant dense<0.000000e+00> : vector<16x512xf32>
    %204 = tpu.matmul %201, %203, %cst_102 {dimension_numbers = #tpu.dot_dimension_numbers<[1], [0], [0], [1], [0, 0, 1, 1], [], []>} : vector<16x128xbf16>, vector<128x512xbf16>, vector<16x512xf32> -> vector<16x512xf32>
    %205 = arith.addf %198, %204 : vector<16x512xf32>
    %c0_103 = arith.constant 0 : index
    %c0_104 = arith.constant 0 : index
    %c0_105 = arith.constant 0 : index
    %206 = vector.load %arg10[%c0_103, %c0_104, %c0_105] : memref<2x16x128xf32, #tpu.memory_space<vmem>>, vector<1x16x128xf32>
    %207 = vector.shape_cast %206 : vector<1x16x128xf32> to vector<16x128xf32>
    %208 = vector.extract_strided_slice %205 {offsets = [0, 0], sizes = [16, 128], strides = [1, 1]} : vector<16x512xf32> to vector<16x128xf32>
    %209 = arith.negf %208 : vector<16x128xf32>
    %210 = math.exp %209 : vector<16x128xf32>
    %cst_106 = arith.constant 1.000000e+00 : f32
    %211 = vector.broadcast %cst_106 : f32 to vector<16x128xf32>
    %212 = arith.addf %211, %210 : vector<16x128xf32>
    %213 = arith.divf %211, %212 : vector<16x128xf32>
    %214 = vector.extract_strided_slice %205 {offsets = [0, 128], sizes = [16, 128], strides = [1, 1]} : vector<16x512xf32> to vector<16x128xf32>
    %215 = arith.negf %214 : vector<16x128xf32>
    %216 = math.exp %215 : vector<16x128xf32>
    %cst_107 = arith.constant 1.000000e+00 : f32
    %217 = vector.broadcast %cst_107 : f32 to vector<16x128xf32>
    %218 = arith.addf %217, %216 : vector<16x128xf32>
    %219 = arith.divf %217, %218 : vector<16x128xf32>
    %220 = vector.extract_strided_slice %205 {offsets = [0, 256], sizes = [16, 128], strides = [1, 1]} : vector<16x512xf32> to vector<16x128xf32>
    %221 = math.tanh %220 : vector<16x128xf32>
    %222 = vector.extract_strided_slice %205 {offsets = [0, 384], sizes = [16, 128], strides = [1, 1]} : vector<16x512xf32> to vector<16x128xf32>
    %223 = arith.negf %222 : vector<16x128xf32>
    %224 = math.exp %223 : vector<16x128xf32>
    %cst_108 = arith.constant 1.000000e+00 : f32
    %225 = vector.broadcast %cst_108 : f32 to vector<16x128xf32>
    %226 = arith.addf %225, %224 : vector<16x128xf32>
    %227 = arith.divf %225, %226 : vector<16x128xf32>
    %228 = arith.mulf %219, %207 : vector<16x128xf32>
    %229 = arith.mulf %213, %221 : vector<16x128xf32>
    %230 = arith.addf %228, %229 : vector<16x128xf32>
    %231 = math.tanh %230 : vector<16x128xf32>
    %232 = arith.mulf %227, %231 : vector<16x128xf32>
    %c0_109 = arith.constant 0 : index
    %c0_110 = arith.constant 0 : index
    %c0_111 = arith.constant 0 : index
    %233 = vector.load %arg9[%c0_109, %c0_110, %c0_111] : memref<2x16x128xf32, #tpu.memory_space<vmem>>, vector<1x16x128xf32>
    %234 = vector.shape_cast %233 : vector<1x16x128xf32> to vector<16x128xf32>
    %235 = vector.shape_cast %232 : vector<16x128xf32> to vector<1x16x128xf32>
    tpu.vector_store %arg9[%c0_109, %c0_110, %c0_111], %235 {strides = array<i32>} : memref<2x16x128xf32, #tpu.memory_space<vmem>>, vector<1x16x128xf32>,
    %c0_112 = arith.constant 0 : index
    %c0_113 = arith.constant 0 : index
    %c0_114 = arith.constant 0 : index
    %236 = vector.load %arg10[%c0_112, %c0_113, %c0_114] : memref<2x16x128xf32, #tpu.memory_space<vmem>>, vector<1x16x128xf32>
    %237 = vector.shape_cast %236 : vector<1x16x128xf32> to vector<16x128xf32>
    %238 = vector.shape_cast %230 : vector<16x128xf32> to vector<1x16x128xf32>
    tpu.vector_store %arg10[%c0_112, %c0_113, %c0_114], %238 {strides = array<i32>} : memref<2x16x128xf32, #tpu.memory_space<vmem>>, vector<1x16x128xf32>,
    %239 = arith.truncf %232 : vector<16x128xf32> to vector<16x128xbf16>
    %c0_115 = arith.constant 0 : index
    %c0_116 = arith.constant 0 : index
    %c0_117 = arith.constant 0 : index
    %240 = vector.load %arg8[%c0_115, %c0_116, %c0_117] : memref<1x128x512xbf16, #tpu.memory_space<vmem>>, vector<1x128x512xbf16>
    %241 = vector.shape_cast %240 : vector<1x128x512xbf16> to vector<128x512xbf16>
    %cst_118 = arith.constant dense<0.000000e+00> : vector<16x512xf32>
    %242 = tpu.matmul %239, %241, %cst_118 {dimension_numbers = #tpu.dot_dimension_numbers<[1], [0], [0], [1], [0, 0, 1, 1], [], []>} : vector<16x128xbf16>, vector<128x512xbf16>, vector<16x512xf32> -> vector<16x512xf32>
    %c1_119 = arith.constant 1 : index
    %c0_120 = arith.constant 0 : index
    %c0_121 = arith.constant 0 : index
    %243 = vector.load %arg9[%c1_119, %c0_120, %c0_121] : memref<2x16x128xf32, #tpu.memory_space<vmem>>, vector<1x16x128xf32>
    %244 = vector.shape_cast %243 : vector<1x16x128xf32> to vector<16x128xf32>
    %245 = arith.truncf %244 : vector<16x128xf32> to vector<16x128xbf16>
    %c1_122 = arith.constant 1 : index
    %c0_123 = arith.constant 0 : index
    %c0_124 = arith.constant 0 : index
    %246 = vector.load %arg7[%c1_122, %c0_123, %c0_124] : memref<2x128x512xbf16, #tpu.memory_space<vmem>>, vector<1x128x512xbf16>
    %247 = vector.shape_cast %246 : vector<1x128x512xbf16> to vector<128x512xbf16>
    %cst_125 = arith.constant dense<0.000000e+00> : vector<16x512xf32>
    %248 = tpu.matmul %245, %247, %cst_125 {dimension_numbers = #tpu.dot_dimension_numbers<[1], [0], [0], [1], [0, 0, 1, 1], [], []>} : vector<16x128xbf16>, vector<128x512xbf16>, vector<16x512xf32> -> vector<16x512xf32>
    %249 = arith.addf %242, %248 : vector<16x512xf32>
    %250 = arith.addf %249, %6 : vector<16x512xf32>
    %c1_126 = arith.constant 1 : index
    %c0_127 = arith.constant 0 : index
    %c0_128 = arith.constant 0 : index
    %251 = vector.load %arg10[%c1_126, %c0_127, %c0_128] : memref<2x16x128xf32, #tpu.memory_space<vmem>>, vector<1x16x128xf32>
    %252 = vector.shape_cast %251 : vector<1x16x128xf32> to vector<16x128xf32>
    %253 = vector.extract_strided_slice %250 {offsets = [0, 0], sizes = [16, 128], strides = [1, 1]} : vector<16x512xf32> to vector<16x128xf32>
    %254 = arith.negf %253 : vector<16x128xf32>
    %255 = math.exp %254 : vector<16x128xf32>
    %cst_129 = arith.constant 1.000000e+00 : f32
    %256 = vector.broadcast %cst_129 : f32 to vector<16x128xf32>
    %257 = arith.addf %256, %255 : vector<16x128xf32>
    %258 = arith.divf %256, %257 : vector<16x128xf32>
    %259 = vector.extract_strided_slice %250 {offsets = [0, 128], sizes = [16, 128], strides = [1, 1]} : vector<16x512xf32> to vector<16x128xf32>
    %260 = arith.negf %259 : vector<16x128xf32>
    %261 = math.exp %260 : vector<16x128xf32>
    %cst_130 = arith.constant 1.000000e+00 : f32
    %262 = vector.broadcast %cst_130 : f32 to vector<16x128xf32>
    %263 = arith.addf %262, %261 : vector<16x128xf32>
    %264 = arith.divf %262, %263 : vector<16x128xf32>
    %265 = vector.extract_strided_slice %250 {offsets = [0, 256], sizes = [16, 128], strides = [1, 1]} : vector<16x512xf32> to vector<16x128xf32>
    %266 = math.tanh %265 : vector<16x128xf32>
    %267 = vector.extract_strided_slice %250 {offsets = [0, 384], sizes = [16, 128], strides = [1, 1]} : vector<16x512xf32> to vector<16x128xf32>
    %268 = arith.negf %267 : vector<16x128xf32>
    %269 = math.exp %268 : vector<16x128xf32>
    %cst_131 = arith.constant 1.000000e+00 : f32
    %270 = vector.broadcast %cst_131 : f32 to vector<16x128xf32>
    %271 = arith.addf %270, %269 : vector<16x128xf32>
    %272 = arith.divf %270, %271 : vector<16x128xf32>
    %273 = arith.mulf %264, %252 : vector<16x128xf32>
    %274 = arith.mulf %258, %266 : vector<16x128xf32>
    %275 = arith.addf %273, %274 : vector<16x128xf32>
    %276 = math.tanh %275 : vector<16x128xf32>
    %277 = arith.mulf %272, %276 : vector<16x128xf32>
    %c1_132 = arith.constant 1 : index
    %c0_133 = arith.constant 0 : index
    %c0_134 = arith.constant 0 : index
    %278 = vector.load %arg9[%c1_132, %c0_133, %c0_134] : memref<2x16x128xf32, #tpu.memory_space<vmem>>, vector<1x16x128xf32>
    %279 = vector.shape_cast %278 : vector<1x16x128xf32> to vector<16x128xf32>
    %280 = vector.shape_cast %277 : vector<16x128xf32> to vector<1x16x128xf32>
    tpu.vector_store %arg9[%c1_132, %c0_133, %c0_134], %280 {strides = array<i32>} : memref<2x16x128xf32, #tpu.memory_space<vmem>>, vector<1x16x128xf32>,
    %c1_135 = arith.constant 1 : index
    %c0_136 = arith.constant 0 : index
    %c0_137 = arith.constant 0 : index
    %281 = vector.load %arg10[%c1_135, %c0_136, %c0_137] : memref<2x16x128xf32, #tpu.memory_space<vmem>>, vector<1x16x128xf32>
    %282 = vector.shape_cast %281 : vector<1x16x128xf32> to vector<16x128xf32>
    %283 = vector.shape_cast %275 : vector<16x128xf32> to vector<1x16x128xf32>
    tpu.vector_store %arg10[%c1_135, %c0_136, %c0_137], %283 {strides = array<i32>} : memref<2x16x128xf32, #tpu.memory_space<vmem>>, vector<1x16x128xf32>,
    %284 = arith.truncf %277 : vector<16x128xf32> to vector<16x128xbf16>
    %285 = arith.index_cast %c2_i32 : i32 to index
    %c0_138 = arith.constant 0 : index
    %c0_139 = arith.constant 0 : index
    %286 = vector.load %arg6[%285, %c0_138, %c0_139] : memref<8x16x128xbf16, #tpu.memory_space<vmem>>, vector<1x16x128xbf16>
    %287 = vector.shape_cast %286 : vector<1x16x128xbf16> to vector<16x128xbf16>
    %288 = vector.shape_cast %284 : vector<16x128xbf16> to vector<1x16x128xbf16>
    tpu.vector_store %arg6[%285, %c0_138, %c0_139], %288 {strides = array<i32>} : memref<8x16x128xbf16, #tpu.memory_space<vmem>>, vector<1x16x128xbf16>,
    %c3_i32 = arith.constant 3 : i32
    %289 = arith.index_cast %c3_i32 : i32 to index
    %c0_140 = arith.constant 0 : index
    %c0_141 = arith.constant 0 : index
    %290 = vector.load %arg2[%289, %c0_140, %c0_141] : memref<8x16x512xbf16, #tpu.memory_space<vmem>>, vector<1x16x512xbf16>
    %291 = vector.shape_cast %290 : vector<1x16x512xbf16> to vector<16x512xbf16>
    %292 = arith.extf %291 : vector<16x512xbf16> to vector<16x512xf32>
    %c0_142 = arith.constant 0 : index
    %c0_143 = arith.constant 0 : index
    %c0_144 = arith.constant 0 : index
    %293 = vector.load %arg9[%c0_142, %c0_143, %c0_144] : memref<2x16x128xf32, #tpu.memory_space<vmem>>, vector<1x16x128xf32>
    %294 = vector.shape_cast %293 : vector<1x16x128xf32> to vector<16x128xf32>
    %295 = arith.truncf %294 : vector<16x128xf32> to vector<16x128xbf16>
    %c0_145 = arith.constant 0 : index
    %c0_146 = arith.constant 0 : index
    %c0_147 = arith.constant 0 : index
    %296 = vector.load %arg7[%c0_145, %c0_146, %c0_147] : memref<2x128x512xbf16, #tpu.memory_space<vmem>>, vector<1x128x512xbf16>
    %297 = vector.shape_cast %296 : vector<1x128x512xbf16> to vector<128x512xbf16>
    %cst_148 = arith.constant dense<0.000000e+00> : vector<16x512xf32>
    %298 = tpu.matmul %295, %297, %cst_148 {dimension_numbers = #tpu.dot_dimension_numbers<[1], [0], [0], [1], [0, 0, 1, 1], [], []>} : vector<16x128xbf16>, vector<128x512xbf16>, vector<16x512xf32> -> vector<16x512xf32>
    %299 = arith.addf %292, %298 : vector<16x512xf32>
    %c0_149 = arith.constant 0 : index
    %c0_150 = arith.constant 0 : index
    %c0_151 = arith.constant 0 : index
    %300 = vector.load %arg10[%c0_149, %c0_150, %c0_151] : memref<2x16x128xf32, #tpu.memory_space<vmem>>, vector<1x16x128xf32>
    %301 = vector.shape_cast %300 : vector<1x16x128xf32> to vector<16x128xf32>
    %302 = vector.extract_strided_slice %299 {offsets = [0, 0], sizes = [16, 128], strides = [1, 1]} : vector<16x512xf32> to vector<16x128xf32>
    %303 = arith.negf %302 : vector<16x128xf32>
    %304 = math.exp %303 : vector<16x128xf32>
    %cst_152 = arith.constant 1.000000e+00 : f32
    %305 = vector.broadcast %cst_152 : f32 to vector<16x128xf32>
    %306 = arith.addf %305, %304 : vector<16x128xf32>
    %307 = arith.divf %305, %306 : vector<16x128xf32>
    %308 = vector.extract_strided_slice %299 {offsets = [0, 128], sizes = [16, 128], strides = [1, 1]} : vector<16x512xf32> to vector<16x128xf32>
    %309 = arith.negf %308 : vector<16x128xf32>
    %310 = math.exp %309 : vector<16x128xf32>
    %cst_153 = arith.constant 1.000000e+00 : f32
    %311 = vector.broadcast %cst_153 : f32 to vector<16x128xf32>
    %312 = arith.addf %311, %310 : vector<16x128xf32>
    %313 = arith.divf %311, %312 : vector<16x128xf32>
    %314 = vector.extract_strided_slice %299 {offsets = [0, 256], sizes = [16, 128], strides = [1, 1]} : vector<16x512xf32> to vector<16x128xf32>
    %315 = math.tanh %314 : vector<16x128xf32>
    %316 = vector.extract_strided_slice %299 {offsets = [0, 384], sizes = [16, 128], strides = [1, 1]} : vector<16x512xf32> to vector<16x128xf32>
    %317 = arith.negf %316 : vector<16x128xf32>
    %318 = math.exp %317 : vector<16x128xf32>
    %cst_154 = arith.constant 1.000000e+00 : f32
    %319 = vector.broadcast %cst_154 : f32 to vector<16x128xf32>
    %320 = arith.addf %319, %318 : vector<16x128xf32>
    %321 = arith.divf %319, %320 : vector<16x128xf32>
    %322 = arith.mulf %313, %301 : vector<16x128xf32>
    %323 = arith.mulf %307, %315 : vector<16x128xf32>
    %324 = arith.addf %322, %323 : vector<16x128xf32>
    %325 = math.tanh %324 : vector<16x128xf32>
    %326 = arith.mulf %321, %325 : vector<16x128xf32>
    %c0_155 = arith.constant 0 : index
    %c0_156 = arith.constant 0 : index
    %c0_157 = arith.constant 0 : index
    %327 = vector.load %arg9[%c0_155, %c0_156, %c0_157] : memref<2x16x128xf32, #tpu.memory_space<vmem>>, vector<1x16x128xf32>
    %328 = vector.shape_cast %327 : vector<1x16x128xf32> to vector<16x128xf32>
    %329 = vector.shape_cast %326 : vector<16x128xf32> to vector<1x16x128xf32>
    tpu.vector_store %arg9[%c0_155, %c0_156, %c0_157], %329 {strides = array<i32>} : memref<2x16x128xf32, #tpu.memory_space<vmem>>, vector<1x16x128xf32>,
    %c0_158 = arith.constant 0 : index
    %c0_159 = arith.constant 0 : index
    %c0_160 = arith.constant 0 : index
    %330 = vector.load %arg10[%c0_158, %c0_159, %c0_160] : memref<2x16x128xf32, #tpu.memory_space<vmem>>, vector<1x16x128xf32>
    %331 = vector.shape_cast %330 : vector<1x16x128xf32> to vector<16x128xf32>
    %332 = vector.shape_cast %324 : vector<16x128xf32> to vector<1x16x128xf32>
    tpu.vector_store %arg10[%c0_158, %c0_159, %c0_160], %332 {strides = array<i32>} : memref<2x16x128xf32, #tpu.memory_space<vmem>>, vector<1x16x128xf32>,
    %333 = arith.truncf %326 : vector<16x128xf32> to vector<16x128xbf16>
    %c0_161 = arith.constant 0 : index
    %c0_162 = arith.constant 0 : index
    %c0_163 = arith.constant 0 : index
    %334 = vector.load %arg8[%c0_161, %c0_162, %c0_163] : memref<1x128x512xbf16, #tpu.memory_space<vmem>>, vector<1x128x512xbf16>
    %335 = vector.shape_cast %334 : vector<1x128x512xbf16> to vector<128x512xbf16>
    %cst_164 = arith.constant dense<0.000000e+00> : vector<16x512xf32>
    %336 = tpu.matmul %333, %335, %cst_164 {dimension_numbers = #tpu.dot_dimension_numbers<[1], [0], [0], [1], [0, 0, 1, 1], [], []>} : vector<16x128xbf16>, vector<128x512xbf16>, vector<16x512xf32> -> vector<16x512xf32>
    %c1_165 = arith.constant 1 : index
    %c0_166 = arith.constant 0 : index
    %c0_167 = arith.constant 0 : index
    %337 = vector.load %arg9[%c1_165, %c0_166, %c0_167] : memref<2x16x128xf32, #tpu.memory_space<vmem>>, vector<1x16x128xf32>
    %338 = vector.shape_cast %337 : vector<1x16x128xf32> to vector<16x128xf32>
    %339 = arith.truncf %338 : vector<16x128xf32> to vector<16x128xbf16>
    %c1_168 = arith.constant 1 : index
    %c0_169 = arith.constant 0 : index
    %c0_170 = arith.constant 0 : index
    %340 = vector.load %arg7[%c1_168, %c0_169, %c0_170] : memref<2x128x512xbf16, #tpu.memory_space<vmem>>, vector<1x128x512xbf16>
    %341 = vector.shape_cast %340 : vector<1x128x512xbf16> to vector<128x512xbf16>
    %cst_171 = arith.constant dense<0.000000e+00> : vector<16x512xf32>
    %342 = tpu.matmul %339, %341, %cst_171 {dimension_numbers = #tpu.dot_dimension_numbers<[1], [0], [0], [1], [0, 0, 1, 1], [], []>} : vector<16x128xbf16>, vector<128x512xbf16>, vector<16x512xf32> -> vector<16x512xf32>
    %343 = arith.addf %336, %342 : vector<16x512xf32>
    %344 = arith.addf %343, %6 : vector<16x512xf32>
    %c1_172 = arith.constant 1 : index
    %c0_173 = arith.constant 0 : index
    %c0_174 = arith.constant 0 : index
    %345 = vector.load %arg10[%c1_172, %c0_173, %c0_174] : memref<2x16x128xf32, #tpu.memory_space<vmem>>, vector<1x16x128xf32>
    %346 = vector.shape_cast %345 : vector<1x16x128xf32> to vector<16x128xf32>
    %347 = vector.extract_strided_slice %344 {offsets = [0, 0], sizes = [16, 128], strides = [1, 1]} : vector<16x512xf32> to vector<16x128xf32>
    %348 = arith.negf %347 : vector<16x128xf32>
    %349 = math.exp %348 : vector<16x128xf32>
    %cst_175 = arith.constant 1.000000e+00 : f32
    %350 = vector.broadcast %cst_175 : f32 to vector<16x128xf32>
    %351 = arith.addf %350, %349 : vector<16x128xf32>
    %352 = arith.divf %350, %351 : vector<16x128xf32>
    %353 = vector.extract_strided_slice %344 {offsets = [0, 128], sizes = [16, 128], strides = [1, 1]} : vector<16x512xf32> to vector<16x128xf32>
    %354 = arith.negf %353 : vector<16x128xf32>
    %355 = math.exp %354 : vector<16x128xf32>
    %cst_176 = arith.constant 1.000000e+00 : f32
    %356 = vector.broadcast %cst_176 : f32 to vector<16x128xf32>
    %357 = arith.addf %356, %355 : vector<16x128xf32>
    %358 = arith.divf %356, %357 : vector<16x128xf32>
    %359 = vector.extract_strided_slice %344 {offsets = [0, 256], sizes = [16, 128], strides = [1, 1]} : vector<16x512xf32> to vector<16x128xf32>
    %360 = math.tanh %359 : vector<16x128xf32>
    %361 = vector.extract_strided_slice %344 {offsets = [0, 384], sizes = [16, 128], strides = [1, 1]} : vector<16x512xf32> to vector<16x128xf32>
    %362 = arith.negf %361 : vector<16x128xf32>
    %363 = math.exp %362 : vector<16x128xf32>
    %cst_177 = arith.constant 1.000000e+00 : f32
    %364 = vector.broadcast %cst_177 : f32 to vector<16x128xf32>
    %365 = arith.addf %364, %363 : vector<16x128xf32>
    %366 = arith.divf %364, %365 : vector<16x128xf32>
    %367 = arith.mulf %358, %346 : vector<16x128xf32>
    %368 = arith.mulf %352, %360 : vector<16x128xf32>
    %369 = arith.addf %367, %368 : vector<16x128xf32>
    %370 = math.tanh %369 : vector<16x128xf32>
    %371 = arith.mulf %366, %370 : vector<16x128xf32>
    %c1_178 = arith.constant 1 : index
    %c0_179 = arith.constant 0 : index
    %c0_180 = arith.constant 0 : index
    %372 = vector.load %arg9[%c1_178, %c0_179, %c0_180] : memref<2x16x128xf32, #tpu.memory_space<vmem>>, vector<1x16x128xf32>
    %373 = vector.shape_cast %372 : vector<1x16x128xf32> to vector<16x128xf32>
    %374 = vector.shape_cast %371 : vector<16x128xf32> to vector<1x16x128xf32>
    tpu.vector_store %arg9[%c1_178, %c0_179, %c0_180], %374 {strides = array<i32>} : memref<2x16x128xf32, #tpu.memory_space<vmem>>, vector<1x16x128xf32>,
    %c1_181 = arith.constant 1 : index
    %c0_182 = arith.constant 0 : index
    %c0_183 = arith.constant 0 : index
    %375 = vector.load %arg10[%c1_181, %c0_182, %c0_183] : memref<2x16x128xf32, #tpu.memory_space<vmem>>, vector<1x16x128xf32>
    %376 = vector.shape_cast %375 : vector<1x16x128xf32> to vector<16x128xf32>
    %377 = vector.shape_cast %369 : vector<16x128xf32> to vector<1x16x128xf32>
    tpu.vector_store %arg10[%c1_181, %c0_182, %c0_183], %377 {strides = array<i32>} : memref<2x16x128xf32, #tpu.memory_space<vmem>>, vector<1x16x128xf32>,
    %378 = arith.truncf %371 : vector<16x128xf32> to vector<16x128xbf16>
    %379 = arith.index_cast %c3_i32 : i32 to index
    %c0_184 = arith.constant 0 : index
    %c0_185 = arith.constant 0 : index
    %380 = vector.load %arg6[%379, %c0_184, %c0_185] : memref<8x16x128xbf16, #tpu.memory_space<vmem>>, vector<1x16x128xbf16>
    %381 = vector.shape_cast %380 : vector<1x16x128xbf16> to vector<16x128xbf16>
    %382 = vector.shape_cast %378 : vector<16x128xbf16> to vector<1x16x128xbf16>
    tpu.vector_store %arg6[%379, %c0_184, %c0_185], %382 {strides = array<i32>} : memref<8x16x128xbf16, #tpu.memory_space<vmem>>, vector<1x16x128xbf16>,
    %c4_i32 = arith.constant 4 : i32
    %383 = arith.index_cast %c4_i32 : i32 to index
    %c0_186 = arith.constant 0 : index
    %c0_187 = arith.constant 0 : index
    %384 = vector.load %arg2[%383, %c0_186, %c0_187] : memref<8x16x512xbf16, #tpu.memory_space<vmem>>, vector<1x16x512xbf16>
    %385 = vector.shape_cast %384 : vector<1x16x512xbf16> to vector<16x512xbf16>
    %386 = arith.extf %385 : vector<16x512xbf16> to vector<16x512xf32>
    %c0_188 = arith.constant 0 : index
    %c0_189 = arith.constant 0 : index
    %c0_190 = arith.constant 0 : index
    %387 = vector.load %arg9[%c0_188, %c0_189, %c0_190] : memref<2x16x128xf32, #tpu.memory_space<vmem>>, vector<1x16x128xf32>
    %388 = vector.shape_cast %387 : vector<1x16x128xf32> to vector<16x128xf32>
    %389 = arith.truncf %388 : vector<16x128xf32> to vector<16x128xbf16>
    %c0_191 = arith.constant 0 : index
    %c0_192 = arith.constant 0 : index
    %c0_193 = arith.constant 0 : index
    %390 = vector.load %arg7[%c0_191, %c0_192, %c0_193] : memref<2x128x512xbf16, #tpu.memory_space<vmem>>, vector<1x128x512xbf16>
    %391 = vector.shape_cast %390 : vector<1x128x512xbf16> to vector<128x512xbf16>
    %cst_194 = arith.constant dense<0.000000e+00> : vector<16x512xf32>
    %392 = tpu.matmul %389, %391, %cst_194 {dimension_numbers = #tpu.dot_dimension_numbers<[1], [0], [0], [1], [0, 0, 1, 1], [], []>} : vector<16x128xbf16>, vector<128x512xbf16>, vector<16x512xf32> -> vector<16x512xf32>
    %393 = arith.addf %386, %392 : vector<16x512xf32>
    %c0_195 = arith.constant 0 : index
    %c0_196 = arith.constant 0 : index
    %c0_197 = arith.constant 0 : index
    %394 = vector.load %arg10[%c0_195, %c0_196, %c0_197] : memref<2x16x128xf32, #tpu.memory_space<vmem>>, vector<1x16x128xf32>
    %395 = vector.shape_cast %394 : vector<1x16x128xf32> to vector<16x128xf32>
    %396 = vector.extract_strided_slice %393 {offsets = [0, 0], sizes = [16, 128], strides = [1, 1]} : vector<16x512xf32> to vector<16x128xf32>
    %397 = arith.negf %396 : vector<16x128xf32>
    %398 = math.exp %397 : vector<16x128xf32>
    %cst_198 = arith.constant 1.000000e+00 : f32
    %399 = vector.broadcast %cst_198 : f32 to vector<16x128xf32>
    %400 = arith.addf %399, %398 : vector<16x128xf32>
    %401 = arith.divf %399, %400 : vector<16x128xf32>
    %402 = vector.extract_strided_slice %393 {offsets = [0, 128], sizes = [16, 128], strides = [1, 1]} : vector<16x512xf32> to vector<16x128xf32>
    %403 = arith.negf %402 : vector<16x128xf32>
    %404 = math.exp %403 : vector<16x128xf32>
    %cst_199 = arith.constant 1.000000e+00 : f32
    %405 = vector.broadcast %cst_199 : f32 to vector<16x128xf32>
    %406 = arith.addf %405, %404 : vector<16x128xf32>
    %407 = arith.divf %405, %406 : vector<16x128xf32>
    %408 = vector.extract_strided_slice %393 {offsets = [0, 256], sizes = [16, 128], strides = [1, 1]} : vector<16x512xf32> to vector<16x128xf32>
    %409 = math.tanh %408 : vector<16x128xf32>
    %410 = vector.extract_strided_slice %393 {offsets = [0, 384], sizes = [16, 128], strides = [1, 1]} : vector<16x512xf32> to vector<16x128xf32>
    %411 = arith.negf %410 : vector<16x128xf32>
    %412 = math.exp %411 : vector<16x128xf32>
    %cst_200 = arith.constant 1.000000e+00 : f32
    %413 = vector.broadcast %cst_200 : f32 to vector<16x128xf32>
    %414 = arith.addf %413, %412 : vector<16x128xf32>
    %415 = arith.divf %413, %414 : vector<16x128xf32>
    %416 = arith.mulf %407, %395 : vector<16x128xf32>
    %417 = arith.mulf %401, %409 : vector<16x128xf32>
    %418 = arith.addf %416, %417 : vector<16x128xf32>
    %419 = math.tanh %418 : vector<16x128xf32>
    %420 = arith.mulf %415, %419 : vector<16x128xf32>
    %c0_201 = arith.constant 0 : index
    %c0_202 = arith.constant 0 : index
    %c0_203 = arith.constant 0 : index
    %421 = vector.load %arg9[%c0_201, %c0_202, %c0_203] : memref<2x16x128xf32, #tpu.memory_space<vmem>>, vector<1x16x128xf32>
    %422 = vector.shape_cast %421 : vector<1x16x128xf32> to vector<16x128xf32>
    %423 = vector.shape_cast %420 : vector<16x128xf32> to vector<1x16x128xf32>
    tpu.vector_store %arg9[%c0_201, %c0_202, %c0_203], %423 {strides = array<i32>} : memref<2x16x128xf32, #tpu.memory_space<vmem>>, vector<1x16x128xf32>,
    %c0_204 = arith.constant 0 : index
    %c0_205 = arith.constant 0 : index
    %c0_206 = arith.constant 0 : index
    %424 = vector.load %arg10[%c0_204, %c0_205, %c0_206] : memref<2x16x128xf32, #tpu.memory_space<vmem>>, vector<1x16x128xf32>
    %425 = vector.shape_cast %424 : vector<1x16x128xf32> to vector<16x128xf32>
    %426 = vector.shape_cast %418 : vector<16x128xf32> to vector<1x16x128xf32>
    tpu.vector_store %arg10[%c0_204, %c0_205, %c0_206], %426 {strides = array<i32>} : memref<2x16x128xf32, #tpu.memory_space<vmem>>, vector<1x16x128xf32>,
    %427 = arith.truncf %420 : vector<16x128xf32> to vector<16x128xbf16>
    %c0_207 = arith.constant 0 : index
    %c0_208 = arith.constant 0 : index
    %c0_209 = arith.constant 0 : index
    %428 = vector.load %arg8[%c0_207, %c0_208, %c0_209] : memref<1x128x512xbf16, #tpu.memory_space<vmem>>, vector<1x128x512xbf16>
    %429 = vector.shape_cast %428 : vector<1x128x512xbf16> to vector<128x512xbf16>
    %cst_210 = arith.constant dense<0.000000e+00> : vector<16x512xf32>
    %430 = tpu.matmul %427, %429, %cst_210 {dimension_numbers = #tpu.dot_dimension_numbers<[1], [0], [0], [1], [0, 0, 1, 1], [], []>} : vector<16x128xbf16>, vector<128x512xbf16>, vector<16x512xf32> -> vector<16x512xf32>
    %c1_211 = arith.constant 1 : index
    %c0_212 = arith.constant 0 : index
    %c0_213 = arith.constant 0 : index
    %431 = vector.load %arg9[%c1_211, %c0_212, %c0_213] : memref<2x16x128xf32, #tpu.memory_space<vmem>>, vector<1x16x128xf32>
    %432 = vector.shape_cast %431 : vector<1x16x128xf32> to vector<16x128xf32>
    %433 = arith.truncf %432 : vector<16x128xf32> to vector<16x128xbf16>
    %c1_214 = arith.constant 1 : index
    %c0_215 = arith.constant 0 : index
    %c0_216 = arith.constant 0 : index
    %434 = vector.load %arg7[%c1_214, %c0_215, %c0_216] : memref<2x128x512xbf16, #tpu.memory_space<vmem>>, vector<1x128x512xbf16>
    %435 = vector.shape_cast %434 : vector<1x128x512xbf16> to vector<128x512xbf16>
    %cst_217 = arith.constant dense<0.000000e+00> : vector<16x512xf32>
    %436 = tpu.matmul %433, %435, %cst_217 {dimension_numbers = #tpu.dot_dimension_numbers<[1], [0], [0], [1], [0, 0, 1, 1], [], []>} : vector<16x128xbf16>, vector<128x512xbf16>, vector<16x512xf32> -> vector<16x512xf32>
    %437 = arith.addf %430, %436 : vector<16x512xf32>
    %438 = arith.addf %437, %6 : vector<16x512xf32>
    %c1_218 = arith.constant 1 : index
    %c0_219 = arith.constant 0 : index
    %c0_220 = arith.constant 0 : index
    %439 = vector.load %arg10[%c1_218, %c0_219, %c0_220] : memref<2x16x128xf32, #tpu.memory_space<vmem>>, vector<1x16x128xf32>
    %440 = vector.shape_cast %439 : vector<1x16x128xf32> to vector<16x128xf32>
    %441 = vector.extract_strided_slice %438 {offsets = [0, 0], sizes = [16, 128], strides = [1, 1]} : vector<16x512xf32> to vector<16x128xf32>
    %442 = arith.negf %441 : vector<16x128xf32>
    %443 = math.exp %442 : vector<16x128xf32>
    %cst_221 = arith.constant 1.000000e+00 : f32
    %444 = vector.broadcast %cst_221 : f32 to vector<16x128xf32>
    %445 = arith.addf %444, %443 : vector<16x128xf32>
    %446 = arith.divf %444, %445 : vector<16x128xf32>
    %447 = vector.extract_strided_slice %438 {offsets = [0, 128], sizes = [16, 128], strides = [1, 1]} : vector<16x512xf32> to vector<16x128xf32>
    %448 = arith.negf %447 : vector<16x128xf32>
    %449 = math.exp %448 : vector<16x128xf32>
    %cst_222 = arith.constant 1.000000e+00 : f32
    %450 = vector.broadcast %cst_222 : f32 to vector<16x128xf32>
    %451 = arith.addf %450, %449 : vector<16x128xf32>
    %452 = arith.divf %450, %451 : vector<16x128xf32>
    %453 = vector.extract_strided_slice %438 {offsets = [0, 256], sizes = [16, 128], strides = [1, 1]} : vector<16x512xf32> to vector<16x128xf32>
    %454 = math.tanh %453 : vector<16x128xf32>
    %455 = vector.extract_strided_slice %438 {offsets = [0, 384], sizes = [16, 128], strides = [1, 1]} : vector<16x512xf32> to vector<16x128xf32>
    %456 = arith.negf %455 : vector<16x128xf32>
    %457 = math.exp %456 : vector<16x128xf32>
    %cst_223 = arith.constant 1.000000e+00 : f32
    %458 = vector.broadcast %cst_223 : f32 to vector<16x128xf32>
    %459 = arith.addf %458, %457 : vector<16x128xf32>
    %460 = arith.divf %458, %459 : vector<16x128xf32>
    %461 = arith.mulf %452, %440 : vector<16x128xf32>
    %462 = arith.mulf %446, %454 : vector<16x128xf32>
    %463 = arith.addf %461, %462 : vector<16x128xf32>
    %464 = math.tanh %463 : vector<16x128xf32>
    %465 = arith.mulf %460, %464 : vector<16x128xf32>
    %c1_224 = arith.constant 1 : index
    %c0_225 = arith.constant 0 : index
    %c0_226 = arith.constant 0 : index
    %466 = vector.load %arg9[%c1_224, %c0_225, %c0_226] : memref<2x16x128xf32, #tpu.memory_space<vmem>>, vector<1x16x128xf32>
    %467 = vector.shape_cast %466 : vector<1x16x128xf32> to vector<16x128xf32>
    %468 = vector.shape_cast %465 : vector<16x128xf32> to vector<1x16x128xf32>
    tpu.vector_store %arg9[%c1_224, %c0_225, %c0_226], %468 {strides = array<i32>} : memref<2x16x128xf32, #tpu.memory_space<vmem>>, vector<1x16x128xf32>,
    %c1_227 = arith.constant 1 : index
    %c0_228 = arith.constant 0 : index
    %c0_229 = arith.constant 0 : index
    %469 = vector.load %arg10[%c1_227, %c0_228, %c0_229] : memref<2x16x128xf32, #tpu.memory_space<vmem>>, vector<1x16x128xf32>
    %470 = vector.shape_cast %469 : vector<1x16x128xf32> to vector<16x128xf32>
    %471 = vector.shape_cast %463 : vector<16x128xf32> to vector<1x16x128xf32>
    tpu.vector_store %arg10[%c1_227, %c0_228, %c0_229], %471 {strides = array<i32>} : memref<2x16x128xf32, #tpu.memory_space<vmem>>, vector<1x16x128xf32>,
    %472 = arith.truncf %465 : vector<16x128xf32> to vector<16x128xbf16>
    %473 = arith.index_cast %c4_i32 : i32 to index
    %c0_230 = arith.constant 0 : index
    %c0_231 = arith.constant 0 : index
    %474 = vector.load %arg6[%473, %c0_230, %c0_231] : memref<8x16x128xbf16, #tpu.memory_space<vmem>>, vector<1x16x128xbf16>
    %475 = vector.shape_cast %474 : vector<1x16x128xbf16> to vector<16x128xbf16>
    %476 = vector.shape_cast %472 : vector<16x128xbf16> to vector<1x16x128xbf16>
    tpu.vector_store %arg6[%473, %c0_230, %c0_231], %476 {strides = array<i32>} : memref<8x16x128xbf16, #tpu.memory_space<vmem>>, vector<1x16x128xbf16>,
    %c5_i32 = arith.constant 5 : i32
    %477 = arith.index_cast %c5_i32 : i32 to index
    %c0_232 = arith.constant 0 : index
    %c0_233 = arith.constant 0 : index
    %478 = vector.load %arg2[%477, %c0_232, %c0_233] : memref<8x16x512xbf16, #tpu.memory_space<vmem>>, vector<1x16x512xbf16>
    %479 = vector.shape_cast %478 : vector<1x16x512xbf16> to vector<16x512xbf16>
    %480 = arith.extf %479 : vector<16x512xbf16> to vector<16x512xf32>
    %c0_234 = arith.constant 0 : index
    %c0_235 = arith.constant 0 : index
    %c0_236 = arith.constant 0 : index
    %481 = vector.load %arg9[%c0_234, %c0_235, %c0_236] : memref<2x16x128xf32, #tpu.memory_space<vmem>>, vector<1x16x128xf32>
    %482 = vector.shape_cast %481 : vector<1x16x128xf32> to vector<16x128xf32>
    %483 = arith.truncf %482 : vector<16x128xf32> to vector<16x128xbf16>
    %c0_237 = arith.constant 0 : index
    %c0_238 = arith.constant 0 : index
    %c0_239 = arith.constant 0 : index
    %484 = vector.load %arg7[%c0_237, %c0_238, %c0_239] : memref<2x128x512xbf16, #tpu.memory_space<vmem>>, vector<1x128x512xbf16>
    %485 = vector.shape_cast %484 : vector<1x128x512xbf16> to vector<128x512xbf16>
    %cst_240 = arith.constant dense<0.000000e+00> : vector<16x512xf32>
    %486 = tpu.matmul %483, %485, %cst_240 {dimension_numbers = #tpu.dot_dimension_numbers<[1], [0], [0], [1], [0, 0, 1, 1], [], []>} : vector<16x128xbf16>, vector<128x512xbf16>, vector<16x512xf32> -> vector<16x512xf32>
    %487 = arith.addf %480, %486 : vector<16x512xf32>
    %c0_241 = arith.constant 0 : index
    %c0_242 = arith.constant 0 : index
    %c0_243 = arith.constant 0 : index
    %488 = vector.load %arg10[%c0_241, %c0_242, %c0_243] : memref<2x16x128xf32, #tpu.memory_space<vmem>>, vector<1x16x128xf32>
    %489 = vector.shape_cast %488 : vector<1x16x128xf32> to vector<16x128xf32>
    %490 = vector.extract_strided_slice %487 {offsets = [0, 0], sizes = [16, 128], strides = [1, 1]} : vector<16x512xf32> to vector<16x128xf32>
    %491 = arith.negf %490 : vector<16x128xf32>
    %492 = math.exp %491 : vector<16x128xf32>
    %cst_244 = arith.constant 1.000000e+00 : f32
    %493 = vector.broadcast %cst_244 : f32 to vector<16x128xf32>
    %494 = arith.addf %493, %492 : vector<16x128xf32>
    %495 = arith.divf %493, %494 : vector<16x128xf32>
    %496 = vector.extract_strided_slice %487 {offsets = [0, 128], sizes = [16, 128], strides = [1, 1]} : vector<16x512xf32> to vector<16x128xf32>
    %497 = arith.negf %496 : vector<16x128xf32>
    %498 = math.exp %497 : vector<16x128xf32>
    %cst_245 = arith.constant 1.000000e+00 : f32
    %499 = vector.broadcast %cst_245 : f32 to vector<16x128xf32>
    %500 = arith.addf %499, %498 : vector<16x128xf32>
    %501 = arith.divf %499, %500 : vector<16x128xf32>
    %502 = vector.extract_strided_slice %487 {offsets = [0, 256], sizes = [16, 128], strides = [1, 1]} : vector<16x512xf32> to vector<16x128xf32>
    %503 = math.tanh %502 : vector<16x128xf32>
    %504 = vector.extract_strided_slice %487 {offsets = [0, 384], sizes = [16, 128], strides = [1, 1]} : vector<16x512xf32> to vector<16x128xf32>
    %505 = arith.negf %504 : vector<16x128xf32>
    %506 = math.exp %505 : vector<16x128xf32>
    %cst_246 = arith.constant 1.000000e+00 : f32
    %507 = vector.broadcast %cst_246 : f32 to vector<16x128xf32>
    %508 = arith.addf %507, %506 : vector<16x128xf32>
    %509 = arith.divf %507, %508 : vector<16x128xf32>
    %510 = arith.mulf %501, %489 : vector<16x128xf32>
    %511 = arith.mulf %495, %503 : vector<16x128xf32>
    %512 = arith.addf %510, %511 : vector<16x128xf32>
    %513 = math.tanh %512 : vector<16x128xf32>
    %514 = arith.mulf %509, %513 : vector<16x128xf32>
    %c0_247 = arith.constant 0 : index
    %c0_248 = arith.constant 0 : index
    %c0_249 = arith.constant 0 : index
    %515 = vector.load %arg9[%c0_247, %c0_248, %c0_249] : memref<2x16x128xf32, #tpu.memory_space<vmem>>, vector<1x16x128xf32>
    %516 = vector.shape_cast %515 : vector<1x16x128xf32> to vector<16x128xf32>
    %517 = vector.shape_cast %514 : vector<16x128xf32> to vector<1x16x128xf32>
    tpu.vector_store %arg9[%c0_247, %c0_248, %c0_249], %517 {strides = array<i32>} : memref<2x16x128xf32, #tpu.memory_space<vmem>>, vector<1x16x128xf32>,
    %c0_250 = arith.constant 0 : index
    %c0_251 = arith.constant 0 : index
    %c0_252 = arith.constant 0 : index
    %518 = vector.load %arg10[%c0_250, %c0_251, %c0_252] : memref<2x16x128xf32, #tpu.memory_space<vmem>>, vector<1x16x128xf32>
    %519 = vector.shape_cast %518 : vector<1x16x128xf32> to vector<16x128xf32>
    %520 = vector.shape_cast %512 : vector<16x128xf32> to vector<1x16x128xf32>
    tpu.vector_store %arg10[%c0_250, %c0_251, %c0_252], %520 {strides = array<i32>} : memref<2x16x128xf32, #tpu.memory_space<vmem>>, vector<1x16x128xf32>,
    %521 = arith.truncf %514 : vector<16x128xf32> to vector<16x128xbf16>
    %c0_253 = arith.constant 0 : index
    %c0_254 = arith.constant 0 : index
    %c0_255 = arith.constant 0 : index
    %522 = vector.load %arg8[%c0_253, %c0_254, %c0_255] : memref<1x128x512xbf16, #tpu.memory_space<vmem>>, vector<1x128x512xbf16>
    %523 = vector.shape_cast %522 : vector<1x128x512xbf16> to vector<128x512xbf16>
    %cst_256 = arith.constant dense<0.000000e+00> : vector<16x512xf32>
    %524 = tpu.matmul %521, %523, %cst_256 {dimension_numbers = #tpu.dot_dimension_numbers<[1], [0], [0], [1], [0, 0, 1, 1], [], []>} : vector<16x128xbf16>, vector<128x512xbf16>, vector<16x512xf32> -> vector<16x512xf32>
    %c1_257 = arith.constant 1 : index
    %c0_258 = arith.constant 0 : index
    %c0_259 = arith.constant 0 : index
    %525 = vector.load %arg9[%c1_257, %c0_258, %c0_259] : memref<2x16x128xf32, #tpu.memory_space<vmem>>, vector<1x16x128xf32>
    %526 = vector.shape_cast %525 : vector<1x16x128xf32> to vector<16x128xf32>
    %527 = arith.truncf %526 : vector<16x128xf32> to vector<16x128xbf16>
    %c1_260 = arith.constant 1 : index
    %c0_261 = arith.constant 0 : index
    %c0_262 = arith.constant 0 : index
    %528 = vector.load %arg7[%c1_260, %c0_261, %c0_262] : memref<2x128x512xbf16, #tpu.memory_space<vmem>>, vector<1x128x512xbf16>
    %529 = vector.shape_cast %528 : vector<1x128x512xbf16> to vector<128x512xbf16>
    %cst_263 = arith.constant dense<0.000000e+00> : vector<16x512xf32>
    %530 = tpu.matmul %527, %529, %cst_263 {dimension_numbers = #tpu.dot_dimension_numbers<[1], [0], [0], [1], [0, 0, 1, 1], [], []>} : vector<16x128xbf16>, vector<128x512xbf16>, vector<16x512xf32> -> vector<16x512xf32>
    %531 = arith.addf %524, %530 : vector<16x512xf32>
    %532 = arith.addf %531, %6 : vector<16x512xf32>
    %c1_264 = arith.constant 1 : index
    %c0_265 = arith.constant 0 : index
    %c0_266 = arith.constant 0 : index
    %533 = vector.load %arg10[%c1_264, %c0_265, %c0_266] : memref<2x16x128xf32, #tpu.memory_space<vmem>>, vector<1x16x128xf32>
    %534 = vector.shape_cast %533 : vector<1x16x128xf32> to vector<16x128xf32>
    %535 = vector.extract_strided_slice %532 {offsets = [0, 0], sizes = [16, 128], strides = [1, 1]} : vector<16x512xf32> to vector<16x128xf32>
    %536 = arith.negf %535 : vector<16x128xf32>
    %537 = math.exp %536 : vector<16x128xf32>
    %cst_267 = arith.constant 1.000000e+00 : f32
    %538 = vector.broadcast %cst_267 : f32 to vector<16x128xf32>
    %539 = arith.addf %538, %537 : vector<16x128xf32>
    %540 = arith.divf %538, %539 : vector<16x128xf32>
    %541 = vector.extract_strided_slice %532 {offsets = [0, 128], sizes = [16, 128], strides = [1, 1]} : vector<16x512xf32> to vector<16x128xf32>
    %542 = arith.negf %541 : vector<16x128xf32>
    %543 = math.exp %542 : vector<16x128xf32>
    %cst_268 = arith.constant 1.000000e+00 : f32
    %544 = vector.broadcast %cst_268 : f32 to vector<16x128xf32>
    %545 = arith.addf %544, %543 : vector<16x128xf32>
    %546 = arith.divf %544, %545 : vector<16x128xf32>
    %547 = vector.extract_strided_slice %532 {offsets = [0, 256], sizes = [16, 128], strides = [1, 1]} : vector<16x512xf32> to vector<16x128xf32>
    %548 = math.tanh %547 : vector<16x128xf32>
    %549 = vector.extract_strided_slice %532 {offsets = [0, 384], sizes = [16, 128], strides = [1, 1]} : vector<16x512xf32> to vector<16x128xf32>
    %550 = arith.negf %549 : vector<16x128xf32>
    %551 = math.exp %550 : vector<16x128xf32>
    %cst_269 = arith.constant 1.000000e+00 : f32
    %552 = vector.broadcast %cst_269 : f32 to vector<16x128xf32>
    %553 = arith.addf %552, %551 : vector<16x128xf32>
    %554 = arith.divf %552, %553 : vector<16x128xf32>
    %555 = arith.mulf %546, %534 : vector<16x128xf32>
    %556 = arith.mulf %540, %548 : vector<16x128xf32>
    %557 = arith.addf %555, %556 : vector<16x128xf32>
    %558 = math.tanh %557 : vector<16x128xf32>
    %559 = arith.mulf %554, %558 : vector<16x128xf32>
    %c1_270 = arith.constant 1 : index
    %c0_271 = arith.constant 0 : index
    %c0_272 = arith.constant 0 : index
    %560 = vector.load %arg9[%c1_270, %c0_271, %c0_272] : memref<2x16x128xf32, #tpu.memory_space<vmem>>, vector<1x16x128xf32>
    %561 = vector.shape_cast %560 : vector<1x16x128xf32> to vector<16x128xf32>
    %562 = vector.shape_cast %559 : vector<16x128xf32> to vector<1x16x128xf32>
    tpu.vector_store %arg9[%c1_270, %c0_271, %c0_272], %562 {strides = array<i32>} : memref<2x16x128xf32, #tpu.memory_space<vmem>>, vector<1x16x128xf32>,
    %c1_273 = arith.constant 1 : index
    %c0_274 = arith.constant 0 : index
    %c0_275 = arith.constant 0 : index
    %563 = vector.load %arg10[%c1_273, %c0_274, %c0_275] : memref<2x16x128xf32, #tpu.memory_space<vmem>>, vector<1x16x128xf32>
    %564 = vector.shape_cast %563 : vector<1x16x128xf32> to vector<16x128xf32>
    %565 = vector.shape_cast %557 : vector<16x128xf32> to vector<1x16x128xf32>
    tpu.vector_store %arg10[%c1_273, %c0_274, %c0_275], %565 {strides = array<i32>} : memref<2x16x128xf32, #tpu.memory_space<vmem>>, vector<1x16x128xf32>,
    %566 = arith.truncf %559 : vector<16x128xf32> to vector<16x128xbf16>
    %567 = arith.index_cast %c5_i32 : i32 to index
    %c0_276 = arith.constant 0 : index
    %c0_277 = arith.constant 0 : index
    %568 = vector.load %arg6[%567, %c0_276, %c0_277] : memref<8x16x128xbf16, #tpu.memory_space<vmem>>, vector<1x16x128xbf16>
    %569 = vector.shape_cast %568 : vector<1x16x128xbf16> to vector<16x128xbf16>
    %570 = vector.shape_cast %566 : vector<16x128xbf16> to vector<1x16x128xbf16>
    tpu.vector_store %arg6[%567, %c0_276, %c0_277], %570 {strides = array<i32>} : memref<8x16x128xbf16, #tpu.memory_space<vmem>>, vector<1x16x128xbf16>,
    %c6_i32 = arith.constant 6 : i32
    %571 = arith.index_cast %c6_i32 : i32 to index
    %c0_278 = arith.constant 0 : index
    %c0_279 = arith.constant 0 : index
    %572 = vector.load %arg2[%571, %c0_278, %c0_279] : memref<8x16x512xbf16, #tpu.memory_space<vmem>>, vector<1x16x512xbf16>
    %573 = vector.shape_cast %572 : vector<1x16x512xbf16> to vector<16x512xbf16>
    %574 = arith.extf %573 : vector<16x512xbf16> to vector<16x512xf32>
    %c0_280 = arith.constant 0 : index
    %c0_281 = arith.constant 0 : index
    %c0_282 = arith.constant 0 : index
    %575 = vector.load %arg9[%c0_280, %c0_281, %c0_282] : memref<2x16x128xf32, #tpu.memory_space<vmem>>, vector<1x16x128xf32>
    %576 = vector.shape_cast %575 : vector<1x16x128xf32> to vector<16x128xf32>
    %577 = arith.truncf %576 : vector<16x128xf32> to vector<16x128xbf16>
    %c0_283 = arith.constant 0 : index
    %c0_284 = arith.constant 0 : index
    %c0_285 = arith.constant 0 : index
    %578 = vector.load %arg7[%c0_283, %c0_284, %c0_285] : memref<2x128x512xbf16, #tpu.memory_space<vmem>>, vector<1x128x512xbf16>
    %579 = vector.shape_cast %578 : vector<1x128x512xbf16> to vector<128x512xbf16>
    %cst_286 = arith.constant dense<0.000000e+00> : vector<16x512xf32>
    %580 = tpu.matmul %577, %579, %cst_286 {dimension_numbers = #tpu.dot_dimension_numbers<[1], [0], [0], [1], [0, 0, 1, 1], [], []>} : vector<16x128xbf16>, vector<128x512xbf16>, vector<16x512xf32> -> vector<16x512xf32>
    %581 = arith.addf %574, %580 : vector<16x512xf32>
    %c0_287 = arith.constant 0 : index
    %c0_288 = arith.constant 0 : index
    %c0_289 = arith.constant 0 : index
    %582 = vector.load %arg10[%c0_287, %c0_288, %c0_289] : memref<2x16x128xf32, #tpu.memory_space<vmem>>, vector<1x16x128xf32>
    %583 = vector.shape_cast %582 : vector<1x16x128xf32> to vector<16x128xf32>
    %584 = vector.extract_strided_slice %581 {offsets = [0, 0], sizes = [16, 128], strides = [1, 1]} : vector<16x512xf32> to vector<16x128xf32>
    %585 = arith.negf %584 : vector<16x128xf32>
    %586 = math.exp %585 : vector<16x128xf32>
    %cst_290 = arith.constant 1.000000e+00 : f32
    %587 = vector.broadcast %cst_290 : f32 to vector<16x128xf32>
    %588 = arith.addf %587, %586 : vector<16x128xf32>
    %589 = arith.divf %587, %588 : vector<16x128xf32>
    %590 = vector.extract_strided_slice %581 {offsets = [0, 128], sizes = [16, 128], strides = [1, 1]} : vector<16x512xf32> to vector<16x128xf32>
    %591 = arith.negf %590 : vector<16x128xf32>
    %592 = math.exp %591 : vector<16x128xf32>
    %cst_291 = arith.constant 1.000000e+00 : f32
    %593 = vector.broadcast %cst_291 : f32 to vector<16x128xf32>
    %594 = arith.addf %593, %592 : vector<16x128xf32>
    %595 = arith.divf %593, %594 : vector<16x128xf32>
    %596 = vector.extract_strided_slice %581 {offsets = [0, 256], sizes = [16, 128], strides = [1, 1]} : vector<16x512xf32> to vector<16x128xf32>
    %597 = math.tanh %596 : vector<16x128xf32>
    %598 = vector.extract_strided_slice %581 {offsets = [0, 384], sizes = [16, 128], strides = [1, 1]} : vector<16x512xf32> to vector<16x128xf32>
    %599 = arith.negf %598 : vector<16x128xf32>
    %600 = math.exp %599 : vector<16x128xf32>
    %cst_292 = arith.constant 1.000000e+00 : f32
    %601 = vector.broadcast %cst_292 : f32 to vector<16x128xf32>
    %602 = arith.addf %601, %600 : vector<16x128xf32>
    %603 = arith.divf %601, %602 : vector<16x128xf32>
    %604 = arith.mulf %595, %583 : vector<16x128xf32>
    %605 = arith.mulf %589, %597 : vector<16x128xf32>
    %606 = arith.addf %604, %605 : vector<16x128xf32>
    %607 = math.tanh %606 : vector<16x128xf32>
    %608 = arith.mulf %603, %607 : vector<16x128xf32>
    %c0_293 = arith.constant 0 : index
    %c0_294 = arith.constant 0 : index
    %c0_295 = arith.constant 0 : index
    %609 = vector.load %arg9[%c0_293, %c0_294, %c0_295] : memref<2x16x128xf32, #tpu.memory_space<vmem>>, vector<1x16x128xf32>
    %610 = vector.shape_cast %609 : vector<1x16x128xf32> to vector<16x128xf32>
    %611 = vector.shape_cast %608 : vector<16x128xf32> to vector<1x16x128xf32>
    tpu.vector_store %arg9[%c0_293, %c0_294, %c0_295], %611 {strides = array<i32>} : memref<2x16x128xf32, #tpu.memory_space<vmem>>, vector<1x16x128xf32>,
    %c0_296 = arith.constant 0 : index
    %c0_297 = arith.constant 0 : index
    %c0_298 = arith.constant 0 : index
    %612 = vector.load %arg10[%c0_296, %c0_297, %c0_298] : memref<2x16x128xf32, #tpu.memory_space<vmem>>, vector<1x16x128xf32>
    %613 = vector.shape_cast %612 : vector<1x16x128xf32> to vector<16x128xf32>
    %614 = vector.shape_cast %606 : vector<16x128xf32> to vector<1x16x128xf32>
    tpu.vector_store %arg10[%c0_296, %c0_297, %c0_298], %614 {strides = array<i32>} : memref<2x16x128xf32, #tpu.memory_space<vmem>>, vector<1x16x128xf32>,
    %615 = arith.truncf %608 : vector<16x128xf32> to vector<16x128xbf16>
    %c0_299 = arith.constant 0 : index
    %c0_300 = arith.constant 0 : index
    %c0_301 = arith.constant 0 : index
    %616 = vector.load %arg8[%c0_299, %c0_300, %c0_301] : memref<1x128x512xbf16, #tpu.memory_space<vmem>>, vector<1x128x512xbf16>
    %617 = vector.shape_cast %616 : vector<1x128x512xbf16> to vector<128x512xbf16>
    %cst_302 = arith.constant dense<0.000000e+00> : vector<16x512xf32>
    %618 = tpu.matmul %615, %617, %cst_302 {dimension_numbers = #tpu.dot_dimension_numbers<[1], [0], [0], [1], [0, 0, 1, 1], [], []>} : vector<16x128xbf16>, vector<128x512xbf16>, vector<16x512xf32> -> vector<16x512xf32>
    %c1_303 = arith.constant 1 : index
    %c0_304 = arith.constant 0 : index
    %c0_305 = arith.constant 0 : index
    %619 = vector.load %arg9[%c1_303, %c0_304, %c0_305] : memref<2x16x128xf32, #tpu.memory_space<vmem>>, vector<1x16x128xf32>
    %620 = vector.shape_cast %619 : vector<1x16x128xf32> to vector<16x128xf32>
    %621 = arith.truncf %620 : vector<16x128xf32> to vector<16x128xbf16>
    %c1_306 = arith.constant 1 : index
    %c0_307 = arith.constant 0 : index
    %c0_308 = arith.constant 0 : index
    %622 = vector.load %arg7[%c1_306, %c0_307, %c0_308] : memref<2x128x512xbf16, #tpu.memory_space<vmem>>, vector<1x128x512xbf16>
    %623 = vector.shape_cast %622 : vector<1x128x512xbf16> to vector<128x512xbf16>
    %cst_309 = arith.constant dense<0.000000e+00> : vector<16x512xf32>
    %624 = tpu.matmul %621, %623, %cst_309 {dimension_numbers = #tpu.dot_dimension_numbers<[1], [0], [0], [1], [0, 0, 1, 1], [], []>} : vector<16x128xbf16>, vector<128x512xbf16>, vector<16x512xf32> -> vector<16x512xf32>
    %625 = arith.addf %618, %624 : vector<16x512xf32>
    %626 = arith.addf %625, %6 : vector<16x512xf32>
    %c1_310 = arith.constant 1 : index
    %c0_311 = arith.constant 0 : index
    %c0_312 = arith.constant 0 : index
    %627 = vector.load %arg10[%c1_310, %c0_311, %c0_312] : memref<2x16x128xf32, #tpu.memory_space<vmem>>, vector<1x16x128xf32>
    %628 = vector.shape_cast %627 : vector<1x16x128xf32> to vector<16x128xf32>
    %629 = vector.extract_strided_slice %626 {offsets = [0, 0], sizes = [16, 128], strides = [1, 1]} : vector<16x512xf32> to vector<16x128xf32>
    %630 = arith.negf %629 : vector<16x128xf32>
    %631 = math.exp %630 : vector<16x128xf32>
    %cst_313 = arith.constant 1.000000e+00 : f32
    %632 = vector.broadcast %cst_313 : f32 to vector<16x128xf32>
    %633 = arith.addf %632, %631 : vector<16x128xf32>
    %634 = arith.divf %632, %633 : vector<16x128xf32>
    %635 = vector.extract_strided_slice %626 {offsets = [0, 128], sizes = [16, 128], strides = [1, 1]} : vector<16x512xf32> to vector<16x128xf32>
    %636 = arith.negf %635 : vector<16x128xf32>
    %637 = math.exp %636 : vector<16x128xf32>
    %cst_314 = arith.constant 1.000000e+00 : f32
    %638 = vector.broadcast %cst_314 : f32 to vector<16x128xf32>
    %639 = arith.addf %638, %637 : vector<16x128xf32>
    %640 = arith.divf %638, %639 : vector<16x128xf32>
    %641 = vector.extract_strided_slice %626 {offsets = [0, 256], sizes = [16, 128], strides = [1, 1]} : vector<16x512xf32> to vector<16x128xf32>
    %642 = math.tanh %641 : vector<16x128xf32>
    %643 = vector.extract_strided_slice %626 {offsets = [0, 384], sizes = [16, 128], strides = [1, 1]} : vector<16x512xf32> to vector<16x128xf32>
    %644 = arith.negf %643 : vector<16x128xf32>
    %645 = math.exp %644 : vector<16x128xf32>
    %cst_315 = arith.constant 1.000000e+00 : f32
    %646 = vector.broadcast %cst_315 : f32 to vector<16x128xf32>
    %647 = arith.addf %646, %645 : vector<16x128xf32>
    %648 = arith.divf %646, %647 : vector<16x128xf32>
    %649 = arith.mulf %640, %628 : vector<16x128xf32>
    %650 = arith.mulf %634, %642 : vector<16x128xf32>
    %651 = arith.addf %649, %650 : vector<16x128xf32>
    %652 = math.tanh %651 : vector<16x128xf32>
    %653 = arith.mulf %648, %652 : vector<16x128xf32>
    %c1_316 = arith.constant 1 : index
    %c0_317 = arith.constant 0 : index
    %c0_318 = arith.constant 0 : index
    %654 = vector.load %arg9[%c1_316, %c0_317, %c0_318] : memref<2x16x128xf32, #tpu.memory_space<vmem>>, vector<1x16x128xf32>
    %655 = vector.shape_cast %654 : vector<1x16x128xf32> to vector<16x128xf32>
    %656 = vector.shape_cast %653 : vector<16x128xf32> to vector<1x16x128xf32>
    tpu.vector_store %arg9[%c1_316, %c0_317, %c0_318], %656 {strides = array<i32>} : memref<2x16x128xf32, #tpu.memory_space<vmem>>, vector<1x16x128xf32>,
    %c1_319 = arith.constant 1 : index
    %c0_320 = arith.constant 0 : index
    %c0_321 = arith.constant 0 : index
    %657 = vector.load %arg10[%c1_319, %c0_320, %c0_321] : memref<2x16x128xf32, #tpu.memory_space<vmem>>, vector<1x16x128xf32>
    %658 = vector.shape_cast %657 : vector<1x16x128xf32> to vector<16x128xf32>
    %659 = vector.shape_cast %651 : vector<16x128xf32> to vector<1x16x128xf32>
    tpu.vector_store %arg10[%c1_319, %c0_320, %c0_321], %659 {strides = array<i32>} : memref<2x16x128xf32, #tpu.memory_space<vmem>>, vector<1x16x128xf32>,
    %660 = arith.truncf %653 : vector<16x128xf32> to vector<16x128xbf16>
    %661 = arith.index_cast %c6_i32 : i32 to index
    %c0_322 = arith.constant 0 : index
    %c0_323 = arith.constant 0 : index
    %662 = vector.load %arg6[%661, %c0_322, %c0_323] : memref<8x16x128xbf16, #tpu.memory_space<vmem>>, vector<1x16x128xbf16>
    %663 = vector.shape_cast %662 : vector<1x16x128xbf16> to vector<16x128xbf16>
    %664 = vector.shape_cast %660 : vector<16x128xbf16> to vector<1x16x128xbf16>
    tpu.vector_store %arg6[%661, %c0_322, %c0_323], %664 {strides = array<i32>} : memref<8x16x128xbf16, #tpu.memory_space<vmem>>, vector<1x16x128xbf16>,
    %c7_i32 = arith.constant 7 : i32
    %665 = arith.index_cast %c7_i32 : i32 to index
    %c0_324 = arith.constant 0 : index
    %c0_325 = arith.constant 0 : index
    %666 = vector.load %arg2[%665, %c0_324, %c0_325] : memref<8x16x512xbf16, #tpu.memory_space<vmem>>, vector<1x16x512xbf16>
    %667 = vector.shape_cast %666 : vector<1x16x512xbf16> to vector<16x512xbf16>
    %668 = arith.extf %667 : vector<16x512xbf16> to vector<16x512xf32>
    %c0_326 = arith.constant 0 : index
    %c0_327 = arith.constant 0 : index
    %c0_328 = arith.constant 0 : index
    %669 = vector.load %arg9[%c0_326, %c0_327, %c0_328] : memref<2x16x128xf32, #tpu.memory_space<vmem>>, vector<1x16x128xf32>
    %670 = vector.shape_cast %669 : vector<1x16x128xf32> to vector<16x128xf32>
    %671 = arith.truncf %670 : vector<16x128xf32> to vector<16x128xbf16>
    %c0_329 = arith.constant 0 : index
    %c0_330 = arith.constant 0 : index
    %c0_331 = arith.constant 0 : index
    %672 = vector.load %arg7[%c0_329, %c0_330, %c0_331] : memref<2x128x512xbf16, #tpu.memory_space<vmem>>, vector<1x128x512xbf16>
    %673 = vector.shape_cast %672 : vector<1x128x512xbf16> to vector<128x512xbf16>
    %cst_332 = arith.constant dense<0.000000e+00> : vector<16x512xf32>
    %674 = tpu.matmul %671, %673, %cst_332 {dimension_numbers = #tpu.dot_dimension_numbers<[1], [0], [0], [1], [0, 0, 1, 1], [], []>} : vector<16x128xbf16>, vector<128x512xbf16>, vector<16x512xf32> -> vector<16x512xf32>
    %675 = arith.addf %668, %674 : vector<16x512xf32>
    %c0_333 = arith.constant 0 : index
    %c0_334 = arith.constant 0 : index
    %c0_335 = arith.constant 0 : index
    %676 = vector.load %arg10[%c0_333, %c0_334, %c0_335] : memref<2x16x128xf32, #tpu.memory_space<vmem>>, vector<1x16x128xf32>
    %677 = vector.shape_cast %676 : vector<1x16x128xf32> to vector<16x128xf32>
    %678 = vector.extract_strided_slice %675 {offsets = [0, 0], sizes = [16, 128], strides = [1, 1]} : vector<16x512xf32> to vector<16x128xf32>
    %679 = arith.negf %678 : vector<16x128xf32>
    %680 = math.exp %679 : vector<16x128xf32>
    %cst_336 = arith.constant 1.000000e+00 : f32
    %681 = vector.broadcast %cst_336 : f32 to vector<16x128xf32>
    %682 = arith.addf %681, %680 : vector<16x128xf32>
    %683 = arith.divf %681, %682 : vector<16x128xf32>
    %684 = vector.extract_strided_slice %675 {offsets = [0, 128], sizes = [16, 128], strides = [1, 1]} : vector<16x512xf32> to vector<16x128xf32>
    %685 = arith.negf %684 : vector<16x128xf32>
    %686 = math.exp %685 : vector<16x128xf32>
    %cst_337 = arith.constant 1.000000e+00 : f32
    %687 = vector.broadcast %cst_337 : f32 to vector<16x128xf32>
    %688 = arith.addf %687, %686 : vector<16x128xf32>
    %689 = arith.divf %687, %688 : vector<16x128xf32>
    %690 = vector.extract_strided_slice %675 {offsets = [0, 256], sizes = [16, 128], strides = [1, 1]} : vector<16x512xf32> to vector<16x128xf32>
    %691 = math.tanh %690 : vector<16x128xf32>
    %692 = vector.extract_strided_slice %675 {offsets = [0, 384], sizes = [16, 128], strides = [1, 1]} : vector<16x512xf32> to vector<16x128xf32>
    %693 = arith.negf %692 : vector<16x128xf32>
    %694 = math.exp %693 : vector<16x128xf32>
    %cst_338 = arith.constant 1.000000e+00 : f32
    %695 = vector.broadcast %cst_338 : f32 to vector<16x128xf32>
    %696 = arith.addf %695, %694 : vector<16x128xf32>
    %697 = arith.divf %695, %696 : vector<16x128xf32>
    %698 = arith.mulf %689, %677 : vector<16x128xf32>
    %699 = arith.mulf %683, %691 : vector<16x128xf32>
    %700 = arith.addf %698, %699 : vector<16x128xf32>
    %701 = math.tanh %700 : vector<16x128xf32>
    %702 = arith.mulf %697, %701 : vector<16x128xf32>
    %c0_339 = arith.constant 0 : index
    %c0_340 = arith.constant 0 : index
    %c0_341 = arith.constant 0 : index
    %703 = vector.load %arg9[%c0_339, %c0_340, %c0_341] : memref<2x16x128xf32, #tpu.memory_space<vmem>>, vector<1x16x128xf32>
    %704 = vector.shape_cast %703 : vector<1x16x128xf32> to vector<16x128xf32>
    %705 = vector.shape_cast %702 : vector<16x128xf32> to vector<1x16x128xf32>
    tpu.vector_store %arg9[%c0_339, %c0_340, %c0_341], %705 {strides = array<i32>} : memref<2x16x128xf32, #tpu.memory_space<vmem>>, vector<1x16x128xf32>,
    %c0_342 = arith.constant 0 : index
    %c0_343 = arith.constant 0 : index
    %c0_344 = arith.constant 0 : index
    %706 = vector.load %arg10[%c0_342, %c0_343, %c0_344] : memref<2x16x128xf32, #tpu.memory_space<vmem>>, vector<1x16x128xf32>
    %707 = vector.shape_cast %706 : vector<1x16x128xf32> to vector<16x128xf32>
    %708 = vector.shape_cast %700 : vector<16x128xf32> to vector<1x16x128xf32>
    tpu.vector_store %arg10[%c0_342, %c0_343, %c0_344], %708 {strides = array<i32>} : memref<2x16x128xf32, #tpu.memory_space<vmem>>, vector<1x16x128xf32>,
    %709 = arith.truncf %702 : vector<16x128xf32> to vector<16x128xbf16>
    %c0_345 = arith.constant 0 : index
    %c0_346 = arith.constant 0 : index
    %c0_347 = arith.constant 0 : index
    %710 = vector.load %arg8[%c0_345, %c0_346, %c0_347] : memref<1x128x512xbf16, #tpu.memory_space<vmem>>, vector<1x128x512xbf16>
    %711 = vector.shape_cast %710 : vector<1x128x512xbf16> to vector<128x512xbf16>
    %cst_348 = arith.constant dense<0.000000e+00> : vector<16x512xf32>
    %712 = tpu.matmul %709, %711, %cst_348 {dimension_numbers = #tpu.dot_dimension_numbers<[1], [0], [0], [1], [0, 0, 1, 1], [], []>} : vector<16x128xbf16>, vector<128x512xbf16>, vector<16x512xf32> -> vector<16x512xf32>
    %c1_349 = arith.constant 1 : index
    %c0_350 = arith.constant 0 : index
    %c0_351 = arith.constant 0 : index
    %713 = vector.load %arg9[%c1_349, %c0_350, %c0_351] : memref<2x16x128xf32, #tpu.memory_space<vmem>>, vector<1x16x128xf32>
    %714 = vector.shape_cast %713 : vector<1x16x128xf32> to vector<16x128xf32>
    %715 = arith.truncf %714 : vector<16x128xf32> to vector<16x128xbf16>
    %c1_352 = arith.constant 1 : index
    %c0_353 = arith.constant 0 : index
    %c0_354 = arith.constant 0 : index
    %716 = vector.load %arg7[%c1_352, %c0_353, %c0_354] : memref<2x128x512xbf16, #tpu.memory_space<vmem>>, vector<1x128x512xbf16>
    %717 = vector.shape_cast %716 : vector<1x128x512xbf16> to vector<128x512xbf16>
    %cst_355 = arith.constant dense<0.000000e+00> : vector<16x512xf32>
    %718 = tpu.matmul %715, %717, %cst_355 {dimension_numbers = #tpu.dot_dimension_numbers<[1], [0], [0], [1], [0, 0, 1, 1], [], []>} : vector<16x128xbf16>, vector<128x512xbf16>, vector<16x512xf32> -> vector<16x512xf32>
    %719 = arith.addf %712, %718 : vector<16x512xf32>
    %720 = arith.addf %719, %6 : vector<16x512xf32>
    %c1_356 = arith.constant 1 : index
    %c0_357 = arith.constant 0 : index
    %c0_358 = arith.constant 0 : index
    %721 = vector.load %arg10[%c1_356, %c0_357, %c0_358] : memref<2x16x128xf32, #tpu.memory_space<vmem>>, vector<1x16x128xf32>
    %722 = vector.shape_cast %721 : vector<1x16x128xf32> to vector<16x128xf32>
    %723 = vector.extract_strided_slice %720 {offsets = [0, 0], sizes = [16, 128], strides = [1, 1]} : vector<16x512xf32> to vector<16x128xf32>
    %724 = arith.negf %723 : vector<16x128xf32>
    %725 = math.exp %724 : vector<16x128xf32>
    %cst_359 = arith.constant 1.000000e+00 : f32
    %726 = vector.broadcast %cst_359 : f32 to vector<16x128xf32>
    %727 = arith.addf %726, %725 : vector<16x128xf32>
    %728 = arith.divf %726, %727 : vector<16x128xf32>
    %729 = vector.extract_strided_slice %720 {offsets = [0, 128], sizes = [16, 128], strides = [1, 1]} : vector<16x512xf32> to vector<16x128xf32>
    %730 = arith.negf %729 : vector<16x128xf32>
    %731 = math.exp %730 : vector<16x128xf32>
    %cst_360 = arith.constant 1.000000e+00 : f32
    %732 = vector.broadcast %cst_360 : f32 to vector<16x128xf32>
    %733 = arith.addf %732, %731 : vector<16x128xf32>
    %734 = arith.divf %732, %733 : vector<16x128xf32>
    %735 = vector.extract_strided_slice %720 {offsets = [0, 256], sizes = [16, 128], strides = [1, 1]} : vector<16x512xf32> to vector<16x128xf32>
    %736 = math.tanh %735 : vector<16x128xf32>
    %737 = vector.extract_strided_slice %720 {offsets = [0, 384], sizes = [16, 128], strides = [1, 1]} : vector<16x512xf32> to vector<16x128xf32>
    %738 = arith.negf %737 : vector<16x128xf32>
    %739 = math.exp %738 : vector<16x128xf32>
    %cst_361 = arith.constant 1.000000e+00 : f32
    %740 = vector.broadcast %cst_361 : f32 to vector<16x128xf32>
    %741 = arith.addf %740, %739 : vector<16x128xf32>
    %742 = arith.divf %740, %741 : vector<16x128xf32>
    %743 = arith.mulf %734, %722 : vector<16x128xf32>
    %744 = arith.mulf %728, %736 : vector<16x128xf32>
    %745 = arith.addf %743, %744 : vector<16x128xf32>
    %746 = math.tanh %745 : vector<16x128xf32>
    %747 = arith.mulf %742, %746 : vector<16x128xf32>
    %c1_362 = arith.constant 1 : index
    %c0_363 = arith.constant 0 : index
    %c0_364 = arith.constant 0 : index
    %748 = vector.load %arg9[%c1_362, %c0_363, %c0_364] : memref<2x16x128xf32, #tpu.memory_space<vmem>>, vector<1x16x128xf32>
    %749 = vector.shape_cast %748 : vector<1x16x128xf32> to vector<16x128xf32>
    %750 = vector.shape_cast %747 : vector<16x128xf32> to vector<1x16x128xf32>
    tpu.vector_store %arg9[%c1_362, %c0_363, %c0_364], %750 {strides = array<i32>} : memref<2x16x128xf32, #tpu.memory_space<vmem>>, vector<1x16x128xf32>,
    %c1_365 = arith.constant 1 : index
    %c0_366 = arith.constant 0 : index
    %c0_367 = arith.constant 0 : index
    %751 = vector.load %arg10[%c1_365, %c0_366, %c0_367] : memref<2x16x128xf32, #tpu.memory_space<vmem>>, vector<1x16x128xf32>
    %752 = vector.shape_cast %751 : vector<1x16x128xf32> to vector<16x128xf32>
    %753 = vector.shape_cast %745 : vector<16x128xf32> to vector<1x16x128xf32>
    tpu.vector_store %arg10[%c1_365, %c0_366, %c0_367], %753 {strides = array<i32>} : memref<2x16x128xf32, #tpu.memory_space<vmem>>, vector<1x16x128xf32>,
    %754 = arith.truncf %747 : vector<16x128xf32> to vector<16x128xbf16>
    %755 = arith.index_cast %c7_i32 : i32 to index
    %c0_368 = arith.constant 0 : index
    %c0_369 = arith.constant 0 : index
    %756 = vector.load %arg6[%755, %c0_368, %c0_369] : memref<8x16x128xbf16, #tpu.memory_space<vmem>>, vector<1x16x128xbf16>
    %757 = vector.shape_cast %756 : vector<1x16x128xbf16> to vector<16x128xbf16>
    %758 = vector.shape_cast %754 : vector<16x128xbf16> to vector<1x16x128xbf16>
    tpu.vector_store %arg6[%755, %c0_368, %c0_369], %758 {strides = array<i32>} : memref<8x16x128xbf16, #tpu.memory_space<vmem>>, vector<1x16x128xbf16>,
    %c8_i32 = arith.constant 8 : i32
    return
  }
  func.func @transform_0(%arg0: i32, %arg1: i32) -> (i32, i32, i32) {
    %c0_i32 = arith.constant 0 : i32
    %c0_i32_0 = arith.constant 0 : i32
    return %arg1, %arg0, %c0_i32 : i32, i32, i32
  }
  func.func @transform_3(%arg0: i32, %arg1: i32) -> (i32, i32, i32) {
    %c0_i32 = arith.constant 0 : i32
    %c0_i32_0 = arith.constant 0 : i32
    %c0_i32_1 = arith.constant 0 : i32
    %c0_i32_2 = arith.constant 0 : i32
    return %c0_i32, %c0_i32_0, %c0_i32_1 : i32, i32, i32
  }
  func.func @transform_4(%arg0: i32, %arg1: i32) -> (i32, i32, i32) {
    %c0_i32 = arith.constant 0 : i32
    %c0_i32_0 = arith.constant 0 : i32
    return %arg1, %arg0, %c0_i32 : i32, i32, i32
  }
}

module attributes {stable_mosaic.version = 11 : i64} {
  func.func @_linear_kernel(%arg0: i32, %arg1: i32, %arg2: memref<16x128xbf16, #tpu.memory_space<vmem>>, %arg3: memref<128x128xbf16, #tpu.memory_space<vmem>>, %arg4: memref<1x128xf32, #tpu.memory_space<vmem>>, %arg5: memref<16x128xf32, #tpu.memory_space<vmem>>) attributes {dimension_semantics = [#tpu.dimension_semantics<parallel>, #tpu.dimension_semantics<parallel>], iteration_bounds = array<i64: 1, 1>, scalar_prefetch = 0 : i64, scratch_operands = 0 : i64, tpu.core_type = #tpu.core_type<tc>, window_params = [{transform_indices = @transform_0, window_bounds = array<i64: 16, 128>}, {transform_indices = @transform_1, window_bounds = array<i64: 128, 128>}, {transform_indices = @transform_2, window_bounds = array<i64: 1, 128>}, {transform_indices = @transform_3, window_bounds = array<i64: 16, 128>}]} {
    %c0 = arith.constant 0 : index
    %c0_0 = arith.constant 0 : index
    %0 = vector.load %arg2[%c0, %c0_0] : memref<16x128xbf16, #tpu.memory_space<vmem>>, vector<16x128xbf16>
    %c0_1 = arith.constant 0 : index
    %c0_2 = arith.constant 0 : index
    %1 = vector.load %arg3[%c0_1, %c0_2] : memref<128x128xbf16, #tpu.memory_space<vmem>>, vector<128x128xbf16>
    %cst = arith.constant dense<0.000000e+00> : vector<16x128xf32>
    %2 = tpu.matmul %0, %1, %cst {dimension_numbers = #tpu.dot_dimension_numbers<[1], [0], [0], [1], [0, 0, 1, 1], [], []>} : vector<16x128xbf16>, vector<128x128xbf16>, vector<16x128xf32> -> vector<16x128xf32>
    %c0_3 = arith.constant 0 : index
    %c0_4 = arith.constant 0 : index
    %3 = vector.load %arg4[%c0_3, %c0_4] : memref<1x128xf32, #tpu.memory_space<vmem>>, vector<1x128xf32>
    %4 = vector.broadcast %3 : vector<1x128xf32> to vector<16x128xf32>
    %5 = arith.addf %2, %4 : vector<16x128xf32>
    %c0_5 = arith.constant 0 : index
    %c0_6 = arith.constant 0 : index
    %6 = vector.load %arg5[%c0_5, %c0_6] : memref<16x128xf32, #tpu.memory_space<vmem>>, vector<16x128xf32>
    tpu.vector_store %arg5[%c0_5, %c0_6], %5 {strides = array<i32>} : memref<16x128xf32, #tpu.memory_space<vmem>>, vector<16x128xf32>,
    return
  }
  func.func @transform_0(%arg0: i32, %arg1: i32) -> (i32, i32) {
    %c0_i32 = arith.constant 0 : i32
    %c0_i32_0 = arith.constant 0 : i32
    return %arg1, %c0_i32 : i32, i32
  }
  func.func @transform_1(%arg0: i32, %arg1: i32) -> (i32, i32) {
    %c0_i32 = arith.constant 0 : i32
    %c0_i32_0 = arith.constant 0 : i32
    return %c0_i32, %arg0 : i32, i32
  }
  func.func @transform_2(%arg0: i32, %arg1: i32) -> (i32, i32) {
    %c0_i32 = arith.constant 0 : i32
    %c0_i32_0 = arith.constant 0 : i32
    return %c0_i32, %arg0 : i32, i32
  }
  func.func @transform_3(%arg0: i32, %arg1: i32) -> (i32, i32) {
    %c0_i32 = arith.constant 0 : i32
    return %arg1, %arg0 : i32, i32
  }
}

</mosaic_0001>

<llo_original>
// kernel: decoder_forward.3
$region0: #{decoder_forward.3}
  #allocation0 [shape = 'u32[]', space=smem, size = 0x4, offset = 0x4, fixed_abs, tag = 'smem constant byte address 0x4 - core index']
  #allocation1 [shape = 'u32[144,128]{1,0:T(1,128)}', space=vmem, size = 0x12000, scoped, tag = 'internal scratch']
  %s0 = inlined_call_operand.vmem [shape: f32[128,32], index: 0, kind: input, shape index: {}]
  %s1 = inlined_call_operand.vmem [shape: bf16[32,512], index: 1, kind: input, shape index: {}]
  %s2 = inlined_call_operand.vmem [shape: f32[1,512], index: 2, kind: input, shape index: {}]
  %s3 = inlined_call_operand.vmem [shape: bf16[128,512], index: 3, kind: output, shape index: {}]
  %s4 = sld [smem:[#allocation0]]
  $region22: #{decoder_forward.3} parent=0
    _
  %s6 = ssub.s32 1, %s4
  %s7 = scalar_select 0, %s6, %s4
  // Predicated region
  $region2: #{decoder_forward.3} parent=0 // pred_check
    _
  $region3: #{decoder_forward.3} parent=0 // pred_check_branch
    %9 = sbr.rel (0) target = $region5
  $region4: #{decoder_forward.3} parent=0 // pred_region
    _
  $region5: #{decoder_forward.3} parent=0 // pred_fallthru
    _
  // Predicated region
  $region6: #{decoder_forward.3} parent=0 // pred_check
    _
  $region7: #{decoder_forward.3} parent=0 // pred_check_branch
    %11 = sbr.rel (0) target = $region9
  $region8: #{decoder_forward.3} parent=0 // pred_region
    _
  $region9: #{decoder_forward.3} parent=0 // pred_fallthru
    _
  // Predicated region
  $region10: #{decoder_forward.3} parent=0 // pred_check
    _
  $region11: #{decoder_forward.3} parent=0 // pred_check_branch
    %13 = sbr.rel (0) target = $region13
  $region12: #{decoder_forward.3} parent=0 // pred_region
    _
  $region13: #{decoder_forward.3} parent=0 // pred_fallthru
    _
  %v15 = vld [vmem:[%s0] sm:$0xff]
  %v16 = vld [vmem:[%s0 + $0x8] sm:$0xff]
  %v17 = vld [vmem:[%s0 + $0x10] sm:$0xff]
  %v18 = vld [vmem:[%s0 + $0x18] sm:$0xff]
  %v19 = vld [vmem:[%s0 + $0x20] sm:$0xff]
  %v20 = vld [vmem:[%s0 + $0x28] sm:$0xff]
  %v21 = vld [vmem:[%s0 + $0x30] sm:$0xff]
  %v22 = vld [vmem:[%s0 + $0x38] sm:$0xff]
  %v23 = vld [vmem:[%s0 + $0x40] sm:$0xff]
  %v24 = vld [vmem:[%s0 + $0x48] sm:$0xff]
  %v25 = vld [vmem:[%s0 + $0x50] sm:$0xff]
  %v26 = vld [vmem:[%s0 + $0x58] sm:$0xff]
  %v27 = vld [vmem:[%s0 + $0x60] sm:$0xff]
  %v28 = vld [vmem:[%s0 + $0x68] sm:$0xff]
  %v29 = vld [vmem:[%s0 + $0x70] sm:$0xff]
  %v30 = vld [vmem:[%s0 + $0x78] sm:$0xff]
  %v31 = vpack.c.bf16 %v16, %v15
  %v32 = vpack.c.bf16 %v18, %v17
  %v33 = vpack.c.bf16 %v20, %v19
  %v34 = vpack.c.bf16 %v22, %v21
  %v35 = vpack.c.bf16 %v24, %v23
  %v36 = vpack.c.bf16 %v26, %v25
  %v37 = vpack.c.bf16 %v28, %v27
  %v38 = vpack.c.bf16 %v30, %v29
  %v39 = vld [vmem:[%s1] sm:$0xff]
  %v40 = vld [vmem:[%s1 + $0x8] sm:$0xff]
  %v41 = vld [vmem:[%s1 + $0x10] sm:$0xff]
  %v42 = vld [vmem:[%s1 + $0x18] sm:$0xff]
  %v43 = vld [vmem:[%s1 + $0x20] sm:$0xff]
  %v44 = vld [vmem:[%s1 + $0x28] sm:$0xff]
  %v45 = vld [vmem:[%s1 + $0x30] sm:$0xff]
  %v46 = vld [vmem:[%s1 + $0x38] sm:$0xff]
  %v47 = vld [vmem:[%s2] sm:$0xf]
  %v49 = vlaneseq
  %v50 = vshrl.u32 %v49, 7
  %v51 = vsub.s32 0, %v50
  %v52 = vrot.slane %v47, %v51
  %v53 = vlaneseq
  %v54 = vshrl.u32 %v53, 7
  %v55 = vsub.s32 1, %v54
  %v56 = vrot.slane %v47, %v55
  %v57 = vlaneseq
  %v58 = vshrl.u32 %v57, 7
  %v59 = vsub.s32 2, %v58
  %v60 = vrot.slane %v47, %v59
  %v61 = vlaneseq
  %v62 = vshrl.u32 %v61, 7
  %v63 = vsub.s32 3, %v62
  %v64 = vrot.slane %v47, %v63
  %v77 = vunpack.c.l.b16 %v39
  %v78 = vunpack.c.h.b16 %v39
  %v79 = vunpack.c.l.b16 %v40
  %v80 = vunpack.c.h.b16 %v40
  %v81 = vunpack.c.l.b16 %v41
  %v82 = vunpack.c.h.b16 %v41
  %v83 = vunpack.c.l.b16 %v42
  %v84 = vunpack.c.h.b16 %v42
  %v85 = vunpack.c.l.b16 %v43
  %v86 = vunpack.c.h.b16 %v43
  %v87 = vunpack.c.l.b16 %v44
  %v88 = vunpack.c.h.b16 %v44
  %v89 = vunpack.c.l.b16 %v45
  %v90 = vunpack.c.h.b16 %v45
  %v91 = vunpack.c.l.b16 %v46
  %v92 = vunpack.c.h.b16 %v46
  %v93 = vpack.c.b16 %v81, %v77
  %v94 = vpack.c.b16 %v82, %v78
  %v95 = vpack.c.b16 %v83, %v79
  %v96 = vpack.c.b16 %v84, %v80
  %v97 = vpack.c.b16 %v89, %v85
  %v98 = vpack.c.b16 %v90, %v86
  %v99 = vpack.c.b16 %v91, %v87
  %v100 = vpack.c.b16 %v92, %v88
  %vm109 = vcmask 261120
  %v111 = vsel %vm109, %v31, 0
  %v114 = vsel %vm109, %v32, 0
  %v117 = vsel %vm109, %v33, 0
  %v120 = vsel %vm109, %v34, 0
  %v123 = vsel %vm109, %v35, 0
  %v126 = vsel %vm109, %v36, 0
  %v129 = vsel %vm109, %v37, 0
  %v132 = vsel %vm109, %v38, 0
  %134 = vmatprep.subr.bf16.mxu0 %v94
  %135 = vmatpush1.bf16.msra.mxu0 %v93
  %136 = vmatprep.subr.bf16.mxu0 %v98
  %137 = vmatpush1.bf16.msra.mxu0 %v97
  %138 = vmatprep.subr.bf16.mxu0 0
  %139 = vmatpush1.bf16.msra.mxu0 0
  %140 = vmatprep.subr.bf16.mxu0 0
  %141 = vmatpush1.bf16.msra.mxu0 0
  %142 = vmatprep.subr.bf16.mxu0 0
  %143 = vmatpush1.bf16.msra.mxu0 0
  %144 = vmatprep.subr.bf16.mxu0 0
  %145 = vmatpush1.bf16.msra.mxu0 0
  %146 = vmatprep.subr.bf16.mxu0 0
  %147 = vmatpush1.bf16.msra.mxu0 0
  %148 = vmatprep.subr.bf16.mxu0 0
  %149 = vmatpush1.bf16.msra.mxu0 0
  %150 = vmatprep.subr.bf16.mxu0 0
  %151 = vmatpush1.bf16.msra.mxu0 0
  %152 = vmatprep.subr.bf16.mxu0 0
  %153 = vmatpush1.bf16.msra.mxu0 0
  %154 = vmatprep.subr.bf16.mxu0 0
  %155 = vmatpush1.bf16.msra.mxu0 0
  %156 = vmatprep.subr.bf16.mxu0 0
  %157 = vmatpush1.bf16.msra.mxu0 0
  %158 = vmatprep.subr.bf16.mxu0 0
  %159 = vmatpush1.bf16.msra.mxu0 0
  %160 = vmatprep.subr.bf16.mxu0 0
  %161 = vmatpush1.bf16.msra.mxu0 0
  %162 = vmatprep.subr.bf16.mxu0 0
  %163 = vmatpush1.bf16.msra.mxu0 0
  %164 = vmatprep.subr.bf16.mxu0 0
  %165 = vmatpush1.bf16.msra.mxu0 0
  %166 = vmatprep.mubr.bf16.mxu0 0
  %167 = vmatmul.mubr.bf16.gmra.mrb[0].mxu0 %v111
  %v168 = vpop.f32.mrb[0].mxu0
  %v169 = vadd.f32 %v52, %v168
  %v170 = vpop.f32.mrb[0].mxu0
  %v171 = vadd.f32 %v56, %v170
  %v172 = vpop.f32.mrb[0].mxu0
  %v173 = vadd.f32 %v52, %v172
  %v174 = vpop.f32.mrb[0].mxu0
  %v175 = vadd.f32 %v56, %v174
  %176 = vmatprep.mubr.bf16.mxu0 0
  %177 = vmatmul.mubr.bf16.gmra.mrb[0].mxu0 %v114
  %v178 = vpop.f32.mrb[0].mxu0
  %v179 = vadd.f32 %v52, %v178
  %v180 = vpop.f32.mrb[0].mxu0
  %v181 = vadd.f32 %v56, %v180
  %v182 = vpop.f32.mrb[0].mxu0
  %v183 = vadd.f32 %v52, %v182
  %v184 = vpop.f32.mrb[0].mxu0
  %v185 = vadd.f32 %v56, %v184
  %186 = vmatprep.mubr.bf16.mxu0 0
  %187 = vmatmul.mubr.bf16.gmra.mrb[0].mxu0 %v117
  %v188 = vpop.f32.mrb[0].mxu0
  %v189 = vadd.f32 %v52, %v188
  %v190 = vpop.f32.mrb[0].mxu0
  %v191 = vadd.f32 %v56, %v190
  %v192 = vpop.f32.mrb[0].mxu0
  %v193 = vadd.f32 %v52, %v192
  %v194 = vpop.f32.mrb[0].mxu0
  %v195 = vadd.f32 %v56, %v194
  %196 = vmatprep.mubr.bf16.mxu0 0
  %197 = vmatmul.mubr.bf16.gmra.mrb[0].mxu0 %v120
  %v198 = vpop.f32.mrb[0].mxu0
  %v199 = vadd.f32 %v52, %v198
  %v200 = vpop.f32.mrb[0].mxu0
  %v201 = vadd.f32 %v56, %v200
  %v202 = vpop.f32.mrb[0].mxu0
  %v203 = vadd.f32 %v52, %v202
  %v204 = vpop.f32.mrb[0].mxu0
  %v205 = vadd.f32 %v56, %v204
  %206 = vmatprep.mubr.bf16.mxu0 0
  %207 = vmatmul.mubr.bf16.gmra.mrb[0].mxu0 %v123
  %v208 = vpop.f32.mrb[0].mxu0
  %v209 = vadd.f32 %v52, %v208
  %v210 = vpop.f32.mrb[0].mxu0
  %v211 = vadd.f32 %v56, %v210
  %v212 = vpop.f32.mrb[0].mxu0
  %v213 = vadd.f32 %v52, %v212
  %v214 = vpop.f32.mrb[0].mxu0
  %v215 = vadd.f32 %v56, %v214
  %216 = vmatprep.mubr.bf16.mxu0 0
  %217 = vmatmul.mubr.bf16.gmra.mrb[0].mxu0 %v126
  %v218 = vpop.f32.mrb[0].mxu0
  %v219 = vadd.f32 %v52, %v218
  %v220 = vpop.f32.mrb[0].mxu0
  %v221 = vadd.f32 %v56, %v220
  %v222 = vpop.f32.mrb[0].mxu0
  %v223 = vadd.f32 %v52, %v222
  %v224 = vpop.f32.mrb[0].mxu0
  %v225 = vadd.f32 %v56, %v224
  %226 = vmatprep.mubr.bf16.mxu0 0
  %227 = vmatmul.mubr.bf16.gmra.mrb[0].mxu0 %v129
  %v228 = vpop.f32.mrb[0].mxu0
  %v229 = vadd.f32 %v52, %v228
  %v230 = vpop.f32.mrb[0].mxu0
  %v231 = vadd.f32 %v56, %v230
  %v232 = vpop.f32.mrb[0].mxu0
  %v233 = vadd.f32 %v52, %v232
  %v234 = vpop.f32.mrb[0].mxu0
  %v235 = vadd.f32 %v56, %v234
  %236 = vmatprep.mubr.bf16.mxu0 0
  %237 = vmatmul.mubr.bf16.gmra.mrb[0].mxu0 %v132
  %v238 = vpop.f32.mrb[0].mxu0
  %v239 = vadd.f32 %v52, %v238
  %v240 = vpop.f32.mrb[0].mxu0
  %v241 = vadd.f32 %v56, %v240
  %v242 = vpop.f32.mrb[0].mxu0
  %v243 = vadd.f32 %v52, %v242
  %v244 = vpop.f32.mrb[0].mxu0
  %v245 = vadd.f32 %v56, %v244
  %246 = vdwg.mxu0
  %247 = vmatprep.subr.bf16.mxu0 %v96
  %248 = vmatpush1.bf16.msra.mxu0 %v95
  %249 = vmatprep.subr.bf16.mxu0 %v100
  %250 = vmatpush1.bf16.msra.mxu0 %v99
  %251 = vmatprep.subr.bf16.mxu0 0
  %252 = vmatpush1.bf16.msra.mxu0 0
  %253 = vmatprep.subr.bf16.mxu0 0
  %254 = vmatpush1.bf16.msra.mxu0 0
  %255 = vmatprep.subr.bf16.mxu0 0
  %256 = vmatpush1.bf16.msra.mxu0 0
  %257 = vmatprep.subr.bf16.mxu0 0
  %258 = vmatpush1.bf16.msra.mxu0 0
  %259 = vmatprep.subr.bf16.mxu0 0
  %260 = vmatpush1.bf16.msra.mxu0 0
  %261 = vmatprep.subr.bf16.mxu0 0
  %262 = vmatpush1.bf16.msra.mxu0 0
  %263 = vmatprep.subr.bf16.mxu0 0
  %264 = vmatpush1.bf16.msra.mxu0 0
  %265 = vmatprep.subr.bf16.mxu0 0
  %266 = vmatpush1.bf16.msra.mxu0 0
  %267 = vmatprep.subr.bf16.mxu0 0
  %268 = vmatpush1.bf16.msra.mxu0 0
  %269 = vmatprep.subr.bf16.mxu0 0
  %270 = vmatpush1.bf16.msra.mxu0 0
  %271 = vmatprep.subr.bf16.mxu0 0
  %272 = vmatpush1.bf16.msra.mxu0 0
  %273 = vmatprep.subr.bf16.mxu0 0
  %274 = vmatpush1.bf16.msra.mxu0 0
  %275 = vmatprep.subr.bf16.mxu0 0
  %276 = vmatpush1.bf16.msra.mxu0 0
  %277 = vmatprep.subr.bf16.mxu0 0
  %278 = vmatpush1.bf16.msra.mxu0 0
  %279 = vmatprep.mubr.bf16.mxu0 0
  %280 = vmatmul.mubr.bf16.gmra.mrb[0].mxu0 %v111
  %v281 = vpop.f32.mrb[0].mxu0
  %v282 = vadd.f32 %v60, %v281
  %v283 = vpop.f32.mrb[0].mxu0
  %v284 = vadd.f32 %v64, %v283
  %v285 = vpop.f32.mrb[0].mxu0
  %v286 = vadd.f32 %v60, %v285
  %v287 = vpop.f32.mrb[0].mxu0
  %v288 = vadd.f32 %v64, %v287
  %289 = vmatprep.mubr.bf16.mxu0 0
  %290 = vmatmul.mubr.bf16.gmra.mrb[0].mxu0 %v114
  %v291 = vpop.f32.mrb[0].mxu0
  %v292 = vadd.f32 %v60, %v291
  %v293 = vpop.f32.mrb[0].mxu0
  %v294 = vadd.f32 %v64, %v293
  %v295 = vpop.f32.mrb[0].mxu0
  %v296 = vadd.f32 %v60, %v295
  %v297 = vpop.f32.mrb[0].mxu0
  %v298 = vadd.f32 %v64, %v297
  %299 = vmatprep.mubr.bf16.mxu0 0
  %300 = vmatmul.mubr.bf16.gmra.mrb[0].mxu0 %v117
  %v301 = vpop.f32.mrb[0].mxu0
  %v302 = vadd.f32 %v60, %v301
  %v303 = vpop.f32.mrb[0].mxu0
  %v304 = vadd.f32 %v64, %v303
  %v305 = vpop.f32.mrb[0].mxu0
  %v306 = vadd.f32 %v60, %v305
  %v307 = vpop.f32.mrb[0].mxu0
  %v308 = vadd.f32 %v64, %v307
  %309 = vmatprep.mubr.bf16.mxu0 0
  %310 = vmatmul.mubr.bf16.gmra.mrb[0].mxu0 %v120
  %v311 = vpop.f32.mrb[0].mxu0
  %v312 = vadd.f32 %v60, %v311
  %v313 = vpop.f32.mrb[0].mxu0
  %v314 = vadd.f32 %v64, %v313
  %v315 = vpop.f32.mrb[0].mxu0
  %v316 = vadd.f32 %v60, %v315
  %v317 = vpop.f32.mrb[0].mxu0
  %v318 = vadd.f32 %v64, %v317
  %319 = vmatprep.mubr.bf16.mxu0 0
  %320 = vmatmul.mubr.bf16.gmra.mrb[0].mxu0 %v123
  %v321 = vpop.f32.mrb[0].mxu0
  %v322 = vadd.f32 %v60, %v321
  %v323 = vpop.f32.mrb[0].mxu0
  %v324 = vadd.f32 %v64, %v323
  %v325 = vpop.f32.mrb[0].mxu0
  %v326 = vadd.f32 %v60, %v325
  %v327 = vpop.f32.mrb[0].mxu0
  %v328 = vadd.f32 %v64, %v327
  %329 = vmatprep.mubr.bf16.mxu0 0
  %330 = vmatmul.mubr.bf16.gmra.mrb[0].mxu0 %v126
  %v331 = vpop.f32.mrb[0].mxu0
  %v332 = vadd.f32 %v60, %v331
  %v333 = vpop.f32.mrb[0].mxu0
  %v334 = vadd.f32 %v64, %v333
  %v335 = vpop.f32.mrb[0].mxu0
  %v336 = vadd.f32 %v60, %v335
  %v337 = vpop.f32.mrb[0].mxu0
  %v338 = vadd.f32 %v64, %v337
  %339 = vmatprep.mubr.bf16.mxu0 0
  %340 = vmatmul.mubr.bf16.gmra.mrb[0].mxu0 %v129
  %v341 = vpop.f32.mrb[0].mxu0
  %v342 = vadd.f32 %v60, %v341
  %v343 = vpop.f32.mrb[0].mxu0
  %v344 = vadd.f32 %v64, %v343
  %v345 = vpop.f32.mrb[0].mxu0
  %v346 = vadd.f32 %v60, %v345
  %v347 = vpop.f32.mrb[0].mxu0
  %v348 = vadd.f32 %v64, %v347
  %349 = vmatprep.mubr.bf16.mxu0 0
  %350 = vmatmul.mubr.bf16.gmra.mrb[0].mxu0 %v132
  %v351 = vpop.f32.mrb[0].mxu0
  %v352 = vadd.f32 %v60, %v351
  %v353 = vpop.f32.mrb[0].mxu0
  %v354 = vadd.f32 %v64, %v353
  %v355 = vpop.f32.mrb[0].mxu0
  %v356 = vadd.f32 %v60, %v355
  %v357 = vpop.f32.mrb[0].mxu0
  %v358 = vadd.f32 %v64, %v357
  %359 = vdwg.mxu0
  %v360 = vpack.c.bf16 %v173, %v169
  %v361 = vpack.c.bf16 %v175, %v171
  %v362 = vpack.c.bf16 %v286, %v282
  %v363 = vpack.c.bf16 %v288, %v284
  %v364 = vpack.c.bf16 %v183, %v179
  %v365 = vpack.c.bf16 %v185, %v181
  %v366 = vpack.c.bf16 %v296, %v292
  %v367 = vpack.c.bf16 %v298, %v294
  %v368 = vpack.c.bf16 %v193, %v189
  %v369 = vpack.c.bf16 %v195, %v191
  %v370 = vpack.c.bf16 %v306, %v302
  %v371 = vpack.c.bf16 %v308, %v304
  %v372 = vpack.c.bf16 %v203, %v199
  %v373 = vpack.c.bf16 %v205, %v201
  %v374 = vpack.c.bf16 %v316, %v312
  %v375 = vpack.c.bf16 %v318, %v314
  %v376 = vpack.c.bf16 %v213, %v209
  %v377 = vpack.c.bf16 %v215, %v211
  %v378 = vpack.c.bf16 %v326, %v322
  %v379 = vpack.c.bf16 %v328, %v324
  %v380 = vpack.c.bf16 %v223, %v219
  %v381 = vpack.c.bf16 %v225, %v221
  %v382 = vpack.c.bf16 %v336, %v332
  %v383 = vpack.c.bf16 %v338, %v334
  %v384 = vpack.c.bf16 %v233, %v229
  %v385 = vpack.c.bf16 %v235, %v231
  %v386 = vpack.c.bf16 %v346, %v342
  %v387 = vpack.c.bf16 %v348, %v344
  %v388 = vpack.c.bf16 %v243, %v239
  %v389 = vpack.c.bf16 %v245, %v241
  %v390 = vpack.c.bf16 %v356, %v352
  %v391 = vpack.c.bf16 %v358, %v354
  %v424 = vunpack.c.l.b16 %v360
  %v425 = vunpack.c.l.b16 %v361
  %v426 = vunpack.c.l.b16 %v362
  %v427 = vunpack.c.l.b16 %v363
  %v428 = vunpack.c.h.b16 %v360
  %v429 = vunpack.c.h.b16 %v361
  %v430 = vunpack.c.h.b16 %v362
  %v431 = vunpack.c.h.b16 %v363
  %v432 = vunpack.c.l.b16 %v364
  %v433 = vunpack.c.l.b16 %v365
  %v434 = vunpack.c.l.b16 %v366
  %v435 = vunpack.c.l.b16 %v367
  %v436 = vunpack.c.h.b16 %v364
  %v437 = vunpack.c.h.b16 %v365
  %v438 = vunpack.c.h.b16 %v366
  %v439 = vunpack.c.h.b16 %v367
  %v440 = vunpack.c.l.b16 %v368
  %v441 = vunpack.c.l.b16 %v369
  %v442 = vunpack.c.l.b16 %v370
  %v443 = vunpack.c.l.b16 %v371
  %v444 = vunpack.c.h.b16 %v368
  %v445 = vunpack.c.h.b16 %v369
  %v446 = vunpack.c.h.b16 %v370
  %v447 = vunpack.c.h.b16 %v371
  %v448 = vunpack.c.l.b16 %v372
  %v449 = vunpack.c.l.b16 %v373
  %v450 = vunpack.c.l.b16 %v374
  %v451 = vunpack.c.l.b16 %v375
  %v452 = vunpack.c.h.b16 %v372
  %v453 = vunpack.c.h.b16 %v373
  %v454 = vunpack.c.h.b16 %v374
  %v455 = vunpack.c.h.b16 %v375
  %v456 = vunpack.c.l.b16 %v376
  %v457 = vunpack.c.l.b16 %v377
  %v458 = vunpack.c.l.b16 %v378
  %v459 = vunpack.c.l.b16 %v379
  %v460 = vunpack.c.h.b16 %v376
  %v461 = vunpack.c.h.b16 %v377
  %v462 = vunpack.c.h.b16 %v378
  %v463 = vunpack.c.h.b16 %v379
  %v464 = vunpack.c.l.b16 %v380
  %v465 = vunpack.c.l.b16 %v381
  %v466 = vunpack.c.l.b16 %v382
  %v467 = vunpack.c.l.b16 %v383
  %v468 = vunpack.c.h.b16 %v380
  %v469 = vunpack.c.h.b16 %v381
  %v470 = vunpack.c.h.b16 %v382
  %v471 = vunpack.c.h.b16 %v383
  %v472 = vunpack.c.l.b16 %v384
  %v473 = vunpack.c.l.b16 %v385
  %v474 = vunpack.c.l.b16 %v386
  %v475 = vunpack.c.l.b16 %v387
  %v476 = vunpack.c.h.b16 %v384
  %v477 = vunpack.c.h.b16 %v385
  %v478 = vunpack.c.h.b16 %v386
  %v479 = vunpack.c.h.b16 %v387
  %v480 = vunpack.c.l.b16 %v388
  %v481 = vunpack.c.l.b16 %v389
  %v482 = vunpack.c.l.b16 %v390
  %v483 = vunpack.c.l.b16 %v391
  %v484 = vunpack.c.h.b16 %v388
  %v485 = vunpack.c.h.b16 %v389
  %v486 = vunpack.c.h.b16 %v390
  %v487 = vunpack.c.h.b16 %v391
  %v488 = vpack.c.b16 %v425, %v424
  %v489 = vpack.c.b16 %v427, %v426
  %v490 = vpack.c.b16 %v429, %v428
  %v491 = vpack.c.b16 %v431, %v430
  %v492 = vpack.c.b16 %v433, %v432
  %v493 = vpack.c.b16 %v435, %v434
  %v494 = vpack.c.b16 %v437, %v436
  %v495 = vpack.c.b16 %v439, %v438
  %v496 = vpack.c.b16 %v441, %v440
  %v497 = vpack.c.b16 %v443, %v442
  %v498 = vpack.c.b16 %v445, %v444
  %v499 = vpack.c.b16 %v447, %v446
  %v500 = vpack.c.b16 %v449, %v448
  %v501 = vpack.c.b16 %v451, %v450
  %v502 = vpack.c.b16 %v453, %v452
  %v503 = vpack.c.b16 %v455, %v454
  %v504 = vpack.c.b16 %v457, %v456
  %v505 = vpack.c.b16 %v459, %v458
  %v506 = vpack.c.b16 %v461, %v460
  %v507 = vpack.c.b16 %v463, %v462
  %v508 = vpack.c.b16 %v465, %v464
  %v509 = vpack.c.b16 %v467, %v466
  %v510 = vpack.c.b16 %v469, %v468
  %v511 = vpack.c.b16 %v471, %v470
  %v512 = vpack.c.b16 %v473, %v472
  %v513 = vpack.c.b16 %v475, %v474
  %v514 = vpack.c.b16 %v477, %v476
  %v515 = vpack.c.b16 %v479, %v478
  %v516 = vpack.c.b16 %v481, %v480
  %v517 = vpack.c.b16 %v483, %v482
  %v518 = vpack.c.b16 %v485, %v484
  %v519 = vpack.c.b16 %v487, %v486
  %552 = vst [vmem:[%s3] sm:$0xff] %v488
  %553 = vst [vmem:[%s3 + $0x8] sm:$0xff] %v489
  %554 = vst [vmem:[%s3 + $0x10] sm:$0xff] %v490
  %555 = vst [vmem:[%s3 + $0x18] sm:$0xff] %v491
  %556 = vst [vmem:[%s3 + $0x20] sm:$0xff] %v492
  %557 = vst [vmem:[%s3 + $0x28] sm:$0xff] %v493
  %558 = vst [vmem:[%s3 + $0x30] sm:$0xff] %v494
  %559 = vst [vmem:[%s3 + $0x38] sm:$0xff] %v495
  %560 = vst [vmem:[%s3 + $0x40] sm:$0xff] %v496
  %561 = vst [vmem:[%s3 + $0x48] sm:$0xff] %v497
  %562 = vst [vmem:[%s3 + $0x50] sm:$0xff] %v498
  %563 = vst [vmem:[%s3 + $0x58] sm:$0xff] %v499
  %564 = vst [vmem:[%s3 + $0x60] sm:$0xff] %v500
  %565 = vst [vmem:[%s3 + $0x68] sm:$0xff] %v501
  %566 = vst [vmem:[%s3 + $0x70] sm:$0xff] %v502
  %567 = vst [vmem:[%s3 + $0x78] sm:$0xff] %v503
  %568 = vst [vmem:[%s3 + $0x80] sm:$0xff] %v504
  %569 = vst [vmem:[%s3 + $0x88] sm:$0xff] %v505
  %570 = vst [vmem:[%s3 + $0x90] sm:$0xff] %v506
  %571 = vst [vmem:[%s3 + $0x98] sm:$0xff] %v507
  %572 = vst [vmem:[%s3 + $0xa0] sm:$0xff] %v508
  %573 = vst [vmem:[%s3 + $0xa8] sm:$0xff] %v509
  %574 = vst [vmem:[%s3 + $0xb0] sm:$0xff] %v510
  %575 = vst [vmem:[%s3 + $0xb8] sm:$0xff] %v511
  %576 = vst [vmem:[%s3 + $0xc0] sm:$0xff] %v512
  %577 = vst [vmem:[%s3 + $0xc8] sm:$0xff] %v513
  %578 = vst [vmem:[%s3 + $0xd0] sm:$0xff] %v514
  %579 = vst [vmem:[%s3 + $0xd8] sm:$0xff] %v515
  %580 = vst [vmem:[%s3 + $0xe0] sm:$0xff] %v516
  %581 = vst [vmem:[%s3 + $0xe8] sm:$0xff] %v517
  %582 = vst [vmem:[%s3 + $0xf0] sm:$0xff] %v518
  %583 = vst [vmem:[%s3 + $0xf8] sm:$0xff] %v519
  // Predicated region
  $region14: #{decoder_forward.3} parent=0 // pred_check
    _
  $region15: #{decoder_forward.3} parent=0 // pred_check_branch
    %585 = sbr.rel (0) target = $region17
  $region16: #{decoder_forward.3} parent=0 // pred_region
    _
  $region17: #{decoder_forward.3} parent=0 // pred_fallthru
    _
  // Predicated region
  $region18: #{decoder_forward.3} parent=0 // pred_check
    _
  $region19: #{decoder_forward.3} parent=0 // pred_check_branch
    %587 = sbr.rel (0) target = $region21
  $region20: #{decoder_forward.3} parent=0 // pred_region
    _
  $region21: #{decoder_forward.3} parent=0 // pred_fallthru
    _

// kernel: decoder_forward.5
$region0: #{decoder_forward.5}
  #allocation0 [shape = 'u32[]', space=smem, size = 0x4, offset = 0x4, fixed_abs, tag = 'smem constant byte address 0x4 - core index']
  #allocation1 [shape = 'u32[144,128]{1,0:T(1,128)}', space=vmem, size = 0x12000, scoped, tag = 'internal scratch']
  %s0 = inlined_call_operand.vmem [shape: bf16[16,128], index: 0, kind: input, shape index: {}]
  %s1 = inlined_call_operand.vmem [shape: bf16[128,128], index: 1, kind: input, shape index: {}]
  %s2 = inlined_call_operand.vmem [shape: f32[1,128], index: 2, kind: input, shape index: {}]
  %s3 = inlined_call_operand.vmem [shape: f32[16,128], index: 3, kind: output, shape index: {}]
  %s4 = sld [smem:[#allocation0]]
  $region22: #{decoder_forward.5} parent=0
    _
  %s6 = ssub.s32 1, %s4
  %s7 = scalar_select 0, %s6, %s4
  // Predicated region
  $region2: #{decoder_forward.5} parent=0 // pred_check
    _
  $region3: #{decoder_forward.5} parent=0 // pred_check_branch
    %9 = sbr.rel (0) target = $region5
  $region4: #{decoder_forward.5} parent=0 // pred_region
    _
  $region5: #{decoder_forward.5} parent=0 // pred_fallthru
    _
  // Predicated region
  $region6: #{decoder_forward.5} parent=0 // pred_check
    _
  $region7: #{decoder_forward.5} parent=0 // pred_check_branch
    %11 = sbr.rel (0) target = $region9
  $region8: #{decoder_forward.5} parent=0 // pred_region
    _
  $region9: #{decoder_forward.5} parent=0 // pred_fallthru
    _
  // Predicated region
  $region10: #{decoder_forward.5} parent=0 // pred_check
    _
  $region11: #{decoder_forward.5} parent=0 // pred_check_branch
    %13 = sbr.rel (0) target = $region13
  $region12: #{decoder_forward.5} parent=0 // pred_region
    _
  $region13: #{decoder_forward.5} parent=0 // pred_fallthru
    _
  %v15 = vld [vmem:[%s0] sm:$0xf]
  %v16 = vld [vmem:[%s0 + $0x4] sm:$0xf]
  %v17 = vld [vmem:[%s1] sm:$0xf]
  %v18 = vld [vmem:[%s1 + $0x4] sm:$0xf]
  %v19 = vld [vmem:[%s1 + $0x8] sm:$0xf]
  %v20 = vld [vmem:[%s1 + $0xc] sm:$0xf]
  %v21 = vld [vmem:[%s1 + $0x10] sm:$0xf]
  %v22 = vld [vmem:[%s1 + $0x14] sm:$0xf]
  %v23 = vld [vmem:[%s1 + $0x18] sm:$0xf]
  %v24 = vld [vmem:[%s1 + $0x1c] sm:$0xf]
  %v25 = vld [vmem:[%s1 + $0x20] sm:$0xf]
  %v26 = vld [vmem:[%s1 + $0x24] sm:$0xf]
  %v27 = vld [vmem:[%s1 + $0x28] sm:$0xf]
  %v28 = vld [vmem:[%s1 + $0x2c] sm:$0xf]
  %v29 = vld [vmem:[%s1 + $0x30] sm:$0xf]
  %v30 = vld [vmem:[%s1 + $0x34] sm:$0xf]
  %v31 = vld [vmem:[%s1 + $0x38] sm:$0xf]
  %v32 = vld [vmem:[%s1 + $0x3c] sm:$0xf]
  %v33 = vld [vmem:[%s2] sm:$0x1]
  %v35 = vlaneseq
  %v36 = vshrl.u32 %v35, 7
  %v37 = vsub.s32 0, %v36
  %v38 = vrot.slane %v33, %v37
  %v42 = vunpack.c.l.b16 %v15
  %v43 = vunpack.c.l.b16 %v16
  %v44 = vpack.c.b16 %v43, %v42
  %v62 = vunpack.c.l.b16 %v17
  %v63 = vunpack.c.l.b16 %v18
  %v64 = vunpack.c.l.b16 %v19
  %v65 = vunpack.c.l.b16 %v20
  %v66 = vunpack.c.l.b16 %v21
  %v67 = vunpack.c.l.b16 %v22
  %v68 = vunpack.c.l.b16 %v23
  %v69 = vunpack.c.l.b16 %v24
  %v70 = vunpack.c.l.b16 %v25
  %v71 = vunpack.c.l.b16 %v26
  %v72 = vunpack.c.l.b16 %v27
  %v73 = vunpack.c.l.b16 %v28
  %v74 = vunpack.c.l.b16 %v29
  %v75 = vunpack.c.l.b16 %v30
  %v76 = vunpack.c.l.b16 %v31
  %v77 = vunpack.c.l.b16 %v32
  %v78 = vpack.c.b16 %v63, %v62
  %v79 = vpack.c.b16 %v65, %v64
  %v80 = vpack.c.b16 %v67, %v66
  %v81 = vpack.c.b16 %v69, %v68
  %v82 = vpack.c.b16 %v71, %v70
  %v83 = vpack.c.b16 %v73, %v72
  %v84 = vpack.c.b16 %v75, %v74
  %v85 = vpack.c.b16 %v77, %v76
  %94 = vmatprep.subr.bf16.mxu0 0
  %95 = vmatpush1.bf16.msra.mxu0 %v78
  %96 = vmatprep.subr.bf16.mxu0 0
  %97 = vmatpush1.bf16.msra.mxu0 %v79
  %98 = vmatprep.subr.bf16.mxu0 0
  %99 = vmatpush1.bf16.msra.mxu0 %v80
  %100 = vmatprep.subr.bf16.mxu0 0
  %101 = vmatpush1.bf16.msra.mxu0 %v81
  %102 = vmatprep.subr.bf16.mxu0 0
  %103 = vmatpush1.bf16.msra.mxu0 %v82
  %104 = vmatprep.subr.bf16.mxu0 0
  %105 = vmatpush1.bf16.msra.mxu0 %v83
  %106 = vmatprep.subr.bf16.mxu0 0
  %107 = vmatpush1.bf16.msra.mxu0 %v84
  %108 = vmatprep.subr.bf16.mxu0 0
  %109 = vmatpush1.bf16.msra.mxu0 %v85
  %110 = vmatprep.subr.bf16.mxu0 0
  %111 = vmatpush1.bf16.msra.mxu0 0
  %112 = vmatprep.subr.bf16.mxu0 0
  %113 = vmatpush1.bf16.msra.mxu0 0
  %114 = vmatprep.subr.bf16.mxu0 0
  %115 = vmatpush1.bf16.msra.mxu0 0
  %116 = vmatprep.subr.bf16.mxu0 0
  %117 = vmatpush1.bf16.msra.mxu0 0
  %118 = vmatprep.subr.bf16.mxu0 0
  %119 = vmatpush1.bf16.msra.mxu0 0
  %120 = vmatprep.subr.bf16.mxu0 0
  %121 = vmatpush1.bf16.msra.mxu0 0
  %122 = vmatprep.subr.bf16.mxu0 0
  %123 = vmatpush1.bf16.msra.mxu0 0
  %124 = vmatprep.subr.bf16.mxu0 0
  %125 = vmatpush1.bf16.msra.mxu0 0
  %126 = vmatprep.mubr.bf16.mxu0 0
  %127 = vmatmul.mubr.bf16.gmra.mrb[0].mxu0 %v44
  %v128 = vpop.f32.mrb[0].mxu0
  %v129 = vadd.f32 %v38, %v128
  %v130 = vpop.f32.mrb[0].mxu0
  %v131 = vpop.f32.mrb[0].mxu0
  %v132 = vadd.f32 %v38, %v131
  %v133 = vpop.f32.mrb[0].mxu0
  %134 = vdwg.mxu0
  %135 = vst [vmem:[%s3] sm:$0xff] %v129
  %136 = vst [vmem:[%s3 + $0x8] sm:$0xff] %v132
  // Predicated region
  $region14: #{decoder_forward.5} parent=0 // pred_check
    _
  $region15: #{decoder_forward.5} parent=0 // pred_check_branch
    %138 = sbr.rel (0) target = $region17
  $region16: #{decoder_forward.5} parent=0 // pred_region
    _
  $region17: #{decoder_forward.5} parent=0 // pred_fallthru
    _
  // Predicated region
  $region18: #{decoder_forward.5} parent=0 // pred_check
    _
  $region19: #{decoder_forward.5} parent=0 // pred_check_branch
    %140 = sbr.rel (0) target = $region21
  $region20: #{decoder_forward.5} parent=0 // pred_region
    _
  $region21: #{decoder_forward.5} parent=0 // pred_fallthru
    _

// kernel: decoder_forward.4
$region0: #{decoder_forward.4}
  #allocation0 [shape = 'u32[]', space=smem, size = 0x4, offset = 0x4, fixed_abs, tag = 'smem constant byte address 0x4 - core index']
  #allocation1 [shape = 'u32[144,128]{1,0:T(1,128)}', space=vmem, size = 0x12000, scoped, tag = 'internal scratch']
  #allocation2 [shape = 'bf16[2,128,512]{2,1,0:T(16,128)(2,1)}', space=vmem, size = 0x40000, scoped, tag = 'scratch operand']
  #allocation3 [shape = 'bf16[1,128,512]{2,1,0:T(16,128)(2,1)}', space=vmem, size = 0x20000, scoped, tag = 'scratch operand']
  #allocation4 [shape = 'f32[2,16,128]{2,1,0:T(8,128)}', space=vmem, size = 0x4000, scoped, tag = 'scratch operand']
  #allocation5 [shape = 'f32[2,16,128]{2,1,0:T(8,128)}', space=vmem, size = 0x4000, scoped, tag = 'scratch operand']
  #allocation6 [shape = 's32[2]{0}', space=sflag, size = 0x8, scoped, tag = 'scratch operand']
  #allocation7 [shape = 's32[]', space=sflag, size = 0x4, offset = 0, fixed_abs, tag = 'sflag constant byte address 0x0 - dummy sync flag']
  #allocation8 [shape = 's32[]', space=sflag, size = 0x4, offset = 0, fixed_abs, tag = 'sflag constant byte address 0x0 - dummy sync flag']
  %s0 = inlined_call_operand.vmem [shape: bf16[8,16,512], index: 0, kind: input, shape index: {}]
  %s1 = inlined_call_operand.vmem [shape: bf16[2,128,512], index: 1, kind: input, shape index: {}]
  %s2 = inlined_call_operand.hbm [shape: bf16[1,128,512], index: 2, kind: input, shape index: {}]
  %s3 = inlined_call_operand.vmem [shape: f32[1,1,512], index: 3, kind: input, shape index: {}]
  %s4 = inlined_call_operand.vmem [shape: bf16[8,16,128], index: 4, kind: output, shape index: {}]
  %s5 = sld [smem:[#allocation0]]
  $region59: #{decoder_forward.4} parent=0
    _
  %s7 = ssub.s32 1, %s5
  %s8 = scalar_select 0, %s7, %s5
  // Predicated region
  $region2: #{decoder_forward.4} parent=0 // pred_check
    _
  $region3: #{decoder_forward.4} parent=0 // pred_check_branch
    %10 = sbr.rel (0) target = $region5
  $region4: #{decoder_forward.4} parent=0 // pred_region
    _
  $region5: #{decoder_forward.4} parent=0 // pred_fallthru
    _
  // Predicated region
  $region6: #{decoder_forward.4} parent=0 // pred_check
    _
  $region7: #{decoder_forward.4} parent=0 // pred_check_branch
    %12 = sbr.rel (0) target = $region9
  $region8: #{decoder_forward.4} parent=0 // pred_region
    _
  $region9: #{decoder_forward.4} parent=0 // pred_fallthru
    _
  %p14 = scmp.eq.s32.totalorder 0, 0
  // Predicated region
  $region10: #{decoder_forward.4} parent=0 // pred_check
    %p15 = pneg %p14
  $region11: #{decoder_forward.4} parent=0 // pred_check_branch
    %17 = sbr.rel (%p15) target = $region13
  $region12: #{decoder_forward.4} parent=0 // pred_region
    #allocation9 [shape = 'u32[9]{0}', space=smem, size = 0x24, scoped, tag = 'DMA stride descriptor']
    %p19 = scmp.lt.u32.totalorder 4, 8
    %p20 = pneg %p19
    // Predicated region
    $region14: #{decoder_forward.4} parent=12 // pred_check
      _
    $region15: #{decoder_forward.4} parent=12 // pred_check_branch
      %22 = sbr.rel (%p19) target = $region17
    $region16: #{decoder_forward.4} parent=12 // pred_region
      %s291 = sand.u32 4, 7
      %p292 = scmp.eq.s32.totalorder %s291, 0
      %p293 = pneg %p292
      // Predicated region
      $region29: #{decoder_forward.4} parent=16 // pred_check
        _
      $region30: #{decoder_forward.4} parent=16 // pred_check_branch
        %295 = sbr.rel (%p292) target = $region32
      $region31: #{decoder_forward.4} parent=16 // pred_region
        %s296 = sand.u32 4, 7
        %s297 = ssub.s32 4, %s296
        %s298 = scalar_lea.vmem %s1, %s297
        %s299 = ssub.s32 4, %s296
        %s300 = scalar_lea.vmem [#allocation2], %s299
        loop: start=0, step=1, limit=1
        $region33: #{decoder_forward.4} parent=31 // loop_pre_header
          _
        $region34: #{decoder_forward.4} parent=31 // loop_header
          %s302 = sphi 0, %s306
          %p303 = scmp.ge.s32.totalorder %s302, 1
          %s307 = sphi %s1, %s1
          %s308 = sphi [#allocation2], [#allocation2]
        $region35: #{decoder_forward.4} parent=31 // loop_header_branch
          %305 = sbr.rel (%p303) target = $region39
        $region36: #{decoder_forward.4} parent=31 // loop_body
          _
        $region37: #{decoder_forward.4} parent=31 // loop_footer
          %s306 = sadd.s32 1, %s302
        $region38: #{decoder_forward.4} parent=31 // loop_footer_branch
          %301 = sbr.rel target = $region34
        $region39: #{decoder_forward.4} parent=31 // loop_exit
          _
        %s309 = sshllo.u32 0, %s296
        loop: start=0, step=1, limit=1
        $region40: #{decoder_forward.4} parent=31 // loop_pre_header
          _
        $region41: #{decoder_forward.4} parent=31 // loop_header
          %s311 = sphi 0, %s315
          %p312 = scmp.ge.s32.totalorder %s311, 1
          %s316 = sphi %s298, %s298
          %s317 = sphi %s300, %s300
        $region42: #{decoder_forward.4} parent=31 // loop_header_branch
          %314 = sbr.rel (%p312) target = $region46
        $region43: #{decoder_forward.4} parent=31 // loop_body
          %v318 = vld [vmem:[%s316] sm:%s309]
          %319 = vst [vmem:[%s317] sm:%s309] %v318
          %v320 = vld [vmem:[%s316 + $0x10] sm:%s309]
          %321 = vst [vmem:[%s317 + $0x4] sm:%s309] %v320
          %v322 = vld [vmem:[%s316 + $0x4] sm:%s309]
          %323 = vst [vmem:[%s317 + $0x8] sm:%s309] %v322
          %v324 = vld [vmem:[%s316 + $0x14] sm:%s309]
          %325 = vst [vmem:[%s317 + $0xc] sm:%s309] %v324
          %v326 = vld [vmem:[%s316 + $0x8] sm:%s309]
          %327 = vst [vmem:[%s317 + $0x10] sm:%s309] %v326
          %v328 = vld [vmem:[%s316 + $0x18] sm:%s309]
          %329 = vst [vmem:[%s317 + $0x14] sm:%s309] %v328
          %v330 = vld [vmem:[%s316 + $0xc] sm:%s309]
          %331 = vst [vmem:[%s317 + $0x18] sm:%s309] %v330
          %v332 = vld [vmem:[%s316 + $0x1c] sm:%s309]
          %333 = vst [vmem:[%s317 + $0x1c] sm:%s309] %v332
          %v334 = vld [vmem:[%s316 + $0x20] sm:%s309]
          %335 = vst [vmem:[%s317 + $0x20] sm:%s309] %v334
          %v336 = vld [vmem:[%s316 + $0x30] sm:%s309]
          %337 = vst [vmem:[%s317 + $0x24] sm:%s309] %v336
          %v338 = vld [vmem:[%s316 + $0x24] sm:%s309]
          %339 = vst [vmem:[%s317 + $0x28] sm:%s309] %v338
          %v340 = vld [vmem:[%s316 + $0x34] sm:%s309]
          %341 = vst [vmem:[%s317 + $0x2c] sm:%s309] %v340
          %v342 = vld [vmem:[%s316 + $0x28] sm:%s309]
          %343 = vst [vmem:[%s317 + $0x30] sm:%s309] %v342
          %v344 = vld [vmem:[%s316 + $0x38] sm:%s309]
          %345 = vst [vmem:[%s317 + $0x34] sm:%s309] %v344
          %v346 = vld [vmem:[%s316 + $0x2c] sm:%s309]
          %347 = vst [vmem:[%s317 + $0x38] sm:%s309] %v346
          %v348 = vld [vmem:[%s316 + $0x3c] sm:%s309]
          %349 = vst [vmem:[%s317 + $0x3c] sm:%s309] %v348
          %v350 = vld [vmem:[%s316 + $0x40] sm:%s309]
          %351 = vst [vmem:[%s317 + $0x40] sm:%s309] %v350
          %v352 = vld [vmem:[%s316 + $0x50] sm:%s309]
          %353 = vst [vmem:[%s317 + $0x44] sm:%s309] %v352
          %v354 = vld [vmem:[%s316 + $0x44] sm:%s309]
          %355 = vst [vmem:[%s317 + $0x48] sm:%s309] %v354
          %v356 = vld [vmem:[%s316 + $0x54] sm:%s309]
          %357 = vst [vmem:[%s317 + $0x4c] sm:%s309] %v356
          %v358 = vld [vmem:[%s316 + $0x48] sm:%s309]
          %359 = vst [vmem:[%s317 + $0x50] sm:%s309] %v358
          %v360 = vld [vmem:[%s316 + $0x58] sm:%s309]
          %361 = vst [vmem:[%s317 + $0x54] sm:%s309] %v360
          %v362 = vld [vmem:[%s316 + $0x4c] sm:%s309]
          %363 = vst [vmem:[%s317 + $0x58] sm:%s309] %v362
          %v364 = vld [vmem:[%s316 + $0x5c] sm:%s309]
          %365 = vst [vmem:[%s317 + $0x5c] sm:%s309] %v364
          %v366 = vld [vmem:[%s316 + $0x60] sm:%s309]
          %367 = vst [vmem:[%s317 + $0x60] sm:%s309] %v366
          %v368 = vld [vmem:[%s316 + $0x70] sm:%s309]
          %369 = vst [vmem:[%s317 + $0x64] sm:%s309] %v368
          %v370 = vld [vmem:[%s316 + $0x64] sm:%s309]
          %371 = vst [vmem:[%s317 + $0x68] sm:%s309] %v370
          %v372 = vld [vmem:[%s316 + $0x74] sm:%s309]
          %373 = vst [vmem:[%s317 + $0x6c] sm:%s309] %v372
          %v374 = vld [vmem:[%s316 + $0x68] sm:%s309]
          %375 = vst [vmem:[%s317 + $0x70] sm:%s309] %v374
          %v376 = vld [vmem:[%s316 + $0x78] sm:%s309]
          %377 = vst [vmem:[%s317 + $0x74] sm:%s309] %v376
          %v378 = vld [vmem:[%s316 + $0x6c] sm:%s309]
          %379 = vst [vmem:[%s317 + $0x78] sm:%s309] %v378
          %v380 = vld [vmem:[%s316 + $0x7c] sm:%s309]
          %381 = vst [vmem:[%s317 + $0x7c] sm:%s309] %v380
          %v382 = vld [vmem:[%s316 + $0x80] sm:%s309]
          %383 = vst [vmem:[%s317 + $0x80] sm:%s309] %v382
          %v384 = vld [vmem:[%s316 + $0x90] sm:%s309]
          %385 = vst [vmem:[%s317 + $0x84] sm:%s309] %v384
          %v386 = vld [vmem:[%s316 + $0x84] sm:%s309]
          %387 = vst [vmem:[%s317 + $0x88] sm:%s309] %v386
          %v388 = vld [vmem:[%s316 + $0x94] sm:%s309]
          %389 = vst [vmem:[%s317 + $0x8c] sm:%s309] %v388
          %v390 = vld [vmem:[%s316 + $0x88] sm:%s309]
          %391 = vst [vmem:[%s317 + $0x90] sm:%s309] %v390
          %v392 = vld [vmem:[%s316 + $0x98] sm:%s309]
          %393 = vst [vmem:[%s317 + $0x94] sm:%s309] %v392
          %v394 = vld [vmem:[%s316 + $0x8c] sm:%s309]
          %395 = vst [vmem:[%s317 + $0x98] sm:%s309] %v394
          %v396 = vld [vmem:[%s316 + $0x9c] sm:%s309]
          %397 = vst [vmem:[%s317 + $0x9c] sm:%s309] %v396
          %v398 = vld [vmem:[%s316 + $0xa0] sm:%s309]
          %399 = vst [vmem:[%s317 + $0xa0] sm:%s309] %v398
          %v400 = vld [vmem:[%s316 + $0xb0] sm:%s309]
          %401 = vst [vmem:[%s317 + $0xa4] sm:%s309] %v400
          %v402 = vld [vmem:[%s316 + $0xa4] sm:%s309]
          %403 = vst [vmem:[%s317 + $0xa8] sm:%s309] %v402
          %v404 = vld [vmem:[%s316 + $0xb4] sm:%s309]
          %405 = vst [vmem:[%s317 + $0xac] sm:%s309] %v404
          %v406 = vld [vmem:[%s316 + $0xa8] sm:%s309]
          %407 = vst [vmem:[%s317 + $0xb0] sm:%s309] %v406
          %v408 = vld [vmem:[%s316 + $0xb8] sm:%s309]
          %409 = vst [vmem:[%s317 + $0xb4] sm:%s309] %v408
          %v410 = vld [vmem:[%s316 + $0xac] sm:%s309]
          %411 = vst [vmem:[%s317 + $0xb8] sm:%s309] %v410
          %v412 = vld [vmem:[%s316 + $0xbc] sm:%s309]
          %413 = vst [vmem:[%s317 + $0xbc] sm:%s309] %v412
          %v414 = vld [vmem:[%s316 + $0xc0] sm:%s309]
          %415 = vst [vmem:[%s317 + $0xc0] sm:%s309] %v414
          %v416 = vld [vmem:[%s316 + $0xd0] sm:%s309]
          %417 = vst [vmem:[%s317 + $0xc4] sm:%s309] %v416
          %v418 = vld [vmem:[%s316 + $0xc4] sm:%s309]
          %419 = vst [vmem:[%s317 + $0xc8] sm:%s309] %v418
          %v420 = vld [vmem:[%s316 + $0xd4] sm:%s309]
          %421 = vst [vmem:[%s317 + $0xcc] sm:%s309] %v420
          %v422 = vld [vmem:[%s316 + $0xc8] sm:%s309]
          %423 = vst [vmem:[%s317 + $0xd0] sm:%s309] %v422
          %v424 = vld [vmem:[%s316 + $0xd8] sm:%s309]
          %425 = vst [vmem:[%s317 + $0xd4] sm:%s309] %v424
          %v426 = vld [vmem:[%s316 + $0xcc] sm:%s309]
          %427 = vst [vmem:[%s317 + $0xd8] sm:%s309] %v426
          %v428 = vld [vmem:[%s316 + $0xdc] sm:%s309]
          %429 = vst [vmem:[%s317 + $0xdc] sm:%s309] %v428
          %v430 = vld [vmem:[%s316 + $0xe0] sm:%s309]
          %431 = vst [vmem:[%s317 + $0xe0] sm:%s309] %v430
          %v432 = vld [vmem:[%s316 + $0xf0] sm:%s309]
          %433 = vst [vmem:[%s317 + $0xe4] sm:%s309] %v432
          %v434 = vld [vmem:[%s316 + $0xe4] sm:%s309]
          %435 = vst [vmem:[%s317 + $0xe8] sm:%s309] %v434
          %v436 = vld [vmem:[%s316 + $0xf4] sm:%s309]
          %437 = vst [vmem:[%s317 + $0xec] sm:%s309] %v436
          %v438 = vld [vmem:[%s316 + $0xe8] sm:%s309]
          %439 = vst [vmem:[%s317 + $0xf0] sm:%s309] %v438
          %v440 = vld [vmem:[%s316 + $0xf8] sm:%s309]
          %441 = vst [vmem:[%s317 + $0xf4] sm:%s309] %v440
          %v442 = vld [vmem:[%s316 + $0xec] sm:%s309]
          %443 = vst [vmem:[%s317 + $0xf8] sm:%s309] %v442
          %v444 = vld [vmem:[%s316 + $0xfc] sm:%s309]
          %445 = vst [vmem:[%s317 + $0xfc] sm:%s309] %v444
          %v446 = vld [vmem:[%s316 + $0x100] sm:%s309]
          %447 = vst [vmem:[%s317 + $0x100] sm:%s309] %v446
          %v448 = vld [vmem:[%s316 + $0x110] sm:%s309]
          %449 = vst [vmem:[%s317 + $0x104] sm:%s309] %v448
          %v450 = vld [vmem:[%s316 + $0x104] sm:%s309]
          %451 = vst [vmem:[%s317 + $0x108] sm:%s309] %v450
          %v452 = vld [vmem:[%s316 + $0x114] sm:%s309]
          %453 = vst [vmem:[%s317 + $0x10c] sm:%s309] %v452
          %v454 = vld [vmem:[%s316 + $0x108] sm:%s309]
          %455 = vst [vmem:[%s317 + $0x110] sm:%s309] %v454
          %v456 = vld [vmem:[%s316 + $0x118] sm:%s309]
          %457 = vst [vmem:[%s317 + $0x114] sm:%s309] %v456
          %v458 = vld [vmem:[%s316 + $0x10c] sm:%s309]
          %459 = vst [vmem:[%s317 + $0x118] sm:%s309] %v458
          %v460 = vld [vmem:[%s316 + $0x11c] sm:%s309]
          %461 = vst [vmem:[%s317 + $0x11c] sm:%s309] %v460
          %v462 = vld [vmem:[%s316 + $0x120] sm:%s309]
          %463 = vst [vmem:[%s317 + $0x120] sm:%s309] %v462
          %v464 = vld [vmem:[%s316 + $0x130] sm:%s309]
          %465 = vst [vmem:[%s317 + $0x124] sm:%s309] %v464
          %v466 = vld [vmem:[%s316 + $0x124] sm:%s309]
          %467 = vst [vmem:[%s317 + $0x128] sm:%s309] %v466
          %v468 = vld [vmem:[%s316 + $0x134] sm:%s309]
          %469 = vst [vmem:[%s317 + $0x12c] sm:%s309] %v468
          %v470 = vld [vmem:[%s316 + $0x128] sm:%s309]
          %471 = vst [vmem:[%s317 + $0x130] sm:%s309] %v470
          %v472 = vld [vmem:[%s316 + $0x138] sm:%s309]
          %473 = vst [vmem:[%s317 + $0x134] sm:%s309] %v472
          %v474 = vld [vmem:[%s316 + $0x12c] sm:%s309]
          %475 = vst [vmem:[%s317 + $0x138] sm:%s309] %v474
          %v476 = vld [vmem:[%s316 + $0x13c] sm:%s309]
          %477 = vst [vmem:[%s317 + $0x13c] sm:%s309] %v476
          %v478 = vld [vmem:[%s316 + $0x140] sm:%s309]
          %479 = vst [vmem:[%s317 + $0x140] sm:%s309] %v478
          %v480 = vld [vmem:[%s316 + $0x150] sm:%s309]
          %481 = vst [vmem:[%s317 + $0x144] sm:%s309] %v480
          %v482 = vld [vmem:[%s316 + $0x144] sm:%s309]
          %483 = vst [vmem:[%s317 + $0x148] sm:%s309] %v482
          %v484 = vld [vmem:[%s316 + $0x154] sm:%s309]
          %485 = vst [vmem:[%s317 + $0x14c] sm:%s309] %v484
          %v486 = vld [vmem:[%s316 + $0x148] sm:%s309]
          %487 = vst [vmem:[%s317 + $0x150] sm:%s309] %v486
          %v488 = vld [vmem:[%s316 + $0x158] sm:%s309]
          %489 = vst [vmem:[%s317 + $0x154] sm:%s309] %v488
          %v490 = vld [vmem:[%s316 + $0x14c] sm:%s309]
          %491 = vst [vmem:[%s317 + $0x158] sm:%s309] %v490
          %v492 = vld [vmem:[%s316 + $0x15c] sm:%s309]
          %493 = vst [vmem:[%s317 + $0x15c] sm:%s309] %v492
          %v494 = vld [vmem:[%s316 + $0x160] sm:%s309]
          %495 = vst [vmem:[%s317 + $0x160] sm:%s309] %v494
          %v496 = vld [vmem:[%s316 + $0x170] sm:%s309]
          %497 = vst [vmem:[%s317 + $0x164] sm:%s309] %v496
          %v498 = vld [vmem:[%s316 + $0x164] sm:%s309]
          %499 = vst [vmem:[%s317 + $0x168] sm:%s309] %v498
          %v500 = vld [vmem:[%s316 + $0x174] sm:%s309]
          %501 = vst [vmem:[%s317 + $0x16c] sm:%s309] %v500
          %v502 = vld [vmem:[%s316 + $0x168] sm:%s309]
          %503 = vst [vmem:[%s317 + $0x170] sm:%s309] %v502
          %v504 = vld [vmem:[%s316 + $0x178] sm:%s309]
          %505 = vst [vmem:[%s317 + $0x174] sm:%s309] %v504
          %v506 = vld [vmem:[%s316 + $0x16c] sm:%s309]
          %507 = vst [vmem:[%s317 + $0x178] sm:%s309] %v506
          %v508 = vld [vmem:[%s316 + $0x17c] sm:%s309]
          %509 = vst [vmem:[%s317 + $0x17c] sm:%s309] %v508
          %v510 = vld [vmem:[%s316 + $0x180] sm:%s309]
          %511 = vst [vmem:[%s317 + $0x180] sm:%s309] %v510
          %v512 = vld [vmem:[%s316 + $0x190] sm:%s309]
          %513 = vst [vmem:[%s317 + $0x184] sm:%s309] %v512
          %v514 = vld [vmem:[%s316 + $0x184] sm:%s309]
          %515 = vst [vmem:[%s317 + $0x188] sm:%s309] %v514
          %v516 = vld [vmem:[%s316 + $0x194] sm:%s309]
          %517 = vst [vmem:[%s317 + $0x18c] sm:%s309] %v516
          %v518 = vld [vmem:[%s316 + $0x188] sm:%s309]
          %519 = vst [vmem:[%s317 + $0x190] sm:%s309] %v518
          %v520 = vld [vmem:[%s316 + $0x198] sm:%s309]
          %521 = vst [vmem:[%s317 + $0x194] sm:%s309] %v520
          %v522 = vld [vmem:[%s316 + $0x18c] sm:%s309]
          %523 = vst [vmem:[%s317 + $0x198] sm:%s309] %v522
          %v524 = vld [vmem:[%s316 + $0x19c] sm:%s309]
          %525 = vst [vmem:[%s317 + $0x19c] sm:%s309] %v524
          %v526 = vld [vmem:[%s316 + $0x1a0] sm:%s309]
          %527 = vst [vmem:[%s317 + $0x1a0] sm:%s309] %v526
          %v528 = vld [vmem:[%s316 + $0x1b0] sm:%s309]
          %529 = vst [vmem:[%s317 + $0x1a4] sm:%s309] %v528
          %v530 = vld [vmem:[%s316 + $0x1a4] sm:%s309]
          %531 = vst [vmem:[%s317 + $0x1a8] sm:%s309] %v530
          %v532 = vld [vmem:[%s316 + $0x1b4] sm:%s309]
          %533 = vst [vmem:[%s317 + $0x1ac] sm:%s309] %v532
          %v534 = vld [vmem:[%s316 + $0x1a8] sm:%s309]
          %535 = vst [vmem:[%s317 + $0x1b0] sm:%s309] %v534
          %v536 = vld [vmem:[%s316 + $0x1b8] sm:%s309]
          %537 = vst [vmem:[%s317 + $0x1b4] sm:%s309] %v536
          %v538 = vld [vmem:[%s316 + $0x1ac] sm:%s309]
          %539 = vst [vmem:[%s317 + $0x1b8] sm:%s309] %v538
          %v540 = vld [vmem:[%s316 + $0x1bc] sm:%s309]
          %541 = vst [vmem:[%s317 + $0x1bc] sm:%s309] %v540
          %v542 = vld [vmem:[%s316 + $0x1c0] sm:%s309]
          %543 = vst [vmem:[%s317 + $0x1c0] sm:%s309] %v542
          %v544 = vld [vmem:[%s316 + $0x1d0] sm:%s309]
          %545 = vst [vmem:[%s317 + $0x1c4] sm:%s309] %v544
          %v546 = vld [vmem:[%s316 + $0x1c4] sm:%s309]
          %547 = vst [vmem:[%s317 + $0x1c8] sm:%s309] %v546
          %v548 = vld [vmem:[%s316 + $0x1d4] sm:%s309]
          %549 = vst [vmem:[%s317 + $0x1cc] sm:%s309] %v548
          %v550 = vld [vmem:[%s316 + $0x1c8] sm:%s309]
          %551 = vst [vmem:[%s317 + $0x1d0] sm:%s309] %v550
          %v552 = vld [vmem:[%s316 + $0x1d8] sm:%s309]
          %553 = vst [vmem:[%s317 + $0x1d4] sm:%s309] %v552
          %v554 = vld [vmem:[%s316 + $0x1cc] sm:%s309]
          %555 = vst [vmem:[%s317 + $0x1d8] sm:%s309] %v554
          %v556 = vld [vmem:[%s316 + $0x1dc] sm:%s309]
          %557 = vst [vmem:[%s317 + $0x1dc] sm:%s309] %v556
          %v558 = vld [vmem:[%s316 + $0x1e0] sm:%s309]
          %559 = vst [vmem:[%s317 + $0x1e0] sm:%s309] %v558
          %v560 = vld [vmem:[%s316 + $0x1f0] sm:%s309]
          %561 = vst [vmem:[%s317 + $0x1e4] sm:%s309] %v560
          %v562 = vld [vmem:[%s316 + $0x1e4] sm:%s309]
          %563 = vst [vmem:[%s317 + $0x1e8] sm:%s309] %v562
          %v564 = vld [vmem:[%s316 + $0x1f4] sm:%s309]
          %565 = vst [vmem:[%s317 + $0x1ec] sm:%s309] %v564
          %v566 = vld [vmem:[%s316 + $0x1e8] sm:%s309]
          %567 = vst [vmem:[%s317 + $0x1f0] sm:%s309] %v566
          %v568 = vld [vmem:[%s316 + $0x1f8] sm:%s309]
          %569 = vst [vmem:[%s317 + $0x1f4] sm:%s309] %v568
          %v570 = vld [vmem:[%s316 + $0x1ec] sm:%s309]
          %571 = vst [vmem:[%s317 + $0x1f8] sm:%s309] %v570
          %v572 = vld [vmem:[%s316 + $0x1fc] sm:%s309]
          %573 = vst [vmem:[%s317 + $0x1fc] sm:%s309] %v572
        $region44: #{decoder_forward.4} parent=31 // loop_footer
          %s315 = sadd.s32 1, %s311
        $region45: #{decoder_forward.4} parent=31 // loop_footer_branch
          %310 = sbr.rel target = $region41
        $region46: #{decoder_forward.4} parent=31 // loop_exit
          _
      $region32: #{decoder_forward.4} parent=16 // pred_fallthru
        _
    $region17: #{decoder_forward.4} parent=12 // pred_fallthru
      _
    // Predicated region
    $region18: #{decoder_forward.4} parent=12 // pred_check
      %p23 = pneg %p19
    $region19: #{decoder_forward.4} parent=12 // pred_check_branch
      %25 = sbr.rel (%p23) target = $region21
    $region20: #{decoder_forward.4} parent=12 // pred_region
      %s26 = sshllo.u32 0, 4
      loop: start=0, step=1, limit=1
      $region22: #{decoder_forward.4} parent=20 // loop_pre_header
        _
      $region23: #{decoder_forward.4} parent=20 // loop_header
        %s28 = sphi 0, %s32
        %p29 = scmp.ge.s32.totalorder %s28, 1
        %s33 = sphi %s1, %s1
        %s34 = sphi [#allocation2], [#allocation2]
      $region24: #{decoder_forward.4} parent=20 // loop_header_branch
        %31 = sbr.rel (%p29) target = $region28
      $region25: #{decoder_forward.4} parent=20 // loop_body
        %v35 = vld [vmem:[%s33] sm:%s26]
        %36 = vst [vmem:[%s34] sm:%s26] %v35
        %v37 = vld [vmem:[%s33 + $0x10] sm:%s26]
        %38 = vst [vmem:[%s34 + $0x4] sm:%s26] %v37
        %v39 = vld [vmem:[%s33 + $0x4] sm:%s26]
        %40 = vst [vmem:[%s34 + $0x8] sm:%s26] %v39
        %v41 = vld [vmem:[%s33 + $0x14] sm:%s26]
        %42 = vst [vmem:[%s34 + $0xc] sm:%s26] %v41
        %v43 = vld [vmem:[%s33 + $0x8] sm:%s26]
        %44 = vst [vmem:[%s34 + $0x10] sm:%s26] %v43
        %v45 = vld [vmem:[%s33 + $0x18] sm:%s26]
        %46 = vst [vmem:[%s34 + $0x14] sm:%s26] %v45
        %v47 = vld [vmem:[%s33 + $0xc] sm:%s26]
        %48 = vst [vmem:[%s34 + $0x18] sm:%s26] %v47
        %v49 = vld [vmem:[%s33 + $0x1c] sm:%s26]
        %50 = vst [vmem:[%s34 + $0x1c] sm:%s26] %v49
        %v51 = vld [vmem:[%s33 + $0x20] sm:%s26]
        %52 = vst [vmem:[%s34 + $0x20] sm:%s26] %v51
        %v53 = vld [vmem:[%s33 + $0x30] sm:%s26]
        %54 = vst [vmem:[%s34 + $0x24] sm:%s26] %v53
        %v55 = vld [vmem:[%s33 + $0x24] sm:%s26]
        %56 = vst [vmem:[%s34 + $0x28] sm:%s26] %v55
        %v57 = vld [vmem:[%s33 + $0x34] sm:%s26]
        %58 = vst [vmem:[%s34 + $0x2c] sm:%s26] %v57
        %v59 = vld [vmem:[%s33 + $0x28] sm:%s26]
        %60 = vst [vmem:[%s34 + $0x30] sm:%s26] %v59
        %v61 = vld [vmem:[%s33 + $0x38] sm:%s26]
        %62 = vst [vmem:[%s34 + $0x34] sm:%s26] %v61
        %v63 = vld [vmem:[%s33 + $0x2c] sm:%s26]
        %64 = vst [vmem:[%s34 + $0x38] sm:%s26] %v63
        %v65 = vld [vmem:[%s33 + $0x3c] sm:%s26]
        %66 = vst [vmem:[%s34 + $0x3c] sm:%s26] %v65
        %v67 = vld [vmem:[%s33 + $0x40] sm:%s26]
        %68 = vst [vmem:[%s34 + $0x40] sm:%s26] %v67
        %v69 = vld [vmem:[%s33 + $0x50] sm:%s26]
        %70 = vst [vmem:[%s34 + $0x44] sm:%s26] %v69
        %v71 = vld [vmem:[%s33 + $0x44] sm:%s26]
        %72 = vst [vmem:[%s34 + $0x48] sm:%s26] %v71
        %v73 = vld [vmem:[%s33 + $0x54] sm:%s26]
        %74 = vst [vmem:[%s34 + $0x4c] sm:%s26] %v73
        %v75 = vld [vmem:[%s33 + $0x48] sm:%s26]
        %76 = vst [vmem:[%s34 + $0x50] sm:%s26] %v75
        %v77 = vld [vmem:[%s33 + $0x58] sm:%s26]
        %78 = vst [vmem:[%s34 + $0x54] sm:%s26] %v77
        %v79 = vld [vmem:[%s33 + $0x4c] sm:%s26]
        %80 = vst [vmem:[%s34 + $0x58] sm:%s26] %v79
        %v81 = vld [vmem:[%s33 + $0x5c] sm:%s26]
        %82 = vst [vmem:[%s34 + $0x5c] sm:%s26] %v81
        %v83 = vld [vmem:[%s33 + $0x60] sm:%s26]
        %84 = vst [vmem:[%s34 + $0x60] sm:%s26] %v83
        %v85 = vld [vmem:[%s33 + $0x70] sm:%s26]
        %86 = vst [vmem:[%s34 + $0x64] sm:%s26] %v85
        %v87 = vld [vmem:[%s33 + $0x64] sm:%s26]
        %88 = vst [vmem:[%s34 + $0x68] sm:%s26] %v87
        %v89 = vld [vmem:[%s33 + $0x74] sm:%s26]
        %90 = vst [vmem:[%s34 + $0x6c] sm:%s26] %v89
        %v91 = vld [vmem:[%s33 + $0x68] sm:%s26]
        %92 = vst [vmem:[%s34 + $0x70] sm:%s26] %v91
        %v93 = vld [vmem:[%s33 + $0x78] sm:%s26]
        %94 = vst [vmem:[%s34 + $0x74] sm:%s26] %v93
        %v95 = vld [vmem:[%s33 + $0x6c] sm:%s26]
        %96 = vst [vmem:[%s34 + $0x78] sm:%s26] %v95
        %v97 = vld [vmem:[%s33 + $0x7c] sm:%s26]
        %98 = vst [vmem:[%s34 + $0x7c] sm:%s26] %v97
        %v99 = vld [vmem:[%s33 + $0x80] sm:%s26]
        %100 = vst [vmem:[%s34 + $0x80] sm:%s26] %v99
        %v101 = vld [vmem:[%s33 + $0x90] sm:%s26]
        %102 = vst [vmem:[%s34 + $0x84] sm:%s26] %v101
        %v103 = vld [vmem:[%s33 + $0x84] sm:%s26]
        %104 = vst [vmem:[%s34 + $0x88] sm:%s26] %v103
        %v105 = vld [vmem:[%s33 + $0x94] sm:%s26]
        %106 = vst [vmem:[%s34 + $0x8c] sm:%s26] %v105
        %v107 = vld [vmem:[%s33 + $0x88] sm:%s26]
        %108 = vst [vmem:[%s34 + $0x90] sm:%s26] %v107
        %v109 = vld [vmem:[%s33 + $0x98] sm:%s26]
        %110 = vst [vmem:[%s34 + $0x94] sm:%s26] %v109
        %v111 = vld [vmem:[%s33 + $0x8c] sm:%s26]
        %112 = vst [vmem:[%s34 + $0x98] sm:%s26] %v111
        %v113 = vld [vmem:[%s33 + $0x9c] sm:%s26]
        %114 = vst [vmem:[%s34 + $0x9c] sm:%s26] %v113
        %v115 = vld [vmem:[%s33 + $0xa0] sm:%s26]
        %116 = vst [vmem:[%s34 + $0xa0] sm:%s26] %v115
        %v117 = vld [vmem:[%s33 + $0xb0] sm:%s26]
        %118 = vst [vmem:[%s34 + $0xa4] sm:%s26] %v117
        %v119 = vld [vmem:[%s33 + $0xa4] sm:%s26]
        %120 = vst [vmem:[%s34 + $0xa8] sm:%s26] %v119
        %v121 = vld [vmem:[%s33 + $0xb4] sm:%s26]
        %122 = vst [vmem:[%s34 + $0xac] sm:%s26] %v121
        %v123 = vld [vmem:[%s33 + $0xa8] sm:%s26]
        %124 = vst [vmem:[%s34 + $0xb0] sm:%s26] %v123
        %v125 = vld [vmem:[%s33 + $0xb8] sm:%s26]
        %126 = vst [vmem:[%s34 + $0xb4] sm:%s26] %v125
        %v127 = vld [vmem:[%s33 + $0xac] sm:%s26]
        %128 = vst [vmem:[%s34 + $0xb8] sm:%s26] %v127
        %v129 = vld [vmem:[%s33 + $0xbc] sm:%s26]
        %130 = vst [vmem:[%s34 + $0xbc] sm:%s26] %v129
        %v131 = vld [vmem:[%s33 + $0xc0] sm:%s26]
        %132 = vst [vmem:[%s34 + $0xc0] sm:%s26] %v131
        %v133 = vld [vmem:[%s33 + $0xd0] sm:%s26]
        %134 = vst [vmem:[%s34 + $0xc4] sm:%s26] %v133
        %v135 = vld [vmem:[%s33 + $0xc4] sm:%s26]
        %136 = vst [vmem:[%s34 + $0xc8] sm:%s26] %v135
        %v137 = vld [vmem:[%s33 + $0xd4] sm:%s26]
        %138 = vst [vmem:[%s34 + $0xcc] sm:%s26] %v137
        %v139 = vld [vmem:[%s33 + $0xc8] sm:%s26]
        %140 = vst [vmem:[%s34 + $0xd0] sm:%s26] %v139
        %v141 = vld [vmem:[%s33 + $0xd8] sm:%s26]
        %142 = vst [vmem:[%s34 + $0xd4] sm:%s26] %v141
        %v143 = vld [vmem:[%s33 + $0xcc] sm:%s26]
        %144 = vst [vmem:[%s34 + $0xd8] sm:%s26] %v143
        %v145 = vld [vmem:[%s33 + $0xdc] sm:%s26]
        %146 = vst [vmem:[%s34 + $0xdc] sm:%s26] %v145
        %v147 = vld [vmem:[%s33 + $0xe0] sm:%s26]
        %148 = vst [vmem:[%s34 + $0xe0] sm:%s26] %v147
        %v149 = vld [vmem:[%s33 + $0xf0] sm:%s26]
        %150 = vst [vmem:[%s34 + $0xe4] sm:%s26] %v149
        %v151 = vld [vmem:[%s33 + $0xe4] sm:%s26]
        %152 = vst [vmem:[%s34 + $0xe8] sm:%s26] %v151
        %v153 = vld [vmem:[%s33 + $0xf4] sm:%s26]
        %154 = vst [vmem:[%s34 + $0xec] sm:%s26] %v153
        %v155 = vld [vmem:[%s33 + $0xe8] sm:%s26]
        %156 = vst [vmem:[%s34 + $0xf0] sm:%s26] %v155
        %v157 = vld [vmem:[%s33 + $0xf8] sm:%s26]
        %158 = vst [vmem:[%s34 + $0xf4] sm:%s26] %v157
        %v159 = vld [vmem:[%s33 + $0xec] sm:%s26]
        %160 = vst [vmem:[%s34 + $0xf8] sm:%s26] %v159
        %v161 = vld [vmem:[%s33 + $0xfc] sm:%s26]
        %162 = vst [vmem:[%s34 + $0xfc] sm:%s26] %v161
        %v163 = vld [vmem:[%s33 + $0x100] sm:%s26]
        %164 = vst [vmem:[%s34 + $0x100] sm:%s26] %v163
        %v165 = vld [vmem:[%s33 + $0x110] sm:%s26]
        %166 = vst [vmem:[%s34 + $0x104] sm:%s26] %v165
        %v167 = vld [vmem:[%s33 + $0x104] sm:%s26]
        %168 = vst [vmem:[%s34 + $0x108] sm:%s26] %v167
        %v169 = vld [vmem:[%s33 + $0x114] sm:%s26]
        %170 = vst [vmem:[%s34 + $0x10c] sm:%s26] %v169
        %v171 = vld [vmem:[%s33 + $0x108] sm:%s26]
        %172 = vst [vmem:[%s34 + $0x110] sm:%s26] %v171
        %v173 = vld [vmem:[%s33 + $0x118] sm:%s26]
        %174 = vst [vmem:[%s34 + $0x114] sm:%s26] %v173
        %v175 = vld [vmem:[%s33 + $0x10c] sm:%s26]
        %176 = vst [vmem:[%s34 + $0x118] sm:%s26] %v175
        %v177 = vld [vmem:[%s33 + $0x11c] sm:%s26]
        %178 = vst [vmem:[%s34 + $0x11c] sm:%s26] %v177
        %v179 = vld [vmem:[%s33 + $0x120] sm:%s26]
        %180 = vst [vmem:[%s34 + $0x120] sm:%s26] %v179
        %v181 = vld [vmem:[%s33 + $0x130] sm:%s26]
        %182 = vst [vmem:[%s34 + $0x124] sm:%s26] %v181
        %v183 = vld [vmem:[%s33 + $0x124] sm:%s26]
        %184 = vst [vmem:[%s34 + $0x128] sm:%s26] %v183
        %v185 = vld [vmem:[%s33 + $0x134] sm:%s26]
        %186 = vst [vmem:[%s34 + $0x12c] sm:%s26] %v185
        %v187 = vld [vmem:[%s33 + $0x128] sm:%s26]
        %188 = vst [vmem:[%s34 + $0x130] sm:%s26] %v187
        %v189 = vld [vmem:[%s33 + $0x138] sm:%s26]
        %190 = vst [vmem:[%s34 + $0x134] sm:%s26] %v189
        %v191 = vld [vmem:[%s33 + $0x12c] sm:%s26]
        %192 = vst [vmem:[%s34 + $0x138] sm:%s26] %v191
        %v193 = vld [vmem:[%s33 + $0x13c] sm:%s26]
        %194 = vst [vmem:[%s34 + $0x13c] sm:%s26] %v193
        %v195 = vld [vmem:[%s33 + $0x140] sm:%s26]
        %196 = vst [vmem:[%s34 + $0x140] sm:%s26] %v195
        %v197 = vld [vmem:[%s33 + $0x150] sm:%s26]
        %198 = vst [vmem:[%s34 + $0x144] sm:%s26] %v197
        %v199 = vld [vmem:[%s33 + $0x144] sm:%s26]
        %200 = vst [vmem:[%s34 + $0x148] sm:%s26] %v199
        %v201 = vld [vmem:[%s33 + $0x154] sm:%s26]
        %202 = vst [vmem:[%s34 + $0x14c] sm:%s26] %v201
        %v203 = vld [vmem:[%s33 + $0x148] sm:%s26]
        %204 = vst [vmem:[%s34 + $0x150] sm:%s26] %v203
        %v205 = vld [vmem:[%s33 + $0x158] sm:%s26]
        %206 = vst [vmem:[%s34 + $0x154] sm:%s26] %v205
        %v207 = vld [vmem:[%s33 + $0x14c] sm:%s26]
        %208 = vst [vmem:[%s34 + $0x158] sm:%s26] %v207
        %v209 = vld [vmem:[%s33 + $0x15c] sm:%s26]
        %210 = vst [vmem:[%s34 + $0x15c] sm:%s26] %v209
        %v211 = vld [vmem:[%s33 + $0x160] sm:%s26]
        %212 = vst [vmem:[%s34 + $0x160] sm:%s26] %v211
        %v213 = vld [vmem:[%s33 + $0x170] sm:%s26]
        %214 = vst [vmem:[%s34 + $0x164] sm:%s26] %v213
        %v215 = vld [vmem:[%s33 + $0x164] sm:%s26]
        %216 = vst [vmem:[%s34 + $0x168] sm:%s26] %v215
        %v217 = vld [vmem:[%s33 + $0x174] sm:%s26]
        %218 = vst [vmem:[%s34 + $0x16c] sm:%s26] %v217
        %v219 = vld [vmem:[%s33 + $0x168] sm:%s26]
        %220 = vst [vmem:[%s34 + $0x170] sm:%s26] %v219
        %v221 = vld [vmem:[%s33 + $0x178] sm:%s26]
        %222 = vst [vmem:[%s34 + $0x174] sm:%s26] %v221
        %v223 = vld [vmem:[%s33 + $0x16c] sm:%s26]
        %224 = vst [vmem:[%s34 + $0x178] sm:%s26] %v223
        %v225 = vld [vmem:[%s33 + $0x17c] sm:%s26]
        %226 = vst [vmem:[%s34 + $0x17c] sm:%s26] %v225
        %v227 = vld [vmem:[%s33 + $0x180] sm:%s26]
        %228 = vst [vmem:[%s34 + $0x180] sm:%s26] %v227
        %v229 = vld [vmem:[%s33 + $0x190] sm:%s26]
        %230 = vst [vmem:[%s34 + $0x184] sm:%s26] %v229
        %v231 = vld [vmem:[%s33 + $0x184] sm:%s26]
        %232 = vst [vmem:[%s34 + $0x188] sm:%s26] %v231
        %v233 = vld [vmem:[%s33 + $0x194] sm:%s26]
        %234 = vst [vmem:[%s34 + $0x18c] sm:%s26] %v233
        %v235 = vld [vmem:[%s33 + $0x188] sm:%s26]
        %236 = vst [vmem:[%s34 + $0x190] sm:%s26] %v235
        %v237 = vld [vmem:[%s33 + $0x198] sm:%s26]
        %238 = vst [vmem:[%s34 + $0x194] sm:%s26] %v237
        %v239 = vld [vmem:[%s33 + $0x18c] sm:%s26]
        %240 = vst [vmem:[%s34 + $0x198] sm:%s26] %v239
        %v241 = vld [vmem:[%s33 + $0x19c] sm:%s26]
        %242 = vst [vmem:[%s34 + $0x19c] sm:%s26] %v241
        %v243 = vld [vmem:[%s33 + $0x1a0] sm:%s26]
        %244 = vst [vmem:[%s34 + $0x1a0] sm:%s26] %v243
        %v245 = vld [vmem:[%s33 + $0x1b0] sm:%s26]
        %246 = vst [vmem:[%s34 + $0x1a4] sm:%s26] %v245
        %v247 = vld [vmem:[%s33 + $0x1a4] sm:%s26]
        %248 = vst [vmem:[%s34 + $0x1a8] sm:%s26] %v247
        %v249 = vld [vmem:[%s33 + $0x1b4] sm:%s26]
        %250 = vst [vmem:[%s34 + $0x1ac] sm:%s26] %v249
        %v251 = vld [vmem:[%s33 + $0x1a8] sm:%s26]
        %252 = vst [vmem:[%s34 + $0x1b0] sm:%s26] %v251
        %v253 = vld [vmem:[%s33 + $0x1b8] sm:%s26]
        %254 = vst [vmem:[%s34 + $0x1b4] sm:%s26] %v253
        %v255 = vld [vmem:[%s33 + $0x1ac] sm:%s26]
        %256 = vst [vmem:[%s34 + $0x1b8] sm:%s26] %v255
        %v257 = vld [vmem:[%s33 + $0x1bc] sm:%s26]
        %258 = vst [vmem:[%s34 + $0x1bc] sm:%s26] %v257
        %v259 = vld [vmem:[%s33 + $0x1c0] sm:%s26]
        %260 = vst [vmem:[%s34 + $0x1c0] sm:%s26] %v259
        %v261 = vld [vmem:[%s33 + $0x1d0] sm:%s26]
        %262 = vst [vmem:[%s34 + $0x1c4] sm:%s26] %v261
        %v263 = vld [vmem:[%s33 + $0x1c4] sm:%s26]
        %264 = vst [vmem:[%s34 + $0x1c8] sm:%s26] %v263
        %v265 = vld [vmem:[%s33 + $0x1d4] sm:%s26]
        %266 = vst [vmem:[%s34 + $0x1cc] sm:%s26] %v265
        %v267 = vld [vmem:[%s33 + $0x1c8] sm:%s26]
        %268 = vst [vmem:[%s34 + $0x1d0] sm:%s26] %v267
        %v269 = vld [vmem:[%s33 + $0x1d8] sm:%s26]
        %270 = vst [vmem:[%s34 + $0x1d4] sm:%s26] %v269
        %v271 = vld [vmem:[%s33 + $0x1cc] sm:%s26]
        %272 = vst [vmem:[%s34 + $0x1d8] sm:%s26] %v271
        %v273 = vld [vmem:[%s33 + $0x1dc] sm:%s26]
        %274 = vst [vmem:[%s34 + $0x1dc] sm:%s26] %v273
        %v275 = vld [vmem:[%s33 + $0x1e0] sm:%s26]
        %276 = vst [vmem:[%s34 + $0x1e0] sm:%s26] %v275
        %v277 = vld [vmem:[%s33 + $0x1f0] sm:%s26]
        %278 = vst [vmem:[%s34 + $0x1e4] sm:%s26] %v277
        %v279 = vld [vmem:[%s33 + $0x1e4] sm:%s26]
        %280 = vst [vmem:[%s34 + $0x1e8] sm:%s26] %v279
        %v281 = vld [vmem:[%s33 + $0x1f4] sm:%s26]
        %282 = vst [vmem:[%s34 + $0x1ec] sm:%s26] %v281
        %v283 = vld [vmem:[%s33 + $0x1e8] sm:%s26]
        %284 = vst [vmem:[%s34 + $0x1f0] sm:%s26] %v283
        %v285 = vld [vmem:[%s33 + $0x1f8] sm:%s26]
        %286 = vst [vmem:[%s34 + $0x1f4] sm:%s26] %v285
        %v287 = vld [vmem:[%s33 + $0x1ec] sm:%s26]
        %288 = vst [vmem:[%s34 + $0x1f8] sm:%s26] %v287
        %v289 = vld [vmem:[%s33 + $0x1fc] sm:%s26]
        %290 = vst [vmem:[%s34 + $0x1fc] sm:%s26] %v289
      $region26: #{decoder_forward.4} parent=20 // loop_footer
        %s32 = sadd.s32 1, %s28
      $region27: #{decoder_forward.4} parent=20 // loop_footer_branch
        %27 = sbr.rel target = $region23
      $region28: #{decoder_forward.4} parent=20 // loop_exit
        _
    $region21: #{decoder_forward.4} parent=12 // pred_fallthru
      _
    // Predicated region
    $region47: #{decoder_forward.4} parent=12 // pred_check
      _
    $region48: #{decoder_forward.4} parent=12 // pred_check_branch
      %576 = sbr.rel (0) target = $region50
    $region49: #{decoder_forward.4} parent=12 // pred_region
      %577 = vsyncadd [#allocation6], 8192
    $region50: #{decoder_forward.4} parent=12 // pred_fallthru
      _
    %s578 = scalar_lea.sflag [#allocation6], 1
    %s580 = sshll.u32 1, 14
    %s581 = sxor.u32 4294967295, %s580
    %s583 = sld [smem:[#allocation0]]
    %s584 = sadd.s32 2, %s583
    %s586 = sshll.u32 7, 26
    %s587 = sxor.u32 4294967295, %s586
    %s588 = sand.u32 0, %s587
    %s589 = sshll.u32 %s584, 26
    %s590 = sor.u32 %s588, %s589
    %s591 = sshll.u32 [#allocation3], 4
    %s592 = int_to_ptr.vmem [resolvable:$true] %s591
    %595 = sst [smem:[#allocation9]] 512
    %s596 = scalar_lea.smem [#allocation9], 1
    %597 = sst [smem:[%s596]] 512
    %s598 = scalar_lea.smem [#allocation9], 2
    %599 = sst [smem:[%s598]] 4
    %s600 = scalar_lea.smem [#allocation9], 3
    %601 = sst [smem:[%s600]] 64
    %s602 = scalar_lea.smem [#allocation9], 4
    %603 = sst [smem:[%s602]] 128
    %s604 = scalar_lea.smem [#allocation9], 5
    %605 = sst [smem:[%s604]] 2
    %s606 = scalar_lea.smem [#allocation9], 6
    %607 = sst [smem:[%s606]] 256
    %s608 = scalar_lea.smem [#allocation9], 7
    %609 = sst [smem:[%s608]] 64
    %s610 = scalar_lea.smem [#allocation9], 8
    %611 = sst [smem:[%s610]] 4
    %613 = dma.general %s2, 4096, %s592, %s578, [#allocation8], [#allocation9], %s590, 0
    %614 = vst [vmem:[#allocation4] sm:$0xff] 0.0
    %615 = vst [vmem:[#allocation4 + $0x8] sm:$0xff] 0.0
    %616 = vst [vmem:[#allocation4 + $0x10] sm:$0xff] 0.0
    %617 = vst [vmem:[#allocation4 + $0x18] sm:$0xff] 0.0
    %618 = vst [vmem:[#allocation5] sm:$0xff] 0.0
    %619 = vst [vmem:[#allocation5 + $0x8] sm:$0xff] 0.0
    %620 = vst [vmem:[#allocation5 + $0x10] sm:$0xff] 0.0
    %621 = vst [vmem:[#allocation5 + $0x18] sm:$0xff] 0.0
    %s622 = smul.u32 4, 2
    %s623 = smul.u32 %s622, 16
    %s624 = smul.u32 %s623, 4
    %s625 = sshll.u32 %s624, 4
    %626 = dma.done [#allocation6], %s625
    %s627 = smul.u32 4, 1
    %s628 = smul.u32 %s627, 16
    %s629 = smul.u32 %s628, 4
    %s630 = sshll.u32 %s629, 4
    %631 = dma.done %s578, %s630
  $region13: #{decoder_forward.4} parent=0 // pred_fallthru
    _
  %v632 = vld [vmem:[%s3] sm:$0xf]
  %v634 = vlaneseq
  %v635 = vshrl.u32 %v634, 7
  %v636 = vsub.s32 0, %v635
  %v637 = vrot.slane %v632, %v636
  %v638 = vlaneseq
  %v639 = vshrl.u32 %v638, 7
  %v640 = vsub.s32 1, %v639
  %v641 = vrot.slane %v632, %v640
  %v642 = vlaneseq
  %v643 = vshrl.u32 %v642, 7
  %v644 = vsub.s32 2, %v643
  %v645 = vrot.slane %v632, %v644
  %v646 = vlaneseq
  %v647 = vshrl.u32 %v646, 7
  %v648 = vsub.s32 3, %v647
  %v649 = vrot.slane %v632, %v648
  %v654 = vld [vmem:[%s0] sm:$0xff]
  %v655 = vld [vmem:[%s0 + $0x8] sm:$0xff]
  %v656 = vld [vmem:[%s0 + $0x10] sm:$0xff]
  %v657 = vld [vmem:[%s0 + $0x18] sm:$0xff]
  %v658 = vunpack.c.l.bf16 %v654
  %v659 = vunpack.c.h.bf16 %v654
  %v660 = vunpack.c.l.bf16 %v655
  %v661 = vunpack.c.h.bf16 %v655
  %v662 = vunpack.c.l.bf16 %v656
  %v663 = vunpack.c.h.bf16 %v656
  %v664 = vunpack.c.l.bf16 %v657
  %v665 = vunpack.c.h.bf16 %v657
  %v666 = vld [vmem:[#allocation4] sm:$0xff]
  %v667 = vld [vmem:[#allocation4 + $0x8] sm:$0xff]
  %v668 = vpack.c.bf16 %v667, %v666
  %v669 = vld [vmem:[#allocation2] sm:$0xff]
  %v670 = vld [vmem:[#allocation2 + $0x8] sm:$0xff]
  %v671 = vld [vmem:[#allocation2 + $0x10] sm:$0xff]
  %v672 = vld [vmem:[#allocation2 + $0x18] sm:$0xff]
  %v673 = vld [vmem:[#allocation2 + $0x20] sm:$0xff]
  %v674 = vld [vmem:[#allocation2 + $0x28] sm:$0xff]
  %v675 = vld [vmem:[#allocation2 + $0x30] sm:$0xff]
  %v676 = vld [vmem:[#allocation2 + $0x38] sm:$0xff]
  %v677 = vld [vmem:[#allocation2 + $0x40] sm:$0xff]
  %v678 = vld [vmem:[#allocation2 + $0x48] sm:$0xff]
  %v679 = vld [vmem:[#allocation2 + $0x50] sm:$0xff]
  %v680 = vld [vmem:[#allocation2 + $0x58] sm:$0xff]
  %v681 = vld [vmem:[#allocation2 + $0x60] sm:$0xff]
  %v682 = vld [vmem:[#allocation2 + $0x68] sm:$0xff]
  %v683 = vld [vmem:[#allocation2 + $0x70] sm:$0xff]
  %v684 = vld [vmem:[#allocation2 + $0x78] sm:$0xff]
  %v685 = vld [vmem:[#allocation2 + $0x80] sm:$0xff]
  %v686 = vld [vmem:[#allocation2 + $0x88] sm:$0xff]
  %v687 = vld [vmem:[#allocation2 + $0x90] sm:$0xff]
  %v688 = vld [vmem:[#allocation2 + $0x98] sm:$0xff]
  %v689 = vld [vmem:[#allocation2 + $0xa0] sm:$0xff]
  %v690 = vld [vmem:[#allocation2 + $0xa8] sm:$0xff]
  %v691 = vld [vmem:[#allocation2 + $0xb0] sm:$0xff]
  %v692 = vld [vmem:[#allocation2 + $0xb8] sm:$0xff]
  %v693 = vld [vmem:[#allocation2 + $0xc0] sm:$0xff]
  %v694 = vld [vmem:[#allocation2 + $0xc8] sm:$0xff]
  %v695 = vld [vmem:[#allocation2 + $0xd0] sm:$0xff]
  %v696 = vld [vmem:[#allocation2 + $0xd8] sm:$0xff]
  %v697 = vld [vmem:[#allocation2 + $0xe0] sm:$0xff]
  %v698 = vld [vmem:[#allocation2 + $0xe8] sm:$0xff]
  %v699 = vld [vmem:[#allocation2 + $0xf0] sm:$0xff]
  %v700 = vld [vmem:[#allocation2 + $0xf8] sm:$0xff]
  %701 = vmatprep.subr.bf16.mxu0 %v670
  %702 = vmatpush1.bf16.msra.mxu0 %v669
  %703 = vmatprep.subr.bf16.mxu0 %v674
  %704 = vmatpush1.bf16.msra.mxu0 %v673
  %705 = vmatprep.subr.bf16.mxu0 %v678
  %706 = vmatpush1.bf16.msra.mxu0 %v677
  %707 = vmatprep.subr.bf16.mxu0 %v682
  %708 = vmatpush1.bf16.msra.mxu0 %v681
  %709 = vmatprep.subr.bf16.mxu0 %v686
  %710 = vmatpush1.bf16.msra.mxu0 %v685
  %711 = vmatprep.subr.bf16.mxu0 %v690
  %712 = vmatpush1.bf16.msra.mxu0 %v689
  %713 = vmatprep.subr.bf16.mxu0 %v694
  %714 = vmatpush1.bf16.msra.mxu0 %v693
  %715 = vmatprep.subr.bf16.mxu0 %v698
  %716 = vmatpush1.bf16.msra.mxu0 %v697
  %717 = vmatprep.subr.bf16.mxu0 0
  %718 = vmatpush1.bf16.msra.mxu0 0
  %719 = vmatprep.subr.bf16.mxu0 0
  %720 = vmatpush1.bf16.msra.mxu0 0
  %721 = vmatprep.subr.bf16.mxu0 0
  %722 = vmatpush1.bf16.msra.mxu0 0
  %723 = vmatprep.subr.bf16.mxu0 0
  %724 = vmatpush1.bf16.msra.mxu0 0
  %725 = vmatprep.subr.bf16.mxu0 0
  %726 = vmatpush1.bf16.msra.mxu0 0
  %727 = vmatprep.subr.bf16.mxu0 0
  %728 = vmatpush1.bf16.msra.mxu0 0
  %729 = vmatprep.subr.bf16.mxu0 0
  %730 = vmatpush1.bf16.msra.mxu0 0
  %731 = vmatprep.subr.bf16.mxu0 0
  %732 = vmatpush1.bf16.msra.mxu0 0
  %733 = vmatprep.mubr.bf16.mxu0 0
  %734 = vmatmul.mubr.bf16.gmra.mrb[0].mxu0 %v668
  %v735 = vpop.f32.mrb[0].mxu0
  %v736 = vadd.f32 0.0, %v735
  %v737 = vpop.f32.mrb[0].mxu0
  %v738 = vadd.f32 0.0, %v737
  %v739 = vpop.f32.mrb[0].mxu0
  %v740 = vadd.f32 0.0, %v739
  %v741 = vpop.f32.mrb[0].mxu0
  %v742 = vadd.f32 0.0, %v741
  %743 = vdwg.mxu0
  %744 = vmatprep.subr.bf16.mxu0 %v672
  %745 = vmatpush1.bf16.msra.mxu0 %v671
  %746 = vmatprep.subr.bf16.mxu0 %v676
  %747 = vmatpush1.bf16.msra.mxu0 %v675
  %748 = vmatprep.subr.bf16.mxu0 %v680
  %749 = vmatpush1.bf16.msra.mxu0 %v679
  %750 = vmatprep.subr.bf16.mxu0 %v684
  %751 = vmatpush1.bf16.msra.mxu0 %v683
  %752 = vmatprep.subr.bf16.mxu0 %v688
  %753 = vmatpush1.bf16.msra.mxu0 %v687
  %754 = vmatprep.subr.bf16.mxu0 %v692
  %755 = vmatpush1.bf16.msra.mxu0 %v691
  %756 = vmatprep.subr.bf16.mxu0 %v696
  %757 = vmatpush1.bf16.msra.mxu0 %v695
  %758 = vmatprep.subr.bf16.mxu0 %v700
  %759 = vmatpush1.bf16.msra.mxu0 %v699
  %760 = vmatprep.subr.bf16.mxu0 0
  %761 = vmatpush1.bf16.msra.mxu0 0
  %762 = vmatprep.subr.bf16.mxu0 0
  %763 = vmatpush1.bf16.msra.mxu0 0
  %764 = vmatprep.subr.bf16.mxu0 0
  %765 = vmatpush1.bf16.msra.mxu0 0
  %766 = vmatprep.subr.bf16.mxu0 0
  %767 = vmatpush1.bf16.msra.mxu0 0
  %768 = vmatprep.subr.bf16.mxu0 0
  %769 = vmatpush1.bf16.msra.mxu0 0
  %770 = vmatprep.subr.bf16.mxu0 0
  %771 = vmatpush1.bf16.msra.mxu0 0
  %772 = vmatprep.subr.bf16.mxu0 0
  %773 = vmatpush1.bf16.msra.mxu0 0
  %774 = vmatprep.subr.bf16.mxu0 0
  %775 = vmatpush1.bf16.msra.mxu0 0
  %776 = vmatprep.mubr.bf16.mxu0 0
  %777 = vmatmul.mubr.bf16.gmra.mrb[0].mxu0 %v668
  %v778 = vpop.f32.mrb[0].mxu0
  %v779 = vadd.f32 0.0, %v778
  %v780 = vpop.f32.mrb[0].mxu0
  %v781 = vadd.f32 0.0, %v780
  %v782 = vpop.f32.mrb[0].mxu0
  %v783 = vadd.f32 0.0, %v782
  %v784 = vpop.f32.mrb[0].mxu0
  %v785 = vadd.f32 0.0, %v784
  %786 = vdwg.mxu0
  %v787 = vadd.f32 %v658, %v736
  %v788 = vadd.f32 %v659, %v738
  %v789 = vadd.f32 %v660, %v779
  %v790 = vadd.f32 %v661, %v781
  %v791 = vadd.f32 %v662, %v740
  %v792 = vadd.f32 %v663, %v742
  %v793 = vadd.f32 %v664, %v783
  %v794 = vadd.f32 %v665, %v785
  %v795 = vld [vmem:[#allocation5] sm:$0xff]
  %v796 = vld [vmem:[#allocation5 + $0x8] sm:$0xff]
  %v797 = vxor.u32 %v787, 2147483648
  %v798 = vxor.u32 %v791, 2147483648
  %v799 = vmul.f32 %v797, 1.442695
  %v800 = vpow.pop %v799
  %v801 = vmul.f32 %v798, 1.442695
  %v802 = vpow.pop %v801
  %v803 = vadd.f32 %v800, 1.0
  %v804 = vadd.f32 %v802, 1.0
  %v805 = vrcp.pop %v803
  %v806 = vmul.f32 1.0, %v805
  %v807 = vrcp.pop %v804
  %v808 = vmul.f32 1.0, %v807
  %v809 = vxor.u32 %v788, 2147483648
  %v810 = vxor.u32 %v792, 2147483648
  %v811 = vmul.f32 %v809, 1.442695
  %v812 = vpow.pop %v811
  %v813 = vmul.f32 %v810, 1.442695
  %v814 = vpow.pop %v813
  %v815 = vadd.f32 %v812, 1.0
  %v816 = vadd.f32 %v814, 1.0
  %v817 = vrcp.pop %v815
  %v818 = vmul.f32 1.0, %v817
  %v819 = vrcp.pop %v816
  %v820 = vmul.f32 1.0, %v819
  %v821 = vtanh.pop %v789
  %v822 = vtanh.pop %v793
  %v823 = vxor.u32 %v790, 2147483648
  %v824 = vxor.u32 %v794, 2147483648
  %v825 = vmul.f32 %v823, 1.442695
  %v826 = vpow.pop %v825
  %v827 = vmul.f32 %v824, 1.442695
  %v828 = vpow.pop %v827
  %v829 = vadd.f32 %v826, 1.0
  %v830 = vadd.f32 %v828, 1.0
  %v831 = vrcp.pop %v829
  %v832 = vmul.f32 1.0, %v831
  %v833 = vrcp.pop %v830
  %v834 = vmul.f32 1.0, %v833
  %v835 = vmul.f32 %v818, %v795
  %v836 = vmul.f32 %v820, %v796
  %v837 = vmul.f32 %v806, %v821
  %v838 = vmul.f32 %v808, %v822
  %v839 = vadd.f32 %v835, %v837
  %v840 = vadd.f32 %v836, %v838
  %v841 = vtanh.pop %v839
  %v842 = vtanh.pop %v840
  %v843 = vmul.f32 %v832, %v841
  %v844 = vmul.f32 %v834, %v842
  %845 = vst [vmem:[#allocation4] sm:$0xff] %v843
  %846 = vst [vmem:[#allocation4 + $0x8] sm:$0xff] %v844
  %847 = vst [vmem:[#allocation5] sm:$0xff] %v839
  %848 = vst [vmem:[#allocation5 + $0x8] sm:$0xff] %v840
  %v849 = vpack.c.bf16 %v844, %v843
  %v850 = vld [vmem:[#allocation3] sm:$0xff]
  %v851 = vld [vmem:[#allocation3 + $0x8] sm:$0xff]
  %v852 = vld [vmem:[#allocation3 + $0x10] sm:$0xff]
  %v853 = vld [vmem:[#allocation3 + $0x18] sm:$0xff]
  %v854 = vld [vmem:[#allocation3 + $0x20] sm:$0xff]
  %v855 = vld [vmem:[#allocation3 + $0x28] sm:$0xff]
  %v856 = vld [vmem:[#allocation3 + $0x30] sm:$0xff]
  %v857 = vld [vmem:[#allocation3 + $0x38] sm:$0xff]
  %v858 = vld [vmem:[#allocation3 + $0x40] sm:$0xff]
  %v859 = vld [vmem:[#allocation3 + $0x48] sm:$0xff]
  %v860 = vld [vmem:[#allocation3 + $0x50] sm:$0xff]
  %v861 = vld [vmem:[#allocation3 + $0x58] sm:$0xff]
  %v862 = vld [vmem:[#allocation3 + $0x60] sm:$0xff]
  %v863 = vld [vmem:[#allocation3 + $0x68] sm:$0xff]
  %v864 = vld [vmem:[#allocation3 + $0x70] sm:$0xff]
  %v865 = vld [vmem:[#allocation3 + $0x78] sm:$0xff]
  %v866 = vld [vmem:[#allocation3 + $0x80] sm:$0xff]
  %v867 = vld [vmem:[#allocation3 + $0x88] sm:$0xff]
  %v868 = vld [vmem:[#allocation3 + $0x90] sm:$0xff]
  %v869 = vld [vmem:[#allocation3 + $0x98] sm:$0xff]
  %v870 = vld [vmem:[#allocation3 + $0xa0] sm:$0xff]
  %v871 = vld [vmem:[#allocation3 + $0xa8] sm:$0xff]
  %v872 = vld [vmem:[#allocation3 + $0xb0] sm:$0xff]
  %v873 = vld [vmem:[#allocation3 + $0xb8] sm:$0xff]
  %v874 = vld [vmem:[#allocation3 + $0xc0] sm:$0xff]
  %v875 = vld [vmem:[#allocation3 + $0xc8] sm:$0xff]
  %v876 = vld [vmem:[#allocation3 + $0xd0] sm:$0xff]
  %v877 = vld [vmem:[#allocation3 + $0xd8] sm:$0xff]
  %v878 = vld [vmem:[#allocation3 + $0xe0] sm:$0xff]
  %v879 = vld [vmem:[#allocation3 + $0xe8] sm:$0xff]
  %v880 = vld [vmem:[#allocation3 + $0xf0] sm:$0xff]
  %v881 = vld [vmem:[#allocation3 + $0xf8] sm:$0xff]
  %s882 = scalar_lea.vmem [#allocation4], 16
  %v883 = vld [vmem:[%s882] sm:$0xff]
  %v884 = vld [vmem:[%s882 + $0x8] sm:$0xff]
  %v885 = vpack.c.bf16 %v884, %v883
  %s886 = scalar_lea.vmem [#allocation2], 256
  %v887 = vld [vmem:[%s886] sm:$0xff]
  %v888 = vld [vmem:[%s886 + $0x8] sm:$0xff]
  %v889 = vld [vmem:[%s886 + $0x10] sm:$0xff]
  %v890 = vld [vmem:[%s886 + $0x18] sm:$0xff]
  %v891 = vld [vmem:[%s886 + $0x20] sm:$0xff]
  %v892 = vld [vmem:[%s886 + $0x28] sm:$0xff]
  %v893 = vld [vmem:[%s886 + $0x30] sm:$0xff]
  %v894 = vld [vmem:[%s886 + $0x38] sm:$0xff]
  %v895 = vld [vmem:[%s886 + $0x40] sm:$0xff]
  %v896 = vld [vmem:[%s886 + $0x48] sm:$0xff]
  %v897 = vld [vmem:[%s886 + $0x50] sm:$0xff]
  %v898 = vld [vmem:[%s886 + $0x58] sm:$0xff]
  %v899 = vld [vmem:[%s886 + $0x60] sm:$0xff]
  %v900 = vld [vmem:[%s886 + $0x68] sm:$0xff]
  %v901 = vld [vmem:[%s886 + $0x70] sm:$0xff]
  %v902 = vld [vmem:[%s886 + $0x78] sm:$0xff]
  %v903 = vld [vmem:[%s886 + $0x80] sm:$0xff]
  %v904 = vld [vmem:[%s886 + $0x88] sm:$0xff]
  %v905 = vld [vmem:[%s886 + $0x90] sm:$0xff]
  %v906 = vld [vmem:[%s886 + $0x98] sm:$0xff]
  %v907 = vld [vmem:[%s886 + $0xa0] sm:$0xff]
  %v908 = vld [vmem:[%s886 + $0xa8] sm:$0xff]
  %v909 = vld [vmem:[%s886 + $0xb0] sm:$0xff]
  %v910 = vld [vmem:[%s886 + $0xb8] sm:$0xff]
  %v911 = vld [vmem:[%s886 + $0xc0] sm:$0xff]
  %v912 = vld [vmem:[%s886 + $0xc8] sm:$0xff]
  %v913 = vld [vmem:[%s886 + $0xd0] sm:$0xff]
  %v914 = vld [vmem:[%s886 + $0xd8] sm:$0xff]
  %v915 = vld [vmem:[%s886 + $0xe0] sm:$0xff]
  %v916 = vld [vmem:[%s886 + $0xe8] sm:$0xff]
  %v917 = vld [vmem:[%s886 + $0xf0] sm:$0xff]
  %v918 = vld [vmem:[%s886 + $0xf8] sm:$0xff]
  %919 = vmatprep.subr.bf16.mxu0 %v888
  %920 = vmatpush1.bf16.msra.mxu0 %v887
  %921 = vmatprep.subr.bf16.mxu0 %v892
  %922 = vmatpush1.bf16.msra.mxu0 %v891
  %923 = vmatprep.subr.bf16.mxu0 %v896
  %924 = vmatpush1.bf16.msra.mxu0 %v895
  %925 = vmatprep.subr.bf16.mxu0 %v900
  %926 = vmatpush1.bf16.msra.mxu0 %v899
  %927 = vmatprep.subr.bf16.mxu0 %v904
  %928 = vmatpush1.bf16.msra.mxu0 %v903
  %929 = vmatprep.subr.bf16.mxu0 %v908
  %930 = vmatpush1.bf16.msra.mxu0 %v907
  %931 = vmatprep.subr.bf16.mxu0 %v912
  %932 = vmatpush1.bf16.msra.mxu0 %v911
  %933 = vmatprep.subr.bf16.mxu0 %v916
  %934 = vmatpush1.bf16.msra.mxu0 %v915
  %935 = vmatprep.subr.bf16.mxu0 0
  %936 = vmatpush1.bf16.msra.mxu0 0
  %937 = vmatprep.subr.bf16.mxu0 0
  %938 = vmatpush1.bf16.msra.mxu0 0
  %939 = vmatprep.subr.bf16.mxu0 0
  %940 = vmatpush1.bf16.msra.mxu0 0
  %941 = vmatprep.subr.bf16.mxu0 0
  %942 = vmatpush1.bf16.msra.mxu0 0
  %943 = vmatprep.subr.bf16.mxu0 0
  %944 = vmatpush1.bf16.msra.mxu0 0
  %945 = vmatprep.subr.bf16.mxu0 0
  %946 = vmatpush1.bf16.msra.mxu0 0
  %947 = vmatprep.subr.bf16.mxu0 0
  %948 = vmatpush1.bf16.msra.mxu0 0
  %949 = vmatprep.subr.bf16.mxu0 0
  %950 = vmatpush1.bf16.msra.mxu0 0
  %951 = vmatprep.mubr.bf16.mxu0 0
  %952 = vmatmul.mubr.bf16.gmra.mrb[0].mxu0 %v885
  %v953 = vpop.f32.mrb[0].mxu0
  %v954 = vadd.f32 0.0, %v953
  %v955 = vpop.f32.mrb[0].mxu0
  %v956 = vadd.f32 0.0, %v955
  %v957 = vpop.f32.mrb[0].mxu0
  %v958 = vadd.f32 0.0, %v957
  %v959 = vpop.f32.mrb[0].mxu0
  %v960 = vadd.f32 0.0, %v959
  %961 = vdwg.mxu0
  %962 = vmatprep.subr.bf16.mxu0 %v890
  %963 = vmatpush1.bf16.msra.mxu0 %v889
  %964 = vmatprep.subr.bf16.mxu0 %v894
  %965 = vmatpush1.bf16.msra.mxu0 %v893
  %966 = vmatprep.subr.bf16.mxu0 %v898
  %967 = vmatpush1.bf16.msra.mxu0 %v897
  %968 = vmatprep.subr.bf16.mxu0 %v902
  %969 = vmatpush1.bf16.msra.mxu0 %v901
  %970 = vmatprep.subr.bf16.mxu0 %v906
  %971 = vmatpush1.bf16.msra.mxu0 %v905
  %972 = vmatprep.subr.bf16.mxu0 %v910
  %973 = vmatpush1.bf16.msra.mxu0 %v909
  %974 = vmatprep.subr.bf16.mxu0 %v914
  %975 = vmatpush1.bf16.msra.mxu0 %v913
  %976 = vmatprep.subr.bf16.mxu0 %v918
  %977 = vmatpush1.bf16.msra.mxu0 %v917
  %978 = vmatprep.subr.bf16.mxu0 0
  %979 = vmatpush1.bf16.msra.mxu0 0
  %980 = vmatprep.subr.bf16.mxu0 0
  %981 = vmatpush1.bf16.msra.mxu0 0
  %982 = vmatprep.subr.bf16.mxu0 0
  %983 = vmatpush1.bf16.msra.mxu0 0
  %984 = vmatprep.subr.bf16.mxu0 0
  %985 = vmatpush1.bf16.msra.mxu0 0
  %986 = vmatprep.subr.bf16.mxu0 0
  %987 = vmatpush1.bf16.msra.mxu0 0
  %988 = vmatprep.subr.bf16.mxu0 0
  %989 = vmatpush1.bf16.msra.mxu0 0
  %990 = vmatprep.subr.bf16.mxu0 0
  %991 = vmatpush1.bf16.msra.mxu0 0
  %992 = vmatprep.subr.bf16.mxu0 0
  %993 = vmatpush1.bf16.msra.mxu0 0
  %994 = vmatprep.mubr.bf16.mxu0 0
  %995 = vmatmul.mubr.bf16.gmra.mrb[0].mxu0 %v885
  %v996 = vpop.f32.mrb[0].mxu0
  %v997 = vadd.f32 0.0, %v996
  %v998 = vpop.f32.mrb[0].mxu0
  %v999 = vadd.f32 0.0, %v998
  %v1000 = vpop.f32.mrb[0].mxu0
  %v1001 = vadd.f32 0.0, %v1000
  %v1002 = vpop.f32.mrb[0].mxu0
  %v1003 = vadd.f32 0.0, %v1002
  %1004 = vdwg.mxu0
  %1005 = vmatprep.subr.bf16.mxu0 %v851
  %1006 = vmatpush1.bf16.msra.mxu0 %v850
  %1007 = vmatprep.subr.bf16.mxu0 %v855
  %1008 = vmatpush1.bf16.msra.mxu0 %v854
  %1009 = vmatprep.subr.bf16.mxu0 %v859
  %1010 = vmatpush1.bf16.msra.mxu0 %v858
  %1011 = vmatprep.subr.bf16.mxu0 %v863
  %1012 = vmatpush1.bf16.msra.mxu0 %v862
  %1013 = vmatprep.subr.bf16.mxu0 %v867
  %1014 = vmatpush1.bf16.msra.mxu0 %v866
  %1015 = vmatprep.subr.bf16.mxu0 %v871
  %1016 = vmatpush1.bf16.msra.mxu0 %v870
  %1017 = vmatprep.subr.bf16.mxu0 %v875
  %1018 = vmatpush1.bf16.msra.mxu0 %v874
  %1019 = vmatprep.subr.bf16.mxu0 %v879
  %1020 = vmatpush1.bf16.msra.mxu0 %v878
  %1021 = vmatprep.subr.bf16.mxu0 0
  %1022 = vmatpush1.bf16.msra.mxu0 0
  %1023 = vmatprep.subr.bf16.mxu0 0
  %1024 = vmatpush1.bf16.msra.mxu0 0
  %1025 = vmatprep.subr.bf16.mxu0 0
  %1026 = vmatpush1.bf16.msra.mxu0 0
  %1027 = vmatprep.subr.bf16.mxu0 0
  %1028 = vmatpush1.bf16.msra.mxu0 0
  %1029 = vmatprep.subr.bf16.mxu0 0
  %1030 = vmatpush1.bf16.msra.mxu0 0
  %1031 = vmatprep.subr.bf16.mxu0 0
  %1032 = vmatpush1.bf16.msra.mxu0 0
  %1033 = vmatprep.subr.bf16.mxu0 0
  %1034 = vmatpush1.bf16.msra.mxu0 0
  %1035 = vmatprep.subr.bf16.mxu0 0
  %1036 = vmatpush1.bf16.msra.mxu0 0
  %1037 = vmatprep.mubr.bf16.mxu0 0
  %1038 = vmatmul.mubr.bf16.gmra.mrb[0].mxu0 %v849
  %v1039 = vpop.f32.mrb[0].mxu0
  %v1040 = vadd.f32 %v954, %v1039
  %v1041 = vpop.f32.mrb[0].mxu0
  %v1042 = vadd.f32 %v956, %v1041
  %v1043 = vpop.f32.mrb[0].mxu0
  %v1044 = vadd.f32 %v958, %v1043
  %v1045 = vpop.f32.mrb[0].mxu0
  %v1046 = vadd.f32 %v960, %v1045
  %1047 = vdwg.mxu0
  %1048 = vmatprep.subr.bf16.mxu0 %v853
  %1049 = vmatpush1.bf16.msra.mxu0 %v852
  %1050 = vmatprep.subr.bf16.mxu0 %v857
  %1051 = vmatpush1.bf16.msra.mxu0 %v856
  %1052 = vmatprep.subr.bf16.mxu0 %v861
  %1053 = vmatpush1.bf16.msra.mxu0 %v860
  %1054 = vmatprep.subr.bf16.mxu0 %v865
  %1055 = vmatpush1.bf16.msra.mxu0 %v864
  %1056 = vmatprep.subr.bf16.mxu0 %v869
  %1057 = vmatpush1.bf16.msra.mxu0 %v868
  %1058 = vmatprep.subr.bf16.mxu0 %v873
  %1059 = vmatpush1.bf16.msra.mxu0 %v872
  %1060 = vmatprep.subr.bf16.mxu0 %v877
  %1061 = vmatpush1.bf16.msra.mxu0 %v876
  %1062 = vmatprep.subr.bf16.mxu0 %v881
  %1063 = vmatpush1.bf16.msra.mxu0 %v880
  %1064 = vmatprep.subr.bf16.mxu0 0
  %1065 = vmatpush1.bf16.msra.mxu0 0
  %1066 = vmatprep.subr.bf16.mxu0 0
  %1067 = vmatpush1.bf16.msra.mxu0 0
  %1068 = vmatprep.subr.bf16.mxu0 0
  %1069 = vmatpush1.bf16.msra.mxu0 0
  %1070 = vmatprep.subr.bf16.mxu0 0
  %1071 = vmatpush1.bf16.msra.mxu0 0
  %1072 = vmatprep.subr.bf16.mxu0 0
  %1073 = vmatpush1.bf16.msra.mxu0 0
  %1074 = vmatprep.subr.bf16.mxu0 0
  %1075 = vmatpush1.bf16.msra.mxu0 0
  %1076 = vmatprep.subr.bf16.mxu0 0
  %1077 = vmatpush1.bf16.msra.mxu0 0
  %1078 = vmatprep.subr.bf16.mxu0 0
  %1079 = vmatpush1.bf16.msra.mxu0 0
  %1080 = vmatprep.mubr.bf16.mxu0 0
  %1081 = vmatmul.mubr.bf16.gmra.mrb[0].mxu0 %v849
  %v1082 = vpop.f32.mrb[0].mxu0
  %v1083 = vadd.f32 %v997, %v1082
  %v1084 = vpop.f32.mrb[0].mxu0
  %v1085 = vadd.f32 %v999, %v1084
  %v1086 = vpop.f32.mrb[0].mxu0
  %v1087 = vadd.f32 %v1001, %v1086
  %v1088 = vpop.f32.mrb[0].mxu0
  %v1089 = vadd.f32 %v1003, %v1088
  %1090 = vdwg.mxu0
  %v1091 = vadd.f32 %v1040, %v637
  %v1092 = vadd.f32 %v1042, %v641
  %v1093 = vadd.f32 %v1083, %v645
  %v1094 = vadd.f32 %v1085, %v649
  %v1095 = vadd.f32 %v1044, %v637
  %v1096 = vadd.f32 %v1046, %v641
  %v1097 = vadd.f32 %v1087, %v645
  %v1098 = vadd.f32 %v1089, %v649
  %s1099 = scalar_lea.vmem [#allocation5], 16
  %v1100 = vld [vmem:[%s1099] sm:$0xff]
  %v1101 = vld [vmem:[%s1099 + $0x8] sm:$0xff]
  %v1102 = vxor.u32 %v1091, 2147483648
  %v1103 = vxor.u32 %v1095, 2147483648
  %v1104 = vmul.f32 %v1102, 1.442695
  %v1105 = vpow.pop %v1104
  %v1106 = vmul.f32 %v1103, 1.442695
  %v1107 = vpow.pop %v1106
  %v1108 = vadd.f32 %v1105, 1.0
  %v1109 = vadd.f32 %v1107, 1.0
  %v1110 = vrcp.pop %v1108
  %v1111 = vmul.f32 1.0, %v1110
  %v1112 = vrcp.pop %v1109
  %v1113 = vmul.f32 1.0, %v1112
  %v1114 = vxor.u32 %v1092, 2147483648
  %v1115 = vxor.u32 %v1096, 2147483648
  %v1116 = vmul.f32 %v1114, 1.442695
  %v1117 = vpow.pop %v1116
  %v1118 = vmul.f32 %v1115, 1.442695
  %v1119 = vpow.pop %v1118
  %v1120 = vadd.f32 %v1117, 1.0
  %v1121 = vadd.f32 %v1119, 1.0
  %v1122 = vrcp.pop %v1120
  %v1123 = vmul.f32 1.0, %v1122
  %v1124 = vrcp.pop %v1121
  %v1125 = vmul.f32 1.0, %v1124
  %v1126 = vtanh.pop %v1093
  %v1127 = vtanh.pop %v1097
  %v1128 = vxor.u32 %v1094, 2147483648
  %v1129 = vxor.u32 %v1098, 2147483648
  %v1130 = vmul.f32 %v1128, 1.442695
  %v1131 = vpow.pop %v1130
  %v1132 = vmul.f32 %v1129, 1.442695
  %v1133 = vpow.pop %v1132
  %v1134 = vadd.f32 %v1131, 1.0
  %v1135 = vadd.f32 %v1133, 1.0
  %v1136 = vrcp.pop %v1134
  %v1137 = vmul.f32 1.0, %v1136
  %v1138 = vrcp.pop %v1135
  %v1139 = vmul.f32 1.0, %v1138
  %v1140 = vmul.f32 %v1123, %v1100
  %v1141 = vmul.f32 %v1125, %v1101
  %v1142 = vmul.f32 %v1111, %v1126
  %v1143 = vmul.f32 %v1113, %v1127
  %v1144 = vadd.f32 %v1140, %v1142
  %v1145 = vadd.f32 %v1141, %v1143
  %v1146 = vtanh.pop %v1144
  %v1147 = vtanh.pop %v1145
  %v1148 = vmul.f32 %v1137, %v1146
  %v1149 = vmul.f32 %v1139, %v1147
  %1150 = vst [vmem:[%s882] sm:$0xff] %v1148
  %1151 = vst [vmem:[%s882 + $0x8] sm:$0xff] %v1149
  %1152 = vst [vmem:[%s1099] sm:$0xff] %v1144
  %1153 = vst [vmem:[%s1099 + $0x8] sm:$0xff] %v1145
  %v1154 = vpack.c.bf16 %v1149, %v1148
  %v1156 = vunpack.c.l.b16 %v1154
  %v1157 = vunpack.c.h.b16 %v1154
  %v1158 = vpack.c.b16 %v1156, %v1156
  %v1159 = vpack.c.b16 %v1157, %v1157
  %1162 = vst [vmem:[%s4] sm:$0xf] %v1158
  %1163 = vst [vmem:[%s4 + $0x4] sm:$0xf] %v1159
  %s1164 = scalar_lea.vmem %s0, 32
  %v1165 = vld [vmem:[%s1164] sm:$0xff]
  %v1166 = vld [vmem:[%s1164 + $0x8] sm:$0xff]
  %v1167 = vld [vmem:[%s1164 + $0x10] sm:$0xff]
  %v1168 = vld [vmem:[%s1164 + $0x18] sm:$0xff]
  %v1169 = vunpack.c.l.bf16 %v1165
  %v1170 = vunpack.c.h.bf16 %v1165
  %v1171 = vunpack.c.l.bf16 %v1166
  %v1172 = vunpack.c.h.bf16 %v1166
  %v1173 = vunpack.c.l.bf16 %v1167
  %v1174 = vunpack.c.h.bf16 %v1167
  %v1175 = vunpack.c.l.bf16 %v1168
  %v1176 = vunpack.c.h.bf16 %v1168
  %v1177 = vld [vmem:[#allocation4] sm:$0xff]
  %v1178 = vld [vmem:[#allocation4 + $0x8] sm:$0xff]
  %v1179 = vpack.c.bf16 %v1178, %v1177
  %v1180 = vld [vmem:[#allocation2] sm:$0xff]
  %v1181 = vld [vmem:[#allocation2 + $0x8] sm:$0xff]
  %v1182 = vld [vmem:[#allocation2 + $0x10] sm:$0xff]
  %v1183 = vld [vmem:[#allocation2 + $0x18] sm:$0xff]
  %v1184 = vld [vmem:[#allocation2 + $0x20] sm:$0xff]
  %v1185 = vld [vmem:[#allocation2 + $0x28] sm:$0xff]
  %v1186 = vld [vmem:[#allocation2 + $0x30] sm:$0xff]
  %v1187 = vld [vmem:[#allocation2 + $0x38] sm:$0xff]
  %v1188 = vld [vmem:[#allocation2 + $0x40] sm:$0xff]
  %v1189 = vld [vmem:[#allocation2 + $0x48] sm:$0xff]
  %v1190 = vld [vmem:[#allocation2 + $0x50] sm:$0xff]
  %v1191 = vld [vmem:[#allocation2 + $0x58] sm:$0xff]
  %v1192 = vld [vmem:[#allocation2 + $0x60] sm:$0xff]
  %v1193 = vld [vmem:[#allocation2 + $0x68] sm:$0xff]
  %v1194 = vld [vmem:[#allocation2 + $0x70] sm:$0xff]
  %v1195 = vld [vmem:[#allocation2 + $0x78] sm:$0xff]
  %v1196 = vld [vmem:[#allocation2 + $0x80] sm:$0xff]
  %v1197 = vld [vmem:[#allocation2 + $0x88] sm:$0xff]
  %v1198 = vld [vmem:[#allocation2 + $0x90] sm:$0xff]
  %v1199 = vld [vmem:[#allocation2 + $0x98] sm:$0xff]
  %v1200 = vld [vmem:[#allocation2 + $0xa0] sm:$0xff]
  %v1201 = vld [vmem:[#allocation2 + $0xa8] sm:$0xff]
  %v1202 = vld [vmem:[#allocation2 + $0xb0] sm:$0xff]
  %v1203 = vld [vmem:[#allocation2 + $0xb8] sm:$0xff]
  %v1204 = vld [vmem:[#allocation2 + $0xc0] sm:$0xff]
  %v1205 = vld [vmem:[#allocation2 + $0xc8] sm:$0xff]
  %v1206 = vld [vmem:[#allocation2 + $0xd0] sm:$0xff]
  %v1207 = vld [vmem:[#allocation2 + $0xd8] sm:$0xff]
  %v1208 = vld [vmem:[#allocation2 + $0xe0] sm:$0xff]
  %v1209 = vld [vmem:[#allocation2 + $0xe8] sm:$0xff]
  %v1210 = vld [vmem:[#allocation2 + $0xf0] sm:$0xff]
  %v1211 = vld [vmem:[#allocation2 + $0xf8] sm:$0xff]
  %1212 = vmatprep.subr.bf16.mxu0 %v1181
  %1213 = vmatpush1.bf16.msra.mxu0 %v1180
  %1214 = vmatprep.subr.bf16.mxu0 %v1185
  %1215 = vmatpush1.bf16.msra.mxu0 %v1184
  %1216 = vmatprep.subr.bf16.mxu0 %v1189
  %1217 = vmatpush1.bf16.msra.mxu0 %v1188
  %1218 = vmatprep.subr.bf16.mxu0 %v1193
  %1219 = vmatpush1.bf16.msra.mxu0 %v1192
  %1220 = vmatprep.subr.bf16.mxu0 %v1197
  %1221 = vmatpush1.bf16.msra.mxu0 %v1196
  %1222 = vmatprep.subr.bf16.mxu0 %v1201
  %1223 = vmatpush1.bf16.msra.mxu0 %v1200
  %1224 = vmatprep.subr.bf16.mxu0 %v1205
  %1225 = vmatpush1.bf16.msra.mxu0 %v1204
  %1226 = vmatprep.subr.bf16.mxu0 %v1209
  %1227 = vmatpush1.bf16.msra.mxu0 %v1208
  %1228 = vmatprep.subr.bf16.mxu0 0
  %1229 = vmatpush1.bf16.msra.mxu0 0
  %1230 = vmatprep.subr.bf16.mxu0 0
  %1231 = vmatpush1.bf16.msra.mxu0 0
  %1232 = vmatprep.subr.bf16.mxu0 0
  %1233 = vmatpush1.bf16.msra.mxu0 0
  %1234 = vmatprep.subr.bf16.mxu0 0
  %1235 = vmatpush1.bf16.msra.mxu0 0
  %1236 = vmatprep.subr.bf16.mxu0 0
  %1237 = vmatpush1.bf16.msra.mxu0 0
  %1238 = vmatprep.subr.bf16.mxu0 0
  %1239 = vmatpush1.bf16.msra.mxu0 0
  %1240 = vmatprep.subr.bf16.mxu0 0
  %1241 = vmatpush1.bf16.msra.mxu0 0
  %1242 = vmatprep.subr.bf16.mxu0 0
  %1243 = vmatpush1.bf16.msra.mxu0 0
  %1244 = vmatprep.mubr.bf16.mxu0 0
  %1245 = vmatmul.mubr.bf16.gmra.mrb[0].mxu0 %v1179
  %v1246 = vpop.f32.mrb[0].mxu0
  %v1247 = vadd.f32 0.0, %v1246
  %v1248 = vpop.f32.mrb[0].mxu0
  %v1249 = vadd.f32 0.0, %v1248
  %v1250 = vpop.f32.mrb[0].mxu0
  %v1251 = vadd.f32 0.0, %v1250
  %v1252 = vpop.f32.mrb[0].mxu0
  %v1253 = vadd.f32 0.0, %v1252
  %1254 = vdwg.mxu0
  %1255 = vmatprep.subr.bf16.mxu0 %v1183
  %1256 = vmatpush1.bf16.msra.mxu0 %v1182
  %1257 = vmatprep.subr.bf16.mxu0 %v1187
  %1258 = vmatpush1.bf16.msra.mxu0 %v1186
  %1259 = vmatprep.subr.bf16.mxu0 %v1191
  %1260 = vmatpush1.bf16.msra.mxu0 %v1190
  %1261 = vmatprep.subr.bf16.mxu0 %v1195
  %1262 = vmatpush1.bf16.msra.mxu0 %v1194
  %1263 = vmatprep.subr.bf16.mxu0 %v1199
  %1264 = vmatpush1.bf16.msra.mxu0 %v1198
  %1265 = vmatprep.subr.bf16.mxu0 %v1203
  %1266 = vmatpush1.bf16.msra.mxu0 %v1202
  %1267 = vmatprep.subr.bf16.mxu0 %v1207
  %1268 = vmatpush1.bf16.msra.mxu0 %v1206
  %1269 = vmatprep.subr.bf16.mxu0 %v1211
  %1270 = vmatpush1.bf16.msra.mxu0 %v1210
  %1271 = vmatprep.subr.bf16.mxu0 0
  %1272 = vmatpush1.bf16.msra.mxu0 0
  %1273 = vmatprep.subr.bf16.mxu0 0
  %1274 = vmatpush1.bf16.msra.mxu0 0
  %1275 = vmatprep.subr.bf16.mxu0 0
  %1276 = vmatpush1.bf16.msra.mxu0 0
  %1277 = vmatprep.subr.bf16.mxu0 0
  %1278 = vmatpush1.bf16.msra.mxu0 0
  %1279 = vmatprep.subr.bf16.mxu0 0
  %1280 = vmatpush1.bf16.msra.mxu0 0
  %1281 = vmatprep.subr.bf16.mxu0 0
  %1282 = vmatpush1.bf16.msra.mxu0 0
  %1283 = vmatprep.subr.bf16.mxu0 0
  %1284 = vmatpush1.bf16.msra.mxu0 0
  %1285 = vmatprep.subr.bf16.mxu0 0
  %1286 = vmatpush1.bf16.msra.mxu0 0
  %1287 = vmatprep.mubr.bf16.mxu0 0
  %1288 = vmatmul.mubr.bf16.gmra.mrb[0].mxu0 %v1179
  %v1289 = vpop.f32.mrb[0].mxu0
  %v1290 = vadd.f32 0.0, %v1289
  %v1291 = vpop.f32.mrb[0].mxu0
  %v1292 = vadd.f32 0.0, %v1291
  %v1293 = vpop.f32.mrb[0].mxu0
  %v1294 = vadd.f32 0.0, %v1293
  %v1295 = vpop.f32.mrb[0].mxu0
  %v1296 = vadd.f32 0.0, %v1295
  %1297 = vdwg.mxu0
  %v1298 = vadd.f32 %v1169, %v1247
  %v1299 = vadd.f32 %v1170, %v1249
  %v1300 = vadd.f32 %v1171, %v1290
  %v1301 = vadd.f32 %v1172, %v1292
  %v1302 = vadd.f32 %v1173, %v1251
  %v1303 = vadd.f32 %v1174, %v1253
  %v1304 = vadd.f32 %v1175, %v1294
  %v1305 = vadd.f32 %v1176, %v1296
  %v1306 = vld [vmem:[#allocation5] sm:$0xff]
  %v1307 = vld [vmem:[#allocation5 + $0x8] sm:$0xff]
  %v1308 = vxor.u32 %v1298, 2147483648
  %v1309 = vxor.u32 %v1302, 2147483648
  %v1310 = vmul.f32 %v1308, 1.442695
  %v1311 = vpow.pop %v1310
  %v1312 = vmul.f32 %v1309, 1.442695
  %v1313 = vpow.pop %v1312
  %v1314 = vadd.f32 %v1311, 1.0
  %v1315 = vadd.f32 %v1313, 1.0
  %v1316 = vrcp.pop %v1314
  %v1317 = vmul.f32 1.0, %v1316
  %v1318 = vrcp.pop %v1315
  %v1319 = vmul.f32 1.0, %v1318
  %v1320 = vxor.u32 %v1299, 2147483648
  %v1321 = vxor.u32 %v1303, 2147483648
  %v1322 = vmul.f32 %v1320, 1.442695
  %v1323 = vpow.pop %v1322
  %v1324 = vmul.f32 %v1321, 1.442695
  %v1325 = vpow.pop %v1324
  %v1326 = vadd.f32 %v1323, 1.0
  %v1327 = vadd.f32 %v1325, 1.0
  %v1328 = vrcp.pop %v1326
  %v1329 = vmul.f32 1.0, %v1328
  %v1330 = vrcp.pop %v1327
  %v1331 = vmul.f32 1.0, %v1330
  %v1332 = vtanh.pop %v1300
  %v1333 = vtanh.pop %v1304
  %v1334 = vxor.u32 %v1301, 2147483648
  %v1335 = vxor.u32 %v1305, 2147483648
  %v1336 = vmul.f32 %v1334, 1.442695
  %v1337 = vpow.pop %v1336
  %v1338 = vmul.f32 %v1335, 1.442695
  %v1339 = vpow.pop %v1338
  %v1340 = vadd.f32 %v1337, 1.0
  %v1341 = vadd.f32 %v1339, 1.0
  %v1342 = vrcp.pop %v1340
  %v1343 = vmul.f32 1.0, %v1342
  %v1344 = vrcp.pop %v1341
  %v1345 = vmul.f32 1.0, %v1344
  %v1346 = vmul.f32 %v1329, %v1306
  %v1347 = vmul.f32 %v1331, %v1307
  %v1348 = vmul.f32 %v1317, %v1332
  %v1349 = vmul.f32 %v1319, %v1333
  %v1350 = vadd.f32 %v1346, %v1348
  %v1351 = vadd.f32 %v1347, %v1349
  %v1352 = vtanh.pop %v1350
  %v1353 = vtanh.pop %v1351
  %v1354 = vmul.f32 %v1343, %v1352
  %v1355 = vmul.f32 %v1345, %v1353
  %1356 = vst [vmem:[#allocation4] sm:$0xff] %v1354
  %1357 = vst [vmem:[#allocation4 + $0x8] sm:$0xff] %v1355
  %1358 = vst [vmem:[#allocation5] sm:$0xff] %v1350
  %1359 = vst [vmem:[#allocation5 + $0x8] sm:$0xff] %v1351
  %v1360 = vpack.c.bf16 %v1355, %v1354
  %v1361 = vld [vmem:[#allocation3] sm:$0xff]
  %v1362 = vld [vmem:[#allocation3 + $0x8] sm:$0xff]
  %v1363 = vld [vmem:[#allocation3 + $0x10] sm:$0xff]
  %v1364 = vld [vmem:[#allocation3 + $0x18] sm:$0xff]
  %v1365 = vld [vmem:[#allocation3 + $0x20] sm:$0xff]
  %v1366 = vld [vmem:[#allocation3 + $0x28] sm:$0xff]
  %v1367 = vld [vmem:[#allocation3 + $0x30] sm:$0xff]
  %v1368 = vld [vmem:[#allocation3 + $0x38] sm:$0xff]
  %v1369 = vld [vmem:[#allocation3 + $0x40] sm:$0xff]
  %v1370 = vld [vmem:[#allocation3 + $0x48] sm:$0xff]
  %v1371 = vld [vmem:[#allocation3 + $0x50] sm:$0xff]
  %v1372 = vld [vmem:[#allocation3 + $0x58] sm:$0xff]
  %v1373 = vld [vmem:[#allocation3 + $0x60] sm:$0xff]
  %v1374 = vld [vmem:[#allocation3 + $0x68] sm:$0xff]
  %v1375 = vld [vmem:[#allocation3 + $0x70] sm:$0xff]
  %v1376 = vld [vmem:[#allocation3 + $0x78] sm:$0xff]
  %v1377 = vld [vmem:[#allocation3 + $0x80] sm:$0xff]
  %v1378 = vld [vmem:[#allocation3 + $0x88] sm:$0xff]
  %v1379 = vld [vmem:[#allocation3 + $0x90] sm:$0xff]
  %v1380 = vld [vmem:[#allocation3 + $0x98] sm:$0xff]
  %v1381 = vld [vmem:[#allocation3 + $0xa0] sm:$0xff]
  %v1382 = vld [vmem:[#allocation3 + $0xa8] sm:$0xff]
  %v1383 = vld [vmem:[#allocation3 + $0xb0] sm:$0xff]
  %v1384 = vld [vmem:[#allocation3 + $0xb8] sm:$0xff]
  %v1385 = vld [vmem:[#allocation3 + $0xc0] sm:$0xff]
  %v1386 = vld [vmem:[#allocation3 + $0xc8] sm:$0xff]
  %v1387 = vld [vmem:[#allocation3 + $0xd0] sm:$0xff]
  %v1388 = vld [vmem:[#allocation3 + $0xd8] sm:$0xff]
  %v1389 = vld [vmem:[#allocation3 + $0xe0] sm:$0xff]
  %v1390 = vld [vmem:[#allocation3 + $0xe8] sm:$0xff]
  %v1391 = vld [vmem:[#allocation3 + $0xf0] sm:$0xff]
  %v1392 = vld [vmem:[#allocation3 + $0xf8] sm:$0xff]
  %v1393 = vld [vmem:[%s882] sm:$0xff]
  %v1394 = vld [vmem:[%s882 + $0x8] sm:$0xff]
  %v1395 = vpack.c.bf16 %v1394, %v1393
  %v1396 = vld [vmem:[%s886] sm:$0xff]
  %v1397 = vld [vmem:[%s886 + $0x8] sm:$0xff]
  %v1398 = vld [vmem:[%s886 + $0x10] sm:$0xff]
  %v1399 = vld [vmem:[%s886 + $0x18] sm:$0xff]
  %v1400 = vld [vmem:[%s886 + $0x20] sm:$0xff]
  %v1401 = vld [vmem:[%s886 + $0x28] sm:$0xff]
  %v1402 = vld [vmem:[%s886 + $0x30] sm:$0xff]
  %v1403 = vld [vmem:[%s886 + $0x38] sm:$0xff]
  %v1404 = vld [vmem:[%s886 + $0x40] sm:$0xff]
  %v1405 = vld [vmem:[%s886 + $0x48] sm:$0xff]
  %v1406 = vld [vmem:[%s886 + $0x50] sm:$0xff]
  %v1407 = vld [vmem:[%s886 + $0x58] sm:$0xff]
  %v1408 = vld [vmem:[%s886 + $0x60] sm:$0xff]
  %v1409 = vld [vmem:[%s886 + $0x68] sm:$0xff]
  %v1410 = vld [vmem:[%s886 + $0x70] sm:$0xff]
  %v1411 = vld [vmem:[%s886 + $0x78] sm:$0xff]
  %v1412 = vld [vmem:[%s886 + $0x80] sm:$0xff]
  %v1413 = vld [vmem:[%s886 + $0x88] sm:$0xff]
  %v1414 = vld [vmem:[%s886 + $0x90] sm:$0xff]
  %v1415 = vld [vmem:[%s886 + $0x98] sm:$0xff]
  %v1416 = vld [vmem:[%s886 + $0xa0] sm:$0xff]
  %v1417 = vld [vmem:[%s886 + $0xa8] sm:$0xff]
  %v1418 = vld [vmem:[%s886 + $0xb0] sm:$0xff]
  %v1419 = vld [vmem:[%s886 + $0xb8] sm:$0xff]
  %v1420 = vld [vmem:[%s886 + $0xc0] sm:$0xff]
  %v1421 = vld [vmem:[%s886 + $0xc8] sm:$0xff]
  %v1422 = vld [vmem:[%s886 + $0xd0] sm:$0xff]
  %v1423 = vld [vmem:[%s886 + $0xd8] sm:$0xff]
  %v1424 = vld [vmem:[%s886 + $0xe0] sm:$0xff]
  %v1425 = vld [vmem:[%s886 + $0xe8] sm:$0xff]
  %v1426 = vld [vmem:[%s886 + $0xf0] sm:$0xff]
  %v1427 = vld [vmem:[%s886 + $0xf8] sm:$0xff]
  %1428 = vmatprep.subr.bf16.mxu0 %v1397
  %1429 = vmatpush1.bf16.msra.mxu0 %v1396
  %1430 = vmatprep.subr.bf16.mxu0 %v1401
  %1431 = vmatpush1.bf16.msra.mxu0 %v1400
  %1432 = vmatprep.subr.bf16.mxu0 %v1405
  %1433 = vmatpush1.bf16.msra.mxu0 %v1404
  %1434 = vmatprep.subr.bf16.mxu0 %v1409
  %1435 = vmatpush1.bf16.msra.mxu0 %v1408
  %1436 = vmatprep.subr.bf16.mxu0 %v1413
  %1437 = vmatpush1.bf16.msra.mxu0 %v1412
  %1438 = vmatprep.subr.bf16.mxu0 %v1417
  %1439 = vmatpush1.bf16.msra.mxu0 %v1416
  %1440 = vmatprep.subr.bf16.mxu0 %v1421
  %1441 = vmatpush1.bf16.msra.mxu0 %v1420
  %1442 = vmatprep.subr.bf16.mxu0 %v1425
  %1443 = vmatpush1.bf16.msra.mxu0 %v1424
  %1444 = vmatprep.subr.bf16.mxu0 0
  %1445 = vmatpush1.bf16.msra.mxu0 0
  %1446 = vmatprep.subr.bf16.mxu0 0
  %1447 = vmatpush1.bf16.msra.mxu0 0
  %1448 = vmatprep.subr.bf16.mxu0 0
  %1449 = vmatpush1.bf16.msra.mxu0 0
  %1450 = vmatprep.subr.bf16.mxu0 0
  %1451 = vmatpush1.bf16.msra.mxu0 0
  %1452 = vmatprep.subr.bf16.mxu0 0
  %1453 = vmatpush1.bf16.msra.mxu0 0
  %1454 = vmatprep.subr.bf16.mxu0 0
  %1455 = vmatpush1.bf16.msra.mxu0 0
  %1456 = vmatprep.subr.bf16.mxu0 0
  %1457 = vmatpush1.bf16.msra.mxu0 0
  %1458 = vmatprep.subr.bf16.mxu0 0
  %1459 = vmatpush1.bf16.msra.mxu0 0
  %1460 = vmatprep.mubr.bf16.mxu0 0
  %1461 = vmatmul.mubr.bf16.gmra.mrb[0].mxu0 %v1395
  %v1462 = vpop.f32.mrb[0].mxu0
  %v1463 = vadd.f32 0.0, %v1462
  %v1464 = vpop.f32.mrb[0].mxu0
  %v1465 = vadd.f32 0.0, %v1464
  %v1466 = vpop.f32.mrb[0].mxu0
  %v1467 = vadd.f32 0.0, %v1466
  %v1468 = vpop.f32.mrb[0].mxu0
  %v1469 = vadd.f32 0.0, %v1468
  %1470 = vdwg.mxu0
  %1471 = vmatprep.subr.bf16.mxu0 %v1399
  %1472 = vmatpush1.bf16.msra.mxu0 %v1398
  %1473 = vmatprep.subr.bf16.mxu0 %v1403
  %1474 = vmatpush1.bf16.msra.mxu0 %v1402
  %1475 = vmatprep.subr.bf16.mxu0 %v1407
  %1476 = vmatpush1.bf16.msra.mxu0 %v1406
  %1477 = vmatprep.subr.bf16.mxu0 %v1411
  %1478 = vmatpush1.bf16.msra.mxu0 %v1410
  %1479 = vmatprep.subr.bf16.mxu0 %v1415
  %1480 = vmatpush1.bf16.msra.mxu0 %v1414
  %1481 = vmatprep.subr.bf16.mxu0 %v1419
  %1482 = vmatpush1.bf16.msra.mxu0 %v1418
  %1483 = vmatprep.subr.bf16.mxu0 %v1423
  %1484 = vmatpush1.bf16.msra.mxu0 %v1422
  %1485 = vmatprep.subr.bf16.mxu0 %v1427
  %1486 = vmatpush1.bf16.msra.mxu0 %v1426
  %1487 = vmatprep.subr.bf16.mxu0 0
  %1488 = vmatpush1.bf16.msra.mxu0 0
  %1489 = vmatprep.subr.bf16.mxu0 0
  %1490 = vmatpush1.bf16.msra.mxu0 0
  %1491 = vmatprep.subr.bf16.mxu0 0
  %1492 = vmatpush1.bf16.msra.mxu0 0
  %1493 = vmatprep.subr.bf16.mxu0 0
  %1494 = vmatpush1.bf16.msra.mxu0 0
  %1495 = vmatprep.subr.bf16.mxu0 0
  %1496 = vmatpush1.bf16.msra.mxu0 0
  %1497 = vmatprep.subr.bf16.mxu0 0
  %1498 = vmatpush1.bf16.msra.mxu0 0
  %1499 = vmatprep.subr.bf16.mxu0 0
  %1500 = vmatpush1.bf16.msra.mxu0 0
  %1501 = vmatprep.subr.bf16.mxu0 0
  %1502 = vmatpush1.bf16.msra.mxu0 0
  %1503 = vmatprep.mubr.bf16.mxu0 0
  %1504 = vmatmul.mubr.bf16.gmra.mrb[0].mxu0 %v1395
  %v1505 = vpop.f32.mrb[0].mxu0
  %v1506 = vadd.f32 0.0, %v1505
  %v1507 = vpop.f32.mrb[0].mxu0
  %v1508 = vadd.f32 0.0, %v1507
  %v1509 = vpop.f32.mrb[0].mxu0
  %v1510 = vadd.f32 0.0, %v1509
  %v1511 = vpop.f32.mrb[0].mxu0
  %v1512 = vadd.f32 0.0, %v1511
  %1513 = vdwg.mxu0
  %1514 = vmatprep.subr.bf16.mxu0 %v1362
  %1515 = vmatpush1.bf16.msra.mxu0 %v1361
  %1516 = vmatprep.subr.bf16.mxu0 %v1366
  %1517 = vmatpush1.bf16.msra.mxu0 %v1365
  %1518 = vmatprep.subr.bf16.mxu0 %v1370
  %1519 = vmatpush1.bf16.msra.mxu0 %v1369
  %1520 = vmatprep.subr.bf16.mxu0 %v1374
  %1521 = vmatpush1.bf16.msra.mxu0 %v1373
  %1522 = vmatprep.subr.bf16.mxu0 %v1378
  %1523 = vmatpush1.bf16.msra.mxu0 %v1377
  %1524 = vmatprep.subr.bf16.mxu0 %v1382
  %1525 = vmatpush1.bf16.msra.mxu0 %v1381
  %1526 = vmatprep.subr.bf16.mxu0 %v1386
  %1527 = vmatpush1.bf16.msra.mxu0 %v1385
  %1528 = vmatprep.subr.bf16.mxu0 %v1390
  %1529 = vmatpush1.bf16.msra.mxu0 %v1389
  %1530 = vmatprep.subr.bf16.mxu0 0
  %1531 = vmatpush1.bf16.msra.mxu0 0
  %1532 = vmatprep.subr.bf16.mxu0 0
  %1533 = vmatpush1.bf16.msra.mxu0 0
  %1534 = vmatprep.subr.bf16.mxu0 0
  %1535 = vmatpush1.bf16.msra.mxu0 0
  %1536 = vmatprep.subr.bf16.mxu0 0
  %1537 = vmatpush1.bf16.msra.mxu0 0
  %1538 = vmatprep.subr.bf16.mxu0 0
  %1539 = vmatpush1.bf16.msra.mxu0 0
  %1540 = vmatprep.subr.bf16.mxu0 0
  %1541 = vmatpush1.bf16.msra.mxu0 0
  %1542 = vmatprep.subr.bf16.mxu0 0
  %1543 = vmatpush1.bf16.msra.mxu0 0
  %1544 = vmatprep.subr.bf16.mxu0 0
  %1545 = vmatpush1.bf16.msra.mxu0 0
  %1546 = vmatprep.mubr.bf16.mxu0 0
  %1547 = vmatmul.mubr.bf16.gmra.mrb[0].mxu0 %v1360
  %v1548 = vpop.f32.mrb[0].mxu0
  %v1549 = vadd.f32 %v1463, %v1548
  %v1550 = vpop.f32.mrb[0].mxu0
  %v1551 = vadd.f32 %v1465, %v1550
  %v1552 = vpop.f32.mrb[0].mxu0
  %v1553 = vadd.f32 %v1467, %v1552
  %v1554 = vpop.f32.mrb[0].mxu0
  %v1555 = vadd.f32 %v1469, %v1554
  %1556 = vdwg.mxu0
  %1557 = vmatprep.subr.bf16.mxu0 %v1364
  %1558 = vmatpush1.bf16.msra.mxu0 %v1363
  %1559 = vmatprep.subr.bf16.mxu0 %v1368
  %1560 = vmatpush1.bf16.msra.mxu0 %v1367
  %1561 = vmatprep.subr.bf16.mxu0 %v1372
  %1562 = vmatpush1.bf16.msra.mxu0 %v1371
  %1563 = vmatprep.subr.bf16.mxu0 %v1376
  %1564 = vmatpush1.bf16.msra.mxu0 %v1375
  %1565 = vmatprep.subr.bf16.mxu0 %v1380
  %1566 = vmatpush1.bf16.msra.mxu0 %v1379
  %1567 = vmatprep.subr.bf16.mxu0 %v1384
  %1568 = vmatpush1.bf16.msra.mxu0 %v1383
  %1569 = vmatprep.subr.bf16.mxu0 %v1388
  %1570 = vmatpush1.bf16.msra.mxu0 %v1387
  %1571 = vmatprep.subr.bf16.mxu0 %v1392
  %1572 = vmatpush1.bf16.msra.mxu0 %v1391
  %1573 = vmatprep.subr.bf16.mxu0 0
  %1574 = vmatpush1.bf16.msra.mxu0 0
  %1575 = vmatprep.subr.bf16.mxu0 0
  %1576 = vmatpush1.bf16.msra.mxu0 0
  %1577 = vmatprep.subr.bf16.mxu0 0
  %1578 = vmatpush1.bf16.msra.mxu0 0
  %1579 = vmatprep.subr.bf16.mxu0 0
  %1580 = vmatpush1.bf16.msra.mxu0 0
  %1581 = vmatprep.subr.bf16.mxu0 0
  %1582 = vmatpush1.bf16.msra.mxu0 0
  %1583 = vmatprep.subr.bf16.mxu0 0
  %1584 = vmatpush1.bf16.msra.mxu0 0
  %1585 = vmatprep.subr.bf16.mxu0 0
  %1586 = vmatpush1.bf16.msra.mxu0 0
  %1587 = vmatprep.subr.bf16.mxu0 0
  %1588 = vmatpush1.bf16.msra.mxu0 0
  %1589 = vmatprep.mubr.bf16.mxu0 0
  %1590 = vmatmul.mubr.bf16.gmra.mrb[0].mxu0 %v1360
  %v1591 = vpop.f32.mrb[0].mxu0
  %v1592 = vadd.f32 %v1506, %v1591
  %v1593 = vpop.f32.mrb[0].mxu0
  %v1594 = vadd.f32 %v1508, %v1593
  %v1595 = vpop.f32.mrb[0].mxu0
  %v1596 = vadd.f32 %v1510, %v1595
  %v1597 = vpop.f32.mrb[0].mxu0
  %v1598 = vadd.f32 %v1512, %v1597
  %1599 = vdwg.mxu0
  %v1600 = vadd.f32 %v1549, %v637
  %v1601 = vadd.f32 %v1551, %v641
  %v1602 = vadd.f32 %v1592, %v645
  %v1603 = vadd.f32 %v1594, %v649
  %v1604 = vadd.f32 %v1553, %v637
  %v1605 = vadd.f32 %v1555, %v641
  %v1606 = vadd.f32 %v1596, %v645
  %v1607 = vadd.f32 %v1598, %v649
  %v1608 = vld [vmem:[%s1099] sm:$0xff]
  %v1609 = vld [vmem:[%s1099 + $0x8] sm:$0xff]
  %v1610 = vxor.u32 %v1600, 2147483648
  %v1611 = vxor.u32 %v1604, 2147483648
  %v1612 = vmul.f32 %v1610, 1.442695
  %v1613 = vpow.pop %v1612
  %v1614 = vmul.f32 %v1611, 1.442695
  %v1615 = vpow.pop %v1614
  %v1616 = vadd.f32 %v1613, 1.0
  %v1617 = vadd.f32 %v1615, 1.0
  %v1618 = vrcp.pop %v1616
  %v1619 = vmul.f32 1.0, %v1618
  %v1620 = vrcp.pop %v1617
  %v1621 = vmul.f32 1.0, %v1620
  %v1622 = vxor.u32 %v1601, 2147483648
  %v1623 = vxor.u32 %v1605, 2147483648
  %v1624 = vmul.f32 %v1622, 1.442695
  %v1625 = vpow.pop %v1624
  %v1626 = vmul.f32 %v1623, 1.442695
  %v1627 = vpow.pop %v1626
  %v1628 = vadd.f32 %v1625, 1.0
  %v1629 = vadd.f32 %v1627, 1.0
  %v1630 = vrcp.pop %v1628
  %v1631 = vmul.f32 1.0, %v1630
  %v1632 = vrcp.pop %v1629
  %v1633 = vmul.f32 1.0, %v1632
  %v1634 = vtanh.pop %v1602
  %v1635 = vtanh.pop %v1606
  %v1636 = vxor.u32 %v1603, 2147483648
  %v1637 = vxor.u32 %v1607, 2147483648
  %v1638 = vmul.f32 %v1636, 1.442695
  %v1639 = vpow.pop %v1638
  %v1640 = vmul.f32 %v1637, 1.442695
  %v1641 = vpow.pop %v1640
  %v1642 = vadd.f32 %v1639, 1.0
  %v1643 = vadd.f32 %v1641, 1.0
  %v1644 = vrcp.pop %v1642
  %v1645 = vmul.f32 1.0, %v1644
  %v1646 = vrcp.pop %v1643
  %v1647 = vmul.f32 1.0, %v1646
  %v1648 = vmul.f32 %v1631, %v1608
  %v1649 = vmul.f32 %v1633, %v1609
  %v1650 = vmul.f32 %v1619, %v1634
  %v1651 = vmul.f32 %v1621, %v1635
  %v1652 = vadd.f32 %v1648, %v1650
  %v1653 = vadd.f32 %v1649, %v1651
  %v1654 = vtanh.pop %v1652
  %v1655 = vtanh.pop %v1653
  %v1656 = vmul.f32 %v1645, %v1654
  %v1657 = vmul.f32 %v1647, %v1655
  %1658 = vst [vmem:[%s882] sm:$0xff] %v1656
  %1659 = vst [vmem:[%s882 + $0x8] sm:$0xff] %v1657
  %1660 = vst [vmem:[%s1099] sm:$0xff] %v1652
  %1661 = vst [vmem:[%s1099 + $0x8] sm:$0xff] %v1653
  %v1662 = vpack.c.bf16 %v1657, %v1656
  %v1664 = vunpack.c.l.b16 %v1662
  %v1665 = vunpack.c.h.b16 %v1662
  %v1666 = vpack.c.b16 %v1664, %v1664
  %v1667 = vpack.c.b16 %v1665, %v1665
  %s1670 = scalar_lea.vmem %s4, 8
  %1671 = vst [vmem:[%s1670] sm:$0xf] %v1666
  %1672 = vst [vmem:[%s1670 + $0x4] sm:$0xf] %v1667
  %s1673 = scalar_lea.vmem %s0, 64
  %v1674 = vld [vmem:[%s1673] sm:$0xff]
  %v1675 = vld [vmem:[%s1673 + $0x8] sm:$0xff]
  %v1676 = vld [vmem:[%s1673 + $0x10] sm:$0xff]
  %v1677 = vld [vmem:[%s1673 + $0x18] sm:$0xff]
  %v1678 = vunpack.c.l.bf16 %v1674
  %v1679 = vunpack.c.h.bf16 %v1674
  %v1680 = vunpack.c.l.bf16 %v1675
  %v1681 = vunpack.c.h.bf16 %v1675
  %v1682 = vunpack.c.l.bf16 %v1676
  %v1683 = vunpack.c.h.bf16 %v1676
  %v1684 = vunpack.c.l.bf16 %v1677
  %v1685 = vunpack.c.h.bf16 %v1677
  %v1686 = vld [vmem:[#allocation4] sm:$0xff]
  %v1687 = vld [vmem:[#allocation4 + $0x8] sm:$0xff]
  %v1688 = vpack.c.bf16 %v1687, %v1686
  %v1689 = vld [vmem:[#allocation2] sm:$0xff]
  %v1690 = vld [vmem:[#allocation2 + $0x8] sm:$0xff]
  %v1691 = vld [vmem:[#allocation2 + $0x10] sm:$0xff]
  %v1692 = vld [vmem:[#allocation2 + $0x18] sm:$0xff]
  %v1693 = vld [vmem:[#allocation2 + $0x20] sm:$0xff]
  %v1694 = vld [vmem:[#allocation2 + $0x28] sm:$0xff]
  %v1695 = vld [vmem:[#allocation2 + $0x30] sm:$0xff]
  %v1696 = vld [vmem:[#allocation2 + $0x38] sm:$0xff]
  %v1697 = vld [vmem:[#allocation2 + $0x40] sm:$0xff]
  %v1698 = vld [vmem:[#allocation2 + $0x48] sm:$0xff]
  %v1699 = vld [vmem:[#allocation2 + $0x50] sm:$0xff]
  %v1700 = vld [vmem:[#allocation2 + $0x58] sm:$0xff]
  %v1701 = vld [vmem:[#allocation2 + $0x60] sm:$0xff]
  %v1702 = vld [vmem:[#allocation2 + $0x68] sm:$0xff]
  %v1703 = vld [vmem:[#allocation2 + $0x70] sm:$0xff]
  %v1704 = vld [vmem:[#allocation2 + $0x78] sm:$0xff]
  %v1705 = vld [vmem:[#allocation2 + $0x80] sm:$0xff]
  %v1706 = vld [vmem:[#allocation2 + $0x88] sm:$0xff]
  %v1707 = vld [vmem:[#allocation2 + $0x90] sm:$0xff]
  %v1708 = vld [vmem:[#allocation2 + $0x98] sm:$0xff]
  %v1709 = vld [vmem:[#allocation2 + $0xa0] sm:$0xff]
  %v1710 = vld [vmem:[#allocation2 + $0xa8] sm:$0xff]
  %v1711 = vld [vmem:[#allocation2 + $0xb0] sm:$0xff]
  %v1712 = vld [vmem:[#allocation2 + $0xb8] sm:$0xff]
  %v1713 = vld [vmem:[#allocation2 + $0xc0] sm:$0xff]
  %v1714 = vld [vmem:[#allocation2 + $0xc8] sm:$0xff]
  %v1715 = vld [vmem:[#allocation2 + $0xd0] sm:$0xff]
  %v1716 = vld [vmem:[#allocation2 + $0xd8] sm:$0xff]
  %v1717 = vld [vmem:[#allocation2 + $0xe0] sm:$0xff]
  %v1718 = vld [vmem:[#allocation2 + $0xe8] sm:$0xff]
  %v1719 = vld [vmem:[#allocation2 + $0xf0] sm:$0xff]
  %v1720 = vld [vmem:[#allocation2 + $0xf8] sm:$0xff]
  %1721 = vmatprep.subr.bf16.mxu0 %v1690
  %1722 = vmatpush1.bf16.msra.mxu0 %v1689
  %1723 = vmatprep.subr.bf16.mxu0 %v1694
  %1724 = vmatpush1.bf16.msra.mxu0 %v1693
  %1725 = vmatprep.subr.bf16.mxu0 %v1698
  %1726 = vmatpush1.bf16.msra.mxu0 %v1697
  %1727 = vmatprep.subr.bf16.mxu0 %v1702
  %1728 = vmatpush1.bf16.msra.mxu0 %v1701
  %1729 = vmatprep.subr.bf16.mxu0 %v1706
  %1730 = vmatpush1.bf16.msra.mxu0 %v1705
  %1731 = vmatprep.subr.bf16.mxu0 %v1710
  %1732 = vmatpush1.bf16.msra.mxu0 %v1709
  %1733 = vmatprep.subr.bf16.mxu0 %v1714
  %1734 = vmatpush1.bf16.msra.mxu0 %v1713
  %1735 = vmatprep.subr.bf16.mxu0 %v1718
  %1736 = vmatpush1.bf16.msra.mxu0 %v1717
  %1737 = vmatprep.subr.bf16.mxu0 0
  %1738 = vmatpush1.bf16.msra.mxu0 0
  %1739 = vmatprep.subr.bf16.mxu0 0
  %1740 = vmatpush1.bf16.msra.mxu0 0
  %1741 = vmatprep.subr.bf16.mxu0 0
  %1742 = vmatpush1.bf16.msra.mxu0 0
  %1743 = vmatprep.subr.bf16.mxu0 0
  %1744 = vmatpush1.bf16.msra.mxu0 0
  %1745 = vmatprep.subr.bf16.mxu0 0
  %1746 = vmatpush1.bf16.msra.mxu0 0
  %1747 = vmatprep.subr.bf16.mxu0 0
  %1748 = vmatpush1.bf16.msra.mxu0 0
  %1749 = vmatprep.subr.bf16.mxu0 0
  %1750 = vmatpush1.bf16.msra.mxu0 0
  %1751 = vmatprep.subr.bf16.mxu0 0
  %1752 = vmatpush1.bf16.msra.mxu0 0
  %1753 = vmatprep.mubr.bf16.mxu0 0
  %1754 = vmatmul.mubr.bf16.gmra.mrb[0].mxu0 %v1688
  %v1755 = vpop.f32.mrb[0].mxu0
  %v1756 = vadd.f32 0.0, %v1755
  %v1757 = vpop.f32.mrb[0].mxu0
  %v1758 = vadd.f32 0.0, %v1757
  %v1759 = vpop.f32.mrb[0].mxu0
  %v1760 = vadd.f32 0.0, %v1759
  %v1761 = vpop.f32.mrb[0].mxu0
  %v1762 = vadd.f32 0.0, %v1761
  %1763 = vdwg.mxu0
  %1764 = vmatprep.subr.bf16.mxu0 %v1692
  %1765 = vmatpush1.bf16.msra.mxu0 %v1691
  %1766 = vmatprep.subr.bf16.mxu0 %v1696
  %1767 = vmatpush1.bf16.msra.mxu0 %v1695
  %1768 = vmatprep.subr.bf16.mxu0 %v1700
  %1769 = vmatpush1.bf16.msra.mxu0 %v1699
  %1770 = vmatprep.subr.bf16.mxu0 %v1704
  %1771 = vmatpush1.bf16.msra.mxu0 %v1703
  %1772 = vmatprep.subr.bf16.mxu0 %v1708
  %1773 = vmatpush1.bf16.msra.mxu0 %v1707
  %1774 = vmatprep.subr.bf16.mxu0 %v1712
  %1775 = vmatpush1.bf16.msra.mxu0 %v1711
  %1776 = vmatprep.subr.bf16.mxu0 %v1716
  %1777 = vmatpush1.bf16.msra.mxu0 %v1715
  %1778 = vmatprep.subr.bf16.mxu0 %v1720
  %1779 = vmatpush1.bf16.msra.mxu0 %v1719
  %1780 = vmatprep.subr.bf16.mxu0 0
  %1781 = vmatpush1.bf16.msra.mxu0 0
  %1782 = vmatprep.subr.bf16.mxu0 0
  %1783 = vmatpush1.bf16.msra.mxu0 0
  %1784 = vmatprep.subr.bf16.mxu0 0
  %1785 = vmatpush1.bf16.msra.mxu0 0
  %1786 = vmatprep.subr.bf16.mxu0 0
  %1787 = vmatpush1.bf16.msra.mxu0 0
  %1788 = vmatprep.subr.bf16.mxu0 0
  %1789 = vmatpush1.bf16.msra.mxu0 0
  %1790 = vmatprep.subr.bf16.mxu0 0
  %1791 = vmatpush1.bf16.msra.mxu0 0
  %1792 = vmatprep.subr.bf16.mxu0 0
  %1793 = vmatpush1.bf16.msra.mxu0 0
  %1794 = vmatprep.subr.bf16.mxu0 0
  %1795 = vmatpush1.bf16.msra.mxu0 0
  %1796 = vmatprep.mubr.bf16.mxu0 0
  %1797 = vmatmul.mubr.bf16.gmra.mrb[0].mxu0 %v1688
  %v1798 = vpop.f32.mrb[0].mxu0
  %v1799 = vadd.f32 0.0, %v1798
  %v1800 = vpop.f32.mrb[0].mxu0
  %v1801 = vadd.f32 0.0, %v1800
  %v1802 = vpop.f32.mrb[0].mxu0
  %v1803 = vadd.f32 0.0, %v1802
  %v1804 = vpop.f32.mrb[0].mxu0
  %v1805 = vadd.f32 0.0, %v1804
  %1806 = vdwg.mxu0
  %v1807 = vadd.f32 %v1678, %v1756
  %v1808 = vadd.f32 %v1679, %v1758
  %v1809 = vadd.f32 %v1680, %v1799
  %v1810 = vadd.f32 %v1681, %v1801
  %v1811 = vadd.f32 %v1682, %v1760
  %v1812 = vadd.f32 %v1683, %v1762
  %v1813 = vadd.f32 %v1684, %v1803
  %v1814 = vadd.f32 %v1685, %v1805
  %v1815 = vld [vmem:[#allocation5] sm:$0xff]
  %v1816 = vld [vmem:[#allocation5 + $0x8] sm:$0xff]
  %v1817 = vxor.u32 %v1807, 2147483648
  %v1818 = vxor.u32 %v1811, 2147483648
  %v1819 = vmul.f32 %v1817, 1.442695
  %v1820 = vpow.pop %v1819
  %v1821 = vmul.f32 %v1818, 1.442695
  %v1822 = vpow.pop %v1821
  %v1823 = vadd.f32 %v1820, 1.0
  %v1824 = vadd.f32 %v1822, 1.0
  %v1825 = vrcp.pop %v1823
  %v1826 = vmul.f32 1.0, %v1825
  %v1827 = vrcp.pop %v1824
  %v1828 = vmul.f32 1.0, %v1827
  %v1829 = vxor.u32 %v1808, 2147483648
  %v1830 = vxor.u32 %v1812, 2147483648
  %v1831 = vmul.f32 %v1829, 1.442695
  %v1832 = vpow.pop %v1831
  %v1833 = vmul.f32 %v1830, 1.442695
  %v1834 = vpow.pop %v1833
  %v1835 = vadd.f32 %v1832, 1.0
  %v1836 = vadd.f32 %v1834, 1.0
  %v1837 = vrcp.pop %v1835
  %v1838 = vmul.f32 1.0, %v1837
  %v1839 = vrcp.pop %v1836
  %v1840 = vmul.f32 1.0, %v1839
  %v1841 = vtanh.pop %v1809
  %v1842 = vtanh.pop %v1813
  %v1843 = vxor.u32 %v1810, 2147483648
  %v1844 = vxor.u32 %v1814, 2147483648
  %v1845 = vmul.f32 %v1843, 1.442695
  %v1846 = vpow.pop %v1845
  %v1847 = vmul.f32 %v1844, 1.442695
  %v1848 = vpow.pop %v1847
  %v1849 = vadd.f32 %v1846, 1.0
  %v1850 = vadd.f32 %v1848, 1.0
  %v1851 = vrcp.pop %v1849
  %v1852 = vmul.f32 1.0, %v1851
  %v1853 = vrcp.pop %v1850
  %v1854 = vmul.f32 1.0, %v1853
  %v1855 = vmul.f32 %v1838, %v1815
  %v1856 = vmul.f32 %v1840, %v1816
  %v1857 = vmul.f32 %v1826, %v1841
  %v1858 = vmul.f32 %v1828, %v1842
  %v1859 = vadd.f32 %v1855, %v1857
  %v1860 = vadd.f32 %v1856, %v1858
  %v1861 = vtanh.pop %v1859
  %v1862 = vtanh.pop %v1860
  %v1863 = vmul.f32 %v1852, %v1861
  %v1864 = vmul.f32 %v1854, %v1862
  %1865 = vst [vmem:[#allocation4] sm:$0xff] %v1863
  %1866 = vst [vmem:[#allocation4 + $0x8] sm:$0xff] %v1864
  %1867 = vst [vmem:[#allocation5] sm:$0xff] %v1859
  %1868 = vst [vmem:[#allocation5 + $0x8] sm:$0xff] %v1860
  %v1869 = vpack.c.bf16 %v1864, %v1863
  %v1870 = vld [vmem:[#allocation3] sm:$0xff]
  %v1871 = vld [vmem:[#allocation3 + $0x8] sm:$0xff]
  %v1872 = vld [vmem:[#allocation3 + $0x10] sm:$0xff]
  %v1873 = vld [vmem:[#allocation3 + $0x18] sm:$0xff]
  %v1874 = vld [vmem:[#allocation3 + $0x20] sm:$0xff]
  %v1875 = vld [vmem:[#allocation3 + $0x28] sm:$0xff]
  %v1876 = vld [vmem:[#allocation3 + $0x30] sm:$0xff]
  %v1877 = vld [vmem:[#allocation3 + $0x38] sm:$0xff]
  %v1878 = vld [vmem:[#allocation3 + $0x40] sm:$0xff]
  %v1879 = vld [vmem:[#allocation3 + $0x48] sm:$0xff]
  %v1880 = vld [vmem:[#allocation3 + $0x50] sm:$0xff]
  %v1881 = vld [vmem:[#allocation3 + $0x58] sm:$0xff]
  %v1882 = vld [vmem:[#allocation3 + $0x60] sm:$0xff]
  %v1883 = vld [vmem:[#allocation3 + $0x68] sm:$0xff]
  %v1884 = vld [vmem:[#allocation3 + $0x70] sm:$0xff]
  %v1885 = vld [vmem:[#allocation3 + $0x78] sm:$0xff]
  %v1886 = vld [vmem:[#allocation3 + $0x80] sm:$0xff]
  %v1887 = vld [vmem:[#allocation3 + $0x88] sm:$0xff]
  %v1888 = vld [vmem:[#allocation3 + $0x90] sm:$0xff]
  %v1889 = vld [vmem:[#allocation3 + $0x98] sm:$0xff]
  %v1890 = vld [vmem:[#allocation3 + $0xa0] sm:$0xff]
  %v1891 = vld [vmem:[#allocation3 + $0xa8] sm:$0xff]
  %v1892 = vld [vmem:[#allocation3 + $0xb0] sm:$0xff]
  %v1893 = vld [vmem:[#allocation3 + $0xb8] sm:$0xff]
  %v1894 = vld [vmem:[#allocation3 + $0xc0] sm:$0xff]
  %v1895 = vld [vmem:[#allocation3 + $0xc8] sm:$0xff]
  %v1896 = vld [vmem:[#allocation3 + $0xd0] sm:$0xff]
  %v1897 = vld [vmem:[#allocation3 + $0xd8] sm:$0xff]
  %v1898 = vld [vmem:[#allocation3 + $0xe0] sm:$0xff]
  %v1899 = vld [vmem:[#allocation3 + $0xe8] sm:$0xff]
  %v1900 = vld [vmem:[#allocation3 + $0xf0] sm:$0xff]
  %v1901 = vld [vmem:[#allocation3 + $0xf8] sm:$0xff]
  %v1902 = vld [vmem:[%s882] sm:$0xff]
  %v1903 = vld [vmem:[%s882 + $0x8] sm:$0xff]
  %v1904 = vpack.c.bf16 %v1903, %v1902
  %v1905 = vld [vmem:[%s886] sm:$0xff]
  %v1906 = vld [vmem:[%s886 + $0x8] sm:$0xff]
  %v1907 = vld [vmem:[%s886 + $0x10] sm:$0xff]
  %v1908 = vld [vmem:[%s886 + $0x18] sm:$0xff]
  %v1909 = vld [vmem:[%s886 + $0x20] sm:$0xff]
  %v1910 = vld [vmem:[%s886 + $0x28] sm:$0xff]
  %v1911 = vld [vmem:[%s886 + $0x30] sm:$0xff]
  %v1912 = vld [vmem:[%s886 + $0x38] sm:$0xff]
  %v1913 = vld [vmem:[%s886 + $0x40] sm:$0xff]
  %v1914 = vld [vmem:[%s886 + $0x48] sm:$0xff]
  %v1915 = vld [vmem:[%s886 + $0x50] sm:$0xff]
  %v1916 = vld [vmem:[%s886 + $0x58] sm:$0xff]
  %v1917 = vld [vmem:[%s886 + $0x60] sm:$0xff]
  %v1918 = vld [vmem:[%s886 + $0x68] sm:$0xff]
  %v1919 = vld [vmem:[%s886 + $0x70] sm:$0xff]
  %v1920 = vld [vmem:[%s886 + $0x78] sm:$0xff]
  %v1921 = vld [vmem:[%s886 + $0x80] sm:$0xff]
  %v1922 = vld [vmem:[%s886 + $0x88] sm:$0xff]
  %v1923 = vld [vmem:[%s886 + $0x90] sm:$0xff]
  %v1924 = vld [vmem:[%s886 + $0x98] sm:$0xff]
  %v1925 = vld [vmem:[%s886 + $0xa0] sm:$0xff]
  %v1926 = vld [vmem:[%s886 + $0xa8] sm:$0xff]
  %v1927 = vld [vmem:[%s886 + $0xb0] sm:$0xff]
  %v1928 = vld [vmem:[%s886 + $0xb8] sm:$0xff]
  %v1929 = vld [vmem:[%s886 + $0xc0] sm:$0xff]
  %v1930 = vld [vmem:[%s886 + $0xc8] sm:$0xff]
  %v1931 = vld [vmem:[%s886 + $0xd0] sm:$0xff]
  %v1932 = vld [vmem:[%s886 + $0xd8] sm:$0xff]
  %v1933 = vld [vmem:[%s886 + $0xe0] sm:$0xff]
  %v1934 = vld [vmem:[%s886 + $0xe8] sm:$0xff]
  %v1935 = vld [vmem:[%s886 + $0xf0] sm:$0xff]
  %v1936 = vld [vmem:[%s886 + $0xf8] sm:$0xff]
  %1937 = vmatprep.subr.bf16.mxu0 %v1906
  %1938 = vmatpush1.bf16.msra.mxu0 %v1905
  %1939 = vmatprep.subr.bf16.mxu0 %v1910
  %1940 = vmatpush1.bf16.msra.mxu0 %v1909
  %1941 = vmatprep.subr.bf16.mxu0 %v1914
  %1942 = vmatpush1.bf16.msra.mxu0 %v1913
  %1943 = vmatprep.subr.bf16.mxu0 %v1918
  %1944 = vmatpush1.bf16.msra.mxu0 %v1917
  %1945 = vmatprep.subr.bf16.mxu0 %v1922
  %1946 = vmatpush1.bf16.msra.mxu0 %v1921
  %1947 = vmatprep.subr.bf16.mxu0 %v1926
  %1948 = vmatpush1.bf16.msra.mxu0 %v1925
  %1949 = vmatprep.subr.bf16.mxu0 %v1930
  %1950 = vmatpush1.bf16.msra.mxu0 %v1929
  %1951 = vmatprep.subr.bf16.mxu0 %v1934
  %1952 = vmatpush1.bf16.msra.mxu0 %v1933
  %1953 = vmatprep.subr.bf16.mxu0 0
  %1954 = vmatpush1.bf16.msra.mxu0 0
  %1955 = vmatprep.subr.bf16.mxu0 0
  %1956 = vmatpush1.bf16.msra.mxu0 0
  %1957 = vmatprep.subr.bf16.mxu0 0
  %1958 = vmatpush1.bf16.msra.mxu0 0
  %1959 = vmatprep.subr.bf16.mxu0 0
  %1960 = vmatpush1.bf16.msra.mxu0 0
  %1961 = vmatprep.subr.bf16.mxu0 0
  %1962 = vmatpush1.bf16.msra.mxu0 0
  %1963 = vmatprep.subr.bf16.mxu0 0
  %1964 = vmatpush1.bf16.msra.mxu0 0
  %1965 = vmatprep.subr.bf16.mxu0 0
  %1966 = vmatpush1.bf16.msra.mxu0 0
  %1967 = vmatprep.subr.bf16.mxu0 0
  %1968 = vmatpush1.bf16.msra.mxu0 0
  %1969 = vmatprep.mubr.bf16.mxu0 0
  %1970 = vmatmul.mubr.bf16.gmra.mrb[0].mxu0 %v1904
  %v1971 = vpop.f32.mrb[0].mxu0
  %v1972 = vadd.f32 0.0, %v1971
  %v1973 = vpop.f32.mrb[0].mxu0
  %v1974 = vadd.f32 0.0, %v1973
  %v1975 = vpop.f32.mrb[0].mxu0
  %v1976 = vadd.f32 0.0, %v1975
  %v1977 = vpop.f32.mrb[0].mxu0
  %v1978 = vadd.f32 0.0, %v1977
  %1979 = vdwg.mxu0
  %1980 = vmatprep.subr.bf16.mxu0 %v1908
  %1981 = vmatpush1.bf16.msra.mxu0 %v1907
  %1982 = vmatprep.subr.bf16.mxu0 %v1912
  %1983 = vmatpush1.bf16.msra.mxu0 %v1911
  %1984 = vmatprep.subr.bf16.mxu0 %v1916
  %1985 = vmatpush1.bf16.msra.mxu0 %v1915
  %1986 = vmatprep.subr.bf16.mxu0 %v1920
  %1987 = vmatpush1.bf16.msra.mxu0 %v1919
  %1988 = vmatprep.subr.bf16.mxu0 %v1924
  %1989 = vmatpush1.bf16.msra.mxu0 %v1923
  %1990 = vmatprep.subr.bf16.mxu0 %v1928
  %1991 = vmatpush1.bf16.msra.mxu0 %v1927
  %1992 = vmatprep.subr.bf16.mxu0 %v1932
  %1993 = vmatpush1.bf16.msra.mxu0 %v1931
  %1994 = vmatprep.subr.bf16.mxu0 %v1936
  %1995 = vmatpush1.bf16.msra.mxu0 %v1935
  %1996 = vmatprep.subr.bf16.mxu0 0
  %1997 = vmatpush1.bf16.msra.mxu0 0
  %1998 = vmatprep.subr.bf16.mxu0 0
  %1999 = vmatpush1.bf16.msra.mxu0 0
  %2000 = vmatprep.subr.bf16.mxu0 0
  %2001 = vmatpush1.bf16.msra.mxu0 0
  %2002 = vmatprep.subr.bf16.mxu0 0
  %2003 = vmatpush1.bf16.msra.mxu0 0
  %2004 = vmatprep.subr.bf16.mxu0 0
  %2005 = vmatpush1.bf16.msra.mxu0 0
  %2006 = vmatprep.subr.bf16.mxu0 0
  %2007 = vmatpush1.bf16.msra.mxu0 0
  %2008 = vmatprep.subr.bf16.mxu0 0
  %2009 = vmatpush1.bf16.msra.mxu0 0
  %2010 = vmatprep.subr.bf16.mxu0 0
  %2011 = vmatpush1.bf16.msra.mxu0 0
  %2012 = vmatprep.mubr.bf16.mxu0 0
  %2013 = vmatmul.mubr.bf16.gmra.mrb[0].mxu0 %v1904
  %v2014 = vpop.f32.mrb[0].mxu0
  %v2015 = vadd.f32 0.0, %v2014
  %v2016 = vpop.f32.mrb[0].mxu0
  %v2017 = vadd.f32 0.0, %v2016
  %v2018 = vpop.f32.mrb[0].mxu0
  %v2019 = vadd.f32 0.0, %v2018
  %v2020 = vpop.f32.mrb[0].mxu0
  %v2021 = vadd.f32 0.0, %v2020
  %2022 = vdwg.mxu0
  %2023 = vmatprep.subr.bf16.mxu0 %v1871
  %2024 = vmatpush1.bf16.msra.mxu0 %v1870
  %2025 = vmatprep.subr.bf16.mxu0 %v1875
  %2026 = vmatpush1.bf16.msra.mxu0 %v1874
  %2027 = vmatprep.subr.bf16.mxu0 %v1879
  %2028 = vmatpush1.bf16.msra.mxu0 %v1878
  %2029 = vmatprep.subr.bf16.mxu0 %v1883
  %2030 = vmatpush1.bf16.msra.mxu0 %v1882
  %2031 = vmatprep.subr.bf16.mxu0 %v1887
  %2032 = vmatpush1.bf16.msra.mxu0 %v1886
  %2033 = vmatprep.subr.bf16.mxu0 %v1891
  %2034 = vmatpush1.bf16.msra.mxu0 %v1890
  %2035 = vmatprep.subr.bf16.mxu0 %v1895
  %2036 = vmatpush1.bf16.msra.mxu0 %v1894
  %2037 = vmatprep.subr.bf16.mxu0 %v1899
  %2038 = vmatpush1.bf16.msra.mxu0 %v1898
  %2039 = vmatprep.subr.bf16.mxu0 0
  %2040 = vmatpush1.bf16.msra.mxu0 0
  %2041 = vmatprep.subr.bf16.mxu0 0
  %2042 = vmatpush1.bf16.msra.mxu0 0
  %2043 = vmatprep.subr.bf16.mxu0 0
  %2044 = vmatpush1.bf16.msra.mxu0 0
  %2045 = vmatprep.subr.bf16.mxu0 0
  %2046 = vmatpush1.bf16.msra.mxu0 0
  %2047 = vmatprep.subr.bf16.mxu0 0
  %2048 = vmatpush1.bf16.msra.mxu0 0
  %2049 = vmatprep.subr.bf16.mxu0 0
  %2050 = vmatpush1.bf16.msra.mxu0 0
  %2051 = vmatprep.subr.bf16.mxu0 0
  %2052 = vmatpush1.bf16.msra.mxu0 0
  %2053 = vmatprep.subr.bf16.mxu0 0
  %2054 = vmatpush1.bf16.msra.mxu0 0
  %2055 = vmatprep.mubr.bf16.mxu0 0
  %2056 = vmatmul.mubr.bf16.gmra.mrb[0].mxu0 %v1869
  %v2057 = vpop.f32.mrb[0].mxu0
  %v2058 = vadd.f32 %v1972, %v2057
  %v2059 = vpop.f32.mrb[0].mxu0
  %v2060 = vadd.f32 %v1974, %v2059
  %v2061 = vpop.f32.mrb[0].mxu0
  %v2062 = vadd.f32 %v1976, %v2061
  %v2063 = vpop.f32.mrb[0].mxu0
  %v2064 = vadd.f32 %v1978, %v2063
  %2065 = vdwg.mxu0
  %2066 = vmatprep.subr.bf16.mxu0 %v1873
  %2067 = vmatpush1.bf16.msra.mxu0 %v1872
  %2068 = vmatprep.subr.bf16.mxu0 %v1877
  %2069 = vmatpush1.bf16.msra.mxu0 %v1876
  %2070 = vmatprep.subr.bf16.mxu0 %v1881
  %2071 = vmatpush1.bf16.msra.mxu0 %v1880
  %2072 = vmatprep.subr.bf16.mxu0 %v1885
  %2073 = vmatpush1.bf16.msra.mxu0 %v1884
  %2074 = vmatprep.subr.bf16.mxu0 %v1889
  %2075 = vmatpush1.bf16.msra.mxu0 %v1888
  %2076 = vmatprep.subr.bf16.mxu0 %v1893
  %2077 = vmatpush1.bf16.msra.mxu0 %v1892
  %2078 = vmatprep.subr.bf16.mxu0 %v1897
  %2079 = vmatpush1.bf16.msra.mxu0 %v1896
  %2080 = vmatprep.subr.bf16.mxu0 %v1901
  %2081 = vmatpush1.bf16.msra.mxu0 %v1900
  %2082 = vmatprep.subr.bf16.mxu0 0
  %2083 = vmatpush1.bf16.msra.mxu0 0
  %2084 = vmatprep.subr.bf16.mxu0 0
  %2085 = vmatpush1.bf16.msra.mxu0 0
  %2086 = vmatprep.subr.bf16.mxu0 0
  %2087 = vmatpush1.bf16.msra.mxu0 0
  %2088 = vmatprep.subr.bf16.mxu0 0
  %2089 = vmatpush1.bf16.msra.mxu0 0
  %2090 = vmatprep.subr.bf16.mxu0 0
  %2091 = vmatpush1.bf16.msra.mxu0 0
  %2092 = vmatprep.subr.bf16.mxu0 0
  %2093 = vmatpush1.bf16.msra.mxu0 0
  %2094 = vmatprep.subr.bf16.mxu0 0
  %2095 = vmatpush1.bf16.msra.mxu0 0
  %2096 = vmatprep.subr.bf16.mxu0 0
  %2097 = vmatpush1.bf16.msra.mxu0 0
  %2098 = vmatprep.mubr.bf16.mxu0 0
  %2099 = vmatmul.mubr.bf16.gmra.mrb[0].mxu0 %v1869
  %v2100 = vpop.f32.mrb[0].mxu0
  %v2101 = vadd.f32 %v2015, %v2100
  %v2102 = vpop.f32.mrb[0].mxu0
  %v2103 = vadd.f32 %v2017, %v2102
  %v2104 = vpop.f32.mrb[0].mxu0
  %v2105 = vadd.f32 %v2019, %v2104
  %v2106 = vpop.f32.mrb[0].mxu0
  %v2107 = vadd.f32 %v2021, %v2106
  %2108 = vdwg.mxu0
  %v2109 = vadd.f32 %v2058, %v637
  %v2110 = vadd.f32 %v2060, %v641
  %v2111 = vadd.f32 %v2101, %v645
  %v2112 = vadd.f32 %v2103, %v649
  %v2113 = vadd.f32 %v2062, %v637
  %v2114 = vadd.f32 %v2064, %v641
  %v2115 = vadd.f32 %v2105, %v645
  %v2116 = vadd.f32 %v2107, %v649
  %v2117 = vld [vmem:[%s1099] sm:$0xff]
  %v2118 = vld [vmem:[%s1099 + $0x8] sm:$0xff]
  %v2119 = vxor.u32 %v2109, 2147483648
  %v2120 = vxor.u32 %v2113, 2147483648
  %v2121 = vmul.f32 %v2119, 1.442695
  %v2122 = vpow.pop %v2121
  %v2123 = vmul.f32 %v2120, 1.442695
  %v2124 = vpow.pop %v2123
  %v2125 = vadd.f32 %v2122, 1.0
  %v2126 = vadd.f32 %v2124, 1.0
  %v2127 = vrcp.pop %v2125
  %v2128 = vmul.f32 1.0, %v2127
  %v2129 = vrcp.pop %v2126
  %v2130 = vmul.f32 1.0, %v2129
  %v2131 = vxor.u32 %v2110, 2147483648
  %v2132 = vxor.u32 %v2114, 2147483648
  %v2133 = vmul.f32 %v2131, 1.442695
  %v2134 = vpow.pop %v2133
  %v2135 = vmul.f32 %v2132, 1.442695
  %v2136 = vpow.pop %v2135
  %v2137 = vadd.f32 %v2134, 1.0
  %v2138 = vadd.f32 %v2136, 1.0
  %v2139 = vrcp.pop %v2137
  %v2140 = vmul.f32 1.0, %v2139
  %v2141 = vrcp.pop %v2138
  %v2142 = vmul.f32 1.0, %v2141
  %v2143 = vtanh.pop %v2111
  %v2144 = vtanh.pop %v2115
  %v2145 = vxor.u32 %v2112, 2147483648
  %v2146 = vxor.u32 %v2116, 2147483648
  %v2147 = vmul.f32 %v2145, 1.442695
  %v2148 = vpow.pop %v2147
  %v2149 = vmul.f32 %v2146, 1.442695
  %v2150 = vpow.pop %v2149
  %v2151 = vadd.f32 %v2148, 1.0
  %v2152 = vadd.f32 %v2150, 1.0
  %v2153 = vrcp.pop %v2151
  %v2154 = vmul.f32 1.0, %v2153
  %v2155 = vrcp.pop %v2152
  %v2156 = vmul.f32 1.0, %v2155
  %v2157 = vmul.f32 %v2140, %v2117
  %v2158 = vmul.f32 %v2142, %v2118
  %v2159 = vmul.f32 %v2128, %v2143
  %v2160 = vmul.f32 %v2130, %v2144
  %v2161 = vadd.f32 %v2157, %v2159
  %v2162 = vadd.f32 %v2158, %v2160
  %v2163 = vtanh.pop %v2161
  %v2164 = vtanh.pop %v2162
  %v2165 = vmul.f32 %v2154, %v2163
  %v2166 = vmul.f32 %v2156, %v2164
  %2167 = vst [vmem:[%s882] sm:$0xff] %v2165
  %2168 = vst [vmem:[%s882 + $0x8] sm:$0xff] %v2166
  %2169 = vst [vmem:[%s1099] sm:$0xff] %v2161
  %2170 = vst [vmem:[%s1099 + $0x8] sm:$0xff] %v2162
  %v2171 = vpack.c.bf16 %v2166, %v2165
  %v2173 = vunpack.c.l.b16 %v2171
  %v2174 = vunpack.c.h.b16 %v2171
  %v2175 = vpack.c.b16 %v2173, %v2173
  %v2176 = vpack.c.b16 %v2174, %v2174
  %s2179 = scalar_lea.vmem %s4, 16
  %2180 = vst [vmem:[%s2179] sm:$0xf] %v2175
  %2181 = vst [vmem:[%s2179 + $0x4] sm:$0xf] %v2176
  %s2182 = scalar_lea.vmem %s0, 96
  %v2183 = vld [vmem:[%s2182] sm:$0xff]
  %v2184 = vld [vmem:[%s2182 + $0x8] sm:$0xff]
  %v2185 = vld [vmem:[%s2182 + $0x10] sm:$0xff]
  %v2186 = vld [vmem:[%s2182 + $0x18] sm:$0xff]
  %v2187 = vunpack.c.l.bf16 %v2183
  %v2188 = vunpack.c.h.bf16 %v2183
  %v2189 = vunpack.c.l.bf16 %v2184
  %v2190 = vunpack.c.h.bf16 %v2184
  %v2191 = vunpack.c.l.bf16 %v2185
  %v2192 = vunpack.c.h.bf16 %v2185
  %v2193 = vunpack.c.l.bf16 %v2186
  %v2194 = vunpack.c.h.bf16 %v2186
  %v2195 = vld [vmem:[#allocation4] sm:$0xff]
  %v2196 = vld [vmem:[#allocation4 + $0x8] sm:$0xff]
  %v2197 = vpack.c.bf16 %v2196, %v2195
  %v2198 = vld [vmem:[#allocation2] sm:$0xff]
  %v2199 = vld [vmem:[#allocation2 + $0x8] sm:$0xff]
  %v2200 = vld [vmem:[#allocation2 + $0x10] sm:$0xff]
  %v2201 = vld [vmem:[#allocation2 + $0x18] sm:$0xff]
  %v2202 = vld [vmem:[#allocation2 + $0x20] sm:$0xff]
  %v2203 = vld [vmem:[#allocation2 + $0x28] sm:$0xff]
  %v2204 = vld [vmem:[#allocation2 + $0x30] sm:$0xff]
  %v2205 = vld [vmem:[#allocation2 + $0x38] sm:$0xff]
  %v2206 = vld [vmem:[#allocation2 + $0x40] sm:$0xff]
  %v2207 = vld [vmem:[#allocation2 + $0x48] sm:$0xff]
  %v2208 = vld [vmem:[#allocation2 + $0x50] sm:$0xff]
  %v2209 = vld [vmem:[#allocation2 + $0x58] sm:$0xff]
  %v2210 = vld [vmem:[#allocation2 + $0x60] sm:$0xff]
  %v2211 = vld [vmem:[#allocation2 + $0x68] sm:$0xff]
  %v2212 = vld [vmem:[#allocation2 + $0x70] sm:$0xff]
  %v2213 = vld [vmem:[#allocation2 + $0x78] sm:$0xff]
  %v2214 = vld [vmem:[#allocation2 + $0x80] sm:$0xff]
  %v2215 = vld [vmem:[#allocation2 + $0x88] sm:$0xff]
  %v2216 = vld [vmem:[#allocation2 + $0x90] sm:$0xff]
  %v2217 = vld [vmem:[#allocation2 + $0x98] sm:$0xff]
  %v2218 = vld [vmem:[#allocation2 + $0xa0] sm:$0xff]
  %v2219 = vld [vmem:[#allocation2 + $0xa8] sm:$0xff]
  %v2220 = vld [vmem:[#allocation2 + $0xb0] sm:$0xff]
  %v2221 = vld [vmem:[#allocation2 + $0xb8] sm:$0xff]
  %v2222 = vld [vmem:[#allocation2 + $0xc0] sm:$0xff]
  %v2223 = vld [vmem:[#allocation2 + $0xc8] sm:$0xff]
  %v2224 = vld [vmem:[#allocation2 + $0xd0] sm:$0xff]
  %v2225 = vld [vmem:[#allocation2 + $0xd8] sm:$0xff]
  %v2226 = vld [vmem:[#allocation2 + $0xe0] sm:$0xff]
  %v2227 = vld [vmem:[#allocation2 + $0xe8] sm:$0xff]
  %v2228 = vld [vmem:[#allocation2 + $0xf0] sm:$0xff]
  %v2229 = vld [vmem:[#allocation2 + $0xf8] sm:$0xff]
  %2230 = vmatprep.subr.bf16.mxu0 %v2199
  %2231 = vmatpush1.bf16.msra.mxu0 %v2198
  %2232 = vmatprep.subr.bf16.mxu0 %v2203
  %2233 = vmatpush1.bf16.msra.mxu0 %v2202
  %2234 = vmatprep.subr.bf16.mxu0 %v2207
  %2235 = vmatpush1.bf16.msra.mxu0 %v2206
  %2236 = vmatprep.subr.bf16.mxu0 %v2211
  %2237 = vmatpush1.bf16.msra.mxu0 %v2210
  %2238 = vmatprep.subr.bf16.mxu0 %v2215
  %2239 = vmatpush1.bf16.msra.mxu0 %v2214
  %2240 = vmatprep.subr.bf16.mxu0 %v2219
  %2241 = vmatpush1.bf16.msra.mxu0 %v2218
  %2242 = vmatprep.subr.bf16.mxu0 %v2223
  %2243 = vmatpush1.bf16.msra.mxu0 %v2222
  %2244 = vmatprep.subr.bf16.mxu0 %v2227
  %2245 = vmatpush1.bf16.msra.mxu0 %v2226
  %2246 = vmatprep.subr.bf16.mxu0 0
  %2247 = vmatpush1.bf16.msra.mxu0 0
  %2248 = vmatprep.subr.bf16.mxu0 0
  %2249 = vmatpush1.bf16.msra.mxu0 0
  %2250 = vmatprep.subr.bf16.mxu0 0
  %2251 = vmatpush1.bf16.msra.mxu0 0
  %2252 = vmatprep.subr.bf16.mxu0 0
  %2253 = vmatpush1.bf16.msra.mxu0 0
  %2254 = vmatprep.subr.bf16.mxu0 0
  %2255 = vmatpush1.bf16.msra.mxu0 0
  %2256 = vmatprep.subr.bf16.mxu0 0
  %2257 = vmatpush1.bf16.msra.mxu0 0
  %2258 = vmatprep.subr.bf16.mxu0 0
  %2259 = vmatpush1.bf16.msra.mxu0 0
  %2260 = vmatprep.subr.bf16.mxu0 0
  %2261 = vmatpush1.bf16.msra.mxu0 0
  %2262 = vmatprep.mubr.bf16.mxu0 0
  %2263 = vmatmul.mubr.bf16.gmra.mrb[0].mxu0 %v2197
  %v2264 = vpop.f32.mrb[0].mxu0
  %v2265 = vadd.f32 0.0, %v2264
  %v2266 = vpop.f32.mrb[0].mxu0
  %v2267 = vadd.f32 0.0, %v2266
  %v2268 = vpop.f32.mrb[0].mxu0
  %v2269 = vadd.f32 0.0, %v2268
  %v2270 = vpop.f32.mrb[0].mxu0
  %v2271 = vadd.f32 0.0, %v2270
  %2272 = vdwg.mxu0
  %2273 = vmatprep.subr.bf16.mxu0 %v2201
  %2274 = vmatpush1.bf16.msra.mxu0 %v2200
  %2275 = vmatprep.subr.bf16.mxu0 %v2205
  %2276 = vmatpush1.bf16.msra.mxu0 %v2204
  %2277 = vmatprep.subr.bf16.mxu0 %v2209
  %2278 = vmatpush1.bf16.msra.mxu0 %v2208
  %2279 = vmatprep.subr.bf16.mxu0 %v2213
  %2280 = vmatpush1.bf16.msra.mxu0 %v2212
  %2281 = vmatprep.subr.bf16.mxu0 %v2217
  %2282 = vmatpush1.bf16.msra.mxu0 %v2216
  %2283 = vmatprep.subr.bf16.mxu0 %v2221
  %2284 = vmatpush1.bf16.msra.mxu0 %v2220
  %2285 = vmatprep.subr.bf16.mxu0 %v2225
  %2286 = vmatpush1.bf16.msra.mxu0 %v2224
  %2287 = vmatprep.subr.bf16.mxu0 %v2229
  %2288 = vmatpush1.bf16.msra.mxu0 %v2228
  %2289 = vmatprep.subr.bf16.mxu0 0
  %2290 = vmatpush1.bf16.msra.mxu0 0
  %2291 = vmatprep.subr.bf16.mxu0 0
  %2292 = vmatpush1.bf16.msra.mxu0 0
  %2293 = vmatprep.subr.bf16.mxu0 0
  %2294 = vmatpush1.bf16.msra.mxu0 0
  %2295 = vmatprep.subr.bf16.mxu0 0
  %2296 = vmatpush1.bf16.msra.mxu0 0
  %2297 = vmatprep.subr.bf16.mxu0 0
  %2298 = vmatpush1.bf16.msra.mxu0 0
  %2299 = vmatprep.subr.bf16.mxu0 0
  %2300 = vmatpush1.bf16.msra.mxu0 0
  %2301 = vmatprep.subr.bf16.mxu0 0
  %2302 = vmatpush1.bf16.msra.mxu0 0
  %2303 = vmatprep.subr.bf16.mxu0 0
  %2304 = vmatpush1.bf16.msra.mxu0 0
  %2305 = vmatprep.mubr.bf16.mxu0 0
  %2306 = vmatmul.mubr.bf16.gmra.mrb[0].mxu0 %v2197
  %v2307 = vpop.f32.mrb[0].mxu0
  %v2308 = vadd.f32 0.0, %v2307
  %v2309 = vpop.f32.mrb[0].mxu0
  %v2310 = vadd.f32 0.0, %v2309
  %v2311 = vpop.f32.mrb[0].mxu0
  %v2312 = vadd.f32 0.0, %v2311
  %v2313 = vpop.f32.mrb[0].mxu0
  %v2314 = vadd.f32 0.0, %v2313
  %2315 = vdwg.mxu0
  %v2316 = vadd.f32 %v2187, %v2265
  %v2317 = vadd.f32 %v2188, %v2267
  %v2318 = vadd.f32 %v2189, %v2308
  %v2319 = vadd.f32 %v2190, %v2310
  %v2320 = vadd.f32 %v2191, %v2269
  %v2321 = vadd.f32 %v2192, %v2271
  %v2322 = vadd.f32 %v2193, %v2312
  %v2323 = vadd.f32 %v2194, %v2314
  %v2324 = vld [vmem:[#allocation5] sm:$0xff]
  %v2325 = vld [vmem:[#allocation5 + $0x8] sm:$0xff]
  %v2326 = vxor.u32 %v2316, 2147483648
  %v2327 = vxor.u32 %v2320, 2147483648
  %v2328 = vmul.f32 %v2326, 1.442695
  %v2329 = vpow.pop %v2328
  %v2330 = vmul.f32 %v2327, 1.442695
  %v2331 = vpow.pop %v2330
  %v2332 = vadd.f32 %v2329, 1.0
  %v2333 = vadd.f32 %v2331, 1.0
  %v2334 = vrcp.pop %v2332
  %v2335 = vmul.f32 1.0, %v2334
  %v2336 = vrcp.pop %v2333
  %v2337 = vmul.f32 1.0, %v2336
  %v2338 = vxor.u32 %v2317, 2147483648
  %v2339 = vxor.u32 %v2321, 2147483648
  %v2340 = vmul.f32 %v2338, 1.442695
  %v2341 = vpow.pop %v2340
  %v2342 = vmul.f32 %v2339, 1.442695
  %v2343 = vpow.pop %v2342
  %v2344 = vadd.f32 %v2341, 1.0
  %v2345 = vadd.f32 %v2343, 1.0
  %v2346 = vrcp.pop %v2344
  %v2347 = vmul.f32 1.0, %v2346
  %v2348 = vrcp.pop %v2345
  %v2349 = vmul.f32 1.0, %v2348
  %v2350 = vtanh.pop %v2318
  %v2351 = vtanh.pop %v2322
  %v2352 = vxor.u32 %v2319, 2147483648
  %v2353 = vxor.u32 %v2323, 2147483648
  %v2354 = vmul.f32 %v2352, 1.442695
  %v2355 = vpow.pop %v2354
  %v2356 = vmul.f32 %v2353, 1.442695
  %v2357 = vpow.pop %v2356
  %v2358 = vadd.f32 %v2355, 1.0
  %v2359 = vadd.f32 %v2357, 1.0
  %v2360 = vrcp.pop %v2358
  %v2361 = vmul.f32 1.0, %v2360
  %v2362 = vrcp.pop %v2359
  %v2363 = vmul.f32 1.0, %v2362
  %v2364 = vmul.f32 %v2347, %v2324
  %v2365 = vmul.f32 %v2349, %v2325
  %v2366 = vmul.f32 %v2335, %v2350
  %v2367 = vmul.f32 %v2337, %v2351
  %v2368 = vadd.f32 %v2364, %v2366
  %v2369 = vadd.f32 %v2365, %v2367
  %v2370 = vtanh.pop %v2368
  %v2371 = vtanh.pop %v2369
  %v2372 = vmul.f32 %v2361, %v2370
  %v2373 = vmul.f32 %v2363, %v2371
  %2374 = vst [vmem:[#allocation4] sm:$0xff] %v2372
  %2375 = vst [vmem:[#allocation4 + $0x8] sm:$0xff] %v2373
  %2376 = vst [vmem:[#allocation5] sm:$0xff] %v2368
  %2377 = vst [vmem:[#allocation5 + $0x8] sm:$0xff] %v2369
  %v2378 = vpack.c.bf16 %v2373, %v2372
  %v2379 = vld [vmem:[#allocation3] sm:$0xff]
  %v2380 = vld [vmem:[#allocation3 + $0x8] sm:$0xff]
  %v2381 = vld [vmem:[#allocation3 + $0x10] sm:$0xff]
  %v2382 = vld [vmem:[#allocation3 + $0x18] sm:$0xff]
  %v2383 = vld [vmem:[#allocation3 + $0x20] sm:$0xff]
  %v2384 = vld [vmem:[#allocation3 + $0x28] sm:$0xff]
  %v2385 = vld [vmem:[#allocation3 + $0x30] sm:$0xff]
  %v2386 = vld [vmem:[#allocation3 + $0x38] sm:$0xff]
  %v2387 = vld [vmem:[#allocation3 + $0x40] sm:$0xff]
  %v2388 = vld [vmem:[#allocation3 + $0x48] sm:$0xff]
  %v2389 = vld [vmem:[#allocation3 + $0x50] sm:$0xff]
  %v2390 = vld [vmem:[#allocation3 + $0x58] sm:$0xff]
  %v2391 = vld [vmem:[#allocation3 + $0x60] sm:$0xff]
  %v2392 = vld [vmem:[#allocation3 + $0x68] sm:$0xff]
  %v2393 = vld [vmem:[#allocation3 + $0x70] sm:$0xff]
  %v2394 = vld [vmem:[#allocation3 + $0x78] sm:$0xff]
  %v2395 = vld [vmem:[#allocation3 + $0x80] sm:$0xff]
  %v2396 = vld [vmem:[#allocation3 + $0x88] sm:$0xff]
  %v2397 = vld [vmem:[#allocation3 + $0x90] sm:$0xff]
  %v2398 = vld [vmem:[#allocation3 + $0x98] sm:$0xff]
  %v2399 = vld [vmem:[#allocation3 + $0xa0] sm:$0xff]
  %v2400 = vld [vmem:[#allocation3 + $0xa8] sm:$0xff]
  %v2401 = vld [vmem:[#allocation3 + $0xb0] sm:$0xff]
  %v2402 = vld [vmem:[#allocation3 + $0xb8] sm:$0xff]
  %v2403 = vld [vmem:[#allocation3 + $0xc0] sm:$0xff]
  %v2404 = vld [vmem:[#allocation3 + $0xc8] sm:$0xff]
  %v2405 = vld [vmem:[#allocation3 + $0xd0] sm:$0xff]
  %v2406 = vld [vmem:[#allocation3 + $0xd8] sm:$0xff]
  %v2407 = vld [vmem:[#allocation3 + $0xe0] sm:$0xff]
  %v2408 = vld [vmem:[#allocation3 + $0xe8] sm:$0xff]
  %v2409 = vld [vmem:[#allocation3 + $0xf0] sm:$0xff]
  %v2410 = vld [vmem:[#allocation3 + $0xf8] sm:$0xff]
  %v2411 = vld [vmem:[%s882] sm:$0xff]
  %v2412 = vld [vmem:[%s882 + $0x8] sm:$0xff]
  %v2413 = vpack.c.bf16 %v2412, %v2411
  %v2414 = vld [vmem:[%s886] sm:$0xff]
  %v2415 = vld [vmem:[%s886 + $0x8] sm:$0xff]
  %v2416 = vld [vmem:[%s886 + $0x10] sm:$0xff]
  %v2417 = vld [vmem:[%s886 + $0x18] sm:$0xff]
  %v2418 = vld [vmem:[%s886 + $0x20] sm:$0xff]
  %v2419 = vld [vmem:[%s886 + $0x28] sm:$0xff]
  %v2420 = vld [vmem:[%s886 + $0x30] sm:$0xff]
  %v2421 = vld [vmem:[%s886 + $0x38] sm:$0xff]
  %v2422 = vld [vmem:[%s886 + $0x40] sm:$0xff]
  %v2423 = vld [vmem:[%s886 + $0x48] sm:$0xff]
  %v2424 = vld [vmem:[%s886 + $0x50] sm:$0xff]
  %v2425 = vld [vmem:[%s886 + $0x58] sm:$0xff]
  %v2426 = vld [vmem:[%s886 + $0x60] sm:$0xff]
  %v2427 = vld [vmem:[%s886 + $0x68] sm:$0xff]
  %v2428 = vld [vmem:[%s886 + $0x70] sm:$0xff]
  %v2429 = vld [vmem:[%s886 + $0x78] sm:$0xff]
  %v2430 = vld [vmem:[%s886 + $0x80] sm:$0xff]
  %v2431 = vld [vmem:[%s886 + $0x88] sm:$0xff]
  %v2432 = vld [vmem:[%s886 + $0x90] sm:$0xff]
  %v2433 = vld [vmem:[%s886 + $0x98] sm:$0xff]
  %v2434 = vld [vmem:[%s886 + $0xa0] sm:$0xff]
  %v2435 = vld [vmem:[%s886 + $0xa8] sm:$0xff]
  %v2436 = vld [vmem:[%s886 + $0xb0] sm:$0xff]
  %v2437 = vld [vmem:[%s886 + $0xb8] sm:$0xff]
  %v2438 = vld [vmem:[%s886 + $0xc0] sm:$0xff]
  %v2439 = vld [vmem:[%s886 + $0xc8] sm:$0xff]
  %v2440 = vld [vmem:[%s886 + $0xd0] sm:$0xff]
  %v2441 = vld [vmem:[%s886 + $0xd8] sm:$0xff]
  %v2442 = vld [vmem:[%s886 + $0xe0] sm:$0xff]
  %v2443 = vld [vmem:[%s886 + $0xe8] sm:$0xff]
  %v2444 = vld [vmem:[%s886 + $0xf0] sm:$0xff]
  %v2445 = vld [vmem:[%s886 + $0xf8] sm:$0xff]
  %2446 = vmatprep.subr.bf16.mxu0 %v2415
  %2447 = vmatpush1.bf16.msra.mxu0 %v2414
  %2448 = vmatprep.subr.bf16.mxu0 %v2419
  %2449 = vmatpush1.bf16.msra.mxu0 %v2418
  %2450 = vmatprep.subr.bf16.mxu0 %v2423
  %2451 = vmatpush1.bf16.msra.mxu0 %v2422
  %2452 = vmatprep.subr.bf16.mxu0 %v2427
  %2453 = vmatpush1.bf16.msra.mxu0 %v2426
  %2454 = vmatprep.subr.bf16.mxu0 %v2431
  %2455 = vmatpush1.bf16.msra.mxu0 %v2430
  %2456 = vmatprep.subr.bf16.mxu0 %v2435
  %2457 = vmatpush1.bf16.msra.mxu0 %v2434
  %2458 = vmatprep.subr.bf16.mxu0 %v2439
  %2459 = vmatpush1.bf16.msra.mxu0 %v2438
  %2460 = vmatprep.subr.bf16.mxu0 %v2443
  %2461 = vmatpush1.bf16.msra.mxu0 %v2442
  %2462 = vmatprep.subr.bf16.mxu0 0
  %2463 = vmatpush1.bf16.msra.mxu0 0
  %2464 = vmatprep.subr.bf16.mxu0 0
  %2465 = vmatpush1.bf16.msra.mxu0 0
  %2466 = vmatprep.subr.bf16.mxu0 0
  %2467 = vmatpush1.bf16.msra.mxu0 0
  %2468 = vmatprep.subr.bf16.mxu0 0
  %2469 = vmatpush1.bf16.msra.mxu0 0
  %2470 = vmatprep.subr.bf16.mxu0 0
  %2471 = vmatpush1.bf16.msra.mxu0 0
  %2472 = vmatprep.subr.bf16.mxu0 0
  %2473 = vmatpush1.bf16.msra.mxu0 0
  %2474 = vmatprep.subr.bf16.mxu0 0
  %2475 = vmatpush1.bf16.msra.mxu0 0
  %2476 = vmatprep.subr.bf16.mxu0 0
  %2477 = vmatpush1.bf16.msra.mxu0 0
  %2478 = vmatprep.mubr.bf16.mxu0 0
  %2479 = vmatmul.mubr.bf16.gmra.mrb[0].mxu0 %v2413
  %v2480 = vpop.f32.mrb[0].mxu0
  %v2481 = vadd.f32 0.0, %v2480
  %v2482 = vpop.f32.mrb[0].mxu0
  %v2483 = vadd.f32 0.0, %v2482
  %v2484 = vpop.f32.mrb[0].mxu0
  %v2485 = vadd.f32 0.0, %v2484
  %v2486 = vpop.f32.mrb[0].mxu0
  %v2487 = vadd.f32 0.0, %v2486
  %2488 = vdwg.mxu0
  %2489 = vmatprep.subr.bf16.mxu0 %v2417
  %2490 = vmatpush1.bf16.msra.mxu0 %v2416
  %2491 = vmatprep.subr.bf16.mxu0 %v2421
  %2492 = vmatpush1.bf16.msra.mxu0 %v2420
  %2493 = vmatprep.subr.bf16.mxu0 %v2425
  %2494 = vmatpush1.bf16.msra.mxu0 %v2424
  %2495 = vmatprep.subr.bf16.mxu0 %v2429
  %2496 = vmatpush1.bf16.msra.mxu0 %v2428
  %2497 = vmatprep.subr.bf16.mxu0 %v2433
  %2498 = vmatpush1.bf16.msra.mxu0 %v2432
  %2499 = vmatprep.subr.bf16.mxu0 %v2437
  %2500 = vmatpush1.bf16.msra.mxu0 %v2436
  %2501 = vmatprep.subr.bf16.mxu0 %v2441
  %2502 = vmatpush1.bf16.msra.mxu0 %v2440
  %2503 = vmatprep.subr.bf16.mxu0 %v2445
  %2504 = vmatpush1.bf16.msra.mxu0 %v2444
  %2505 = vmatprep.subr.bf16.mxu0 0
  %2506 = vmatpush1.bf16.msra.mxu0 0
  %2507 = vmatprep.subr.bf16.mxu0 0
  %2508 = vmatpush1.bf16.msra.mxu0 0
  %2509 = vmatprep.subr.bf16.mxu0 0
  %2510 = vmatpush1.bf16.msra.mxu0 0
  %2511 = vmatprep.subr.bf16.mxu0 0
  %2512 = vmatpush1.bf16.msra.mxu0 0
  %2513 = vmatprep.subr.bf16.mxu0 0
  %2514 = vmatpush1.bf16.msra.mxu0 0
  %2515 = vmatprep.subr.bf16.mxu0 0
  %2516 = vmatpush1.bf16.msra.mxu0 0
  %2517 = vmatprep.subr.bf16.mxu0 0
  %2518 = vmatpush1.bf16.msra.mxu0 0
  %2519 = vmatprep.subr.bf16.mxu0 0
  %2520 = vmatpush1.bf16.msra.mxu0 0
  %2521 = vmatprep.mubr.bf16.mxu0 0
  %2522 = vmatmul.mubr.bf16.gmra.mrb[0].mxu0 %v2413
  %v2523 = vpop.f32.mrb[0].mxu0
  %v2524 = vadd.f32 0.0, %v2523
  %v2525 = vpop.f32.mrb[0].mxu0
  %v2526 = vadd.f32 0.0, %v2525
  %v2527 = vpop.f32.mrb[0].mxu0
  %v2528 = vadd.f32 0.0, %v2527
  %v2529 = vpop.f32.mrb[0].mxu0
  %v2530 = vadd.f32 0.0, %v2529
  %2531 = vdwg.mxu0
  %2532 = vmatprep.subr.bf16.mxu0 %v2380
  %2533 = vmatpush1.bf16.msra.mxu0 %v2379
  %2534 = vmatprep.subr.bf16.mxu0 %v2384
  %2535 = vmatpush1.bf16.msra.mxu0 %v2383
  %2536 = vmatprep.subr.bf16.mxu0 %v2388
  %2537 = vmatpush1.bf16.msra.mxu0 %v2387
  %2538 = vmatprep.subr.bf16.mxu0 %v2392
  %2539 = vmatpush1.bf16.msra.mxu0 %v2391
  %2540 = vmatprep.subr.bf16.mxu0 %v2396
  %2541 = vmatpush1.bf16.msra.mxu0 %v2395
  %2542 = vmatprep.subr.bf16.mxu0 %v2400
  %2543 = vmatpush1.bf16.msra.mxu0 %v2399
  %2544 = vmatprep.subr.bf16.mxu0 %v2404
  %2545 = vmatpush1.bf16.msra.mxu0 %v2403
  %2546 = vmatprep.subr.bf16.mxu0 %v2408
  %2547 = vmatpush1.bf16.msra.mxu0 %v2407
  %2548 = vmatprep.subr.bf16.mxu0 0
  %2549 = vmatpush1.bf16.msra.mxu0 0
  %2550 = vmatprep.subr.bf16.mxu0 0
  %2551 = vmatpush1.bf16.msra.mxu0 0
  %2552 = vmatprep.subr.bf16.mxu0 0
  %2553 = vmatpush1.bf16.msra.mxu0 0
  %2554 = vmatprep.subr.bf16.mxu0 0
  %2555 = vmatpush1.bf16.msra.mxu0 0
  %2556 = vmatprep.subr.bf16.mxu0 0
  %2557 = vmatpush1.bf16.msra.mxu0 0
  %2558 = vmatprep.subr.bf16.mxu0 0
  %2559 = vmatpush1.bf16.msra.mxu0 0
  %2560 = vmatprep.subr.bf16.mxu0 0
  %2561 = vmatpush1.bf16.msra.mxu0 0
  %2562 = vmatprep.subr.bf16.mxu0 0
  %2563 = vmatpush1.bf16.msra.mxu0 0
  %2564 = vmatprep.mubr.bf16.mxu0 0
  %2565 = vmatmul.mubr.bf16.gmra.mrb[0].mxu0 %v2378
  %v2566 = vpop.f32.mrb[0].mxu0
  %v2567 = vadd.f32 %v2481, %v2566
  %v2568 = vpop.f32.mrb[0].mxu0
  %v2569 = vadd.f32 %v2483, %v2568
  %v2570 = vpop.f32.mrb[0].mxu0
  %v2571 = vadd.f32 %v2485, %v2570
  %v2572 = vpop.f32.mrb[0].mxu0
  %v2573 = vadd.f32 %v2487, %v2572
  %2574 = vdwg.mxu0
  %2575 = vmatprep.subr.bf16.mxu0 %v2382
  %2576 = vmatpush1.bf16.msra.mxu0 %v2381
  %2577 = vmatprep.subr.bf16.mxu0 %v2386
  %2578 = vmatpush1.bf16.msra.mxu0 %v2385
  %2579 = vmatprep.subr.bf16.mxu0 %v2390
  %2580 = vmatpush1.bf16.msra.mxu0 %v2389
  %2581 = vmatprep.subr.bf16.mxu0 %v2394
  %2582 = vmatpush1.bf16.msra.mxu0 %v2393
  %2583 = vmatprep.subr.bf16.mxu0 %v2398
  %2584 = vmatpush1.bf16.msra.mxu0 %v2397
  %2585 = vmatprep.subr.bf16.mxu0 %v2402
  %2586 = vmatpush1.bf16.msra.mxu0 %v2401
  %2587 = vmatprep.subr.bf16.mxu0 %v2406
  %2588 = vmatpush1.bf16.msra.mxu0 %v2405
  %2589 = vmatprep.subr.bf16.mxu0 %v2410
  %2590 = vmatpush1.bf16.msra.mxu0 %v2409
  %2591 = vmatprep.subr.bf16.mxu0 0
  %2592 = vmatpush1.bf16.msra.mxu0 0
  %2593 = vmatprep.subr.bf16.mxu0 0
  %2594 = vmatpush1.bf16.msra.mxu0 0
  %2595 = vmatprep.subr.bf16.mxu0 0
  %2596 = vmatpush1.bf16.msra.mxu0 0
  %2597 = vmatprep.subr.bf16.mxu0 0
  %2598 = vmatpush1.bf16.msra.mxu0 0
  %2599 = vmatprep.subr.bf16.mxu0 0
  %2600 = vmatpush1.bf16.msra.mxu0 0
  %2601 = vmatprep.subr.bf16.mxu0 0
  %2602 = vmatpush1.bf16.msra.mxu0 0
  %2603 = vmatprep.subr.bf16.mxu0 0
  %2604 = vmatpush1.bf16.msra.mxu0 0
  %2605 = vmatprep.subr.bf16.mxu0 0
  %2606 = vmatpush1.bf16.msra.mxu0 0
  %2607 = vmatprep.mubr.bf16.mxu0 0
  %2608 = vmatmul.mubr.bf16.gmra.mrb[0].mxu0 %v2378
  %v2609 = vpop.f32.mrb[0].mxu0
  %v2610 = vadd.f32 %v2524, %v2609
  %v2611 = vpop.f32.mrb[0].mxu0
  %v2612 = vadd.f32 %v2526, %v2611
  %v2613 = vpop.f32.mrb[0].mxu0
  %v2614 = vadd.f32 %v2528, %v2613
  %v2615 = vpop.f32.mrb[0].mxu0
  %v2616 = vadd.f32 %v2530, %v2615
  %2617 = vdwg.mxu0
  %v2618 = vadd.f32 %v2567, %v637
  %v2619 = vadd.f32 %v2569, %v641
  %v2620 = vadd.f32 %v2610, %v645
  %v2621 = vadd.f32 %v2612, %v649
  %v2622 = vadd.f32 %v2571, %v637
  %v2623 = vadd.f32 %v2573, %v641
  %v2624 = vadd.f32 %v2614, %v645
  %v2625 = vadd.f32 %v2616, %v649
  %v2626 = vld [vmem:[%s1099] sm:$0xff]
  %v2627 = vld [vmem:[%s1099 + $0x8] sm:$0xff]
  %v2628 = vxor.u32 %v2618, 2147483648
  %v2629 = vxor.u32 %v2622, 2147483648
  %v2630 = vmul.f32 %v2628, 1.442695
  %v2631 = vpow.pop %v2630
  %v2632 = vmul.f32 %v2629, 1.442695
  %v2633 = vpow.pop %v2632
  %v2634 = vadd.f32 %v2631, 1.0
  %v2635 = vadd.f32 %v2633, 1.0
  %v2636 = vrcp.pop %v2634
  %v2637 = vmul.f32 1.0, %v2636
  %v2638 = vrcp.pop %v2635
  %v2639 = vmul.f32 1.0, %v2638
  %v2640 = vxor.u32 %v2619, 2147483648
  %v2641 = vxor.u32 %v2623, 2147483648
  %v2642 = vmul.f32 %v2640, 1.442695
  %v2643 = vpow.pop %v2642
  %v2644 = vmul.f32 %v2641, 1.442695
  %v2645 = vpow.pop %v2644
  %v2646 = vadd.f32 %v2643, 1.0
  %v2647 = vadd.f32 %v2645, 1.0
  %v2648 = vrcp.pop %v2646
  %v2649 = vmul.f32 1.0, %v2648
  %v2650 = vrcp.pop %v2647
  %v2651 = vmul.f32 1.0, %v2650
  %v2652 = vtanh.pop %v2620
  %v2653 = vtanh.pop %v2624
  %v2654 = vxor.u32 %v2621, 2147483648
  %v2655 = vxor.u32 %v2625, 2147483648
  %v2656 = vmul.f32 %v2654, 1.442695
  %v2657 = vpow.pop %v2656
  %v2658 = vmul.f32 %v2655, 1.442695
  %v2659 = vpow.pop %v2658
  %v2660 = vadd.f32 %v2657, 1.0
  %v2661 = vadd.f32 %v2659, 1.0
  %v2662 = vrcp.pop %v2660
  %v2663 = vmul.f32 1.0, %v2662
  %v2664 = vrcp.pop %v2661
  %v2665 = vmul.f32 1.0, %v2664
  %v2666 = vmul.f32 %v2649, %v2626
  %v2667 = vmul.f32 %v2651, %v2627
  %v2668 = vmul.f32 %v2637, %v2652
  %v2669 = vmul.f32 %v2639, %v2653
  %v2670 = vadd.f32 %v2666, %v2668
  %v2671 = vadd.f32 %v2667, %v2669
  %v2672 = vtanh.pop %v2670
  %v2673 = vtanh.pop %v2671
  %v2674 = vmul.f32 %v2663, %v2672
  %v2675 = vmul.f32 %v2665, %v2673
  %2676 = vst [vmem:[%s882] sm:$0xff] %v2674
  %2677 = vst [vmem:[%s882 + $0x8] sm:$0xff] %v2675
  %2678 = vst [vmem:[%s1099] sm:$0xff] %v2670
  %2679 = vst [vmem:[%s1099 + $0x8] sm:$0xff] %v2671
  %v2680 = vpack.c.bf16 %v2675, %v2674
  %v2682 = vunpack.c.l.b16 %v2680
  %v2683 = vunpack.c.h.b16 %v2680
  %v2684 = vpack.c.b16 %v2682, %v2682
  %v2685 = vpack.c.b16 %v2683, %v2683
  %s2688 = scalar_lea.vmem %s4, 24
  %2689 = vst [vmem:[%s2688] sm:$0xf] %v2684
  %2690 = vst [vmem:[%s2688 + $0x4] sm:$0xf] %v2685
  %s2691 = scalar_lea.vmem %s0, 128
  %v2692 = vld [vmem:[%s2691] sm:$0xff]
  %v2693 = vld [vmem:[%s2691 + $0x8] sm:$0xff]
  %v2694 = vld [vmem:[%s2691 + $0x10] sm:$0xff]
  %v2695 = vld [vmem:[%s2691 + $0x18] sm:$0xff]
  %v2696 = vunpack.c.l.bf16 %v2692
  %v2697 = vunpack.c.h.bf16 %v2692
  %v2698 = vunpack.c.l.bf16 %v2693
  %v2699 = vunpack.c.h.bf16 %v2693
  %v2700 = vunpack.c.l.bf16 %v2694
  %v2701 = vunpack.c.h.bf16 %v2694
  %v2702 = vunpack.c.l.bf16 %v2695
  %v2703 = vunpack.c.h.bf16 %v2695
  %v2704 = vld [vmem:[#allocation4] sm:$0xff]
  %v2705 = vld [vmem:[#allocation4 + $0x8] sm:$0xff]
  %v2706 = vpack.c.bf16 %v2705, %v2704
  %v2707 = vld [vmem:[#allocation2] sm:$0xff]
  %v2708 = vld [vmem:[#allocation2 + $0x8] sm:$0xff]
  %v2709 = vld [vmem:[#allocation2 + $0x10] sm:$0xff]
  %v2710 = vld [vmem:[#allocation2 + $0x18] sm:$0xff]
  %v2711 = vld [vmem:[#allocation2 + $0x20] sm:$0xff]
  %v2712 = vld [vmem:[#allocation2 + $0x28] sm:$0xff]
  %v2713 = vld [vmem:[#allocation2 + $0x30] sm:$0xff]
  %v2714 = vld [vmem:[#allocation2 + $0x38] sm:$0xff]
  %v2715 = vld [vmem:[#allocation2 + $0x40] sm:$0xff]
  %v2716 = vld [vmem:[#allocation2 + $0x48] sm:$0xff]
  %v2717 = vld [vmem:[#allocation2 + $0x50] sm:$0xff]
  %v2718 = vld [vmem:[#allocation2 + $0x58] sm:$0xff]
  %v2719 = vld [vmem:[#allocation2 + $0x60] sm:$0xff]
  %v2720 = vld [vmem:[#allocation2 + $0x68] sm:$0xff]
  %v2721 = vld [vmem:[#allocation2 + $0x70] sm:$0xff]
  %v2722 = vld [vmem:[#allocation2 + $0x78] sm:$0xff]
  %v2723 = vld [vmem:[#allocation2 + $0x80] sm:$0xff]
  %v2724 = vld [vmem:[#allocation2 + $0x88] sm:$0xff]
  %v2725 = vld [vmem:[#allocation2 + $0x90] sm:$0xff]
  %v2726 = vld [vmem:[#allocation2 + $0x98] sm:$0xff]
  %v2727 = vld [vmem:[#allocation2 + $0xa0] sm:$0xff]
  %v2728 = vld [vmem:[#allocation2 + $0xa8] sm:$0xff]
  %v2729 = vld [vmem:[#allocation2 + $0xb0] sm:$0xff]
  %v2730 = vld [vmem:[#allocation2 + $0xb8] sm:$0xff]
  %v2731 = vld [vmem:[#allocation2 + $0xc0] sm:$0xff]
  %v2732 = vld [vmem:[#allocation2 + $0xc8] sm:$0xff]
  %v2733 = vld [vmem:[#allocation2 + $0xd0] sm:$0xff]
  %v2734 = vld [vmem:[#allocation2 + $0xd8] sm:$0xff]
  %v2735 = vld [vmem:[#allocation2 + $0xe0] sm:$0xff]
  %v2736 = vld [vmem:[#allocation2 + $0xe8] sm:$0xff]
  %v2737 = vld [vmem:[#allocation2 + $0xf0] sm:$0xff]
  %v2738 = vld [vmem:[#allocation2 + $0xf8] sm:$0xff]
  %2739 = vmatprep.subr.bf16.mxu0 %v2708
  %2740 = vmatpush1.bf16.msra.mxu0 %v2707
  %2741 = vmatprep.subr.bf16.mxu0 %v2712
  %2742 = vmatpush1.bf16.msra.mxu0 %v2711
  %2743 = vmatprep.subr.bf16.mxu0 %v2716
  %2744 = vmatpush1.bf16.msra.mxu0 %v2715
  %2745 = vmatprep.subr.bf16.mxu0 %v2720
  %2746 = vmatpush1.bf16.msra.mxu0 %v2719
  %2747 = vmatprep.subr.bf16.mxu0 %v2724
  %2748 = vmatpush1.bf16.msra.mxu0 %v2723
  %2749 = vmatprep.subr.bf16.mxu0 %v2728
  %2750 = vmatpush1.bf16.msra.mxu0 %v2727
  %2751 = vmatprep.subr.bf16.mxu0 %v2732
  %2752 = vmatpush1.bf16.msra.mxu0 %v2731
  %2753 = vmatprep.subr.bf16.mxu0 %v2736
  %2754 = vmatpush1.bf16.msra.mxu0 %v2735
  %2755 = vmatprep.subr.bf16.mxu0 0
  %2756 = vmatpush1.bf16.msra.mxu0 0
  %2757 = vmatprep.subr.bf16.mxu0 0
  %2758 = vmatpush1.bf16.msra.mxu0 0
  %2759 = vmatprep.subr.bf16.mxu0 0
  %2760 = vmatpush1.bf16.msra.mxu0 0
  %2761 = vmatprep.subr.bf16.mxu0 0
  %2762 = vmatpush1.bf16.msra.mxu0 0
  %2763 = vmatprep.subr.bf16.mxu0 0
  %2764 = vmatpush1.bf16.msra.mxu0 0
  %2765 = vmatprep.subr.bf16.mxu0 0
  %2766 = vmatpush1.bf16.msra.mxu0 0
  %2767 = vmatprep.subr.bf16.mxu0 0
  %2768 = vmatpush1.bf16.msra.mxu0 0
  %2769 = vmatprep.subr.bf16.mxu0 0
  %2770 = vmatpush1.bf16.msra.mxu0 0
  %2771 = vmatprep.mubr.bf16.mxu0 0
  %2772 = vmatmul.mubr.bf16.gmra.mrb[0].mxu0 %v2706
  %v2773 = vpop.f32.mrb[0].mxu0
  %v2774 = vadd.f32 0.0, %v2773
  %v2775 = vpop.f32.mrb[0].mxu0
  %v2776 = vadd.f32 0.0, %v2775
  %v2777 = vpop.f32.mrb[0].mxu0
  %v2778 = vadd.f32 0.0, %v2777
  %v2779 = vpop.f32.mrb[0].mxu0
  %v2780 = vadd.f32 0.0, %v2779
  %2781 = vdwg.mxu0
  %2782 = vmatprep.subr.bf16.mxu0 %v2710
  %2783 = vmatpush1.bf16.msra.mxu0 %v2709
  %2784 = vmatprep.subr.bf16.mxu0 %v2714
  %2785 = vmatpush1.bf16.msra.mxu0 %v2713
  %2786 = vmatprep.subr.bf16.mxu0 %v2718
  %2787 = vmatpush1.bf16.msra.mxu0 %v2717
  %2788 = vmatprep.subr.bf16.mxu0 %v2722
  %2789 = vmatpush1.bf16.msra.mxu0 %v2721
  %2790 = vmatprep.subr.bf16.mxu0 %v2726
  %2791 = vmatpush1.bf16.msra.mxu0 %v2725
  %2792 = vmatprep.subr.bf16.mxu0 %v2730
  %2793 = vmatpush1.bf16.msra.mxu0 %v2729
  %2794 = vmatprep.subr.bf16.mxu0 %v2734
  %2795 = vmatpush1.bf16.msra.mxu0 %v2733
  %2796 = vmatprep.subr.bf16.mxu0 %v2738
  %2797 = vmatpush1.bf16.msra.mxu0 %v2737
  %2798 = vmatprep.subr.bf16.mxu0 0
  %2799 = vmatpush1.bf16.msra.mxu0 0
  %2800 = vmatprep.subr.bf16.mxu0 0
  %2801 = vmatpush1.bf16.msra.mxu0 0
  %2802 = vmatprep.subr.bf16.mxu0 0
  %2803 = vmatpush1.bf16.msra.mxu0 0
  %2804 = vmatprep.subr.bf16.mxu0 0
  %2805 = vmatpush1.bf16.msra.mxu0 0
  %2806 = vmatprep.subr.bf16.mxu0 0
  %2807 = vmatpush1.bf16.msra.mxu0 0
  %2808 = vmatprep.subr.bf16.mxu0 0
  %2809 = vmatpush1.bf16.msra.mxu0 0
  %2810 = vmatprep.subr.bf16.mxu0 0
  %2811 = vmatpush1.bf16.msra.mxu0 0
  %2812 = vmatprep.subr.bf16.mxu0 0
  %2813 = vmatpush1.bf16.msra.mxu0 0
  %2814 = vmatprep.mubr.bf16.mxu0 0
  %2815 = vmatmul.mubr.bf16.gmra.mrb[0].mxu0 %v2706
  %v2816 = vpop.f32.mrb[0].mxu0
  %v2817 = vadd.f32 0.0, %v2816
  %v2818 = vpop.f32.mrb[0].mxu0
  %v2819 = vadd.f32 0.0, %v2818
  %v2820 = vpop.f32.mrb[0].mxu0
  %v2821 = vadd.f32 0.0, %v2820
  %v2822 = vpop.f32.mrb[0].mxu0
  %v2823 = vadd.f32 0.0, %v2822
  %2824 = vdwg.mxu0
  %v2825 = vadd.f32 %v2696, %v2774
  %v2826 = vadd.f32 %v2697, %v2776
  %v2827 = vadd.f32 %v2698, %v2817
  %v2828 = vadd.f32 %v2699, %v2819
  %v2829 = vadd.f32 %v2700, %v2778
  %v2830 = vadd.f32 %v2701, %v2780
  %v2831 = vadd.f32 %v2702, %v2821
  %v2832 = vadd.f32 %v2703, %v2823
  %v2833 = vld [vmem:[#allocation5] sm:$0xff]
  %v2834 = vld [vmem:[#allocation5 + $0x8] sm:$0xff]
  %v2835 = vxor.u32 %v2825, 2147483648
  %v2836 = vxor.u32 %v2829, 2147483648
  %v2837 = vmul.f32 %v2835, 1.442695
  %v2838 = vpow.pop %v2837
  %v2839 = vmul.f32 %v2836, 1.442695
  %v2840 = vpow.pop %v2839
  %v2841 = vadd.f32 %v2838, 1.0
  %v2842 = vadd.f32 %v2840, 1.0
  %v2843 = vrcp.pop %v2841
  %v2844 = vmul.f32 1.0, %v2843
  %v2845 = vrcp.pop %v2842
  %v2846 = vmul.f32 1.0, %v2845
  %v2847 = vxor.u32 %v2826, 2147483648
  %v2848 = vxor.u32 %v2830, 2147483648
  %v2849 = vmul.f32 %v2847, 1.442695
  %v2850 = vpow.pop %v2849
  %v2851 = vmul.f32 %v2848, 1.442695
  %v2852 = vpow.pop %v2851
  %v2853 = vadd.f32 %v2850, 1.0
  %v2854 = vadd.f32 %v2852, 1.0
  %v2855 = vrcp.pop %v2853
  %v2856 = vmul.f32 1.0, %v2855
  %v2857 = vrcp.pop %v2854
  %v2858 = vmul.f32 1.0, %v2857
  %v2859 = vtanh.pop %v2827
  %v2860 = vtanh.pop %v2831
  %v2861 = vxor.u32 %v2828, 2147483648
  %v2862 = vxor.u32 %v2832, 2147483648
  %v2863 = vmul.f32 %v2861, 1.442695
  %v2864 = vpow.pop %v2863
  %v2865 = vmul.f32 %v2862, 1.442695
  %v2866 = vpow.pop %v2865
  %v2867 = vadd.f32 %v2864, 1.0
  %v2868 = vadd.f32 %v2866, 1.0
  %v2869 = vrcp.pop %v2867
  %v2870 = vmul.f32 1.0, %v2869
  %v2871 = vrcp.pop %v2868
  %v2872 = vmul.f32 1.0, %v2871
  %v2873 = vmul.f32 %v2856, %v2833
  %v2874 = vmul.f32 %v2858, %v2834
  %v2875 = vmul.f32 %v2844, %v2859
  %v2876 = vmul.f32 %v2846, %v2860
  %v2877 = vadd.f32 %v2873, %v2875
  %v2878 = vadd.f32 %v2874, %v2876
  %v2879 = vtanh.pop %v2877
  %v2880 = vtanh.pop %v2878
  %v2881 = vmul.f32 %v2870, %v2879
  %v2882 = vmul.f32 %v2872, %v2880
  %2883 = vst [vmem:[#allocation4] sm:$0xff] %v2881
  %2884 = vst [vmem:[#allocation4 + $0x8] sm:$0xff] %v2882
  %2885 = vst [vmem:[#allocation5] sm:$0xff] %v2877
  %2886 = vst [vmem:[#allocation5 + $0x8] sm:$0xff] %v2878
  %v2887 = vpack.c.bf16 %v2882, %v2881
  %v2888 = vld [vmem:[#allocation3] sm:$0xff]
  %v2889 = vld [vmem:[#allocation3 + $0x8] sm:$0xff]
  %v2890 = vld [vmem:[#allocation3 + $0x10] sm:$0xff]
  %v2891 = vld [vmem:[#allocation3 + $0x18] sm:$0xff]
  %v2892 = vld [vmem:[#allocation3 + $0x20] sm:$0xff]
  %v2893 = vld [vmem:[#allocation3 + $0x28] sm:$0xff]
  %v2894 = vld [vmem:[#allocation3 + $0x30] sm:$0xff]
  %v2895 = vld [vmem:[#allocation3 + $0x38] sm:$0xff]
  %v2896 = vld [vmem:[#allocation3 + $0x40] sm:$0xff]
  %v2897 = vld [vmem:[#allocation3 + $0x48] sm:$0xff]
  %v2898 = vld [vmem:[#allocation3 + $0x50] sm:$0xff]
  %v2899 = vld [vmem:[#allocation3 + $0x58] sm:$0xff]
  %v2900 = vld [vmem:[#allocation3 + $0x60] sm:$0xff]
  %v2901 = vld [vmem:[#allocation3 + $0x68] sm:$0xff]
  %v2902 = vld [vmem:[#allocation3 + $0x70] sm:$0xff]
  %v2903 = vld [vmem:[#allocation3 + $0x78] sm:$0xff]
  %v2904 = vld [vmem:[#allocation3 + $0x80] sm:$0xff]
  %v2905 = vld [vmem:[#allocation3 + $0x88] sm:$0xff]
  %v2906 = vld [vmem:[#allocation3 + $0x90] sm:$0xff]
  %v2907 = vld [vmem:[#allocation3 + $0x98] sm:$0xff]
  %v2908 = vld [vmem:[#allocation3 + $0xa0] sm:$0xff]
  %v2909 = vld [vmem:[#allocation3 + $0xa8] sm:$0xff]
  %v2910 = vld [vmem:[#allocation3 + $0xb0] sm:$0xff]
  %v2911 = vld [vmem:[#allocation3 + $0xb8] sm:$0xff]
  %v2912 = vld [vmem:[#allocation3 + $0xc0] sm:$0xff]
  %v2913 = vld [vmem:[#allocation3 + $0xc8] sm:$0xff]
  %v2914 = vld [vmem:[#allocation3 + $0xd0] sm:$0xff]
  %v2915 = vld [vmem:[#allocation3 + $0xd8] sm:$0xff]
  %v2916 = vld [vmem:[#allocation3 + $0xe0] sm:$0xff]
  %v2917 = vld [vmem:[#allocation3 + $0xe8] sm:$0xff]
  %v2918 = vld [vmem:[#allocation3 + $0xf0] sm:$0xff]
  %v2919 = vld [vmem:[#allocation3 + $0xf8] sm:$0xff]
  %v2920 = vld [vmem:[%s882] sm:$0xff]
  %v2921 = vld [vmem:[%s882 + $0x8] sm:$0xff]
  %v2922 = vpack.c.bf16 %v2921, %v2920
  %v2923 = vld [vmem:[%s886] sm:$0xff]
  %v2924 = vld [vmem:[%s886 + $0x8] sm:$0xff]
  %v2925 = vld [vmem:[%s886 + $0x10] sm:$0xff]
  %v2926 = vld [vmem:[%s886 + $0x18] sm:$0xff]
  %v2927 = vld [vmem:[%s886 + $0x20] sm:$0xff]
  %v2928 = vld [vmem:[%s886 + $0x28] sm:$0xff]
  %v2929 = vld [vmem:[%s886 + $0x30] sm:$0xff]
  %v2930 = vld [vmem:[%s886 + $0x38] sm:$0xff]
  %v2931 = vld [vmem:[%s886 + $0x40] sm:$0xff]
  %v2932 = vld [vmem:[%s886 + $0x48] sm:$0xff]
  %v2933 = vld [vmem:[%s886 + $0x50] sm:$0xff]
  %v2934 = vld [vmem:[%s886 + $0x58] sm:$0xff]
  %v2935 = vld [vmem:[%s886 + $0x60] sm:$0xff]
  %v2936 = vld [vmem:[%s886 + $0x68] sm:$0xff]
  %v2937 = vld [vmem:[%s886 + $0x70] sm:$0xff]
  %v2938 = vld [vmem:[%s886 + $0x78] sm:$0xff]
  %v2939 = vld [vmem:[%s886 + $0x80] sm:$0xff]
  %v2940 = vld [vmem:[%s886 + $0x88] sm:$0xff]
  %v2941 = vld [vmem:[%s886 + $0x90] sm:$0xff]
  %v2942 = vld [vmem:[%s886 + $0x98] sm:$0xff]
  %v2943 = vld [vmem:[%s886 + $0xa0] sm:$0xff]
  %v2944 = vld [vmem:[%s886 + $0xa8] sm:$0xff]
  %v2945 = vld [vmem:[%s886 + $0xb0] sm:$0xff]
  %v2946 = vld [vmem:[%s886 + $0xb8] sm:$0xff]
  %v2947 = vld [vmem:[%s886 + $0xc0] sm:$0xff]
  %v2948 = vld [vmem:[%s886 + $0xc8] sm:$0xff]
  %v2949 = vld [vmem:[%s886 + $0xd0] sm:$0xff]
  %v2950 = vld [vmem:[%s886 + $0xd8] sm:$0xff]
  %v2951 = vld [vmem:[%s886 + $0xe0] sm:$0xff]
  %v2952 = vld [vmem:[%s886 + $0xe8] sm:$0xff]
  %v2953 = vld [vmem:[%s886 + $0xf0] sm:$0xff]
  %v2954 = vld [vmem:[%s886 + $0xf8] sm:$0xff]
  %2955 = vmatprep.subr.bf16.mxu0 %v2924
  %2956 = vmatpush1.bf16.msra.mxu0 %v2923
  %2957 = vmatprep.subr.bf16.mxu0 %v2928
  %2958 = vmatpush1.bf16.msra.mxu0 %v2927
  %2959 = vmatprep.subr.bf16.mxu0 %v2932
  %2960 = vmatpush1.bf16.msra.mxu0 %v2931
  %2961 = vmatprep.subr.bf16.mxu0 %v2936
  %2962 = vmatpush1.bf16.msra.mxu0 %v2935
  %2963 = vmatprep.subr.bf16.mxu0 %v2940
  %2964 = vmatpush1.bf16.msra.mxu0 %v2939
  %2965 = vmatprep.subr.bf16.mxu0 %v2944
  %2966 = vmatpush1.bf16.msra.mxu0 %v2943
  %2967 = vmatprep.subr.bf16.mxu0 %v2948
  %2968 = vmatpush1.bf16.msra.mxu0 %v2947
  %2969 = vmatprep.subr.bf16.mxu0 %v2952
  %2970 = vmatpush1.bf16.msra.mxu0 %v2951
  %2971 = vmatprep.subr.bf16.mxu0 0
  %2972 = vmatpush1.bf16.msra.mxu0 0
  %2973 = vmatprep.subr.bf16.mxu0 0
  %2974 = vmatpush1.bf16.msra.mxu0 0
  %2975 = vmatprep.subr.bf16.mxu0 0
  %2976 = vmatpush1.bf16.msra.mxu0 0
  %2977 = vmatprep.subr.bf16.mxu0 0
  %2978 = vmatpush1.bf16.msra.mxu0 0
  %2979 = vmatprep.subr.bf16.mxu0 0
  %2980 = vmatpush1.bf16.msra.mxu0 0
  %2981 = vmatprep.subr.bf16.mxu0 0
  %2982 = vmatpush1.bf16.msra.mxu0 0
  %2983 = vmatprep.subr.bf16.mxu0 0
  %2984 = vmatpush1.bf16.msra.mxu0 0
  %2985 = vmatprep.subr.bf16.mxu0 0
  %2986 = vmatpush1.bf16.msra.mxu0 0
  %2987 = vmatprep.mubr.bf16.mxu0 0
  %2988 = vmatmul.mubr.bf16.gmra.mrb[0].mxu0 %v2922
  %v2989 = vpop.f32.mrb[0].mxu0
  %v2990 = vadd.f32 0.0, %v2989
  %v2991 = vpop.f32.mrb[0].mxu0
  %v2992 = vadd.f32 0.0, %v2991
  %v2993 = vpop.f32.mrb[0].mxu0
  %v2994 = vadd.f32 0.0, %v2993
  %v2995 = vpop.f32.mrb[0].mxu0
  %v2996 = vadd.f32 0.0, %v2995
  %2997 = vdwg.mxu0
  %2998 = vmatprep.subr.bf16.mxu0 %v2926
  %2999 = vmatpush1.bf16.msra.mxu0 %v2925
  %3000 = vmatprep.subr.bf16.mxu0 %v2930
  %3001 = vmatpush1.bf16.msra.mxu0 %v2929
  %3002 = vmatprep.subr.bf16.mxu0 %v2934
  %3003 = vmatpush1.bf16.msra.mxu0 %v2933
  %3004 = vmatprep.subr.bf16.mxu0 %v2938
  %3005 = vmatpush1.bf16.msra.mxu0 %v2937
  %3006 = vmatprep.subr.bf16.mxu0 %v2942
  %3007 = vmatpush1.bf16.msra.mxu0 %v2941
  %3008 = vmatprep.subr.bf16.mxu0 %v2946
  %3009 = vmatpush1.bf16.msra.mxu0 %v2945
  %3010 = vmatprep.subr.bf16.mxu0 %v2950
  %3011 = vmatpush1.bf16.msra.mxu0 %v2949
  %3012 = vmatprep.subr.bf16.mxu0 %v2954
  %3013 = vmatpush1.bf16.msra.mxu0 %v2953
  %3014 = vmatprep.subr.bf16.mxu0 0
  %3015 = vmatpush1.bf16.msra.mxu0 0
  %3016 = vmatprep.subr.bf16.mxu0 0
  %3017 = vmatpush1.bf16.msra.mxu0 0
  %3018 = vmatprep.subr.bf16.mxu0 0
  %3019 = vmatpush1.bf16.msra.mxu0 0
  %3020 = vmatprep.subr.bf16.mxu0 0
  %3021 = vmatpush1.bf16.msra.mxu0 0
  %3022 = vmatprep.subr.bf16.mxu0 0
  %3023 = vmatpush1.bf16.msra.mxu0 0
  %3024 = vmatprep.subr.bf16.mxu0 0
  %3025 = vmatpush1.bf16.msra.mxu0 0
  %3026 = vmatprep.subr.bf16.mxu0 0
  %3027 = vmatpush1.bf16.msra.mxu0 0
  %3028 = vmatprep.subr.bf16.mxu0 0
  %3029 = vmatpush1.bf16.msra.mxu0 0
  %3030 = vmatprep.mubr.bf16.mxu0 0
  %3031 = vmatmul.mubr.bf16.gmra.mrb[0].mxu0 %v2922
  %v3032 = vpop.f32.mrb[0].mxu0
  %v3033 = vadd.f32 0.0, %v3032
  %v3034 = vpop.f32.mrb[0].mxu0
  %v3035 = vadd.f32 0.0, %v3034
  %v3036 = vpop.f32.mrb[0].mxu0
  %v3037 = vadd.f32 0.0, %v3036
  %v3038 = vpop.f32.mrb[0].mxu0
  %v3039 = vadd.f32 0.0, %v3038
  %3040 = vdwg.mxu0
  %3041 = vmatprep.subr.bf16.mxu0 %v2889
  %3042 = vmatpush1.bf16.msra.mxu0 %v2888
  %3043 = vmatprep.subr.bf16.mxu0 %v2893
  %3044 = vmatpush1.bf16.msra.mxu0 %v2892
  %3045 = vmatprep.subr.bf16.mxu0 %v2897
  %3046 = vmatpush1.bf16.msra.mxu0 %v2896
  %3047 = vmatprep.subr.bf16.mxu0 %v2901
  %3048 = vmatpush1.bf16.msra.mxu0 %v2900
  %3049 = vmatprep.subr.bf16.mxu0 %v2905
  %3050 = vmatpush1.bf16.msra.mxu0 %v2904
  %3051 = vmatprep.subr.bf16.mxu0 %v2909
  %3052 = vmatpush1.bf16.msra.mxu0 %v2908
  %3053 = vmatprep.subr.bf16.mxu0 %v2913
  %3054 = vmatpush1.bf16.msra.mxu0 %v2912
  %3055 = vmatprep.subr.bf16.mxu0 %v2917
  %3056 = vmatpush1.bf16.msra.mxu0 %v2916
  %3057 = vmatprep.subr.bf16.mxu0 0
  %3058 = vmatpush1.bf16.msra.mxu0 0
  %3059 = vmatprep.subr.bf16.mxu0 0
  %3060 = vmatpush1.bf16.msra.mxu0 0
  %3061 = vmatprep.subr.bf16.mxu0 0
  %3062 = vmatpush1.bf16.msra.mxu0 0
  %3063 = vmatprep.subr.bf16.mxu0 0
  %3064 = vmatpush1.bf16.msra.mxu0 0
  %3065 = vmatprep.subr.bf16.mxu0 0
  %3066 = vmatpush1.bf16.msra.mxu0 0
  %3067 = vmatprep.subr.bf16.mxu0 0
  %3068 = vmatpush1.bf16.msra.mxu0 0
  %3069 = vmatprep.subr.bf16.mxu0 0
  %3070 = vmatpush1.bf16.msra.mxu0 0
  %3071 = vmatprep.subr.bf16.mxu0 0
  %3072 = vmatpush1.bf16.msra.mxu0 0
  %3073 = vmatprep.mubr.bf16.mxu0 0
  %3074 = vmatmul.mubr.bf16.gmra.mrb[0].mxu0 %v2887
  %v3075 = vpop.f32.mrb[0].mxu0
  %v3076 = vadd.f32 %v2990, %v3075
  %v3077 = vpop.f32.mrb[0].mxu0
  %v3078 = vadd.f32 %v2992, %v3077
  %v3079 = vpop.f32.mrb[0].mxu0
  %v3080 = vadd.f32 %v2994, %v3079
  %v3081 = vpop.f32.mrb[0].mxu0
  %v3082 = vadd.f32 %v2996, %v3081
  %3083 = vdwg.mxu0
  %3084 = vmatprep.subr.bf16.mxu0 %v2891
  %3085 = vmatpush1.bf16.msra.mxu0 %v2890
  %3086 = vmatprep.subr.bf16.mxu0 %v2895
  %3087 = vmatpush1.bf16.msra.mxu0 %v2894
  %3088 = vmatprep.subr.bf16.mxu0 %v2899
  %3089 = vmatpush1.bf16.msra.mxu0 %v2898
  %3090 = vmatprep.subr.bf16.mxu0 %v2903
  %3091 = vmatpush1.bf16.msra.mxu0 %v2902
  %3092 = vmatprep.subr.bf16.mxu0 %v2907
  %3093 = vmatpush1.bf16.msra.mxu0 %v2906
  %3094 = vmatprep.subr.bf16.mxu0 %v2911
  %3095 = vmatpush1.bf16.msra.mxu0 %v2910
  %3096 = vmatprep.subr.bf16.mxu0 %v2915
  %3097 = vmatpush1.bf16.msra.mxu0 %v2914
  %3098 = vmatprep.subr.bf16.mxu0 %v2919
  %3099 = vmatpush1.bf16.msra.mxu0 %v2918
  %3100 = vmatprep.subr.bf16.mxu0 0
  %3101 = vmatpush1.bf16.msra.mxu0 0
  %3102 = vmatprep.subr.bf16.mxu0 0
  %3103 = vmatpush1.bf16.msra.mxu0 0
  %3104 = vmatprep.subr.bf16.mxu0 0
  %3105 = vmatpush1.bf16.msra.mxu0 0
  %3106 = vmatprep.subr.bf16.mxu0 0
  %3107 = vmatpush1.bf16.msra.mxu0 0
  %3108 = vmatprep.subr.bf16.mxu0 0
  %3109 = vmatpush1.bf16.msra.mxu0 0
  %3110 = vmatprep.subr.bf16.mxu0 0
  %3111 = vmatpush1.bf16.msra.mxu0 0
  %3112 = vmatprep.subr.bf16.mxu0 0
  %3113 = vmatpush1.bf16.msra.mxu0 0
  %3114 = vmatprep.subr.bf16.mxu0 0
  %3115 = vmatpush1.bf16.msra.mxu0 0
  %3116 = vmatprep.mubr.bf16.mxu0 0
  %3117 = vmatmul.mubr.bf16.gmra.mrb[0].mxu0 %v2887
  %v3118 = vpop.f32.mrb[0].mxu0
  %v3119 = vadd.f32 %v3033, %v3118
  %v3120 = vpop.f32.mrb[0].mxu0
  %v3121 = vadd.f32 %v3035, %v3120
  %v3122 = vpop.f32.mrb[0].mxu0
  %v3123 = vadd.f32 %v3037, %v3122
  %v3124 = vpop.f32.mrb[0].mxu0
  %v3125 = vadd.f32 %v3039, %v3124
  %3126 = vdwg.mxu0
  %v3127 = vadd.f32 %v3076, %v637
  %v3128 = vadd.f32 %v3078, %v641
  %v3129 = vadd.f32 %v3119, %v645
  %v3130 = vadd.f32 %v3121, %v649
  %v3131 = vadd.f32 %v3080, %v637
  %v3132 = vadd.f32 %v3082, %v641
  %v3133 = vadd.f32 %v3123, %v645
  %v3134 = vadd.f32 %v3125, %v649
  %v3135 = vld [vmem:[%s1099] sm:$0xff]
  %v3136 = vld [vmem:[%s1099 + $0x8] sm:$0xff]
  %v3137 = vxor.u32 %v3127, 2147483648
  %v3138 = vxor.u32 %v3131, 2147483648
  %v3139 = vmul.f32 %v3137, 1.442695
  %v3140 = vpow.pop %v3139
  %v3141 = vmul.f32 %v3138, 1.442695
  %v3142 = vpow.pop %v3141
  %v3143 = vadd.f32 %v3140, 1.0
  %v3144 = vadd.f32 %v3142, 1.0
  %v3145 = vrcp.pop %v3143
  %v3146 = vmul.f32 1.0, %v3145
  %v3147 = vrcp.pop %v3144
  %v3148 = vmul.f32 1.0, %v3147
  %v3149 = vxor.u32 %v3128, 2147483648
  %v3150 = vxor.u32 %v3132, 2147483648
  %v3151 = vmul.f32 %v3149, 1.442695
  %v3152 = vpow.pop %v3151
  %v3153 = vmul.f32 %v3150, 1.442695
  %v3154 = vpow.pop %v3153
  %v3155 = vadd.f32 %v3152, 1.0
  %v3156 = vadd.f32 %v3154, 1.0
  %v3157 = vrcp.pop %v3155
  %v3158 = vmul.f32 1.0, %v3157
  %v3159 = vrcp.pop %v3156
  %v3160 = vmul.f32 1.0, %v3159
  %v3161 = vtanh.pop %v3129
  %v3162 = vtanh.pop %v3133
  %v3163 = vxor.u32 %v3130, 2147483648
  %v3164 = vxor.u32 %v3134, 2147483648
  %v3165 = vmul.f32 %v3163, 1.442695
  %v3166 = vpow.pop %v3165
  %v3167 = vmul.f32 %v3164, 1.442695
  %v3168 = vpow.pop %v3167
  %v3169 = vadd.f32 %v3166, 1.0
  %v3170 = vadd.f32 %v3168, 1.0
  %v3171 = vrcp.pop %v3169
  %v3172 = vmul.f32 1.0, %v3171
  %v3173 = vrcp.pop %v3170
  %v3174 = vmul.f32 1.0, %v3173
  %v3175 = vmul.f32 %v3158, %v3135
  %v3176 = vmul.f32 %v3160, %v3136
  %v3177 = vmul.f32 %v3146, %v3161
  %v3178 = vmul.f32 %v3148, %v3162
  %v3179 = vadd.f32 %v3175, %v3177
  %v3180 = vadd.f32 %v3176, %v3178
  %v3181 = vtanh.pop %v3179
  %v3182 = vtanh.pop %v3180
  %v3183 = vmul.f32 %v3172, %v3181
  %v3184 = vmul.f32 %v3174, %v3182
  %3185 = vst [vmem:[%s882] sm:$0xff] %v3183
  %3186 = vst [vmem:[%s882 + $0x8] sm:$0xff] %v3184
  %3187 = vst [vmem:[%s1099] sm:$0xff] %v3179
  %3188 = vst [vmem:[%s1099 + $0x8] sm:$0xff] %v3180
  %v3189 = vpack.c.bf16 %v3184, %v3183
  %v3191 = vunpack.c.l.b16 %v3189
  %v3192 = vunpack.c.h.b16 %v3189
  %v3193 = vpack.c.b16 %v3191, %v3191
  %v3194 = vpack.c.b16 %v3192, %v3192
  %s3197 = scalar_lea.vmem %s4, 32
  %3198 = vst [vmem:[%s3197] sm:$0xf] %v3193
  %3199 = vst [vmem:[%s3197 + $0x4] sm:$0xf] %v3194
  %s3200 = scalar_lea.vmem %s0, 160
  %v3201 = vld [vmem:[%s3200] sm:$0xff]
  %v3202 = vld [vmem:[%s3200 + $0x8] sm:$0xff]
  %v3203 = vld [vmem:[%s3200 + $0x10] sm:$0xff]
  %v3204 = vld [vmem:[%s3200 + $0x18] sm:$0xff]
  %v3205 = vunpack.c.l.bf16 %v3201
  %v3206 = vunpack.c.h.bf16 %v3201
  %v3207 = vunpack.c.l.bf16 %v3202
  %v3208 = vunpack.c.h.bf16 %v3202
  %v3209 = vunpack.c.l.bf16 %v3203
  %v3210 = vunpack.c.h.bf16 %v3203
  %v3211 = vunpack.c.l.bf16 %v3204
  %v3212 = vunpack.c.h.bf16 %v3204
  %v3213 = vld [vmem:[#allocation4] sm:$0xff]
  %v3214 = vld [vmem:[#allocation4 + $0x8] sm:$0xff]
  %v3215 = vpack.c.bf16 %v3214, %v3213
  %v3216 = vld [vmem:[#allocation2] sm:$0xff]
  %v3217 = vld [vmem:[#allocation2 + $0x8] sm:$0xff]
  %v3218 = vld [vmem:[#allocation2 + $0x10] sm:$0xff]
  %v3219 = vld [vmem:[#allocation2 + $0x18] sm:$0xff]
  %v3220 = vld [vmem:[#allocation2 + $0x20] sm:$0xff]
  %v3221 = vld [vmem:[#allocation2 + $0x28] sm:$0xff]
  %v3222 = vld [vmem:[#allocation2 + $0x30] sm:$0xff]
  %v3223 = vld [vmem:[#allocation2 + $0x38] sm:$0xff]
  %v3224 = vld [vmem:[#allocation2 + $0x40] sm:$0xff]
  %v3225 = vld [vmem:[#allocation2 + $0x48] sm:$0xff]
  %v3226 = vld [vmem:[#allocation2 + $0x50] sm:$0xff]
  %v3227 = vld [vmem:[#allocation2 + $0x58] sm:$0xff]
  %v3228 = vld [vmem:[#allocation2 + $0x60] sm:$0xff]
  %v3229 = vld [vmem:[#allocation2 + $0x68] sm:$0xff]
  %v3230 = vld [vmem:[#allocation2 + $0x70] sm:$0xff]
  %v3231 = vld [vmem:[#allocation2 + $0x78] sm:$0xff]
  %v3232 = vld [vmem:[#allocation2 + $0x80] sm:$0xff]
  %v3233 = vld [vmem:[#allocation2 + $0x88] sm:$0xff]
  %v3234 = vld [vmem:[#allocation2 + $0x90] sm:$0xff]
  %v3235 = vld [vmem:[#allocation2 + $0x98] sm:$0xff]
  %v3236 = vld [vmem:[#allocation2 + $0xa0] sm:$0xff]
  %v3237 = vld [vmem:[#allocation2 + $0xa8] sm:$0xff]
  %v3238 = vld [vmem:[#allocation2 + $0xb0] sm:$0xff]
  %v3239 = vld [vmem:[#allocation2 + $0xb8] sm:$0xff]
  %v3240 = vld [vmem:[#allocation2 + $0xc0] sm:$0xff]
  %v3241 = vld [vmem:[#allocation2 + $0xc8] sm:$0xff]
  %v3242 = vld [vmem:[#allocation2 + $0xd0] sm:$0xff]
  %v3243 = vld [vmem:[#allocation2 + $0xd8] sm:$0xff]
  %v3244 = vld [vmem:[#allocation2 + $0xe0] sm:$0xff]
  %v3245 = vld [vmem:[#allocation2 + $0xe8] sm:$0xff]
  %v3246 = vld [vmem:[#allocation2 + $0xf0] sm:$0xff]
  %v3247 = vld [vmem:[#allocation2 + $0xf8] sm:$0xff]
  %3248 = vmatprep.subr.bf16.mxu0 %v3217
  %3249 = vmatpush1.bf16.msra.mxu0 %v3216
  %3250 = vmatprep.subr.bf16.mxu0 %v3221
  %3251 = vmatpush1.bf16.msra.mxu0 %v3220
  %3252 = vmatprep.subr.bf16.mxu0 %v3225
  %3253 = vmatpush1.bf16.msra.mxu0 %v3224
  %3254 = vmatprep.subr.bf16.mxu0 %v3229
  %3255 = vmatpush1.bf16.msra.mxu0 %v3228
  %3256 = vmatprep.subr.bf16.mxu0 %v3233
  %3257 = vmatpush1.bf16.msra.mxu0 %v3232
  %3258 = vmatprep.subr.bf16.mxu0 %v3237
  %3259 = vmatpush1.bf16.msra.mxu0 %v3236
  %3260 = vmatprep.subr.bf16.mxu0 %v3241
  %3261 = vmatpush1.bf16.msra.mxu0 %v3240
  %3262 = vmatprep.subr.bf16.mxu0 %v3245
  %3263 = vmatpush1.bf16.msra.mxu0 %v3244
  %3264 = vmatprep.subr.bf16.mxu0 0
  %3265 = vmatpush1.bf16.msra.mxu0 0
  %3266 = vmatprep.subr.bf16.mxu0 0
  %3267 = vmatpush1.bf16.msra.mxu0 0
  %3268 = vmatprep.subr.bf16.mxu0 0
  %3269 = vmatpush1.bf16.msra.mxu0 0
  %3270 = vmatprep.subr.bf16.mxu0 0
  %3271 = vmatpush1.bf16.msra.mxu0 0
  %3272 = vmatprep.subr.bf16.mxu0 0
  %3273 = vmatpush1.bf16.msra.mxu0 0
  %3274 = vmatprep.subr.bf16.mxu0 0
  %3275 = vmatpush1.bf16.msra.mxu0 0
  %3276 = vmatprep.subr.bf16.mxu0 0
  %3277 = vmatpush1.bf16.msra.mxu0 0
  %3278 = vmatprep.subr.bf16.mxu0 0
  %3279 = vmatpush1.bf16.msra.mxu0 0
  %3280 = vmatprep.mubr.bf16.mxu0 0
  %3281 = vmatmul.mubr.bf16.gmra.mrb[0].mxu0 %v3215
  %v3282 = vpop.f32.mrb[0].mxu0
  %v3283 = vadd.f32 0.0, %v3282
  %v3284 = vpop.f32.mrb[0].mxu0
  %v3285 = vadd.f32 0.0, %v3284
  %v3286 = vpop.f32.mrb[0].mxu0
  %v3287 = vadd.f32 0.0, %v3286
  %v3288 = vpop.f32.mrb[0].mxu0
  %v3289 = vadd.f32 0.0, %v3288
  %3290 = vdwg.mxu0
  %3291 = vmatprep.subr.bf16.mxu0 %v3219
  %3292 = vmatpush1.bf16.msra.mxu0 %v3218
  %3293 = vmatprep.subr.bf16.mxu0 %v3223
  %3294 = vmatpush1.bf16.msra.mxu0 %v3222
  %3295 = vmatprep.subr.bf16.mxu0 %v3227
  %3296 = vmatpush1.bf16.msra.mxu0 %v3226
  %3297 = vmatprep.subr.bf16.mxu0 %v3231
  %3298 = vmatpush1.bf16.msra.mxu0 %v3230
  %3299 = vmatprep.subr.bf16.mxu0 %v3235
  %3300 = vmatpush1.bf16.msra.mxu0 %v3234
  %3301 = vmatprep.subr.bf16.mxu0 %v3239
  %3302 = vmatpush1.bf16.msra.mxu0 %v3238
  %3303 = vmatprep.subr.bf16.mxu0 %v3243
  %3304 = vmatpush1.bf16.msra.mxu0 %v3242
  %3305 = vmatprep.subr.bf16.mxu0 %v3247
  %3306 = vmatpush1.bf16.msra.mxu0 %v3246
  %3307 = vmatprep.subr.bf16.mxu0 0
  %3308 = vmatpush1.bf16.msra.mxu0 0
  %3309 = vmatprep.subr.bf16.mxu0 0
  %3310 = vmatpush1.bf16.msra.mxu0 0
  %3311 = vmatprep.subr.bf16.mxu0 0
  %3312 = vmatpush1.bf16.msra.mxu0 0
  %3313 = vmatprep.subr.bf16.mxu0 0
  %3314 = vmatpush1.bf16.msra.mxu0 0
  %3315 = vmatprep.subr.bf16.mxu0 0
  %3316 = vmatpush1.bf16.msra.mxu0 0
  %3317 = vmatprep.subr.bf16.mxu0 0
  %3318 = vmatpush1.bf16.msra.mxu0 0
  %3319 = vmatprep.subr.bf16.mxu0 0
  %3320 = vmatpush1.bf16.msra.mxu0 0
  %3321 = vmatprep.subr.bf16.mxu0 0
  %3322 = vmatpush1.bf16.msra.mxu0 0
  %3323 = vmatprep.mubr.bf16.mxu0 0
  %3324 = vmatmul.mubr.bf16.gmra.mrb[0].mxu0 %v3215
  %v3325 = vpop.f32.mrb[0].mxu0
  %v3326 = vadd.f32 0.0, %v3325
  %v3327 = vpop.f32.mrb[0].mxu0
  %v3328 = vadd.f32 0.0, %v3327
  %v3329 = vpop.f32.mrb[0].mxu0
  %v3330 = vadd.f32 0.0, %v3329
  %v3331 = vpop.f32.mrb[0].mxu0
  %v3332 = vadd.f32 0.0, %v3331
  %3333 = vdwg.mxu0
  %v3334 = vadd.f32 %v3205, %v3283
  %v3335 = vadd.f32 %v3206, %v3285
  %v3336 = vadd.f32 %v3207, %v3326
  %v3337 = vadd.f32 %v3208, %v3328
  %v3338 = vadd.f32 %v3209, %v3287
  %v3339 = vadd.f32 %v3210, %v3289
  %v3340 = vadd.f32 %v3211, %v3330
  %v3341 = vadd.f32 %v3212, %v3332
  %v3342 = vld [vmem:[#allocation5] sm:$0xff]
  %v3343 = vld [vmem:[#allocation5 + $0x8] sm:$0xff]
  %v3344 = vxor.u32 %v3334, 2147483648
  %v3345 = vxor.u32 %v3338, 2147483648
  %v3346 = vmul.f32 %v3344, 1.442695
  %v3347 = vpow.pop %v3346
  %v3348 = vmul.f32 %v3345, 1.442695
  %v3349 = vpow.pop %v3348
  %v3350 = vadd.f32 %v3347, 1.0
  %v3351 = vadd.f32 %v3349, 1.0
  %v3352 = vrcp.pop %v3350
  %v3353 = vmul.f32 1.0, %v3352
  %v3354 = vrcp.pop %v3351
  %v3355 = vmul.f32 1.0, %v3354
  %v3356 = vxor.u32 %v3335, 2147483648
  %v3357 = vxor.u32 %v3339, 2147483648
  %v3358 = vmul.f32 %v3356, 1.442695
  %v3359 = vpow.pop %v3358
  %v3360 = vmul.f32 %v3357, 1.442695
  %v3361 = vpow.pop %v3360
  %v3362 = vadd.f32 %v3359, 1.0
  %v3363 = vadd.f32 %v3361, 1.0
  %v3364 = vrcp.pop %v3362
  %v3365 = vmul.f32 1.0, %v3364
  %v3366 = vrcp.pop %v3363
  %v3367 = vmul.f32 1.0, %v3366
  %v3368 = vtanh.pop %v3336
  %v3369 = vtanh.pop %v3340
  %v3370 = vxor.u32 %v3337, 2147483648
  %v3371 = vxor.u32 %v3341, 2147483648
  %v3372 = vmul.f32 %v3370, 1.442695
  %v3373 = vpow.pop %v3372
  %v3374 = vmul.f32 %v3371, 1.442695
  %v3375 = vpow.pop %v3374
  %v3376 = vadd.f32 %v3373, 1.0
  %v3377 = vadd.f32 %v3375, 1.0
  %v3378 = vrcp.pop %v3376
  %v3379 = vmul.f32 1.0, %v3378
  %v3380 = vrcp.pop %v3377
  %v3381 = vmul.f32 1.0, %v3380
  %v3382 = vmul.f32 %v3365, %v3342
  %v3383 = vmul.f32 %v3367, %v3343
  %v3384 = vmul.f32 %v3353, %v3368
  %v3385 = vmul.f32 %v3355, %v3369
  %v3386 = vadd.f32 %v3382, %v3384
  %v3387 = vadd.f32 %v3383, %v3385
  %v3388 = vtanh.pop %v3386
  %v3389 = vtanh.pop %v3387
  %v3390 = vmul.f32 %v3379, %v3388
  %v3391 = vmul.f32 %v3381, %v3389
  %3392 = vst [vmem:[#allocation4] sm:$0xff] %v3390
  %3393 = vst [vmem:[#allocation4 + $0x8] sm:$0xff] %v3391
  %3394 = vst [vmem:[#allocation5] sm:$0xff] %v3386
  %3395 = vst [vmem:[#allocation5 + $0x8] sm:$0xff] %v3387
  %v3396 = vpack.c.bf16 %v3391, %v3390
  %v3397 = vld [vmem:[#allocation3] sm:$0xff]
  %v3398 = vld [vmem:[#allocation3 + $0x8] sm:$0xff]
  %v3399 = vld [vmem:[#allocation3 + $0x10] sm:$0xff]
  %v3400 = vld [vmem:[#allocation3 + $0x18] sm:$0xff]
  %v3401 = vld [vmem:[#allocation3 + $0x20] sm:$0xff]
  %v3402 = vld [vmem:[#allocation3 + $0x28] sm:$0xff]
  %v3403 = vld [vmem:[#allocation3 + $0x30] sm:$0xff]
  %v3404 = vld [vmem:[#allocation3 + $0x38] sm:$0xff]
  %v3405 = vld [vmem:[#allocation3 + $0x40] sm:$0xff]
  %v3406 = vld [vmem:[#allocation3 + $0x48] sm:$0xff]
  %v3407 = vld [vmem:[#allocation3 + $0x50] sm:$0xff]
  %v3408 = vld [vmem:[#allocation3 + $0x58] sm:$0xff]
  %v3409 = vld [vmem:[#allocation3 + $0x60] sm:$0xff]
  %v3410 = vld [vmem:[#allocation3 + $0x68] sm:$0xff]
  %v3411 = vld [vmem:[#allocation3 + $0x70] sm:$0xff]
  %v3412 = vld [vmem:[#allocation3 + $0x78] sm:$0xff]
  %v3413 = vld [vmem:[#allocation3 + $0x80] sm:$0xff]
  %v3414 = vld [vmem:[#allocation3 + $0x88] sm:$0xff]
  %v3415 = vld [vmem:[#allocation3 + $0x90] sm:$0xff]
  %v3416 = vld [vmem:[#allocation3 + $0x98] sm:$0xff]
  %v3417 = vld [vmem:[#allocation3 + $0xa0] sm:$0xff]
  %v3418 = vld [vmem:[#allocation3 + $0xa8] sm:$0xff]
  %v3419 = vld [vmem:[#allocation3 + $0xb0] sm:$0xff]
  %v3420 = vld [vmem:[#allocation3 + $0xb8] sm:$0xff]
  %v3421 = vld [vmem:[#allocation3 + $0xc0] sm:$0xff]
  %v3422 = vld [vmem:[#allocation3 + $0xc8] sm:$0xff]
  %v3423 = vld [vmem:[#allocation3 + $0xd0] sm:$0xff]
  %v3424 = vld [vmem:[#allocation3 + $0xd8] sm:$0xff]
  %v3425 = vld [vmem:[#allocation3 + $0xe0] sm:$0xff]
  %v3426 = vld [vmem:[#allocation3 + $0xe8] sm:$0xff]
  %v3427 = vld [vmem:[#allocation3 + $0xf0] sm:$0xff]
  %v3428 = vld [vmem:[#allocation3 + $0xf8] sm:$0xff]
  %v3429 = vld [vmem:[%s882] sm:$0xff]
  %v3430 = vld [vmem:[%s882 + $0x8] sm:$0xff]
  %v3431 = vpack.c.bf16 %v3430, %v3429
  %v3432 = vld [vmem:[%s886] sm:$0xff]
  %v3433 = vld [vmem:[%s886 + $0x8] sm:$0xff]
  %v3434 = vld [vmem:[%s886 + $0x10] sm:$0xff]
  %v3435 = vld [vmem:[%s886 + $0x18] sm:$0xff]
  %v3436 = vld [vmem:[%s886 + $0x20] sm:$0xff]
  %v3437 = vld [vmem:[%s886 + $0x28] sm:$0xff]
  %v3438 = vld [vmem:[%s886 + $0x30] sm:$0xff]
  %v3439 = vld [vmem:[%s886 + $0x38] sm:$0xff]
  %v3440 = vld [vmem:[%s886 + $0x40] sm:$0xff]
  %v3441 = vld [vmem:[%s886 + $0x48] sm:$0xff]
  %v3442 = vld [vmem:[%s886 + $0x50] sm:$0xff]
  %v3443 = vld [vmem:[%s886 + $0x58] sm:$0xff]
  %v3444 = vld [vmem:[%s886 + $0x60] sm:$0xff]
  %v3445 = vld [vmem:[%s886 + $0x68] sm:$0xff]
  %v3446 = vld [vmem:[%s886 + $0x70] sm:$0xff]
  %v3447 = vld [vmem:[%s886 + $0x78] sm:$0xff]
  %v3448 = vld [vmem:[%s886 + $0x80] sm:$0xff]
  %v3449 = vld [vmem:[%s886 + $0x88] sm:$0xff]
  %v3450 = vld [vmem:[%s886 + $0x90] sm:$0xff]
  %v3451 = vld [vmem:[%s886 + $0x98] sm:$0xff]
  %v3452 = vld [vmem:[%s886 + $0xa0] sm:$0xff]
  %v3453 = vld [vmem:[%s886 + $0xa8] sm:$0xff]
  %v3454 = vld [vmem:[%s886 + $0xb0] sm:$0xff]
  %v3455 = vld [vmem:[%s886 + $0xb8] sm:$0xff]
  %v3456 = vld [vmem:[%s886 + $0xc0] sm:$0xff]
  %v3457 = vld [vmem:[%s886 + $0xc8] sm:$0xff]
  %v3458 = vld [vmem:[%s886 + $0xd0] sm:$0xff]
  %v3459 = vld [vmem:[%s886 + $0xd8] sm:$0xff]
  %v3460 = vld [vmem:[%s886 + $0xe0] sm:$0xff]
  %v3461 = vld [vmem:[%s886 + $0xe8] sm:$0xff]
  %v3462 = vld [vmem:[%s886 + $0xf0] sm:$0xff]
  %v3463 = vld [vmem:[%s886 + $0xf8] sm:$0xff]
  %3464 = vmatprep.subr.bf16.mxu0 %v3433
  %3465 = vmatpush1.bf16.msra.mxu0 %v3432
  %3466 = vmatprep.subr.bf16.mxu0 %v3437
  %3467 = vmatpush1.bf16.msra.mxu0 %v3436
  %3468 = vmatprep.subr.bf16.mxu0 %v3441
  %3469 = vmatpush1.bf16.msra.mxu0 %v3440
  %3470 = vmatprep.subr.bf16.mxu0 %v3445
  %3471 = vmatpush1.bf16.msra.mxu0 %v3444
  %3472 = vmatprep.subr.bf16.mxu0 %v3449
  %3473 = vmatpush1.bf16.msra.mxu0 %v3448
  %3474 = vmatprep.subr.bf16.mxu0 %v3453
  %3475 = vmatpush1.bf16.msra.mxu0 %v3452
  %3476 = vmatprep.subr.bf16.mxu0 %v3457
  %3477 = vmatpush1.bf16.msra.mxu0 %v3456
  %3478 = vmatprep.subr.bf16.mxu0 %v3461
  %3479 = vmatpush1.bf16.msra.mxu0 %v3460
  %3480 = vmatprep.subr.bf16.mxu0 0
  %3481 = vmatpush1.bf16.msra.mxu0 0
  %3482 = vmatprep.subr.bf16.mxu0 0
  %3483 = vmatpush1.bf16.msra.mxu0 0
  %3484 = vmatprep.subr.bf16.mxu0 0
  %3485 = vmatpush1.bf16.msra.mxu0 0
  %3486 = vmatprep.subr.bf16.mxu0 0
  %3487 = vmatpush1.bf16.msra.mxu0 0
  %3488 = vmatprep.subr.bf16.mxu0 0
  %3489 = vmatpush1.bf16.msra.mxu0 0
  %3490 = vmatprep.subr.bf16.mxu0 0
  %3491 = vmatpush1.bf16.msra.mxu0 0
  %3492 = vmatprep.subr.bf16.mxu0 0
  %3493 = vmatpush1.bf16.msra.mxu0 0
  %3494 = vmatprep.subr.bf16.mxu0 0
  %3495 = vmatpush1.bf16.msra.mxu0 0
  %3496 = vmatprep.mubr.bf16.mxu0 0
  %3497 = vmatmul.mubr.bf16.gmra.mrb[0].mxu0 %v3431
  %v3498 = vpop.f32.mrb[0].mxu0
  %v3499 = vadd.f32 0.0, %v3498
  %v3500 = vpop.f32.mrb[0].mxu0
  %v3501 = vadd.f32 0.0, %v3500
  %v3502 = vpop.f32.mrb[0].mxu0
  %v3503 = vadd.f32 0.0, %v3502
  %v3504 = vpop.f32.mrb[0].mxu0
  %v3505 = vadd.f32 0.0, %v3504
  %3506 = vdwg.mxu0
  %3507 = vmatprep.subr.bf16.mxu0 %v3435
  %3508 = vmatpush1.bf16.msra.mxu0 %v3434
  %3509 = vmatprep.subr.bf16.mxu0 %v3439
  %3510 = vmatpush1.bf16.msra.mxu0 %v3438
  %3511 = vmatprep.subr.bf16.mxu0 %v3443
  %3512 = vmatpush1.bf16.msra.mxu0 %v3442
  %3513 = vmatprep.subr.bf16.mxu0 %v3447
  %3514 = vmatpush1.bf16.msra.mxu0 %v3446
  %3515 = vmatprep.subr.bf16.mxu0 %v3451
  %3516 = vmatpush1.bf16.msra.mxu0 %v3450
  %3517 = vmatprep.subr.bf16.mxu0 %v3455
  %3518 = vmatpush1.bf16.msra.mxu0 %v3454
  %3519 = vmatprep.subr.bf16.mxu0 %v3459
  %3520 = vmatpush1.bf16.msra.mxu0 %v3458
  %3521 = vmatprep.subr.bf16.mxu0 %v3463
  %3522 = vmatpush1.bf16.msra.mxu0 %v3462
  %3523 = vmatprep.subr.bf16.mxu0 0
  %3524 = vmatpush1.bf16.msra.mxu0 0
  %3525 = vmatprep.subr.bf16.mxu0 0
  %3526 = vmatpush1.bf16.msra.mxu0 0
  %3527 = vmatprep.subr.bf16.mxu0 0
  %3528 = vmatpush1.bf16.msra.mxu0 0
  %3529 = vmatprep.subr.bf16.mxu0 0
  %3530 = vmatpush1.bf16.msra.mxu0 0
  %3531 = vmatprep.subr.bf16.mxu0 0
  %3532 = vmatpush1.bf16.msra.mxu0 0
  %3533 = vmatprep.subr.bf16.mxu0 0
  %3534 = vmatpush1.bf16.msra.mxu0 0
  %3535 = vmatprep.subr.bf16.mxu0 0
  %3536 = vmatpush1.bf16.msra.mxu0 0
  %3537 = vmatprep.subr.bf16.mxu0 0
  %3538 = vmatpush1.bf16.msra.mxu0 0
  %3539 = vmatprep.mubr.bf16.mxu0 0
  %3540 = vmatmul.mubr.bf16.gmra.mrb[0].mxu0 %v3431
  %v3541 = vpop.f32.mrb[0].mxu0
  %v3542 = vadd.f32 0.0, %v3541
  %v3543 = vpop.f32.mrb[0].mxu0
  %v3544 = vadd.f32 0.0, %v3543
  %v3545 = vpop.f32.mrb[0].mxu0
  %v3546 = vadd.f32 0.0, %v3545
  %v3547 = vpop.f32.mrb[0].mxu0
  %v3548 = vadd.f32 0.0, %v3547
  %3549 = vdwg.mxu0
  %3550 = vmatprep.subr.bf16.mxu0 %v3398
  %3551 = vmatpush1.bf16.msra.mxu0 %v3397
  %3552 = vmatprep.subr.bf16.mxu0 %v3402
  %3553 = vmatpush1.bf16.msra.mxu0 %v3401
  %3554 = vmatprep.subr.bf16.mxu0 %v3406
  %3555 = vmatpush1.bf16.msra.mxu0 %v3405
  %3556 = vmatprep.subr.bf16.mxu0 %v3410
  %3557 = vmatpush1.bf16.msra.mxu0 %v3409
  %3558 = vmatprep.subr.bf16.mxu0 %v3414
  %3559 = vmatpush1.bf16.msra.mxu0 %v3413
  %3560 = vmatprep.subr.bf16.mxu0 %v3418
  %3561 = vmatpush1.bf16.msra.mxu0 %v3417
  %3562 = vmatprep.subr.bf16.mxu0 %v3422
  %3563 = vmatpush1.bf16.msra.mxu0 %v3421
  %3564 = vmatprep.subr.bf16.mxu0 %v3426
  %3565 = vmatpush1.bf16.msra.mxu0 %v3425
  %3566 = vmatprep.subr.bf16.mxu0 0
  %3567 = vmatpush1.bf16.msra.mxu0 0
  %3568 = vmatprep.subr.bf16.mxu0 0
  %3569 = vmatpush1.bf16.msra.mxu0 0
  %3570 = vmatprep.subr.bf16.mxu0 0
  %3571 = vmatpush1.bf16.msra.mxu0 0
  %3572 = vmatprep.subr.bf16.mxu0 0
  %3573 = vmatpush1.bf16.msra.mxu0 0
  %3574 = vmatprep.subr.bf16.mxu0 0
  %3575 = vmatpush1.bf16.msra.mxu0 0
  %3576 = vmatprep.subr.bf16.mxu0 0
  %3577 = vmatpush1.bf16.msra.mxu0 0
  %3578 = vmatprep.subr.bf16.mxu0 0
  %3579 = vmatpush1.bf16.msra.mxu0 0
  %3580 = vmatprep.subr.bf16.mxu0 0
  %3581 = vmatpush1.bf16.msra.mxu0 0
  %3582 = vmatprep.mubr.bf16.mxu0 0
  %3583 = vmatmul.mubr.bf16.gmra.mrb[0].mxu0 %v3396
  %v3584 = vpop.f32.mrb[0].mxu0
  %v3585 = vadd.f32 %v3499, %v3584
  %v3586 = vpop.f32.mrb[0].mxu0
  %v3587 = vadd.f32 %v3501, %v3586
  %v3588 = vpop.f32.mrb[0].mxu0
  %v3589 = vadd.f32 %v3503, %v3588
  %v3590 = vpop.f32.mrb[0].mxu0
  %v3591 = vadd.f32 %v3505, %v3590
  %3592 = vdwg.mxu0
  %3593 = vmatprep.subr.bf16.mxu0 %v3400
  %3594 = vmatpush1.bf16.msra.mxu0 %v3399
  %3595 = vmatprep.subr.bf16.mxu0 %v3404
  %3596 = vmatpush1.bf16.msra.mxu0 %v3403
  %3597 = vmatprep.subr.bf16.mxu0 %v3408
  %3598 = vmatpush1.bf16.msra.mxu0 %v3407
  %3599 = vmatprep.subr.bf16.mxu0 %v3412
  %3600 = vmatpush1.bf16.msra.mxu0 %v3411
  %3601 = vmatprep.subr.bf16.mxu0 %v3416
  %3602 = vmatpush1.bf16.msra.mxu0 %v3415
  %3603 = vmatprep.subr.bf16.mxu0 %v3420
  %3604 = vmatpush1.bf16.msra.mxu0 %v3419
  %3605 = vmatprep.subr.bf16.mxu0 %v3424
  %3606 = vmatpush1.bf16.msra.mxu0 %v3423
  %3607 = vmatprep.subr.bf16.mxu0 %v3428
  %3608 = vmatpush1.bf16.msra.mxu0 %v3427
  %3609 = vmatprep.subr.bf16.mxu0 0
  %3610 = vmatpush1.bf16.msra.mxu0 0
  %3611 = vmatprep.subr.bf16.mxu0 0
  %3612 = vmatpush1.bf16.msra.mxu0 0
  %3613 = vmatprep.subr.bf16.mxu0 0
  %3614 = vmatpush1.bf16.msra.mxu0 0
  %3615 = vmatprep.subr.bf16.mxu0 0
  %3616 = vmatpush1.bf16.msra.mxu0 0
  %3617 = vmatprep.subr.bf16.mxu0 0
  %3618 = vmatpush1.bf16.msra.mxu0 0
  %3619 = vmatprep.subr.bf16.mxu0 0
  %3620 = vmatpush1.bf16.msra.mxu0 0
  %3621 = vmatprep.subr.bf16.mxu0 0
  %3622 = vmatpush1.bf16.msra.mxu0 0
  %3623 = vmatprep.subr.bf16.mxu0 0
  %3624 = vmatpush1.bf16.msra.mxu0 0
  %3625 = vmatprep.mubr.bf16.mxu0 0
  %3626 = vmatmul.mubr.bf16.gmra.mrb[0].mxu0 %v3396
  %v3627 = vpop.f32.mrb[0].mxu0
  %v3628 = vadd.f32 %v3542, %v3627
  %v3629 = vpop.f32.mrb[0].mxu0
  %v3630 = vadd.f32 %v3544, %v3629
  %v3631 = vpop.f32.mrb[0].mxu0
  %v3632 = vadd.f32 %v3546, %v3631
  %v3633 = vpop.f32.mrb[0].mxu0
  %v3634 = vadd.f32 %v3548, %v3633
  %3635 = vdwg.mxu0
  %v3636 = vadd.f32 %v3585, %v637
  %v3637 = vadd.f32 %v3587, %v641
  %v3638 = vadd.f32 %v3628, %v645
  %v3639 = vadd.f32 %v3630, %v649
  %v3640 = vadd.f32 %v3589, %v637
  %v3641 = vadd.f32 %v3591, %v641
  %v3642 = vadd.f32 %v3632, %v645
  %v3643 = vadd.f32 %v3634, %v649
  %v3644 = vld [vmem:[%s1099] sm:$0xff]
  %v3645 = vld [vmem:[%s1099 + $0x8] sm:$0xff]
  %v3646 = vxor.u32 %v3636, 2147483648
  %v3647 = vxor.u32 %v3640, 2147483648
  %v3648 = vmul.f32 %v3646, 1.442695
  %v3649 = vpow.pop %v3648
  %v3650 = vmul.f32 %v3647, 1.442695
  %v3651 = vpow.pop %v3650
  %v3652 = vadd.f32 %v3649, 1.0
  %v3653 = vadd.f32 %v3651, 1.0
  %v3654 = vrcp.pop %v3652
  %v3655 = vmul.f32 1.0, %v3654
  %v3656 = vrcp.pop %v3653
  %v3657 = vmul.f32 1.0, %v3656
  %v3658 = vxor.u32 %v3637, 2147483648
  %v3659 = vxor.u32 %v3641, 2147483648
  %v3660 = vmul.f32 %v3658, 1.442695
  %v3661 = vpow.pop %v3660
  %v3662 = vmul.f32 %v3659, 1.442695
  %v3663 = vpow.pop %v3662
  %v3664 = vadd.f32 %v3661, 1.0
  %v3665 = vadd.f32 %v3663, 1.0
  %v3666 = vrcp.pop %v3664
  %v3667 = vmul.f32 1.0, %v3666
  %v3668 = vrcp.pop %v3665
  %v3669 = vmul.f32 1.0, %v3668
  %v3670 = vtanh.pop %v3638
  %v3671 = vtanh.pop %v3642
  %v3672 = vxor.u32 %v3639, 2147483648
  %v3673 = vxor.u32 %v3643, 2147483648
  %v3674 = vmul.f32 %v3672, 1.442695
  %v3675 = vpow.pop %v3674
  %v3676 = vmul.f32 %v3673, 1.442695
  %v3677 = vpow.pop %v3676
  %v3678 = vadd.f32 %v3675, 1.0
  %v3679 = vadd.f32 %v3677, 1.0
  %v3680 = vrcp.pop %v3678
  %v3681 = vmul.f32 1.0, %v3680
  %v3682 = vrcp.pop %v3679
  %v3683 = vmul.f32 1.0, %v3682
  %v3684 = vmul.f32 %v3667, %v3644
  %v3685 = vmul.f32 %v3669, %v3645
  %v3686 = vmul.f32 %v3655, %v3670
  %v3687 = vmul.f32 %v3657, %v3671
  %v3688 = vadd.f32 %v3684, %v3686
  %v3689 = vadd.f32 %v3685, %v3687
  %v3690 = vtanh.pop %v3688
  %v3691 = vtanh.pop %v3689
  %v3692 = vmul.f32 %v3681, %v3690
  %v3693 = vmul.f32 %v3683, %v3691
  %3694 = vst [vmem:[%s882] sm:$0xff] %v3692
  %3695 = vst [vmem:[%s882 + $0x8] sm:$0xff] %v3693
  %3696 = vst [vmem:[%s1099] sm:$0xff] %v3688
  %3697 = vst [vmem:[%s1099 + $0x8] sm:$0xff] %v3689
  %v3698 = vpack.c.bf16 %v3693, %v3692
  %v3700 = vunpack.c.l.b16 %v3698
  %v3701 = vunpack.c.h.b16 %v3698
  %v3702 = vpack.c.b16 %v3700, %v3700
  %v3703 = vpack.c.b16 %v3701, %v3701
  %s3706 = scalar_lea.vmem %s4, 40
  %3707 = vst [vmem:[%s3706] sm:$0xf] %v3702
  %3708 = vst [vmem:[%s3706 + $0x4] sm:$0xf] %v3703
  %s3709 = scalar_lea.vmem %s0, 192
  %v3710 = vld [vmem:[%s3709] sm:$0xff]
  %v3711 = vld [vmem:[%s3709 + $0x8] sm:$0xff]
  %v3712 = vld [vmem:[%s3709 + $0x10] sm:$0xff]
  %v3713 = vld [vmem:[%s3709 + $0x18] sm:$0xff]
  %v3714 = vunpack.c.l.bf16 %v3710
  %v3715 = vunpack.c.h.bf16 %v3710
  %v3716 = vunpack.c.l.bf16 %v3711
  %v3717 = vunpack.c.h.bf16 %v3711
  %v3718 = vunpack.c.l.bf16 %v3712
  %v3719 = vunpack.c.h.bf16 %v3712
  %v3720 = vunpack.c.l.bf16 %v3713
  %v3721 = vunpack.c.h.bf16 %v3713
  %v3722 = vld [vmem:[#allocation4] sm:$0xff]
  %v3723 = vld [vmem:[#allocation4 + $0x8] sm:$0xff]
  %v3724 = vpack.c.bf16 %v3723, %v3722
  %v3725 = vld [vmem:[#allocation2] sm:$0xff]
  %v3726 = vld [vmem:[#allocation2 + $0x8] sm:$0xff]
  %v3727 = vld [vmem:[#allocation2 + $0x10] sm:$0xff]
  %v3728 = vld [vmem:[#allocation2 + $0x18] sm:$0xff]
  %v3729 = vld [vmem:[#allocation2 + $0x20] sm:$0xff]
  %v3730 = vld [vmem:[#allocation2 + $0x28] sm:$0xff]
  %v3731 = vld [vmem:[#allocation2 + $0x30] sm:$0xff]
  %v3732 = vld [vmem:[#allocation2 + $0x38] sm:$0xff]
  %v3733 = vld [vmem:[#allocation2 + $0x40] sm:$0xff]
  %v3734 = vld [vmem:[#allocation2 + $0x48] sm:$0xff]
  %v3735 = vld [vmem:[#allocation2 + $0x50] sm:$0xff]
  %v3736 = vld [vmem:[#allocation2 + $0x58] sm:$0xff]
  %v3737 = vld [vmem:[#allocation2 + $0x60] sm:$0xff]
  %v3738 = vld [vmem:[#allocation2 + $0x68] sm:$0xff]
  %v3739 = vld [vmem:[#allocation2 + $0x70] sm:$0xff]
  %v3740 = vld [vmem:[#allocation2 + $0x78] sm:$0xff]
  %v3741 = vld [vmem:[#allocation2 + $0x80] sm:$0xff]
  %v3742 = vld [vmem:[#allocation2 + $0x88] sm:$0xff]
  %v3743 = vld [vmem:[#allocation2 + $0x90] sm:$0xff]
  %v3744 = vld [vmem:[#allocation2 + $0x98] sm:$0xff]
  %v3745 = vld [vmem:[#allocation2 + $0xa0] sm:$0xff]
  %v3746 = vld [vmem:[#allocation2 + $0xa8] sm:$0xff]
  %v3747 = vld [vmem:[#allocation2 + $0xb0] sm:$0xff]
  %v3748 = vld [vmem:[#allocation2 + $0xb8] sm:$0xff]
  %v3749 = vld [vmem:[#allocation2 + $0xc0] sm:$0xff]
  %v3750 = vld [vmem:[#allocation2 + $0xc8] sm:$0xff]
  %v3751 = vld [vmem:[#allocation2 + $0xd0] sm:$0xff]
  %v3752 = vld [vmem:[#allocation2 + $0xd8] sm:$0xff]
  %v3753 = vld [vmem:[#allocation2 + $0xe0] sm:$0xff]
  %v3754 = vld [vmem:[#allocation2 + $0xe8] sm:$0xff]
  %v3755 = vld [vmem:[#allocation2 + $0xf0] sm:$0xff]
  %v3756 = vld [vmem:[#allocation2 + $0xf8] sm:$0xff]
  %3757 = vmatprep.subr.bf16.mxu0 %v3726
  %3758 = vmatpush1.bf16.msra.mxu0 %v3725
  %3759 = vmatprep.subr.bf16.mxu0 %v3730
  %3760 = vmatpush1.bf16.msra.mxu0 %v3729
  %3761 = vmatprep.subr.bf16.mxu0 %v3734
  %3762 = vmatpush1.bf16.msra.mxu0 %v3733
  %3763 = vmatprep.subr.bf16.mxu0 %v3738
  %3764 = vmatpush1.bf16.msra.mxu0 %v3737
  %3765 = vmatprep.subr.bf16.mxu0 %v3742
  %3766 = vmatpush1.bf16.msra.mxu0 %v3741
  %3767 = vmatprep.subr.bf16.mxu0 %v3746
  %3768 = vmatpush1.bf16.msra.mxu0 %v3745
  %3769 = vmatprep.subr.bf16.mxu0 %v3750
  %3770 = vmatpush1.bf16.msra.mxu0 %v3749
  %3771 = vmatprep.subr.bf16.mxu0 %v3754
  %3772 = vmatpush1.bf16.msra.mxu0 %v3753
  %3773 = vmatprep.subr.bf16.mxu0 0
  %3774 = vmatpush1.bf16.msra.mxu0 0
  %3775 = vmatprep.subr.bf16.mxu0 0
  %3776 = vmatpush1.bf16.msra.mxu0 0
  %3777 = vmatprep.subr.bf16.mxu0 0
  %3778 = vmatpush1.bf16.msra.mxu0 0
  %3779 = vmatprep.subr.bf16.mxu0 0
  %3780 = vmatpush1.bf16.msra.mxu0 0
  %3781 = vmatprep.subr.bf16.mxu0 0
  %3782 = vmatpush1.bf16.msra.mxu0 0
  %3783 = vmatprep.subr.bf16.mxu0 0
  %3784 = vmatpush1.bf16.msra.mxu0 0
  %3785 = vmatprep.subr.bf16.mxu0 0
  %3786 = vmatpush1.bf16.msra.mxu0 0
  %3787 = vmatprep.subr.bf16.mxu0 0
  %3788 = vmatpush1.bf16.msra.mxu0 0
  %3789 = vmatprep.mubr.bf16.mxu0 0
  %3790 = vmatmul.mubr.bf16.gmra.mrb[0].mxu0 %v3724
  %v3791 = vpop.f32.mrb[0].mxu0
  %v3792 = vadd.f32 0.0, %v3791
  %v3793 = vpop.f32.mrb[0].mxu0
  %v3794 = vadd.f32 0.0, %v3793
  %v3795 = vpop.f32.mrb[0].mxu0
  %v3796 = vadd.f32 0.0, %v3795
  %v3797 = vpop.f32.mrb[0].mxu0
  %v3798 = vadd.f32 0.0, %v3797
  %3799 = vdwg.mxu0
  %3800 = vmatprep.subr.bf16.mxu0 %v3728
  %3801 = vmatpush1.bf16.msra.mxu0 %v3727
  %3802 = vmatprep.subr.bf16.mxu0 %v3732
  %3803 = vmatpush1.bf16.msra.mxu0 %v3731
  %3804 = vmatprep.subr.bf16.mxu0 %v3736
  %3805 = vmatpush1.bf16.msra.mxu0 %v3735
  %3806 = vmatprep.subr.bf16.mxu0 %v3740
  %3807 = vmatpush1.bf16.msra.mxu0 %v3739
  %3808 = vmatprep.subr.bf16.mxu0 %v3744
  %3809 = vmatpush1.bf16.msra.mxu0 %v3743
  %3810 = vmatprep.subr.bf16.mxu0 %v3748
  %3811 = vmatpush1.bf16.msra.mxu0 %v3747
  %3812 = vmatprep.subr.bf16.mxu0 %v3752
  %3813 = vmatpush1.bf16.msra.mxu0 %v3751
  %3814 = vmatprep.subr.bf16.mxu0 %v3756
  %3815 = vmatpush1.bf16.msra.mxu0 %v3755
  %3816 = vmatprep.subr.bf16.mxu0 0
  %3817 = vmatpush1.bf16.msra.mxu0 0
  %3818 = vmatprep.subr.bf16.mxu0 0
  %3819 = vmatpush1.bf16.msra.mxu0 0
  %3820 = vmatprep.subr.bf16.mxu0 0
  %3821 = vmatpush1.bf16.msra.mxu0 0
  %3822 = vmatprep.subr.bf16.mxu0 0
  %3823 = vmatpush1.bf16.msra.mxu0 0
  %3824 = vmatprep.subr.bf16.mxu0 0
  %3825 = vmatpush1.bf16.msra.mxu0 0
  %3826 = vmatprep.subr.bf16.mxu0 0
  %3827 = vmatpush1.bf16.msra.mxu0 0
  %3828 = vmatprep.subr.bf16.mxu0 0
  %3829 = vmatpush1.bf16.msra.mxu0 0
  %3830 = vmatprep.subr.bf16.mxu0 0
  %3831 = vmatpush1.bf16.msra.mxu0 0
  %3832 = vmatprep.mubr.bf16.mxu0 0
  %3833 = vmatmul.mubr.bf16.gmra.mrb[0].mxu0 %v3724
  %v3834 = vpop.f32.mrb[0].mxu0
  %v3835 = vadd.f32 0.0, %v3834
  %v3836 = vpop.f32.mrb[0].mxu0
  %v3837 = vadd.f32 0.0, %v3836
  %v3838 = vpop.f32.mrb[0].mxu0
  %v3839 = vadd.f32 0.0, %v3838
  %v3840 = vpop.f32.mrb[0].mxu0
  %v3841 = vadd.f32 0.0, %v3840
  %3842 = vdwg.mxu0
  %v3843 = vadd.f32 %v3714, %v3792
  %v3844 = vadd.f32 %v3715, %v3794
  %v3845 = vadd.f32 %v3716, %v3835
  %v3846 = vadd.f32 %v3717, %v3837
  %v3847 = vadd.f32 %v3718, %v3796
  %v3848 = vadd.f32 %v3719, %v3798
  %v3849 = vadd.f32 %v3720, %v3839
  %v3850 = vadd.f32 %v3721, %v3841
  %v3851 = vld [vmem:[#allocation5] sm:$0xff]
  %v3852 = vld [vmem:[#allocation5 + $0x8] sm:$0xff]
  %v3853 = vxor.u32 %v3843, 2147483648
  %v3854 = vxor.u32 %v3847, 2147483648
  %v3855 = vmul.f32 %v3853, 1.442695
  %v3856 = vpow.pop %v3855
  %v3857 = vmul.f32 %v3854, 1.442695
  %v3858 = vpow.pop %v3857
  %v3859 = vadd.f32 %v3856, 1.0
  %v3860 = vadd.f32 %v3858, 1.0
  %v3861 = vrcp.pop %v3859
  %v3862 = vmul.f32 1.0, %v3861
  %v3863 = vrcp.pop %v3860
  %v3864 = vmul.f32 1.0, %v3863
  %v3865 = vxor.u32 %v3844, 2147483648
  %v3866 = vxor.u32 %v3848, 2147483648
  %v3867 = vmul.f32 %v3865, 1.442695
  %v3868 = vpow.pop %v3867
  %v3869 = vmul.f32 %v3866, 1.442695
  %v3870 = vpow.pop %v3869
  %v3871 = vadd.f32 %v3868, 1.0
  %v3872 = vadd.f32 %v3870, 1.0
  %v3873 = vrcp.pop %v3871
  %v3874 = vmul.f32 1.0, %v3873
  %v3875 = vrcp.pop %v3872
  %v3876 = vmul.f32 1.0, %v3875
  %v3877 = vtanh.pop %v3845
  %v3878 = vtanh.pop %v3849
  %v3879 = vxor.u32 %v3846, 2147483648
  %v3880 = vxor.u32 %v3850, 2147483648
  %v3881 = vmul.f32 %v3879, 1.442695
  %v3882 = vpow.pop %v3881
  %v3883 = vmul.f32 %v3880, 1.442695
  %v3884 = vpow.pop %v3883
  %v3885 = vadd.f32 %v3882, 1.0
  %v3886 = vadd.f32 %v3884, 1.0
  %v3887 = vrcp.pop %v3885
  %v3888 = vmul.f32 1.0, %v3887
  %v3889 = vrcp.pop %v3886
  %v3890 = vmul.f32 1.0, %v3889
  %v3891 = vmul.f32 %v3874, %v3851
  %v3892 = vmul.f32 %v3876, %v3852
  %v3893 = vmul.f32 %v3862, %v3877
  %v3894 = vmul.f32 %v3864, %v3878
  %v3895 = vadd.f32 %v3891, %v3893
  %v3896 = vadd.f32 %v3892, %v3894
  %v3897 = vtanh.pop %v3895
  %v3898 = vtanh.pop %v3896
  %v3899 = vmul.f32 %v3888, %v3897
  %v3900 = vmul.f32 %v3890, %v3898
  %3901 = vst [vmem:[#allocation4] sm:$0xff] %v3899
  %3902 = vst [vmem:[#allocation4 + $0x8] sm:$0xff] %v3900
  %3903 = vst [vmem:[#allocation5] sm:$0xff] %v3895
  %3904 = vst [vmem:[#allocation5 + $0x8] sm:$0xff] %v3896
  %v3905 = vpack.c.bf16 %v3900, %v3899
  %v3906 = vld [vmem:[#allocation3] sm:$0xff]
  %v3907 = vld [vmem:[#allocation3 + $0x8] sm:$0xff]
  %v3908 = vld [vmem:[#allocation3 + $0x10] sm:$0xff]
  %v3909 = vld [vmem:[#allocation3 + $0x18] sm:$0xff]
  %v3910 = vld [vmem:[#allocation3 + $0x20] sm:$0xff]
  %v3911 = vld [vmem:[#allocation3 + $0x28] sm:$0xff]
  %v3912 = vld [vmem:[#allocation3 + $0x30] sm:$0xff]
  %v3913 = vld [vmem:[#allocation3 + $0x38] sm:$0xff]
  %v3914 = vld [vmem:[#allocation3 + $0x40] sm:$0xff]
  %v3915 = vld [vmem:[#allocation3 + $0x48] sm:$0xff]
  %v3916 = vld [vmem:[#allocation3 + $0x50] sm:$0xff]
  %v3917 = vld [vmem:[#allocation3 + $0x58] sm:$0xff]
  %v3918 = vld [vmem:[#allocation3 + $0x60] sm:$0xff]
  %v3919 = vld [vmem:[#allocation3 + $0x68] sm:$0xff]
  %v3920 = vld [vmem:[#allocation3 + $0x70] sm:$0xff]
  %v3921 = vld [vmem:[#allocation3 + $0x78] sm:$0xff]
  %v3922 = vld [vmem:[#allocation3 + $0x80] sm:$0xff]
  %v3923 = vld [vmem:[#allocation3 + $0x88] sm:$0xff]
  %v3924 = vld [vmem:[#allocation3 + $0x90] sm:$0xff]
  %v3925 = vld [vmem:[#allocation3 + $0x98] sm:$0xff]
  %v3926 = vld [vmem:[#allocation3 + $0xa0] sm:$0xff]
  %v3927 = vld [vmem:[#allocation3 + $0xa8] sm:$0xff]
  %v3928 = vld [vmem:[#allocation3 + $0xb0] sm:$0xff]
  %v3929 = vld [vmem:[#allocation3 + $0xb8] sm:$0xff]
  %v3930 = vld [vmem:[#allocation3 + $0xc0] sm:$0xff]
  %v3931 = vld [vmem:[#allocation3 + $0xc8] sm:$0xff]
  %v3932 = vld [vmem:[#allocation3 + $0xd0] sm:$0xff]
  %v3933 = vld [vmem:[#allocation3 + $0xd8] sm:$0xff]
  %v3934 = vld [vmem:[#allocation3 + $0xe0] sm:$0xff]
  %v3935 = vld [vmem:[#allocation3 + $0xe8] sm:$0xff]
  %v3936 = vld [vmem:[#allocation3 + $0xf0] sm:$0xff]
  %v3937 = vld [vmem:[#allocation3 + $0xf8] sm:$0xff]
  %v3938 = vld [vmem:[%s882] sm:$0xff]
  %v3939 = vld [vmem:[%s882 + $0x8] sm:$0xff]
  %v3940 = vpack.c.bf16 %v3939, %v3938
  %v3941 = vld [vmem:[%s886] sm:$0xff]
  %v3942 = vld [vmem:[%s886 + $0x8] sm:$0xff]
  %v3943 = vld [vmem:[%s886 + $0x10] sm:$0xff]
  %v3944 = vld [vmem:[%s886 + $0x18] sm:$0xff]
  %v3945 = vld [vmem:[%s886 + $0x20] sm:$0xff]
  %v3946 = vld [vmem:[%s886 + $0x28] sm:$0xff]
  %v3947 = vld [vmem:[%s886 + $0x30] sm:$0xff]
  %v3948 = vld [vmem:[%s886 + $0x38] sm:$0xff]
  %v3949 = vld [vmem:[%s886 + $0x40] sm:$0xff]
  %v3950 = vld [vmem:[%s886 + $0x48] sm:$0xff]
  %v3951 = vld [vmem:[%s886 + $0x50] sm:$0xff]
  %v3952 = vld [vmem:[%s886 + $0x58] sm:$0xff]
  %v3953 = vld [vmem:[%s886 + $0x60] sm:$0xff]
  %v3954 = vld [vmem:[%s886 + $0x68] sm:$0xff]
  %v3955 = vld [vmem:[%s886 + $0x70] sm:$0xff]
  %v3956 = vld [vmem:[%s886 + $0x78] sm:$0xff]
  %v3957 = vld [vmem:[%s886 + $0x80] sm:$0xff]
  %v3958 = vld [vmem:[%s886 + $0x88] sm:$0xff]
  %v3959 = vld [vmem:[%s886 + $0x90] sm:$0xff]
  %v3960 = vld [vmem:[%s886 + $0x98] sm:$0xff]
  %v3961 = vld [vmem:[%s886 + $0xa0] sm:$0xff]
  %v3962 = vld [vmem:[%s886 + $0xa8] sm:$0xff]
  %v3963 = vld [vmem:[%s886 + $0xb0] sm:$0xff]
  %v3964 = vld [vmem:[%s886 + $0xb8] sm:$0xff]
  %v3965 = vld [vmem:[%s886 + $0xc0] sm:$0xff]
  %v3966 = vld [vmem:[%s886 + $0xc8] sm:$0xff]
  %v3967 = vld [vmem:[%s886 + $0xd0] sm:$0xff]
  %v3968 = vld [vmem:[%s886 + $0xd8] sm:$0xff]
  %v3969 = vld [vmem:[%s886 + $0xe0] sm:$0xff]
  %v3970 = vld [vmem:[%s886 + $0xe8] sm:$0xff]
  %v3971 = vld [vmem:[%s886 + $0xf0] sm:$0xff]
  %v3972 = vld [vmem:[%s886 + $0xf8] sm:$0xff]
  %3973 = vmatprep.subr.bf16.mxu0 %v3942
  %3974 = vmatpush1.bf16.msra.mxu0 %v3941
  %3975 = vmatprep.subr.bf16.mxu0 %v3946
  %3976 = vmatpush1.bf16.msra.mxu0 %v3945
  %3977 = vmatprep.subr.bf16.mxu0 %v3950
  %3978 = vmatpush1.bf16.msra.mxu0 %v3949
  %3979 = vmatprep.subr.bf16.mxu0 %v3954
  %3980 = vmatpush1.bf16.msra.mxu0 %v3953
  %3981 = vmatprep.subr.bf16.mxu0 %v3958
  %3982 = vmatpush1.bf16.msra.mxu0 %v3957
  %3983 = vmatprep.subr.bf16.mxu0 %v3962
  %3984 = vmatpush1.bf16.msra.mxu0 %v3961
  %3985 = vmatprep.subr.bf16.mxu0 %v3966
  %3986 = vmatpush1.bf16.msra.mxu0 %v3965
  %3987 = vmatprep.subr.bf16.mxu0 %v3970
  %3988 = vmatpush1.bf16.msra.mxu0 %v3969
  %3989 = vmatprep.subr.bf16.mxu0 0
  %3990 = vmatpush1.bf16.msra.mxu0 0
  %3991 = vmatprep.subr.bf16.mxu0 0
  %3992 = vmatpush1.bf16.msra.mxu0 0
  %3993 = vmatprep.subr.bf16.mxu0 0
  %3994 = vmatpush1.bf16.msra.mxu0 0
  %3995 = vmatprep.subr.bf16.mxu0 0
  %3996 = vmatpush1.bf16.msra.mxu0 0
  %3997 = vmatprep.subr.bf16.mxu0 0
  %3998 = vmatpush1.bf16.msra.mxu0 0
  %3999 = vmatprep.subr.bf16.mxu0 0
  %4000 = vmatpush1.bf16.msra.mxu0 0
  %4001 = vmatprep.subr.bf16.mxu0 0
  %4002 = vmatpush1.bf16.msra.mxu0 0
  %4003 = vmatprep.subr.bf16.mxu0 0
  %4004 = vmatpush1.bf16.msra.mxu0 0
  %4005 = vmatprep.mubr.bf16.mxu0 0
  %4006 = vmatmul.mubr.bf16.gmra.mrb[0].mxu0 %v3940
  %v4007 = vpop.f32.mrb[0].mxu0
  %v4008 = vadd.f32 0.0, %v4007
  %v4009 = vpop.f32.mrb[0].mxu0
  %v4010 = vadd.f32 0.0, %v4009
  %v4011 = vpop.f32.mrb[0].mxu0
  %v4012 = vadd.f32 0.0, %v4011
  %v4013 = vpop.f32.mrb[0].mxu0
  %v4014 = vadd.f32 0.0, %v4013
  %4015 = vdwg.mxu0
  %4016 = vmatprep.subr.bf16.mxu0 %v3944
  %4017 = vmatpush1.bf16.msra.mxu0 %v3943
  %4018 = vmatprep.subr.bf16.mxu0 %v3948
  %4019 = vmatpush1.bf16.msra.mxu0 %v3947
  %4020 = vmatprep.subr.bf16.mxu0 %v3952
  %4021 = vmatpush1.bf16.msra.mxu0 %v3951
  %4022 = vmatprep.subr.bf16.mxu0 %v3956
  %4023 = vmatpush1.bf16.msra.mxu0 %v3955
  %4024 = vmatprep.subr.bf16.mxu0 %v3960
  %4025 = vmatpush1.bf16.msra.mxu0 %v3959
  %4026 = vmatprep.subr.bf16.mxu0 %v3964
  %4027 = vmatpush1.bf16.msra.mxu0 %v3963
  %4028 = vmatprep.subr.bf16.mxu0 %v3968
  %4029 = vmatpush1.bf16.msra.mxu0 %v3967
  %4030 = vmatprep.subr.bf16.mxu0 %v3972
  %4031 = vmatpush1.bf16.msra.mxu0 %v3971
  %4032 = vmatprep.subr.bf16.mxu0 0
  %4033 = vmatpush1.bf16.msra.mxu0 0
  %4034 = vmatprep.subr.bf16.mxu0 0
  %4035 = vmatpush1.bf16.msra.mxu0 0
  %4036 = vmatprep.subr.bf16.mxu0 0
  %4037 = vmatpush1.bf16.msra.mxu0 0
  %4038 = vmatprep.subr.bf16.mxu0 0
  %4039 = vmatpush1.bf16.msra.mxu0 0
  %4040 = vmatprep.subr.bf16.mxu0 0
  %4041 = vmatpush1.bf16.msra.mxu0 0
  %4042 = vmatprep.subr.bf16.mxu0 0
  %4043 = vmatpush1.bf16.msra.mxu0 0
  %4044 = vmatprep.subr.bf16.mxu0 0
  %4045 = vmatpush1.bf16.msra.mxu0 0
  %4046 = vmatprep.subr.bf16.mxu0 0
  %4047 = vmatpush1.bf16.msra.mxu0 0
  %4048 = vmatprep.mubr.bf16.mxu0 0
  %4049 = vmatmul.mubr.bf16.gmra.mrb[0].mxu0 %v3940
  %v4050 = vpop.f32.mrb[0].mxu0
  %v4051 = vadd.f32 0.0, %v4050
  %v4052 = vpop.f32.mrb[0].mxu0
  %v4053 = vadd.f32 0.0, %v4052
  %v4054 = vpop.f32.mrb[0].mxu0
  %v4055 = vadd.f32 0.0, %v4054
  %v4056 = vpop.f32.mrb[0].mxu0
  %v4057 = vadd.f32 0.0, %v4056
  %4058 = vdwg.mxu0
  %4059 = vmatprep.subr.bf16.mxu0 %v3907
  %4060 = vmatpush1.bf16.msra.mxu0 %v3906
  %4061 = vmatprep.subr.bf16.mxu0 %v3911
  %4062 = vmatpush1.bf16.msra.mxu0 %v3910
  %4063 = vmatprep.subr.bf16.mxu0 %v3915
  %4064 = vmatpush1.bf16.msra.mxu0 %v3914
  %4065 = vmatprep.subr.bf16.mxu0 %v3919
  %4066 = vmatpush1.bf16.msra.mxu0 %v3918
  %4067 = vmatprep.subr.bf16.mxu0 %v3923
  %4068 = vmatpush1.bf16.msra.mxu0 %v3922
  %4069 = vmatprep.subr.bf16.mxu0 %v3927
  %4070 = vmatpush1.bf16.msra.mxu0 %v3926
  %4071 = vmatprep.subr.bf16.mxu0 %v3931
  %4072 = vmatpush1.bf16.msra.mxu0 %v3930
  %4073 = vmatprep.subr.bf16.mxu0 %v3935
  %4074 = vmatpush1.bf16.msra.mxu0 %v3934
  %4075 = vmatprep.subr.bf16.mxu0 0
  %4076 = vmatpush1.bf16.msra.mxu0 0
  %4077 = vmatprep.subr.bf16.mxu0 0
  %4078 = vmatpush1.bf16.msra.mxu0 0
  %4079 = vmatprep.subr.bf16.mxu0 0
  %4080 = vmatpush1.bf16.msra.mxu0 0
  %4081 = vmatprep.subr.bf16.mxu0 0
  %4082 = vmatpush1.bf16.msra.mxu0 0
  %4083 = vmatprep.subr.bf16.mxu0 0
  %4084 = vmatpush1.bf16.msra.mxu0 0
  %4085 = vmatprep.subr.bf16.mxu0 0
  %4086 = vmatpush1.bf16.msra.mxu0 0
  %4087 = vmatprep.subr.bf16.mxu0 0
  %4088 = vmatpush1.bf16.msra.mxu0 0
  %4089 = vmatprep.subr.bf16.mxu0 0
  %4090 = vmatpush1.bf16.msra.mxu0 0
  %4091 = vmatprep.mubr.bf16.mxu0 0
  %4092 = vmatmul.mubr.bf16.gmra.mrb[0].mxu0 %v3905
  %v4093 = vpop.f32.mrb[0].mxu0
  %v4094 = vadd.f32 %v4008, %v4093
  %v4095 = vpop.f32.mrb[0].mxu0
  %v4096 = vadd.f32 %v4010, %v4095
  %v4097 = vpop.f32.mrb[0].mxu0
  %v4098 = vadd.f32 %v4012, %v4097
  %v4099 = vpop.f32.mrb[0].mxu0
  %v4100 = vadd.f32 %v4014, %v4099
  %4101 = vdwg.mxu0
  %4102 = vmatprep.subr.bf16.mxu0 %v3909
  %4103 = vmatpush1.bf16.msra.mxu0 %v3908
  %4104 = vmatprep.subr.bf16.mxu0 %v3913
  %4105 = vmatpush1.bf16.msra.mxu0 %v3912
  %4106 = vmatprep.subr.bf16.mxu0 %v3917
  %4107 = vmatpush1.bf16.msra.mxu0 %v3916
  %4108 = vmatprep.subr.bf16.mxu0 %v3921
  %4109 = vmatpush1.bf16.msra.mxu0 %v3920
  %4110 = vmatprep.subr.bf16.mxu0 %v3925
  %4111 = vmatpush1.bf16.msra.mxu0 %v3924
  %4112 = vmatprep.subr.bf16.mxu0 %v3929
  %4113 = vmatpush1.bf16.msra.mxu0 %v3928
  %4114 = vmatprep.subr.bf16.mxu0 %v3933
  %4115 = vmatpush1.bf16.msra.mxu0 %v3932
  %4116 = vmatprep.subr.bf16.mxu0 %v3937
  %4117 = vmatpush1.bf16.msra.mxu0 %v3936
  %4118 = vmatprep.subr.bf16.mxu0 0
  %4119 = vmatpush1.bf16.msra.mxu0 0
  %4120 = vmatprep.subr.bf16.mxu0 0
  %4121 = vmatpush1.bf16.msra.mxu0 0
  %4122 = vmatprep.subr.bf16.mxu0 0
  %4123 = vmatpush1.bf16.msra.mxu0 0
  %4124 = vmatprep.subr.bf16.mxu0 0
  %4125 = vmatpush1.bf16.msra.mxu0 0
  %4126 = vmatprep.subr.bf16.mxu0 0
  %4127 = vmatpush1.bf16.msra.mxu0 0
  %4128 = vmatprep.subr.bf16.mxu0 0
  %4129 = vmatpush1.bf16.msra.mxu0 0
  %4130 = vmatprep.subr.bf16.mxu0 0
  %4131 = vmatpush1.bf16.msra.mxu0 0
  %4132 = vmatprep.subr.bf16.mxu0 0
  %4133 = vmatpush1.bf16.msra.mxu0 0
  %4134 = vmatprep.mubr.bf16.mxu0 0
  %4135 = vmatmul.mubr.bf16.gmra.mrb[0].mxu0 %v3905
  %v4136 = vpop.f32.mrb[0].mxu0
  %v4137 = vadd.f32 %v4051, %v4136
  %v4138 = vpop.f32.mrb[0].mxu0
  %v4139 = vadd.f32 %v4053, %v4138
  %v4140 = vpop.f32.mrb[0].mxu0
  %v4141 = vadd.f32 %v4055, %v4140
  %v4142 = vpop.f32.mrb[0].mxu0
  %v4143 = vadd.f32 %v4057, %v4142
  %4144 = vdwg.mxu0
  %v4145 = vadd.f32 %v4094, %v637
  %v4146 = vadd.f32 %v4096, %v641
  %v4147 = vadd.f32 %v4137, %v645
  %v4148 = vadd.f32 %v4139, %v649
  %v4149 = vadd.f32 %v4098, %v637
  %v4150 = vadd.f32 %v4100, %v641
  %v4151 = vadd.f32 %v4141, %v645
  %v4152 = vadd.f32 %v4143, %v649
  %v4153 = vld [vmem:[%s1099] sm:$0xff]
  %v4154 = vld [vmem:[%s1099 + $0x8] sm:$0xff]
  %v4155 = vxor.u32 %v4145, 2147483648
  %v4156 = vxor.u32 %v4149, 2147483648
  %v4157 = vmul.f32 %v4155, 1.442695
  %v4158 = vpow.pop %v4157
  %v4159 = vmul.f32 %v4156, 1.442695
  %v4160 = vpow.pop %v4159
  %v4161 = vadd.f32 %v4158, 1.0
  %v4162 = vadd.f32 %v4160, 1.0
  %v4163 = vrcp.pop %v4161
  %v4164 = vmul.f32 1.0, %v4163
  %v4165 = vrcp.pop %v4162
  %v4166 = vmul.f32 1.0, %v4165
  %v4167 = vxor.u32 %v4146, 2147483648
  %v4168 = vxor.u32 %v4150, 2147483648
  %v4169 = vmul.f32 %v4167, 1.442695
  %v4170 = vpow.pop %v4169
  %v4171 = vmul.f32 %v4168, 1.442695
  %v4172 = vpow.pop %v4171
  %v4173 = vadd.f32 %v4170, 1.0
  %v4174 = vadd.f32 %v4172, 1.0
  %v4175 = vrcp.pop %v4173
  %v4176 = vmul.f32 1.0, %v4175
  %v4177 = vrcp.pop %v4174
  %v4178 = vmul.f32 1.0, %v4177
  %v4179 = vtanh.pop %v4147
  %v4180 = vtanh.pop %v4151
  %v4181 = vxor.u32 %v4148, 2147483648
  %v4182 = vxor.u32 %v4152, 2147483648
  %v4183 = vmul.f32 %v4181, 1.442695
  %v4184 = vpow.pop %v4183
  %v4185 = vmul.f32 %v4182, 1.442695
  %v4186 = vpow.pop %v4185
  %v4187 = vadd.f32 %v4184, 1.0
  %v4188 = vadd.f32 %v4186, 1.0
  %v4189 = vrcp.pop %v4187
  %v4190 = vmul.f32 1.0, %v4189
  %v4191 = vrcp.pop %v4188
  %v4192 = vmul.f32 1.0, %v4191
  %v4193 = vmul.f32 %v4176, %v4153
  %v4194 = vmul.f32 %v4178, %v4154
  %v4195 = vmul.f32 %v4164, %v4179
  %v4196 = vmul.f32 %v4166, %v4180
  %v4197 = vadd.f32 %v4193, %v4195
  %v4198 = vadd.f32 %v4194, %v4196
  %v4199 = vtanh.pop %v4197
  %v4200 = vtanh.pop %v4198
  %v4201 = vmul.f32 %v4190, %v4199
  %v4202 = vmul.f32 %v4192, %v4200
  %4203 = vst [vmem:[%s882] sm:$0xff] %v4201
  %4204 = vst [vmem:[%s882 + $0x8] sm:$0xff] %v4202
  %4205 = vst [vmem:[%s1099] sm:$0xff] %v4197
  %4206 = vst [vmem:[%s1099 + $0x8] sm:$0xff] %v4198
  %v4207 = vpack.c.bf16 %v4202, %v4201
  %v4209 = vunpack.c.l.b16 %v4207
  %v4210 = vunpack.c.h.b16 %v4207
  %v4211 = vpack.c.b16 %v4209, %v4209
  %v4212 = vpack.c.b16 %v4210, %v4210
  %s4215 = scalar_lea.vmem %s4, 48
  %4216 = vst [vmem:[%s4215] sm:$0xf] %v4211
  %4217 = vst [vmem:[%s4215 + $0x4] sm:$0xf] %v4212
  %s4218 = scalar_lea.vmem %s0, 224
  %v4219 = vld [vmem:[%s4218] sm:$0xff]
  %v4220 = vld [vmem:[%s4218 + $0x8] sm:$0xff]
  %v4221 = vld [vmem:[%s4218 + $0x10] sm:$0xff]
  %v4222 = vld [vmem:[%s4218 + $0x18] sm:$0xff]
  %v4223 = vunpack.c.l.bf16 %v4219
  %v4224 = vunpack.c.h.bf16 %v4219
  %v4225 = vunpack.c.l.bf16 %v4220
  %v4226 = vunpack.c.h.bf16 %v4220
  %v4227 = vunpack.c.l.bf16 %v4221
  %v4228 = vunpack.c.h.bf16 %v4221
  %v4229 = vunpack.c.l.bf16 %v4222
  %v4230 = vunpack.c.h.bf16 %v4222
  %v4231 = vld [vmem:[#allocation4] sm:$0xff]
  %v4232 = vld [vmem:[#allocation4 + $0x8] sm:$0xff]
  %v4233 = vpack.c.bf16 %v4232, %v4231
  %v4234 = vld [vmem:[#allocation2] sm:$0xff]
  %v4235 = vld [vmem:[#allocation2 + $0x8] sm:$0xff]
  %v4236 = vld [vmem:[#allocation2 + $0x10] sm:$0xff]
  %v4237 = vld [vmem:[#allocation2 + $0x18] sm:$0xff]
  %v4238 = vld [vmem:[#allocation2 + $0x20] sm:$0xff]
  %v4239 = vld [vmem:[#allocation2 + $0x28] sm:$0xff]
  %v4240 = vld [vmem:[#allocation2 + $0x30] sm:$0xff]
  %v4241 = vld [vmem:[#allocation2 + $0x38] sm:$0xff]
  %v4242 = vld [vmem:[#allocation2 + $0x40] sm:$0xff]
  %v4243 = vld [vmem:[#allocation2 + $0x48] sm:$0xff]
  %v4244 = vld [vmem:[#allocation2 + $0x50] sm:$0xff]
  %v4245 = vld [vmem:[#allocation2 + $0x58] sm:$0xff]
  %v4246 = vld [vmem:[#allocation2 + $0x60] sm:$0xff]
  %v4247 = vld [vmem:[#allocation2 + $0x68] sm:$0xff]
  %v4248 = vld [vmem:[#allocation2 + $0x70] sm:$0xff]
  %v4249 = vld [vmem:[#allocation2 + $0x78] sm:$0xff]
  %v4250 = vld [vmem:[#allocation2 + $0x80] sm:$0xff]
  %v4251 = vld [vmem:[#allocation2 + $0x88] sm:$0xff]
  %v4252 = vld [vmem:[#allocation2 + $0x90] sm:$0xff]
  %v4253 = vld [vmem:[#allocation2 + $0x98] sm:$0xff]
  %v4254 = vld [vmem:[#allocation2 + $0xa0] sm:$0xff]
  %v4255 = vld [vmem:[#allocation2 + $0xa8] sm:$0xff]
  %v4256 = vld [vmem:[#allocation2 + $0xb0] sm:$0xff]
  %v4257 = vld [vmem:[#allocation2 + $0xb8] sm:$0xff]
  %v4258 = vld [vmem:[#allocation2 + $0xc0] sm:$0xff]
  %v4259 = vld [vmem:[#allocation2 + $0xc8] sm:$0xff]
  %v4260 = vld [vmem:[#allocation2 + $0xd0] sm:$0xff]
  %v4261 = vld [vmem:[#allocation2 + $0xd8] sm:$0xff]
  %v4262 = vld [vmem:[#allocation2 + $0xe0] sm:$0xff]
  %v4263 = vld [vmem:[#allocation2 + $0xe8] sm:$0xff]
  %v4264 = vld [vmem:[#allocation2 + $0xf0] sm:$0xff]
  %v4265 = vld [vmem:[#allocation2 + $0xf8] sm:$0xff]
  %4266 = vmatprep.subr.bf16.mxu0 %v4235
  %4267 = vmatpush1.bf16.msra.mxu0 %v4234
  %4268 = vmatprep.subr.bf16.mxu0 %v4239
  %4269 = vmatpush1.bf16.msra.mxu0 %v4238
  %4270 = vmatprep.subr.bf16.mxu0 %v4243
  %4271 = vmatpush1.bf16.msra.mxu0 %v4242
  %4272 = vmatprep.subr.bf16.mxu0 %v4247
  %4273 = vmatpush1.bf16.msra.mxu0 %v4246
  %4274 = vmatprep.subr.bf16.mxu0 %v4251
  %4275 = vmatpush1.bf16.msra.mxu0 %v4250
  %4276 = vmatprep.subr.bf16.mxu0 %v4255
  %4277 = vmatpush1.bf16.msra.mxu0 %v4254
  %4278 = vmatprep.subr.bf16.mxu0 %v4259
  %4279 = vmatpush1.bf16.msra.mxu0 %v4258
  %4280 = vmatprep.subr.bf16.mxu0 %v4263
  %4281 = vmatpush1.bf16.msra.mxu0 %v4262
  %4282 = vmatprep.subr.bf16.mxu0 0
  %4283 = vmatpush1.bf16.msra.mxu0 0
  %4284 = vmatprep.subr.bf16.mxu0 0
  %4285 = vmatpush1.bf16.msra.mxu0 0
  %4286 = vmatprep.subr.bf16.mxu0 0
  %4287 = vmatpush1.bf16.msra.mxu0 0
  %4288 = vmatprep.subr.bf16.mxu0 0
  %4289 = vmatpush1.bf16.msra.mxu0 0
  %4290 = vmatprep.subr.bf16.mxu0 0
  %4291 = vmatpush1.bf16.msra.mxu0 0
  %4292 = vmatprep.subr.bf16.mxu0 0
  %4293 = vmatpush1.bf16.msra.mxu0 0
  %4294 = vmatprep.subr.bf16.mxu0 0
  %4295 = vmatpush1.bf16.msra.mxu0 0
  %4296 = vmatprep.subr.bf16.mxu0 0
  %4297 = vmatpush1.bf16.msra.mxu0 0
  %4298 = vmatprep.mubr.bf16.mxu0 0
  %4299 = vmatmul.mubr.bf16.gmra.mrb[0].mxu0 %v4233
  %v4300 = vpop.f32.mrb[0].mxu0
  %v4301 = vadd.f32 0.0, %v4300
  %v4302 = vpop.f32.mrb[0].mxu0
  %v4303 = vadd.f32 0.0, %v4302
  %v4304 = vpop.f32.mrb[0].mxu0
  %v4305 = vadd.f32 0.0, %v4304
  %v4306 = vpop.f32.mrb[0].mxu0
  %v4307 = vadd.f32 0.0, %v4306
  %4308 = vdwg.mxu0
  %4309 = vmatprep.subr.bf16.mxu0 %v4237
  %4310 = vmatpush1.bf16.msra.mxu0 %v4236
  %4311 = vmatprep.subr.bf16.mxu0 %v4241
  %4312 = vmatpush1.bf16.msra.mxu0 %v4240
  %4313 = vmatprep.subr.bf16.mxu0 %v4245
  %4314 = vmatpush1.bf16.msra.mxu0 %v4244
  %4315 = vmatprep.subr.bf16.mxu0 %v4249
  %4316 = vmatpush1.bf16.msra.mxu0 %v4248
  %4317 = vmatprep.subr.bf16.mxu0 %v4253
  %4318 = vmatpush1.bf16.msra.mxu0 %v4252
  %4319 = vmatprep.subr.bf16.mxu0 %v4257
  %4320 = vmatpush1.bf16.msra.mxu0 %v4256
  %4321 = vmatprep.subr.bf16.mxu0 %v4261
  %4322 = vmatpush1.bf16.msra.mxu0 %v4260
  %4323 = vmatprep.subr.bf16.mxu0 %v4265
  %4324 = vmatpush1.bf16.msra.mxu0 %v4264
  %4325 = vmatprep.subr.bf16.mxu0 0
  %4326 = vmatpush1.bf16.msra.mxu0 0
  %4327 = vmatprep.subr.bf16.mxu0 0
  %4328 = vmatpush1.bf16.msra.mxu0 0
  %4329 = vmatprep.subr.bf16.mxu0 0
  %4330 = vmatpush1.bf16.msra.mxu0 0
  %4331 = vmatprep.subr.bf16.mxu0 0
  %4332 = vmatpush1.bf16.msra.mxu0 0
  %4333 = vmatprep.subr.bf16.mxu0 0
  %4334 = vmatpush1.bf16.msra.mxu0 0
  %4335 = vmatprep.subr.bf16.mxu0 0
  %4336 = vmatpush1.bf16.msra.mxu0 0
  %4337 = vmatprep.subr.bf16.mxu0 0
  %4338 = vmatpush1.bf16.msra.mxu0 0
  %4339 = vmatprep.subr.bf16.mxu0 0
  %4340 = vmatpush1.bf16.msra.mxu0 0
  %4341 = vmatprep.mubr.bf16.mxu0 0
  %4342 = vmatmul.mubr.bf16.gmra.mrb[0].mxu0 %v4233
  %v4343 = vpop.f32.mrb[0].mxu0
  %v4344 = vadd.f32 0.0, %v4343
  %v4345 = vpop.f32.mrb[0].mxu0
  %v4346 = vadd.f32 0.0, %v4345
  %v4347 = vpop.f32.mrb[0].mxu0
  %v4348 = vadd.f32 0.0, %v4347
  %v4349 = vpop.f32.mrb[0].mxu0
  %v4350 = vadd.f32 0.0, %v4349
  %4351 = vdwg.mxu0
  %v4352 = vadd.f32 %v4223, %v4301
  %v4353 = vadd.f32 %v4224, %v4303
  %v4354 = vadd.f32 %v4225, %v4344
  %v4355 = vadd.f32 %v4226, %v4346
  %v4356 = vadd.f32 %v4227, %v4305
  %v4357 = vadd.f32 %v4228, %v4307
  %v4358 = vadd.f32 %v4229, %v4348
  %v4359 = vadd.f32 %v4230, %v4350
  %v4360 = vld [vmem:[#allocation5] sm:$0xff]
  %v4361 = vld [vmem:[#allocation5 + $0x8] sm:$0xff]
  %v4362 = vxor.u32 %v4352, 2147483648
  %v4363 = vxor.u32 %v4356, 2147483648
  %v4364 = vmul.f32 %v4362, 1.442695
  %v4365 = vpow.pop %v4364
  %v4366 = vmul.f32 %v4363, 1.442695
  %v4367 = vpow.pop %v4366
  %v4368 = vadd.f32 %v4365, 1.0
  %v4369 = vadd.f32 %v4367, 1.0
  %v4370 = vrcp.pop %v4368
  %v4371 = vmul.f32 1.0, %v4370
  %v4372 = vrcp.pop %v4369
  %v4373 = vmul.f32 1.0, %v4372
  %v4374 = vxor.u32 %v4353, 2147483648
  %v4375 = vxor.u32 %v4357, 2147483648
  %v4376 = vmul.f32 %v4374, 1.442695
  %v4377 = vpow.pop %v4376
  %v4378 = vmul.f32 %v4375, 1.442695
  %v4379 = vpow.pop %v4378
  %v4380 = vadd.f32 %v4377, 1.0
  %v4381 = vadd.f32 %v4379, 1.0
  %v4382 = vrcp.pop %v4380
  %v4383 = vmul.f32 1.0, %v4382
  %v4384 = vrcp.pop %v4381
  %v4385 = vmul.f32 1.0, %v4384
  %v4386 = vtanh.pop %v4354
  %v4387 = vtanh.pop %v4358
  %v4388 = vxor.u32 %v4355, 2147483648
  %v4389 = vxor.u32 %v4359, 2147483648
  %v4390 = vmul.f32 %v4388, 1.442695
  %v4391 = vpow.pop %v4390
  %v4392 = vmul.f32 %v4389, 1.442695
  %v4393 = vpow.pop %v4392
  %v4394 = vadd.f32 %v4391, 1.0
  %v4395 = vadd.f32 %v4393, 1.0
  %v4396 = vrcp.pop %v4394
  %v4397 = vmul.f32 1.0, %v4396
  %v4398 = vrcp.pop %v4395
  %v4399 = vmul.f32 1.0, %v4398
  %v4400 = vmul.f32 %v4383, %v4360
  %v4401 = vmul.f32 %v4385, %v4361
  %v4402 = vmul.f32 %v4371, %v4386
  %v4403 = vmul.f32 %v4373, %v4387
  %v4404 = vadd.f32 %v4400, %v4402
  %v4405 = vadd.f32 %v4401, %v4403
  %v4406 = vtanh.pop %v4404
  %v4407 = vtanh.pop %v4405
  %v4408 = vmul.f32 %v4397, %v4406
  %v4409 = vmul.f32 %v4399, %v4407
  %4410 = vst [vmem:[#allocation4] sm:$0xff] %v4408
  %4411 = vst [vmem:[#allocation4 + $0x8] sm:$0xff] %v4409
  %4412 = vst [vmem:[#allocation5] sm:$0xff] %v4404
  %4413 = vst [vmem:[#allocation5 + $0x8] sm:$0xff] %v4405
  %v4414 = vpack.c.bf16 %v4409, %v4408
  %v4415 = vld [vmem:[#allocation3] sm:$0xff]
  %v4416 = vld [vmem:[#allocation3 + $0x8] sm:$0xff]
  %v4417 = vld [vmem:[#allocation3 + $0x10] sm:$0xff]
  %v4418 = vld [vmem:[#allocation3 + $0x18] sm:$0xff]
  %v4419 = vld [vmem:[#allocation3 + $0x20] sm:$0xff]
  %v4420 = vld [vmem:[#allocation3 + $0x28] sm:$0xff]
  %v4421 = vld [vmem:[#allocation3 + $0x30] sm:$0xff]
  %v4422 = vld [vmem:[#allocation3 + $0x38] sm:$0xff]
  %v4423 = vld [vmem:[#allocation3 + $0x40] sm:$0xff]
  %v4424 = vld [vmem:[#allocation3 + $0x48] sm:$0xff]
  %v4425 = vld [vmem:[#allocation3 + $0x50] sm:$0xff]
  %v4426 = vld [vmem:[#allocation3 + $0x58] sm:$0xff]
  %v4427 = vld [vmem:[#allocation3 + $0x60] sm:$0xff]
  %v4428 = vld [vmem:[#allocation3 + $0x68] sm:$0xff]
  %v4429 = vld [vmem:[#allocation3 + $0x70] sm:$0xff]
  %v4430 = vld [vmem:[#allocation3 + $0x78] sm:$0xff]
  %v4431 = vld [vmem:[#allocation3 + $0x80] sm:$0xff]
  %v4432 = vld [vmem:[#allocation3 + $0x88] sm:$0xff]
  %v4433 = vld [vmem:[#allocation3 + $0x90] sm:$0xff]
  %v4434 = vld [vmem:[#allocation3 + $0x98] sm:$0xff]
  %v4435 = vld [vmem:[#allocation3 + $0xa0] sm:$0xff]
  %v4436 = vld [vmem:[#allocation3 + $0xa8] sm:$0xff]
  %v4437 = vld [vmem:[#allocation3 + $0xb0] sm:$0xff]
  %v4438 = vld [vmem:[#allocation3 + $0xb8] sm:$0xff]
  %v4439 = vld [vmem:[#allocation3 + $0xc0] sm:$0xff]
  %v4440 = vld [vmem:[#allocation3 + $0xc8] sm:$0xff]
  %v4441 = vld [vmem:[#allocation3 + $0xd0] sm:$0xff]
  %v4442 = vld [vmem:[#allocation3 + $0xd8] sm:$0xff]
  %v4443 = vld [vmem:[#allocation3 + $0xe0] sm:$0xff]
  %v4444 = vld [vmem:[#allocation3 + $0xe8] sm:$0xff]
  %v4445 = vld [vmem:[#allocation3 + $0xf0] sm:$0xff]
  %v4446 = vld [vmem:[#allocation3 + $0xf8] sm:$0xff]
  %v4447 = vld [vmem:[%s882] sm:$0xff]
  %v4448 = vld [vmem:[%s882 + $0x8] sm:$0xff]
  %v4449 = vpack.c.bf16 %v4448, %v4447
  %v4450 = vld [vmem:[%s886] sm:$0xff]
  %v4451 = vld [vmem:[%s886 + $0x8] sm:$0xff]
  %v4452 = vld [vmem:[%s886 + $0x10] sm:$0xff]
  %v4453 = vld [vmem:[%s886 + $0x18] sm:$0xff]
  %v4454 = vld [vmem:[%s886 + $0x20] sm:$0xff]
  %v4455 = vld [vmem:[%s886 + $0x28] sm:$0xff]
  %v4456 = vld [vmem:[%s886 + $0x30] sm:$0xff]
  %v4457 = vld [vmem:[%s886 + $0x38] sm:$0xff]
  %v4458 = vld [vmem:[%s886 + $0x40] sm:$0xff]
  %v4459 = vld [vmem:[%s886 + $0x48] sm:$0xff]
  %v4460 = vld [vmem:[%s886 + $0x50] sm:$0xff]
  %v4461 = vld [vmem:[%s886 + $0x58] sm:$0xff]
  %v4462 = vld [vmem:[%s886 + $0x60] sm:$0xff]
  %v4463 = vld [vmem:[%s886 + $0x68] sm:$0xff]
  %v4464 = vld [vmem:[%s886 + $0x70] sm:$0xff]
  %v4465 = vld [vmem:[%s886 + $0x78] sm:$0xff]
  %v4466 = vld [vmem:[%s886 + $0x80] sm:$0xff]
  %v4467 = vld [vmem:[%s886 + $0x88] sm:$0xff]
  %v4468 = vld [vmem:[%s886 + $0x90] sm:$0xff]
  %v4469 = vld [vmem:[%s886 + $0x98] sm:$0xff]
  %v4470 = vld [vmem:[%s886 + $0xa0] sm:$0xff]
  %v4471 = vld [vmem:[%s886 + $0xa8] sm:$0xff]
  %v4472 = vld [vmem:[%s886 + $0xb0] sm:$0xff]
  %v4473 = vld [vmem:[%s886 + $0xb8] sm:$0xff]
  %v4474 = vld [vmem:[%s886 + $0xc0] sm:$0xff]
  %v4475 = vld [vmem:[%s886 + $0xc8] sm:$0xff]
  %v4476 = vld [vmem:[%s886 + $0xd0] sm:$0xff]
  %v4477 = vld [vmem:[%s886 + $0xd8] sm:$0xff]
  %v4478 = vld [vmem:[%s886 + $0xe0] sm:$0xff]
  %v4479 = vld [vmem:[%s886 + $0xe8] sm:$0xff]
  %v4480 = vld [vmem:[%s886 + $0xf0] sm:$0xff]
  %v4481 = vld [vmem:[%s886 + $0xf8] sm:$0xff]
  %4482 = vmatprep.subr.bf16.mxu0 %v4451
  %4483 = vmatpush1.bf16.msra.mxu0 %v4450
  %4484 = vmatprep.subr.bf16.mxu0 %v4455
  %4485 = vmatpush1.bf16.msra.mxu0 %v4454
  %4486 = vmatprep.subr.bf16.mxu0 %v4459
  %4487 = vmatpush1.bf16.msra.mxu0 %v4458
  %4488 = vmatprep.subr.bf16.mxu0 %v4463
  %4489 = vmatpush1.bf16.msra.mxu0 %v4462
  %4490 = vmatprep.subr.bf16.mxu0 %v4467
  %4491 = vmatpush1.bf16.msra.mxu0 %v4466
  %4492 = vmatprep.subr.bf16.mxu0 %v4471
  %4493 = vmatpush1.bf16.msra.mxu0 %v4470
  %4494 = vmatprep.subr.bf16.mxu0 %v4475
  %4495 = vmatpush1.bf16.msra.mxu0 %v4474
  %4496 = vmatprep.subr.bf16.mxu0 %v4479
  %4497 = vmatpush1.bf16.msra.mxu0 %v4478
  %4498 = vmatprep.subr.bf16.mxu0 0
  %4499 = vmatpush1.bf16.msra.mxu0 0
  %4500 = vmatprep.subr.bf16.mxu0 0
  %4501 = vmatpush1.bf16.msra.mxu0 0
  %4502 = vmatprep.subr.bf16.mxu0 0
  %4503 = vmatpush1.bf16.msra.mxu0 0
  %4504 = vmatprep.subr.bf16.mxu0 0
  %4505 = vmatpush1.bf16.msra.mxu0 0
  %4506 = vmatprep.subr.bf16.mxu0 0
  %4507 = vmatpush1.bf16.msra.mxu0 0
  %4508 = vmatprep.subr.bf16.mxu0 0
  %4509 = vmatpush1.bf16.msra.mxu0 0
  %4510 = vmatprep.subr.bf16.mxu0 0
  %4511 = vmatpush1.bf16.msra.mxu0 0
  %4512 = vmatprep.subr.bf16.mxu0 0
  %4513 = vmatpush1.bf16.msra.mxu0 0
  %4514 = vmatprep.mubr.bf16.mxu0 0
  %4515 = vmatmul.mubr.bf16.gmra.mrb[0].mxu0 %v4449
  %v4516 = vpop.f32.mrb[0].mxu0
  %v4517 = vadd.f32 0.0, %v4516
  %v4518 = vpop.f32.mrb[0].mxu0
  %v4519 = vadd.f32 0.0, %v4518
  %v4520 = vpop.f32.mrb[0].mxu0
  %v4521 = vadd.f32 0.0, %v4520
  %v4522 = vpop.f32.mrb[0].mxu0
  %v4523 = vadd.f32 0.0, %v4522
  %4524 = vdwg.mxu0
  %4525 = vmatprep.subr.bf16.mxu0 %v4453
  %4526 = vmatpush1.bf16.msra.mxu0 %v4452
  %4527 = vmatprep.subr.bf16.mxu0 %v4457
  %4528 = vmatpush1.bf16.msra.mxu0 %v4456
  %4529 = vmatprep.subr.bf16.mxu0 %v4461
  %4530 = vmatpush1.bf16.msra.mxu0 %v4460
  %4531 = vmatprep.subr.bf16.mxu0 %v4465
  %4532 = vmatpush1.bf16.msra.mxu0 %v4464
  %4533 = vmatprep.subr.bf16.mxu0 %v4469
  %4534 = vmatpush1.bf16.msra.mxu0 %v4468
  %4535 = vmatprep.subr.bf16.mxu0 %v4473
  %4536 = vmatpush1.bf16.msra.mxu0 %v4472
  %4537 = vmatprep.subr.bf16.mxu0 %v4477
  %4538 = vmatpush1.bf16.msra.mxu0 %v4476
  %4539 = vmatprep.subr.bf16.mxu0 %v4481
  %4540 = vmatpush1.bf16.msra.mxu0 %v4480
  %4541 = vmatprep.subr.bf16.mxu0 0
  %4542 = vmatpush1.bf16.msra.mxu0 0
  %4543 = vmatprep.subr.bf16.mxu0 0
  %4544 = vmatpush1.bf16.msra.mxu0 0
  %4545 = vmatprep.subr.bf16.mxu0 0
  %4546 = vmatpush1.bf16.msra.mxu0 0
  %4547 = vmatprep.subr.bf16.mxu0 0
  %4548 = vmatpush1.bf16.msra.mxu0 0
  %4549 = vmatprep.subr.bf16.mxu0 0
  %4550 = vmatpush1.bf16.msra.mxu0 0
  %4551 = vmatprep.subr.bf16.mxu0 0
  %4552 = vmatpush1.bf16.msra.mxu0 0
  %4553 = vmatprep.subr.bf16.mxu0 0
  %4554 = vmatpush1.bf16.msra.mxu0 0
  %4555 = vmatprep.subr.bf16.mxu0 0
  %4556 = vmatpush1.bf16.msra.mxu0 0
  %4557 = vmatprep.mubr.bf16.mxu0 0
  %4558 = vmatmul.mubr.bf16.gmra.mrb[0].mxu0 %v4449
  %v4559 = vpop.f32.mrb[0].mxu0
  %v4560 = vadd.f32 0.0, %v4559
  %v4561 = vpop.f32.mrb[0].mxu0
  %v4562 = vadd.f32 0.0, %v4561
  %v4563 = vpop.f32.mrb[0].mxu0
  %v4564 = vadd.f32 0.0, %v4563
  %v4565 = vpop.f32.mrb[0].mxu0
  %v4566 = vadd.f32 0.0, %v4565
  %4567 = vdwg.mxu0
  %4568 = vmatprep.subr.bf16.mxu0 %v4416
  %4569 = vmatpush1.bf16.msra.mxu0 %v4415
  %4570 = vmatprep.subr.bf16.mxu0 %v4420
  %4571 = vmatpush1.bf16.msra.mxu0 %v4419
  %4572 = vmatprep.subr.bf16.mxu0 %v4424
  %4573 = vmatpush1.bf16.msra.mxu0 %v4423
  %4574 = vmatprep.subr.bf16.mxu0 %v4428
  %4575 = vmatpush1.bf16.msra.mxu0 %v4427
  %4576 = vmatprep.subr.bf16.mxu0 %v4432
  %4577 = vmatpush1.bf16.msra.mxu0 %v4431
  %4578 = vmatprep.subr.bf16.mxu0 %v4436
  %4579 = vmatpush1.bf16.msra.mxu0 %v4435
  %4580 = vmatprep.subr.bf16.mxu0 %v4440
  %4581 = vmatpush1.bf16.msra.mxu0 %v4439
  %4582 = vmatprep.subr.bf16.mxu0 %v4444
  %4583 = vmatpush1.bf16.msra.mxu0 %v4443
  %4584 = vmatprep.subr.bf16.mxu0 0
  %4585 = vmatpush1.bf16.msra.mxu0 0
  %4586 = vmatprep.subr.bf16.mxu0 0
  %4587 = vmatpush1.bf16.msra.mxu0 0
  %4588 = vmatprep.subr.bf16.mxu0 0
  %4589 = vmatpush1.bf16.msra.mxu0 0
  %4590 = vmatprep.subr.bf16.mxu0 0
  %4591 = vmatpush1.bf16.msra.mxu0 0
  %4592 = vmatprep.subr.bf16.mxu0 0
  %4593 = vmatpush1.bf16.msra.mxu0 0
  %4594 = vmatprep.subr.bf16.mxu0 0
  %4595 = vmatpush1.bf16.msra.mxu0 0
  %4596 = vmatprep.subr.bf16.mxu0 0
  %4597 = vmatpush1.bf16.msra.mxu0 0
  %4598 = vmatprep.subr.bf16.mxu0 0
  %4599 = vmatpush1.bf16.msra.mxu0 0
  %4600 = vmatprep.mubr.bf16.mxu0 0
  %4601 = vmatmul.mubr.bf16.gmra.mrb[0].mxu0 %v4414
  %v4602 = vpop.f32.mrb[0].mxu0
  %v4603 = vadd.f32 %v4517, %v4602
  %v4604 = vpop.f32.mrb[0].mxu0
  %v4605 = vadd.f32 %v4519, %v4604
  %v4606 = vpop.f32.mrb[0].mxu0
  %v4607 = vadd.f32 %v4521, %v4606
  %v4608 = vpop.f32.mrb[0].mxu0
  %v4609 = vadd.f32 %v4523, %v4608
  %4610 = vdwg.mxu0
  %4611 = vmatprep.subr.bf16.mxu0 %v4418
  %4612 = vmatpush1.bf16.msra.mxu0 %v4417
  %4613 = vmatprep.subr.bf16.mxu0 %v4422
  %4614 = vmatpush1.bf16.msra.mxu0 %v4421
  %4615 = vmatprep.subr.bf16.mxu0 %v4426
  %4616 = vmatpush1.bf16.msra.mxu0 %v4425
  %4617 = vmatprep.subr.bf16.mxu0 %v4430
  %4618 = vmatpush1.bf16.msra.mxu0 %v4429
  %4619 = vmatprep.subr.bf16.mxu0 %v4434
  %4620 = vmatpush1.bf16.msra.mxu0 %v4433
  %4621 = vmatprep.subr.bf16.mxu0 %v4438
  %4622 = vmatpush1.bf16.msra.mxu0 %v4437
  %4623 = vmatprep.subr.bf16.mxu0 %v4442
  %4624 = vmatpush1.bf16.msra.mxu0 %v4441
  %4625 = vmatprep.subr.bf16.mxu0 %v4446
  %4626 = vmatpush1.bf16.msra.mxu0 %v4445
  %4627 = vmatprep.subr.bf16.mxu0 0
  %4628 = vmatpush1.bf16.msra.mxu0 0
  %4629 = vmatprep.subr.bf16.mxu0 0
  %4630 = vmatpush1.bf16.msra.mxu0 0
  %4631 = vmatprep.subr.bf16.mxu0 0
  %4632 = vmatpush1.bf16.msra.mxu0 0
  %4633 = vmatprep.subr.bf16.mxu0 0
  %4634 = vmatpush1.bf16.msra.mxu0 0
  %4635 = vmatprep.subr.bf16.mxu0 0
  %4636 = vmatpush1.bf16.msra.mxu0 0
  %4637 = vmatprep.subr.bf16.mxu0 0
  %4638 = vmatpush1.bf16.msra.mxu0 0
  %4639 = vmatprep.subr.bf16.mxu0 0
  %4640 = vmatpush1.bf16.msra.mxu0 0
  %4641 = vmatprep.subr.bf16.mxu0 0
  %4642 = vmatpush1.bf16.msra.mxu0 0
  %4643 = vmatprep.mubr.bf16.mxu0 0
  %4644 = vmatmul.mubr.bf16.gmra.mrb[0].mxu0 %v4414
  %v4645 = vpop.f32.mrb[0].mxu0
  %v4646 = vadd.f32 %v4560, %v4645
  %v4647 = vpop.f32.mrb[0].mxu0
  %v4648 = vadd.f32 %v4562, %v4647
  %v4649 = vpop.f32.mrb[0].mxu0
  %v4650 = vadd.f32 %v4564, %v4649
  %v4651 = vpop.f32.mrb[0].mxu0
  %v4652 = vadd.f32 %v4566, %v4651
  %4653 = vdwg.mxu0
  %v4654 = vadd.f32 %v4603, %v637
  %v4655 = vadd.f32 %v4605, %v641
  %v4656 = vadd.f32 %v4646, %v645
  %v4657 = vadd.f32 %v4648, %v649
  %v4658 = vadd.f32 %v4607, %v637
  %v4659 = vadd.f32 %v4609, %v641
  %v4660 = vadd.f32 %v4650, %v645
  %v4661 = vadd.f32 %v4652, %v649
  %v4662 = vld [vmem:[%s1099] sm:$0xff]
  %v4663 = vld [vmem:[%s1099 + $0x8] sm:$0xff]
  %v4664 = vxor.u32 %v4654, 2147483648
  %v4665 = vxor.u32 %v4658, 2147483648
  %v4666 = vmul.f32 %v4664, 1.442695
  %v4667 = vpow.pop %v4666
  %v4668 = vmul.f32 %v4665, 1.442695
  %v4669 = vpow.pop %v4668
  %v4670 = vadd.f32 %v4667, 1.0
  %v4671 = vadd.f32 %v4669, 1.0
  %v4672 = vrcp.pop %v4670
  %v4673 = vmul.f32 1.0, %v4672
  %v4674 = vrcp.pop %v4671
  %v4675 = vmul.f32 1.0, %v4674
  %v4676 = vxor.u32 %v4655, 2147483648
  %v4677 = vxor.u32 %v4659, 2147483648
  %v4678 = vmul.f32 %v4676, 1.442695
  %v4679 = vpow.pop %v4678
  %v4680 = vmul.f32 %v4677, 1.442695
  %v4681 = vpow.pop %v4680
  %v4682 = vadd.f32 %v4679, 1.0
  %v4683 = vadd.f32 %v4681, 1.0
  %v4684 = vrcp.pop %v4682
  %v4685 = vmul.f32 1.0, %v4684
  %v4686 = vrcp.pop %v4683
  %v4687 = vmul.f32 1.0, %v4686
  %v4688 = vtanh.pop %v4656
  %v4689 = vtanh.pop %v4660
  %v4690 = vxor.u32 %v4657, 2147483648
  %v4691 = vxor.u32 %v4661, 2147483648
  %v4692 = vmul.f32 %v4690, 1.442695
  %v4693 = vpow.pop %v4692
  %v4694 = vmul.f32 %v4691, 1.442695
  %v4695 = vpow.pop %v4694
  %v4696 = vadd.f32 %v4693, 1.0
  %v4697 = vadd.f32 %v4695, 1.0
  %v4698 = vrcp.pop %v4696
  %v4699 = vmul.f32 1.0, %v4698
  %v4700 = vrcp.pop %v4697
  %v4701 = vmul.f32 1.0, %v4700
  %v4702 = vmul.f32 %v4685, %v4662
  %v4703 = vmul.f32 %v4687, %v4663
  %v4704 = vmul.f32 %v4673, %v4688
  %v4705 = vmul.f32 %v4675, %v4689
  %v4706 = vadd.f32 %v4702, %v4704
  %v4707 = vadd.f32 %v4703, %v4705
  %v4708 = vtanh.pop %v4706
  %v4709 = vtanh.pop %v4707
  %v4710 = vmul.f32 %v4699, %v4708
  %v4711 = vmul.f32 %v4701, %v4709
  %4712 = vst [vmem:[%s882] sm:$0xff] %v4710
  %4713 = vst [vmem:[%s882 + $0x8] sm:$0xff] %v4711
  %4714 = vst [vmem:[%s1099] sm:$0xff] %v4706
  %4715 = vst [vmem:[%s1099 + $0x8] sm:$0xff] %v4707
  %v4716 = vpack.c.bf16 %v4711, %v4710
  %v4718 = vunpack.c.l.b16 %v4716
  %v4719 = vunpack.c.h.b16 %v4716
  %v4720 = vpack.c.b16 %v4718, %v4718
  %v4721 = vpack.c.b16 %v4719, %v4719
  %s4724 = scalar_lea.vmem %s4, 56
  %4725 = vst [vmem:[%s4724] sm:$0xf] %v4720
  %4726 = vst [vmem:[%s4724 + $0x4] sm:$0xf] %v4721
  // Predicated region
  $region51: #{decoder_forward.4} parent=0 // pred_check
    _
  $region52: #{decoder_forward.4} parent=0 // pred_check_branch
    %4728 = sbr.rel (0) target = $region54
  $region53: #{decoder_forward.4} parent=0 // pred_region
    _
  $region54: #{decoder_forward.4} parent=0 // pred_fallthru
    _
  // Predicated region
  $region55: #{decoder_forward.4} parent=0 // pred_check
    _
  $region56: #{decoder_forward.4} parent=0 // pred_check_branch
    %4730 = sbr.rel (0) target = $region58
  $region57: #{decoder_forward.4} parent=0 // pred_region
    _
  $region58: #{decoder_forward.4} parent=0 // pred_fallthru
    _
  %4731 = vsyncmov [#allocation6]
  %s4732 = vpop.sfrf %4731
  %p4733 = scmp.eq.s32.totalorder %s4732, 0
  %p4734 = pneg %p4733
  %4736 = shalt.err (%p4734)
  %s4737 = scalar_lea.sflag [#allocation6], 1
  %4738 = vsyncmov %s4737
  %s4739 = vpop.sfrf %4738
  %p4740 = scmp.eq.s32.totalorder %s4739, 0
  %p4741 = pneg %p4740
  %4743 = shalt.err (%p4741)

</llo_original>
